<compile_context>
chip_gen: v6e
topology: v6e:2x2x1
jax: 0.10.0
libtpu: 0.0.40
codegen_flags: <defaults>
</compile_context>

<pallas_src>
import math
from functools import partial

import jax
import jax.numpy as jnp
from jax.experimental import pallas as pl
from jax.experimental.pallas import tpu as pltpu

LN_EPS = 1e-5  # PyTorch nn.LayerNorm default


# ----------------------------- fused Pallas kernel -----------------------------

def _make_fused_kernel(*, num_heads, num_layers, prefix_len, emit_attn, sqrt_h):
    def kernel(*refs):
        it = iter(refs)
        x_ref, enc_ref = next(it), next(it)
        cache_ref = next(it) if prefix_len > 0 else None
        emb_w_ref, emb_b_ref, pos_ref = next(it), next(it), next(it)
        wq1_ref, wkv1_ref, wo1_ref = next(it), next(it), next(it)
        wq2_ref, wkv2_ref, wo2_ref = next(it), next(it), next(it)
        ffn_w1_ref, ffn_b1_ref = next(it), next(it)
        ffn_w2_ref, ffn_b2_ref = next(it), next(it)
        norms_ref, out_w_ref, out_b_ref = next(it), next(it), next(it)
        logits_ref, hlay_ref = next(it), next(it)
        attn1_ref = next(it) if emit_attn else None
        attn2_ref = next(it) if emit_attn else None

        H = emb_w_ref.shape[1]
        d = H // num_heads
        att_scale = 1.0 / math.sqrt(d)

        def mha(q_in, kv_in, wq, wkv, wo, attn_ref, li):
            # Single Q and fused K|V projections, head-batched attention, then
            # one output-projection matmul on the merged heads.
            q = jnp.dot(q_in, wq, preferred_element_type=jnp.float32)      # [Sq, H]
            kvp = jnp.dot(kv_in, wkv, preferred_element_type=jnp.float32)  # [Skv, 2H]
            qh = jnp.stack([q[:, h * d:(h + 1) * d]
                            for h in range(num_heads)], axis=0)            # [nh,Sq,d]
            kh = jnp.stack([kvp[:, h * d:(h + 1) * d]
                            for h in range(num_heads)], axis=0)            # [nh,Skv,d]
            vh = jnp.stack([kvp[:, H + h * d:H + (h + 1) * d]
                            for h in range(num_heads)], axis=0)            # [nh,Skv,d]
            s = jnp.einsum("hqd,hkd->hqk", qh, kh,
                           preferred_element_type=jnp.float32) * att_scale
            e = jnp.exp(s - jnp.max(s, axis=-1, keepdims=True))
            # Exact divide: these probabilities are exported as outputs.
            p = e / jnp.sum(e, axis=-1, keepdims=True)                     # [nh,Sq,Skv]
            if attn_ref is not None:
                attn_ref[li] = p.astype(attn_ref.dtype)                    # one store
            oh = jnp.einsum("hqk,hkd->hqd", p, vh,
                            preferred_element_type=jnp.float32)            # [nh,Sq,d]
            o = jnp.concatenate([oh[h] for h in range(num_heads)], axis=1)  # [Sq, H]
            return jnp.dot(o, wo, preferred_element_type=jnp.float32)

        def add_norm(resid, y, g, b):
            # AddNorm: LayerNorm(dropout(Y) + X); dropout is identity in eval mode.
            sm = resid + y
            mean = jnp.mean(sm, axis=-1, keepdims=True)
            var = jnp.mean((sm - mean) ** 2, axis=-1, keepdims=True)
            return (sm - mean) * jax.lax.rsqrt(var + LN_EPS) * g + b

        # Embedding Linear + sqrt(H) scale + positional encoding.
        x = x_ref[0].astype(jnp.float32)                                   # [S, V]
        enc = enc_ref[0].astype(jnp.float32)                               # [Se, H]
        h = (jnp.dot(x, emb_w_ref[...], preferred_element_type=jnp.float32)
             + emb_b_ref[...]) * sqrt_h + pos_ref[...]                     # [S, H]

        for li in range(num_layers):
            # layer input is what gets appended to the KV cache
            hlay_ref[li, 0] = h.astype(hlay_ref.dtype)
            if prefix_len > 0:
                kv = jnp.concatenate(
                    [cache_ref[li, 0].astype(jnp.float32), h], axis=0)     # [Sp+S, H]
            else:
                kv = h
            ln = norms_ref[li]                                             # [6, H]
            x2 = mha(h, kv, wq1_ref[li], wkv1_ref[li], wo1_ref[li], attn1_ref, li)
            y = add_norm(h, x2, ln[0:1], ln[1:2])
            y2 = mha(y, enc, wq2_ref[li], wkv2_ref[li], wo2_ref[li], attn2_ref, li)
            z = add_norm(y, y2, ln[2:3], ln[3:4])
            hid = jnp.maximum(
                jnp.dot(z, ffn_w1_ref[li], preferred_element_type=jnp.float32)
                + ffn_b1_ref[li], 0.0)
            f = (jnp.dot(hid, ffn_w2_ref[li], preferred_element_type=jnp.float32)
                 + ffn_b2_ref[li])
            h = add_norm(z, f, ln[4:5], ln[5:6])

        # Final vocab projection, last time step only (== linear(X)[:, -1, :]).
        last = h.shape[0] - 1
        logits_ref[0] = (jnp.dot(h[last:last + 1, :], out_w_ref[...],
                                 preferred_element_type=jnp.float32)
                         + out_b_ref[...]).astype(logits_ref.dtype)

    return kernel


def fused_decoder_forward(params, X, enc_outputs, kv_prev, *, num_heads,
                          emit_attn=True):
    B, S, V = X.shape
    H = params["emb_w"].shape[1]
    L = params["wq1"].shape[0]
    F = params["ffn_w1"].shape[2]
    Se = enc_outputs.shape[1]
    Sp = 0 if kv_prev is None else kv_prev.shape[2]
    Skv = Sp + S
    nh = num_heads

    def const_spec(shape):
        zeros = (0,) * len(shape)
        return pl.BlockSpec(shape, lambda b: zeros)

    in_specs = [pl.BlockSpec((1, S, V), lambda b: (b, 0, 0)),
                pl.BlockSpec((1, Se, H), lambda b: (b, 0, 0))]
    inputs = [X, enc_outputs]
    if Sp > 0:
        in_specs.append(pl.BlockSpec((L, 1, Sp, H), lambda b: (0, b, 0, 0)))
        inputs.append(kv_prev)
    in_specs += [const_spec((V, H)), const_spec((1, H)), const_spec((S, H)),
                 const_spec((L, H, H)), const_spec((L, H, 2 * H)), const_spec((L, H, H)),
                 const_spec((L, H, H)), const_spec((L, H, 2 * H)), const_spec((L, H, H)),
                 const_spec((L, H, F)), const_spec((L, 1, F)),
                 const_spec((L, F, H)), const_spec((L, 1, H)),
                 const_spec((L, 6, H)), const_spec((H, V)), const_spec((1, V))]
    inputs += [params["emb_w"], params["emb_b"], params["P"][0, :S, :],
               params["wq1"], params["wkv1"], params["wo1"],
               params["wq2"], params["wkv2"], params["wo2"],
               params["ffn_w1"], params["ffn_b1"], params["ffn_w2"], params["ffn_b2"],
               params["norms"], params["out_w"], params["out_b"]]

    out_specs = [pl.BlockSpec((1, 1, V), lambda b: (b, 0, 0)),
                 pl.BlockSpec((L, 1, S, H), lambda b: (0, b, 0, 0))]
    out_shape = [jax.ShapeDtypeStruct((B, 1, V), X.dtype),
                 jax.ShapeDtypeStruct((L, B, S, H), X.dtype)]
    if emit_attn:
        # emitted directly in the [B*nh, S, Skv] layout the caller wants
        out_specs += [pl.BlockSpec((L, nh, S, Skv), lambda b: (0, b, 0, 0)),
                      pl.BlockSpec((L, nh, S, Se), lambda b: (0, b, 0, 0))]
        out_shape += [jax.ShapeDtypeStruct((L, B * nh, S, Skv), jnp.float32),
                      jax.ShapeDtypeStruct((L, B * nh, S, Se), jnp.float32)]

    kern = _make_fused_kernel(num_heads=nh, num_layers=L, prefix_len=Sp,
                              emit_attn=emit_attn, sqrt_h=math.sqrt(H))
    return pl.pallas_call(
        kern,
        grid=(B,),
        in_specs=in_specs,
        out_specs=tuple(out_specs),
        out_shape=tuple(out_shape),
        compiler_params=pltpu.CompilerParams(dimension_semantics=("parallel",)),
    )(*inputs)


# ------------------------------ JAX glue code -------------------------------

def transformer_decoder_forward(params, X, state, *, num_heads, emit_attn=True):
    enc_outputs, enc_valid_lens, caches = state
    B = X.shape[0]
    L = params["wq1"].shape[0]

    # Reference semantics: cache is None on the first call, else grows by S each call.
    if all(c is None for c in caches):
        kv_prev = None
    else:
        kv_prev = jnp.stack(list(caches), axis=0)            # [L, B, Sp, H]

    outs = fused_decoder_forward(params, X, enc_outputs, kv_prev,
                                 num_heads=num_heads, emit_attn=emit_attn)
    if emit_attn:
        logits3, h_layers, a1, a2 = outs
        attn_weights = [[a1[i] for i in range(L)], [a2[i] for i in range(L)]]
    else:
        logits3, h_layers = outs
        attn_weights = [[None] * L, [None] * L]
    logits = logits3.reshape(B, -1)

    new_caches = []
    for i in range(L):
        if caches[i] is None:
            new_caches.append(h_layers[i])
        else:
            # TODO(synk): replace with a preallocated cache + input_output_aliases
            # appended in-kernel via pl.ds for O(T) autoregressive decode.
            new_caches.append(jnp.concatenate([caches[i], h_layers[i]], axis=1))
    return logits, (enc_outputs, enc_valid_lens, new_caches), attn_weights


# ---------------------------- deterministic params --------------------------

def make_positional_encoding(max_len, num_hiddens):
    pos = jnp.arange(max_len, dtype=jnp.float32)[:, None]
    freqs = jnp.power(10000.0,
                      jnp.arange(0, num_hiddens, 2, dtype=jnp.float32) / num_hiddens)
    ang = pos / freqs
    P = jnp.zeros((1, max_len, num_hiddens), jnp.float32)
    P = P.at[0, :, 0::2].set(jnp.sin(ang))
    P = P.at[0, :, 1::2].set(jnp.cos(ang))
    return P


def init_params(key, vocab_size, num_hiddens, ffn_num_hiddens, num_layers, max_len=64):
    H, F, L = num_hiddens, ffn_num_hiddens, num_layers

    def dense(k, fan_in, fan_out, bias=True):
        kw, kb = jax.random.split(k)
        w = jax.random.normal(kw, (fan_in, fan_out), jnp.float32) * 0.05
        b = (jax.random.normal(kb, (1, fan_out), jnp.float32) * 0.05) if bias else None
        return w, b

    keys = jax.random.split(key, 2 + L)
    params = {}
    params["emb_w"], params["emb_b"] = dense(keys[0], vocab_size, H)
    params["out_w"], params["out_b"] = dense(keys[1], H, vocab_size)
    params["P"] = make_positional_encoding(max_len, H)

    stacks = {k: [] for k in ["wq1", "wkv1", "wo1", "wq2", "wkv2", "wo2",
                              "ffn_w1", "ffn_b1", "ffn_w2", "ffn_b2"]}
    for li in range(L):
        bk = jax.random.split(keys[2 + li], 8)
        stacks["wq1"].append(dense(bk[0], H, H, bias=False)[0])      # bias=False (d2l MHA)
        stacks["wkv1"].append(dense(bk[1], H, 2 * H, bias=False)[0])  # fused K|V
        stacks["wo1"].append(dense(bk[2], H, H, bias=False)[0])
        stacks["wq2"].append(dense(bk[3], H, H, bias=False)[0])
        stacks["wkv2"].append(dense(bk[4], H, 2 * H, bias=False)[0])
        stacks["wo2"].append(dense(bk[5], H, H, bias=False)[0])
        w1, b1 = dense(bk[6], H, F)
        w2, b2 = dense(bk[7], F, H)
        stacks["ffn_w1"].append(w1); stacks["ffn_b1"].append(b1)
        stacks["ffn_w2"].append(w2); stacks["ffn_b2"].append(b2)
    for k, v in stacks.items():
        params[k] = jnp.stack(v, axis=0)

    # Packed LayerNorm params: rows = (ln1_g, ln1_b, ln2_g, ln2_b, ln3_g, ln3_b)
    one_layer = jnp.stack([jnp.ones((H,), jnp.float32),
                           jnp.zeros((H,), jnp.float32)] * 3, axis=0)   # [6, H]
    params["norms"] = jnp.tile(one_layer[None], (L, 1, 1))              # [L, 6, H]
    return params


# ----------------------------------- main -----------------------------------

if __name__ == "__main__":
    vocab_size = 16
    num_hiddens = 32
    ffn_num_hiddens = 64
    num_heads = 4
    num_layers = 2
    batch, seq, enc_seq = 2, 8, 8

    key = jax.random.PRNGKey(0)
    kp, kx, ke = jax.random.split(key, 3)
    params = init_params(kp, vocab_size, num_hiddens, ffn_num_hiddens, num_layers)

    X = jax.random.normal(kx, (batch, seq, vocab_size), jnp.float32)
    enc_outputs = jax.random.normal(ke, (batch, enc_seq, num_hiddens), jnp.float32)

    # init_state equivalent: [enc_outputs, enc_valid_lens, [None] * num_layers]
    state = (enc_outputs, None, [None] * num_layers)

    fwd = jax.jit(partial(transformer_decoder_forward, num_heads=num_heads))
    out, state_out, attn_w = fwd(params, X, state)
    jax.block_until_ready(out)
    jax.block_until_ready(state_out[2])

    assert out.shape == (batch, vocab_size)
    assert state_out[2][0].shape == (batch, seq, num_hiddens)          # per-layer KV cache
    assert attn_w[0][0].shape == (batch * num_heads, seq, seq)         # self-attn weights
    assert attn_w[1][0].shape == (batch * num_heads, seq, enc_seq)     # cross-attn weights
    assert bool(jnp.all(jnp.isfinite(out)))
    # exact-divide softmax: exported attention rows sum to 1
    assert bool(jnp.allclose(attn_w[0][0].sum(-1), 1.0, atol=1e-5))
    print("KERNEL_OK")
</pallas_src>

<mosaic_0001>
module attributes {stable_mosaic.version = 11 : i64} {
  func.func @kernel(%arg0: i32, %arg1: memref<1x8x16xf32, #tpu.memory_space<vmem>>, %arg2: memref<1x8x32xf32, #tpu.memory_space<vmem>>, %arg3: memref<16x32xf32, #tpu.memory_space<vmem>>, %arg4: memref<1x32xf32, #tpu.memory_space<vmem>>, %arg5: memref<8x32xf32, #tpu.memory_space<vmem>>, %arg6: memref<2x32x32xf32, #tpu.memory_space<vmem>>, %arg7: memref<2x32x64xf32, #tpu.memory_space<vmem>>, %arg8: memref<2x32x32xf32, #tpu.memory_space<vmem>>, %arg9: memref<2x32x32xf32, #tpu.memory_space<vmem>>, %arg10: memref<2x32x64xf32, #tpu.memory_space<vmem>>, %arg11: memref<2x32x32xf32, #tpu.memory_space<vmem>>, %arg12: memref<2x32x64xf32, #tpu.memory_space<vmem>>, %arg13: memref<2x1x64xf32, #tpu.memory_space<vmem>>, %arg14: memref<2x64x32xf32, #tpu.memory_space<vmem>>, %arg15: memref<2x1x32xf32, #tpu.memory_space<vmem>>, %arg16: memref<2x6x32xf32, #tpu.memory_space<vmem>>, %arg17: memref<32x16xf32, #tpu.memory_space<vmem>>, %arg18: memref<1x16xf32, #tpu.memory_space<vmem>>, %arg19: memref<1x1x16xf32, #tpu.memory_space<vmem>>, %arg20: memref<2x1x8x32xf32, #tpu.memory_space<vmem>>, %arg21: memref<2x4x8x8xf32, #tpu.memory_space<vmem>>, %arg22: memref<2x4x8x8xf32, #tpu.memory_space<vmem>>) attributes {dimension_semantics = [#tpu.dimension_semantics<parallel>], iteration_bounds = array<i64: 2>, scalar_prefetch = 0 : i64, scratch_operands = 0 : i64, tpu.core_type = #tpu.core_type<tc>, window_params = [{transform_indices = @transform_0, window_bounds = array<i64: 1, 8, 16>}, {transform_indices = @transform_1, window_bounds = array<i64: 1, 8, 32>}, {pipeline_mode = #tpu.pipeline_mode<synchronous>, transform_indices = @transform_2, window_bounds = array<i64: 16, 32>}, {pipeline_mode = #tpu.pipeline_mode<synchronous>, transform_indices = @transform_3, window_bounds = array<i64: 1, 32>}, {pipeline_mode = #tpu.pipeline_mode<synchronous>, transform_indices = @transform_4, window_bounds = array<i64: 8, 32>}, {pipeline_mode = #tpu.pipeline_mode<synchronous>, transform_indices = @transform_5, window_bounds = array<i64: 2, 32, 32>}, {pipeline_mode = #tpu.pipeline_mode<synchronous>, transform_indices = @transform_6, window_bounds = array<i64: 2, 32, 64>}, {pipeline_mode = #tpu.pipeline_mode<synchronous>, transform_indices = @transform_7, window_bounds = array<i64: 2, 32, 32>}, {pipeline_mode = #tpu.pipeline_mode<synchronous>, transform_indices = @transform_8, window_bounds = array<i64: 2, 32, 32>}, {pipeline_mode = #tpu.pipeline_mode<synchronous>, transform_indices = @transform_9, window_bounds = array<i64: 2, 32, 64>}, {pipeline_mode = #tpu.pipeline_mode<synchronous>, transform_indices = @transform_10, window_bounds = array<i64: 2, 32, 32>}, {pipeline_mode = #tpu.pipeline_mode<synchronous>, transform_indices = @transform_11, window_bounds = array<i64: 2, 32, 64>}, {pipeline_mode = #tpu.pipeline_mode<synchronous>, transform_indices = @transform_12, window_bounds = array<i64: 2, 1, 64>}, {pipeline_mode = #tpu.pipeline_mode<synchronous>, transform_indices = @transform_13, window_bounds = array<i64: 2, 64, 32>}, {pipeline_mode = #tpu.pipeline_mode<synchronous>, transform_indices = @transform_14, window_bounds = array<i64: 2, 1, 32>}, {pipeline_mode = #tpu.pipeline_mode<synchronous>, transform_indices = @transform_15, window_bounds = array<i64: 2, 6, 32>}, {pipeline_mode = #tpu.pipeline_mode<synchronous>, transform_indices = @transform_16, window_bounds = array<i64: 32, 16>}, {pipeline_mode = #tpu.pipeline_mode<synchronous>, transform_indices = @transform_17, window_bounds = array<i64: 1, 16>}, {transform_indices = @transform_18, window_bounds = array<i64: 1, 1, 16>}, {transform_indices = @transform_19, window_bounds = array<i64: 2, 1, 8, 32>}, {transform_indices = @transform_20, window_bounds = array<i64: 2, 4, 8, 8>}, {transform_indices = @transform_21, window_bounds = array<i64: 2, 4, 8, 8>}]} {
    %c0 = arith.constant 0 : index
    %c0_0 = arith.constant 0 : index
    %c0_1 = arith.constant 0 : index
    %0 = vector.load %arg1[%c0, %c0_0, %c0_1] : memref<1x8x16xf32, #tpu.memory_space<vmem>>, vector<1x8x16xf32>
    %1 = vector.shape_cast %0 : vector<1x8x16xf32> to vector<8x16xf32>
    %c0_2 = arith.constant 0 : index
    %c0_3 = arith.constant 0 : index
    %c0_4 = arith.constant 0 : index
    %2 = vector.load %arg2[%c0_2, %c0_3, %c0_4] : memref<1x8x32xf32, #tpu.memory_space<vmem>>, vector<1x8x32xf32>
    %3 = vector.shape_cast %2 : vector<1x8x32xf32> to vector<8x32xf32>
    %c0_5 = arith.constant 0 : index
    %c0_6 = arith.constant 0 : index
    %4 = vector.load %arg3[%c0_5, %c0_6] : memref<16x32xf32, #tpu.memory_space<vmem>>, vector<16x32xf32>
    %cst = arith.constant dense<0.000000e+00> : vector<8x32xf32>
    %5 = tpu.matmul %1, %4, %cst {dimension_numbers = #tpu.dot_dimension_numbers<[1], [0], [0], [1], [0, 0, 1, 1], [], []>} : vector<8x16xf32>, vector<16x32xf32>, vector<8x32xf32> -> vector<8x32xf32>
    %c0_7 = arith.constant 0 : index
    %c0_8 = arith.constant 0 : index
    %6 = vector.load %arg4[%c0_7, %c0_8] : memref<1x32xf32, #tpu.memory_space<vmem>>, vector<1x32xf32>
    %7 = vector.broadcast %6 : vector<1x32xf32> to vector<8x32xf32>
    %8 = arith.addf %5, %7 : vector<8x32xf32>
    %cst_9 = arith.constant 5.65685415 : f32
    %9 = vector.broadcast %cst_9 : f32 to vector<8x32xf32>
    %10 = arith.mulf %8, %9 : vector<8x32xf32>
    %c0_10 = arith.constant 0 : index
    %c0_11 = arith.constant 0 : index
    %11 = vector.load %arg5[%c0_10, %c0_11] : memref<8x32xf32, #tpu.memory_space<vmem>>, vector<8x32xf32>
    %12 = arith.addf %10, %11 : vector<8x32xf32>
    %c0_12 = arith.constant 0 : index
    %c0_13 = arith.constant 0 : index
    %c0_14 = arith.constant 0 : index
    %c0_15 = arith.constant 0 : index
    %13 = vector.load %arg20[%c0_12, %c0_13, %c0_14, %c0_15] : memref<2x1x8x32xf32, #tpu.memory_space<vmem>>, vector<1x1x8x32xf32>
    %14 = vector.shape_cast %13 : vector<1x1x8x32xf32> to vector<8x32xf32>
    %15 = vector.shape_cast %12 : vector<8x32xf32> to vector<1x1x8x32xf32>
    tpu.vector_store %arg20[%c0_12, %c0_13, %c0_14, %c0_15], %15 {strides = array<i32>} : memref<2x1x8x32xf32, #tpu.memory_space<vmem>>, vector<1x1x8x32xf32>,
    %c0_16 = arith.constant 0 : index
    %c0_17 = arith.constant 0 : index
    %c0_18 = arith.constant 0 : index
    %16 = vector.load %arg16[%c0_16, %c0_17, %c0_18] : memref<2x6x32xf32, #tpu.memory_space<vmem>>, vector<1x6x32xf32>
    %17 = vector.shape_cast %16 : vector<1x6x32xf32> to vector<6x32xf32>
    %c0_19 = arith.constant 0 : index
    %c0_20 = arith.constant 0 : index
    %c0_21 = arith.constant 0 : index
    %18 = vector.load %arg6[%c0_19, %c0_20, %c0_21] : memref<2x32x32xf32, #tpu.memory_space<vmem>>, vector<1x32x32xf32>
    %19 = vector.shape_cast %18 : vector<1x32x32xf32> to vector<32x32xf32>
    %c0_22 = arith.constant 0 : index
    %c0_23 = arith.constant 0 : index
    %c0_24 = arith.constant 0 : index
    %20 = vector.load %arg7[%c0_22, %c0_23, %c0_24] : memref<2x32x64xf32, #tpu.memory_space<vmem>>, vector<1x32x64xf32>
    %21 = vector.shape_cast %20 : vector<1x32x64xf32> to vector<32x64xf32>
    %c0_25 = arith.constant 0 : index
    %c0_26 = arith.constant 0 : index
    %c0_27 = arith.constant 0 : index
    %22 = vector.load %arg8[%c0_25, %c0_26, %c0_27] : memref<2x32x32xf32, #tpu.memory_space<vmem>>, vector<1x32x32xf32>
    %23 = vector.shape_cast %22 : vector<1x32x32xf32> to vector<32x32xf32>
    %cst_28 = arith.constant dense<0.000000e+00> : vector<8x32xf32>
    %24 = tpu.matmul %12, %19, %cst_28 {dimension_numbers = #tpu.dot_dimension_numbers<[1], [0], [0], [1], [0, 0, 1, 1], [], []>} : vector<8x32xf32>, vector<32x32xf32>, vector<8x32xf32> -> vector<8x32xf32>
    %cst_29 = arith.constant dense<0.000000e+00> : vector<8x64xf32>
    %25 = tpu.matmul %12, %21, %cst_29 {dimension_numbers = #tpu.dot_dimension_numbers<[1], [0], [0], [1], [0, 0, 1, 1], [], []>} : vector<8x32xf32>, vector<32x64xf32>, vector<8x64xf32> -> vector<8x64xf32>
    %26 = vector.extract_strided_slice %24 {offsets = [0, 0], sizes = [8, 8], strides = [1, 1]} : vector<8x32xf32> to vector<8x8xf32>
    %27 = vector.extract_strided_slice %24 {offsets = [0, 8], sizes = [8, 8], strides = [1, 1]} : vector<8x32xf32> to vector<8x8xf32>
    %28 = vector.extract_strided_slice %24 {offsets = [0, 16], sizes = [8, 8], strides = [1, 1]} : vector<8x32xf32> to vector<8x8xf32>
    %29 = vector.extract_strided_slice %24 {offsets = [0, 24], sizes = [8, 8], strides = [1, 1]} : vector<8x32xf32> to vector<8x8xf32>
    %30 = vector.shape_cast %26 : vector<8x8xf32> to vector<1x8x8xf32>
    %31 = vector.shape_cast %27 : vector<8x8xf32> to vector<1x8x8xf32>
    %32 = vector.shape_cast %28 : vector<8x8xf32> to vector<1x8x8xf32>
    %33 = vector.shape_cast %29 : vector<8x8xf32> to vector<1x8x8xf32>
    %34 = tpu.concatenate %30, %31, %32, %33 in 0 : vector<1x8x8xf32>, vector<1x8x8xf32>, vector<1x8x8xf32>, vector<1x8x8xf32> -> vector<4x8x8xf32>
    %35 = vector.extract_strided_slice %25 {offsets = [0, 0], sizes = [8, 8], strides = [1, 1]} : vector<8x64xf32> to vector<8x8xf32>
    %36 = vector.extract_strided_slice %25 {offsets = [0, 8], sizes = [8, 8], strides = [1, 1]} : vector<8x64xf32> to vector<8x8xf32>
    %37 = vector.extract_strided_slice %25 {offsets = [0, 16], sizes = [8, 8], strides = [1, 1]} : vector<8x64xf32> to vector<8x8xf32>
    %38 = vector.extract_strided_slice %25 {offsets = [0, 24], sizes = [8, 8], strides = [1, 1]} : vector<8x64xf32> to vector<8x8xf32>
    %39 = vector.shape_cast %35 : vector<8x8xf32> to vector<1x8x8xf32>
    %40 = vector.shape_cast %36 : vector<8x8xf32> to vector<1x8x8xf32>
    %41 = vector.shape_cast %37 : vector<8x8xf32> to vector<1x8x8xf32>
    %42 = vector.shape_cast %38 : vector<8x8xf32> to vector<1x8x8xf32>
    %43 = tpu.concatenate %39, %40, %41, %42 in 0 : vector<1x8x8xf32>, vector<1x8x8xf32>, vector<1x8x8xf32>, vector<1x8x8xf32> -> vector<4x8x8xf32>
    %44 = vector.extract_strided_slice %25 {offsets = [0, 32], sizes = [8, 8], strides = [1, 1]} : vector<8x64xf32> to vector<8x8xf32>
    %45 = vector.extract_strided_slice %25 {offsets = [0, 40], sizes = [8, 8], strides = [1, 1]} : vector<8x64xf32> to vector<8x8xf32>
    %46 = vector.extract_strided_slice %25 {offsets = [0, 48], sizes = [8, 8], strides = [1, 1]} : vector<8x64xf32> to vector<8x8xf32>
    %47 = vector.extract_strided_slice %25 {offsets = [0, 56], sizes = [8, 8], strides = [1, 1]} : vector<8x64xf32> to vector<8x8xf32>
    %48 = vector.shape_cast %44 : vector<8x8xf32> to vector<1x8x8xf32>
    %49 = vector.shape_cast %45 : vector<8x8xf32> to vector<1x8x8xf32>
    %50 = vector.shape_cast %46 : vector<8x8xf32> to vector<1x8x8xf32>
    %51 = vector.shape_cast %47 : vector<8x8xf32> to vector<1x8x8xf32>
    %52 = tpu.concatenate %48, %49, %50, %51 in 0 : vector<1x8x8xf32>, vector<1x8x8xf32>, vector<1x8x8xf32>, vector<1x8x8xf32> -> vector<4x8x8xf32>
    "tpu.trace_start"() <{level = 10 : i32, message = "hqd,hkd->hqk"}> : () -> ()
    %cst_30 = arith.constant dense<0.000000e+00> : vector<4x8x8xf32>
    %53 = tpu.matmul %34, %43, %cst_30 {dimension_numbers = #tpu.dot_dimension_numbers<[2], [2], [1], [1], [0, 0, 0, 1, 1, 1], [0], [0]>} : vector<4x8x8xf32>, vector<4x8x8xf32>, vector<4x8x8xf32> -> vector<4x8x8xf32>
    "tpu.trace_stop"() : () -> ()
    %cst_31 = arith.constant 0.353553385 : f32
    %54 = vector.broadcast %cst_31 : f32 to vector<4x8x8xf32>
    %55 = arith.mulf %53, %54 : vector<4x8x8xf32>
    %cst_32 = arith.constant dense<0xFF800000> : vector<4x8xf32>
    %56 = vector.multi_reduction <maximumf>, %55, %cst_32 [2] : vector<4x8x8xf32> to vector<4x8xf32>
    %57 = vector.shape_cast %56 : vector<4x8xf32> to vector<4x8x1xf32>
    %58 = vector.broadcast %57 : vector<4x8x1xf32> to vector<4x8x8xf32>
    %59 = arith.subf %55, %58 : vector<4x8x8xf32>
    %60 = math.exp %59 : vector<4x8x8xf32>
    %cst_33 = arith.constant dense<0.000000e+00> : vector<4x8xf32>
    %61 = vector.multi_reduction <add>, %60, %cst_33 [2] : vector<4x8x8xf32> to vector<4x8xf32>
    %62 = vector.shape_cast %61 : vector<4x8xf32> to vector<4x8x1xf32>
    %63 = vector.broadcast %62 : vector<4x8x1xf32> to vector<4x8x8xf32>
    %64 = arith.divf %60, %63 : vector<4x8x8xf32>
    %c0_34 = arith.constant 0 : index
    %c0_35 = arith.constant 0 : index
    %c0_36 = arith.constant 0 : index
    %c0_37 = arith.constant 0 : index
    %65 = vector.load %arg21[%c0_34, %c0_35, %c0_36, %c0_37] : memref<2x4x8x8xf32, #tpu.memory_space<vmem>>, vector<1x4x8x8xf32>
    %66 = vector.shape_cast %65 : vector<1x4x8x8xf32> to vector<4x8x8xf32>
    %67 = vector.shape_cast %64 : vector<4x8x8xf32> to vector<1x4x8x8xf32>
    tpu.vector_store %arg21[%c0_34, %c0_35, %c0_36, %c0_37], %67 {strides = array<i32>} : memref<2x4x8x8xf32, #tpu.memory_space<vmem>>, vector<1x4x8x8xf32>,
    "tpu.trace_start"() <{level = 10 : i32, message = "hqk,hkd->hqd"}> : () -> ()
    %cst_38 = arith.constant dense<0.000000e+00> : vector<4x8x8xf32>
    %68 = tpu.matmul %64, %52, %cst_38 {dimension_numbers = #tpu.dot_dimension_numbers<[2], [1], [1], [2], [0, 0, 0, 1, 1, 2], [0], [0]>} : vector<4x8x8xf32>, vector<4x8x8xf32>, vector<4x8x8xf32> -> vector<4x8x8xf32>
    "tpu.trace_stop"() : () -> ()
    %69 = vector.extract_strided_slice %68 {offsets = [0, 0, 0], sizes = [1, 8, 8], strides = [1, 1, 1]} : vector<4x8x8xf32> to vector<1x8x8xf32>
    %70 = vector.shape_cast %69 : vector<1x8x8xf32> to vector<8x8xf32>
    %71 = vector.extract_strided_slice %68 {offsets = [1, 0, 0], sizes = [1, 8, 8], strides = [1, 1, 1]} : vector<4x8x8xf32> to vector<1x8x8xf32>
    %72 = vector.shape_cast %71 : vector<1x8x8xf32> to vector<8x8xf32>
    %73 = vector.extract_strided_slice %68 {offsets = [2, 0, 0], sizes = [1, 8, 8], strides = [1, 1, 1]} : vector<4x8x8xf32> to vector<1x8x8xf32>
    %74 = vector.shape_cast %73 : vector<1x8x8xf32> to vector<8x8xf32>
    %75 = vector.extract_strided_slice %68 {offsets = [3, 0, 0], sizes = [1, 8, 8], strides = [1, 1, 1]} : vector<4x8x8xf32> to vector<1x8x8xf32>
    %76 = vector.shape_cast %75 : vector<1x8x8xf32> to vector<8x8xf32>
    %77 = tpu.concatenate %70, %72, %74, %76 in 1 : vector<8x8xf32>, vector<8x8xf32>, vector<8x8xf32>, vector<8x8xf32> -> vector<8x32xf32>
    %cst_39 = arith.constant dense<0.000000e+00> : vector<8x32xf32>
    %78 = tpu.matmul %77, %23, %cst_39 {dimension_numbers = #tpu.dot_dimension_numbers<[1], [0], [0], [1], [0, 0, 1, 1], [], []>} : vector<8x32xf32>, vector<32x32xf32>, vector<8x32xf32> -> vector<8x32xf32>
    %79 = vector.extract_strided_slice %17 {offsets = [0, 0], sizes = [1, 32], strides = [1, 1]} : vector<6x32xf32> to vector<1x32xf32>
    %80 = vector.extract_strided_slice %17 {offsets = [1, 0], sizes = [1, 32], strides = [1, 1]} : vector<6x32xf32> to vector<1x32xf32>
    %81 = arith.addf %12, %78 : vector<8x32xf32>
    %cst_40 = arith.constant dense<0.000000e+00> : vector<8xf32>
    %82 = vector.multi_reduction <add>, %81, %cst_40 [1] : vector<8x32xf32> to vector<8xf32>
    %83 = vector.shape_cast %82 : vector<8xf32> to vector<8x1xf32>
    %cst_41 = arith.constant 3.200000e+01 : f32
    %84 = vector.broadcast %cst_41 : f32 to vector<8x1xf32>
    %85 = arith.divf %83, %84 : vector<8x1xf32>
    %86 = vector.broadcast %85 : vector<8x1xf32> to vector<8x32xf32>
    %87 = arith.subf %81, %86 : vector<8x32xf32>
    %88 = arith.mulf %87, %87 : vector<8x32xf32>
    %cst_42 = arith.constant dense<0.000000e+00> : vector<8xf32>
    %89 = vector.multi_reduction <add>, %88, %cst_42 [1] : vector<8x32xf32> to vector<8xf32>
    %90 = vector.shape_cast %89 : vector<8xf32> to vector<8x1xf32>
    %cst_43 = arith.constant 3.200000e+01 : f32
    %91 = vector.broadcast %cst_43 : f32 to vector<8x1xf32>
    %92 = arith.divf %90, %91 : vector<8x1xf32>
    %93 = vector.broadcast %85 : vector<8x1xf32> to vector<8x32xf32>
    %94 = arith.subf %81, %93 : vector<8x32xf32>
    %cst_44 = arith.constant 9.99999974E-6 : f32
    %95 = vector.broadcast %cst_44 : f32 to vector<8x1xf32>
    %96 = arith.addf %92, %95 : vector<8x1xf32>
    %97 = math.rsqrt %96 : vector<8x1xf32>
    %98 = vector.broadcast %97 : vector<8x1xf32> to vector<8x32xf32>
    %99 = arith.mulf %94, %98 : vector<8x32xf32>
    %100 = vector.broadcast %79 : vector<1x32xf32> to vector<8x32xf32>
    %101 = arith.mulf %99, %100 : vector<8x32xf32>
    %102 = vector.broadcast %80 : vector<1x32xf32> to vector<8x32xf32>
    %103 = arith.addf %101, %102 : vector<8x32xf32>
    %c0_45 = arith.constant 0 : index
    %c0_46 = arith.constant 0 : index
    %c0_47 = arith.constant 0 : index
    %104 = vector.load %arg9[%c0_45, %c0_46, %c0_47] : memref<2x32x32xf32, #tpu.memory_space<vmem>>, vector<1x32x32xf32>
    %105 = vector.shape_cast %104 : vector<1x32x32xf32> to vector<32x32xf32>
    %c0_48 = arith.constant 0 : index
    %c0_49 = arith.constant 0 : index
    %c0_50 = arith.constant 0 : index
    %106 = vector.load %arg10[%c0_48, %c0_49, %c0_50] : memref<2x32x64xf32, #tpu.memory_space<vmem>>, vector<1x32x64xf32>
    %107 = vector.shape_cast %106 : vector<1x32x64xf32> to vector<32x64xf32>
    %c0_51 = arith.constant 0 : index
    %c0_52 = arith.constant 0 : index
    %c0_53 = arith.constant 0 : index
    %108 = vector.load %arg11[%c0_51, %c0_52, %c0_53] : memref<2x32x32xf32, #tpu.memory_space<vmem>>, vector<1x32x32xf32>
    %109 = vector.shape_cast %108 : vector<1x32x32xf32> to vector<32x32xf32>
    %cst_54 = arith.constant dense<0.000000e+00> : vector<8x32xf32>
    %110 = tpu.matmul %103, %105, %cst_54 {dimension_numbers = #tpu.dot_dimension_numbers<[1], [0], [0], [1], [0, 0, 1, 1], [], []>} : vector<8x32xf32>, vector<32x32xf32>, vector<8x32xf32> -> vector<8x32xf32>
    %cst_55 = arith.constant dense<0.000000e+00> : vector<8x64xf32>
    %111 = tpu.matmul %3, %107, %cst_55 {dimension_numbers = #tpu.dot_dimension_numbers<[1], [0], [0], [1], [0, 0, 1, 1], [], []>} : vector<8x32xf32>, vector<32x64xf32>, vector<8x64xf32> -> vector<8x64xf32>
    %112 = vector.extract_strided_slice %110 {offsets = [0, 0], sizes = [8, 8], strides = [1, 1]} : vector<8x32xf32> to vector<8x8xf32>
    %113 = vector.extract_strided_slice %110 {offsets = [0, 8], sizes = [8, 8], strides = [1, 1]} : vector<8x32xf32> to vector<8x8xf32>
    %114 = vector.extract_strided_slice %110 {offsets = [0, 16], sizes = [8, 8], strides = [1, 1]} : vector<8x32xf32> to vector<8x8xf32>
    %115 = vector.extract_strided_slice %110 {offsets = [0, 24], sizes = [8, 8], strides = [1, 1]} : vector<8x32xf32> to vector<8x8xf32>
    %116 = vector.shape_cast %112 : vector<8x8xf32> to vector<1x8x8xf32>
    %117 = vector.shape_cast %113 : vector<8x8xf32> to vector<1x8x8xf32>
    %118 = vector.shape_cast %114 : vector<8x8xf32> to vector<1x8x8xf32>
    %119 = vector.shape_cast %115 : vector<8x8xf32> to vector<1x8x8xf32>
    %120 = tpu.concatenate %116, %117, %118, %119 in 0 : vector<1x8x8xf32>, vector<1x8x8xf32>, vector<1x8x8xf32>, vector<1x8x8xf32> -> vector<4x8x8xf32>
    %121 = vector.extract_strided_slice %111 {offsets = [0, 0], sizes = [8, 8], strides = [1, 1]} : vector<8x64xf32> to vector<8x8xf32>
    %122 = vector.extract_strided_slice %111 {offsets = [0, 8], sizes = [8, 8], strides = [1, 1]} : vector<8x64xf32> to vector<8x8xf32>
    %123 = vector.extract_strided_slice %111 {offsets = [0, 16], sizes = [8, 8], strides = [1, 1]} : vector<8x64xf32> to vector<8x8xf32>
    %124 = vector.extract_strided_slice %111 {offsets = [0, 24], sizes = [8, 8], strides = [1, 1]} : vector<8x64xf32> to vector<8x8xf32>
    %125 = vector.shape_cast %121 : vector<8x8xf32> to vector<1x8x8xf32>
    %126 = vector.shape_cast %122 : vector<8x8xf32> to vector<1x8x8xf32>
    %127 = vector.shape_cast %123 : vector<8x8xf32> to vector<1x8x8xf32>
    %128 = vector.shape_cast %124 : vector<8x8xf32> to vector<1x8x8xf32>
    %129 = tpu.concatenate %125, %126, %127, %128 in 0 : vector<1x8x8xf32>, vector<1x8x8xf32>, vector<1x8x8xf32>, vector<1x8x8xf32> -> vector<4x8x8xf32>
    %130 = vector.extract_strided_slice %111 {offsets = [0, 32], sizes = [8, 8], strides = [1, 1]} : vector<8x64xf32> to vector<8x8xf32>
    %131 = vector.extract_strided_slice %111 {offsets = [0, 40], sizes = [8, 8], strides = [1, 1]} : vector<8x64xf32> to vector<8x8xf32>
    %132 = vector.extract_strided_slice %111 {offsets = [0, 48], sizes = [8, 8], strides = [1, 1]} : vector<8x64xf32> to vector<8x8xf32>
    %133 = vector.extract_strided_slice %111 {offsets = [0, 56], sizes = [8, 8], strides = [1, 1]} : vector<8x64xf32> to vector<8x8xf32>
    %134 = vector.shape_cast %130 : vector<8x8xf32> to vector<1x8x8xf32>
    %135 = vector.shape_cast %131 : vector<8x8xf32> to vector<1x8x8xf32>
    %136 = vector.shape_cast %132 : vector<8x8xf32> to vector<1x8x8xf32>
    %137 = vector.shape_cast %133 : vector<8x8xf32> to vector<1x8x8xf32>
    %138 = tpu.concatenate %134, %135, %136, %137 in 0 : vector<1x8x8xf32>, vector<1x8x8xf32>, vector<1x8x8xf32>, vector<1x8x8xf32> -> vector<4x8x8xf32>
    "tpu.trace_start"() <{level = 10 : i32, message = "hqd,hkd->hqk"}> : () -> ()
    %cst_56 = arith.constant dense<0.000000e+00> : vector<4x8x8xf32>
    %139 = tpu.matmul %120, %129, %cst_56 {dimension_numbers = #tpu.dot_dimension_numbers<[2], [2], [1], [1], [0, 0, 0, 1, 1, 1], [0], [0]>} : vector<4x8x8xf32>, vector<4x8x8xf32>, vector<4x8x8xf32> -> vector<4x8x8xf32>
    "tpu.trace_stop"() : () -> ()
    %cst_57 = arith.constant 0.353553385 : f32
    %140 = vector.broadcast %cst_57 : f32 to vector<4x8x8xf32>
    %141 = arith.mulf %139, %140 : vector<4x8x8xf32>
    %cst_58 = arith.constant dense<0xFF800000> : vector<4x8xf32>
    %142 = vector.multi_reduction <maximumf>, %141, %cst_58 [2] : vector<4x8x8xf32> to vector<4x8xf32>
    %143 = vector.shape_cast %142 : vector<4x8xf32> to vector<4x8x1xf32>
    %144 = vector.broadcast %143 : vector<4x8x1xf32> to vector<4x8x8xf32>
    %145 = arith.subf %141, %144 : vector<4x8x8xf32>
    %146 = math.exp %145 : vector<4x8x8xf32>
    %cst_59 = arith.constant dense<0.000000e+00> : vector<4x8xf32>
    %147 = vector.multi_reduction <add>, %146, %cst_59 [2] : vector<4x8x8xf32> to vector<4x8xf32>
    %148 = vector.shape_cast %147 : vector<4x8xf32> to vector<4x8x1xf32>
    %149 = vector.broadcast %148 : vector<4x8x1xf32> to vector<4x8x8xf32>
    %150 = arith.divf %146, %149 : vector<4x8x8xf32>
    %c0_60 = arith.constant 0 : index
    %c0_61 = arith.constant 0 : index
    %c0_62 = arith.constant 0 : index
    %c0_63 = arith.constant 0 : index
    %151 = vector.load %arg22[%c0_60, %c0_61, %c0_62, %c0_63] : memref<2x4x8x8xf32, #tpu.memory_space<vmem>>, vector<1x4x8x8xf32>
    %152 = vector.shape_cast %151 : vector<1x4x8x8xf32> to vector<4x8x8xf32>
    %153 = vector.shape_cast %150 : vector<4x8x8xf32> to vector<1x4x8x8xf32>
    tpu.vector_store %arg22[%c0_60, %c0_61, %c0_62, %c0_63], %153 {strides = array<i32>} : memref<2x4x8x8xf32, #tpu.memory_space<vmem>>, vector<1x4x8x8xf32>,
    "tpu.trace_start"() <{level = 10 : i32, message = "hqk,hkd->hqd"}> : () -> ()
    %cst_64 = arith.constant dense<0.000000e+00> : vector<4x8x8xf32>
    %154 = tpu.matmul %150, %138, %cst_64 {dimension_numbers = #tpu.dot_dimension_numbers<[2], [1], [1], [2], [0, 0, 0, 1, 1, 2], [0], [0]>} : vector<4x8x8xf32>, vector<4x8x8xf32>, vector<4x8x8xf32> -> vector<4x8x8xf32>
    "tpu.trace_stop"() : () -> ()
    %155 = vector.extract_strided_slice %154 {offsets = [0, 0, 0], sizes = [1, 8, 8], strides = [1, 1, 1]} : vector<4x8x8xf32> to vector<1x8x8xf32>
    %156 = vector.shape_cast %155 : vector<1x8x8xf32> to vector<8x8xf32>
    %157 = vector.extract_strided_slice %154 {offsets = [1, 0, 0], sizes = [1, 8, 8], strides = [1, 1, 1]} : vector<4x8x8xf32> to vector<1x8x8xf32>
    %158 = vector.shape_cast %157 : vector<1x8x8xf32> to vector<8x8xf32>
    %159 = vector.extract_strided_slice %154 {offsets = [2, 0, 0], sizes = [1, 8, 8], strides = [1, 1, 1]} : vector<4x8x8xf32> to vector<1x8x8xf32>
    %160 = vector.shape_cast %159 : vector<1x8x8xf32> to vector<8x8xf32>
    %161 = vector.extract_strided_slice %154 {offsets = [3, 0, 0], sizes = [1, 8, 8], strides = [1, 1, 1]} : vector<4x8x8xf32> to vector<1x8x8xf32>
    %162 = vector.shape_cast %161 : vector<1x8x8xf32> to vector<8x8xf32>
    %163 = tpu.concatenate %156, %158, %160, %162 in 1 : vector<8x8xf32>, vector<8x8xf32>, vector<8x8xf32>, vector<8x8xf32> -> vector<8x32xf32>
    %cst_65 = arith.constant dense<0.000000e+00> : vector<8x32xf32>
    %164 = tpu.matmul %163, %109, %cst_65 {dimension_numbers = #tpu.dot_dimension_numbers<[1], [0], [0], [1], [0, 0, 1, 1], [], []>} : vector<8x32xf32>, vector<32x32xf32>, vector<8x32xf32> -> vector<8x32xf32>
    %165 = vector.extract_strided_slice %17 {offsets = [2, 0], sizes = [1, 32], strides = [1, 1]} : vector<6x32xf32> to vector<1x32xf32>
    %166 = vector.extract_strided_slice %17 {offsets = [3, 0], sizes = [1, 32], strides = [1, 1]} : vector<6x32xf32> to vector<1x32xf32>
    %167 = arith.addf %103, %164 : vector<8x32xf32>
    %cst_66 = arith.constant dense<0.000000e+00> : vector<8xf32>
    %168 = vector.multi_reduction <add>, %167, %cst_66 [1] : vector<8x32xf32> to vector<8xf32>
    %169 = vector.shape_cast %168 : vector<8xf32> to vector<8x1xf32>
    %cst_67 = arith.constant 3.200000e+01 : f32
    %170 = vector.broadcast %cst_67 : f32 to vector<8x1xf32>
    %171 = arith.divf %169, %170 : vector<8x1xf32>
    %172 = vector.broadcast %171 : vector<8x1xf32> to vector<8x32xf32>
    %173 = arith.subf %167, %172 : vector<8x32xf32>
    %174 = arith.mulf %173, %173 : vector<8x32xf32>
    %cst_68 = arith.constant dense<0.000000e+00> : vector<8xf32>
    %175 = vector.multi_reduction <add>, %174, %cst_68 [1] : vector<8x32xf32> to vector<8xf32>
    %176 = vector.shape_cast %175 : vector<8xf32> to vector<8x1xf32>
    %cst_69 = arith.constant 3.200000e+01 : f32
    %177 = vector.broadcast %cst_69 : f32 to vector<8x1xf32>
    %178 = arith.divf %176, %177 : vector<8x1xf32>
    %179 = vector.broadcast %171 : vector<8x1xf32> to vector<8x32xf32>
    %180 = arith.subf %167, %179 : vector<8x32xf32>
    %cst_70 = arith.constant 9.99999974E-6 : f32
    %181 = vector.broadcast %cst_70 : f32 to vector<8x1xf32>
    %182 = arith.addf %178, %181 : vector<8x1xf32>
    %183 = math.rsqrt %182 : vector<8x1xf32>
    %184 = vector.broadcast %183 : vector<8x1xf32> to vector<8x32xf32>
    %185 = arith.mulf %180, %184 : vector<8x32xf32>
    %186 = vector.broadcast %165 : vector<1x32xf32> to vector<8x32xf32>
    %187 = arith.mulf %185, %186 : vector<8x32xf32>
    %188 = vector.broadcast %166 : vector<1x32xf32> to vector<8x32xf32>
    %189 = arith.addf %187, %188 : vector<8x32xf32>
    %c0_71 = arith.constant 0 : index
    %c0_72 = arith.constant 0 : index
    %c0_73 = arith.constant 0 : index
    %190 = vector.load %arg12[%c0_71, %c0_72, %c0_73] : memref<2x32x64xf32, #tpu.memory_space<vmem>>, vector<1x32x64xf32>
    %191 = vector.shape_cast %190 : vector<1x32x64xf32> to vector<32x64xf32>
    %cst_74 = arith.constant dense<0.000000e+00> : vector<8x64xf32>
    %192 = tpu.matmul %189, %191, %cst_74 {dimension_numbers = #tpu.dot_dimension_numbers<[1], [0], [0], [1], [0, 0, 1, 1], [], []>} : vector<8x32xf32>, vector<32x64xf32>, vector<8x64xf32> -> vector<8x64xf32>
    %c0_75 = arith.constant 0 : index
    %c0_76 = arith.constant 0 : index
    %c0_77 = arith.constant 0 : index
    %193 = vector.load %arg13[%c0_75, %c0_76, %c0_77] : memref<2x1x64xf32, #tpu.memory_space<vmem>>, vector<1x1x64xf32>
    %194 = vector.shape_cast %193 : vector<1x1x64xf32> to vector<1x64xf32>
    %195 = vector.broadcast %194 : vector<1x64xf32> to vector<8x64xf32>
    %196 = arith.addf %192, %195 : vector<8x64xf32>
    %cst_78 = arith.constant 0.000000e+00 : f32
    %197 = vector.broadcast %cst_78 : f32 to vector<8x64xf32>
    %198 = arith.maximumf %196, %197 : vector<8x64xf32>
    %c0_79 = arith.constant 0 : index
    %c0_80 = arith.constant 0 : index
    %c0_81 = arith.constant 0 : index
    %199 = vector.load %arg14[%c0_79, %c0_80, %c0_81] : memref<2x64x32xf32, #tpu.memory_space<vmem>>, vector<1x64x32xf32>
    %200 = vector.shape_cast %199 : vector<1x64x32xf32> to vector<64x32xf32>
    %cst_82 = arith.constant dense<0.000000e+00> : vector<8x32xf32>
    %201 = tpu.matmul %198, %200, %cst_82 {dimension_numbers = #tpu.dot_dimension_numbers<[1], [0], [0], [1], [0, 0, 1, 1], [], []>} : vector<8x64xf32>, vector<64x32xf32>, vector<8x32xf32> -> vector<8x32xf32>
    %c0_83 = arith.constant 0 : index
    %c0_84 = arith.constant 0 : index
    %c0_85 = arith.constant 0 : index
    %202 = vector.load %arg15[%c0_83, %c0_84, %c0_85] : memref<2x1x32xf32, #tpu.memory_space<vmem>>, vector<1x1x32xf32>
    %203 = vector.shape_cast %202 : vector<1x1x32xf32> to vector<1x32xf32>
    %204 = vector.broadcast %203 : vector<1x32xf32> to vector<8x32xf32>
    %205 = arith.addf %201, %204 : vector<8x32xf32>
    %206 = vector.extract_strided_slice %17 {offsets = [4, 0], sizes = [1, 32], strides = [1, 1]} : vector<6x32xf32> to vector<1x32xf32>
    %207 = vector.extract_strided_slice %17 {offsets = [5, 0], sizes = [1, 32], strides = [1, 1]} : vector<6x32xf32> to vector<1x32xf32>
    %208 = arith.addf %189, %205 : vector<8x32xf32>
    %cst_86 = arith.constant dense<0.000000e+00> : vector<8xf32>
    %209 = vector.multi_reduction <add>, %208, %cst_86 [1] : vector<8x32xf32> to vector<8xf32>
    %210 = vector.shape_cast %209 : vector<8xf32> to vector<8x1xf32>
    %cst_87 = arith.constant 3.200000e+01 : f32
    %211 = vector.broadcast %cst_87 : f32 to vector<8x1xf32>
    %212 = arith.divf %210, %211 : vector<8x1xf32>
    %213 = vector.broadcast %212 : vector<8x1xf32> to vector<8x32xf32>
    %214 = arith.subf %208, %213 : vector<8x32xf32>
    %215 = arith.mulf %214, %214 : vector<8x32xf32>
    %cst_88 = arith.constant dense<0.000000e+00> : vector<8xf32>
    %216 = vector.multi_reduction <add>, %215, %cst_88 [1] : vector<8x32xf32> to vector<8xf32>
    %217 = vector.shape_cast %216 : vector<8xf32> to vector<8x1xf32>
    %cst_89 = arith.constant 3.200000e+01 : f32
    %218 = vector.broadcast %cst_89 : f32 to vector<8x1xf32>
    %219 = arith.divf %217, %218 : vector<8x1xf32>
    %220 = vector.broadcast %212 : vector<8x1xf32> to vector<8x32xf32>
    %221 = arith.subf %208, %220 : vector<8x32xf32>
    %cst_90 = arith.constant 9.99999974E-6 : f32
    %222 = vector.broadcast %cst_90 : f32 to vector<8x1xf32>
    %223 = arith.addf %219, %222 : vector<8x1xf32>
    %224 = math.rsqrt %223 : vector<8x1xf32>
    %225 = vector.broadcast %224 : vector<8x1xf32> to vector<8x32xf32>
    %226 = arith.mulf %221, %225 : vector<8x32xf32>
    %227 = vector.broadcast %206 : vector<1x32xf32> to vector<8x32xf32>
    %228 = arith.mulf %226, %227 : vector<8x32xf32>
    %229 = vector.broadcast %207 : vector<1x32xf32> to vector<8x32xf32>
    %230 = arith.addf %228, %229 : vector<8x32xf32>
    %c1 = arith.constant 1 : index
    %c0_91 = arith.constant 0 : index
    %c0_92 = arith.constant 0 : index
    %c0_93 = arith.constant 0 : index
    %231 = vector.load %arg20[%c1, %c0_91, %c0_92, %c0_93] : memref<2x1x8x32xf32, #tpu.memory_space<vmem>>, vector<1x1x8x32xf32>
    %232 = vector.shape_cast %231 : vector<1x1x8x32xf32> to vector<8x32xf32>
    %233 = vector.shape_cast %230 : vector<8x32xf32> to vector<1x1x8x32xf32>
    tpu.vector_store %arg20[%c1, %c0_91, %c0_92, %c0_93], %233 {strides = array<i32>} : memref<2x1x8x32xf32, #tpu.memory_space<vmem>>, vector<1x1x8x32xf32>,
    %c1_94 = arith.constant 1 : index
    %c0_95 = arith.constant 0 : index
    %c0_96 = arith.constant 0 : index
    %234 = vector.load %arg16[%c1_94, %c0_95, %c0_96] : memref<2x6x32xf32, #tpu.memory_space<vmem>>, vector<1x6x32xf32>
    %235 = vector.shape_cast %234 : vector<1x6x32xf32> to vector<6x32xf32>
    %c1_97 = arith.constant 1 : index
    %c0_98 = arith.constant 0 : index
    %c0_99 = arith.constant 0 : index
    %236 = vector.load %arg6[%c1_97, %c0_98, %c0_99] : memref<2x32x32xf32, #tpu.memory_space<vmem>>, vector<1x32x32xf32>
    %237 = vector.shape_cast %236 : vector<1x32x32xf32> to vector<32x32xf32>
    %c1_100 = arith.constant 1 : index
    %c0_101 = arith.constant 0 : index
    %c0_102 = arith.constant 0 : index
    %238 = vector.load %arg7[%c1_100, %c0_101, %c0_102] : memref<2x32x64xf32, #tpu.memory_space<vmem>>, vector<1x32x64xf32>
    %239 = vector.shape_cast %238 : vector<1x32x64xf32> to vector<32x64xf32>
    %c1_103 = arith.constant 1 : index
    %c0_104 = arith.constant 0 : index
    %c0_105 = arith.constant 0 : index
    %240 = vector.load %arg8[%c1_103, %c0_104, %c0_105] : memref<2x32x32xf32, #tpu.memory_space<vmem>>, vector<1x32x32xf32>
    %241 = vector.shape_cast %240 : vector<1x32x32xf32> to vector<32x32xf32>
    %cst_106 = arith.constant dense<0.000000e+00> : vector<8x32xf32>
    %242 = tpu.matmul %230, %237, %cst_106 {dimension_numbers = #tpu.dot_dimension_numbers<[1], [0], [0], [1], [0, 0, 1, 1], [], []>} : vector<8x32xf32>, vector<32x32xf32>, vector<8x32xf32> -> vector<8x32xf32>
    %cst_107 = arith.constant dense<0.000000e+00> : vector<8x64xf32>
    %243 = tpu.matmul %230, %239, %cst_107 {dimension_numbers = #tpu.dot_dimension_numbers<[1], [0], [0], [1], [0, 0, 1, 1], [], []>} : vector<8x32xf32>, vector<32x64xf32>, vector<8x64xf32> -> vector<8x64xf32>
    %244 = vector.extract_strided_slice %242 {offsets = [0, 0], sizes = [8, 8], strides = [1, 1]} : vector<8x32xf32> to vector<8x8xf32>
    %245 = vector.extract_strided_slice %242 {offsets = [0, 8], sizes = [8, 8], strides = [1, 1]} : vector<8x32xf32> to vector<8x8xf32>
    %246 = vector.extract_strided_slice %242 {offsets = [0, 16], sizes = [8, 8], strides = [1, 1]} : vector<8x32xf32> to vector<8x8xf32>
    %247 = vector.extract_strided_slice %242 {offsets = [0, 24], sizes = [8, 8], strides = [1, 1]} : vector<8x32xf32> to vector<8x8xf32>
    %248 = vector.shape_cast %244 : vector<8x8xf32> to vector<1x8x8xf32>
    %249 = vector.shape_cast %245 : vector<8x8xf32> to vector<1x8x8xf32>
    %250 = vector.shape_cast %246 : vector<8x8xf32> to vector<1x8x8xf32>
    %251 = vector.shape_cast %247 : vector<8x8xf32> to vector<1x8x8xf32>
    %252 = tpu.concatenate %248, %249, %250, %251 in 0 : vector<1x8x8xf32>, vector<1x8x8xf32>, vector<1x8x8xf32>, vector<1x8x8xf32> -> vector<4x8x8xf32>
    %253 = vector.extract_strided_slice %243 {offsets = [0, 0], sizes = [8, 8], strides = [1, 1]} : vector<8x64xf32> to vector<8x8xf32>
    %254 = vector.extract_strided_slice %243 {offsets = [0, 8], sizes = [8, 8], strides = [1, 1]} : vector<8x64xf32> to vector<8x8xf32>
    %255 = vector.extract_strided_slice %243 {offsets = [0, 16], sizes = [8, 8], strides = [1, 1]} : vector<8x64xf32> to vector<8x8xf32>
    %256 = vector.extract_strided_slice %243 {offsets = [0, 24], sizes = [8, 8], strides = [1, 1]} : vector<8x64xf32> to vector<8x8xf32>
    %257 = vector.shape_cast %253 : vector<8x8xf32> to vector<1x8x8xf32>
    %258 = vector.shape_cast %254 : vector<8x8xf32> to vector<1x8x8xf32>
    %259 = vector.shape_cast %255 : vector<8x8xf32> to vector<1x8x8xf32>
    %260 = vector.shape_cast %256 : vector<8x8xf32> to vector<1x8x8xf32>
    %261 = tpu.concatenate %257, %258, %259, %260 in 0 : vector<1x8x8xf32>, vector<1x8x8xf32>, vector<1x8x8xf32>, vector<1x8x8xf32> -> vector<4x8x8xf32>
    %262 = vector.extract_strided_slice %243 {offsets = [0, 32], sizes = [8, 8], strides = [1, 1]} : vector<8x64xf32> to vector<8x8xf32>
    %263 = vector.extract_strided_slice %243 {offsets = [0, 40], sizes = [8, 8], strides = [1, 1]} : vector<8x64xf32> to vector<8x8xf32>
    %264 = vector.extract_strided_slice %243 {offsets = [0, 48], sizes = [8, 8], strides = [1, 1]} : vector<8x64xf32> to vector<8x8xf32>
    %265 = vector.extract_strided_slice %243 {offsets = [0, 56], sizes = [8, 8], strides = [1, 1]} : vector<8x64xf32> to vector<8x8xf32>
    %266 = vector.shape_cast %262 : vector<8x8xf32> to vector<1x8x8xf32>
    %267 = vector.shape_cast %263 : vector<8x8xf32> to vector<1x8x8xf32>
    %268 = vector.shape_cast %264 : vector<8x8xf32> to vector<1x8x8xf32>
    %269 = vector.shape_cast %265 : vector<8x8xf32> to vector<1x8x8xf32>
    %270 = tpu.concatenate %266, %267, %268, %269 in 0 : vector<1x8x8xf32>, vector<1x8x8xf32>, vector<1x8x8xf32>, vector<1x8x8xf32> -> vector<4x8x8xf32>
    "tpu.trace_start"() <{level = 10 : i32, message = "hqd,hkd->hqk"}> : () -> ()
    %cst_108 = arith.constant dense<0.000000e+00> : vector<4x8x8xf32>
    %271 = tpu.matmul %252, %261, %cst_108 {dimension_numbers = #tpu.dot_dimension_numbers<[2], [2], [1], [1], [0, 0, 0, 1, 1, 1], [0], [0]>} : vector<4x8x8xf32>, vector<4x8x8xf32>, vector<4x8x8xf32> -> vector<4x8x8xf32>
    "tpu.trace_stop"() : () -> ()
    %cst_109 = arith.constant 0.353553385 : f32
    %272 = vector.broadcast %cst_109 : f32 to vector<4x8x8xf32>
    %273 = arith.mulf %271, %272 : vector<4x8x8xf32>
    %cst_110 = arith.constant dense<0xFF800000> : vector<4x8xf32>
    %274 = vector.multi_reduction <maximumf>, %273, %cst_110 [2] : vector<4x8x8xf32> to vector<4x8xf32>
    %275 = vector.shape_cast %274 : vector<4x8xf32> to vector<4x8x1xf32>
    %276 = vector.broadcast %275 : vector<4x8x1xf32> to vector<4x8x8xf32>
    %277 = arith.subf %273, %276 : vector<4x8x8xf32>
    %278 = math.exp %277 : vector<4x8x8xf32>
    %cst_111 = arith.constant dense<0.000000e+00> : vector<4x8xf32>
    %279 = vector.multi_reduction <add>, %278, %cst_111 [2] : vector<4x8x8xf32> to vector<4x8xf32>
    %280 = vector.shape_cast %279 : vector<4x8xf32> to vector<4x8x1xf32>
    %281 = vector.broadcast %280 : vector<4x8x1xf32> to vector<4x8x8xf32>
    %282 = arith.divf %278, %281 : vector<4x8x8xf32>
    %c1_112 = arith.constant 1 : index
    %c0_113 = arith.constant 0 : index
    %c0_114 = arith.constant 0 : index
    %c0_115 = arith.constant 0 : index
    %283 = vector.load %arg21[%c1_112, %c0_113, %c0_114, %c0_115] : memref<2x4x8x8xf32, #tpu.memory_space<vmem>>, vector<1x4x8x8xf32>
    %284 = vector.shape_cast %283 : vector<1x4x8x8xf32> to vector<4x8x8xf32>
    %285 = vector.shape_cast %282 : vector<4x8x8xf32> to vector<1x4x8x8xf32>
    tpu.vector_store %arg21[%c1_112, %c0_113, %c0_114, %c0_115], %285 {strides = array<i32>} : memref<2x4x8x8xf32, #tpu.memory_space<vmem>>, vector<1x4x8x8xf32>,
    "tpu.trace_start"() <{level = 10 : i32, message = "hqk,hkd->hqd"}> : () -> ()
    %cst_116 = arith.constant dense<0.000000e+00> : vector<4x8x8xf32>
    %286 = tpu.matmul %282, %270, %cst_116 {dimension_numbers = #tpu.dot_dimension_numbers<[2], [1], [1], [2], [0, 0, 0, 1, 1, 2], [0], [0]>} : vector<4x8x8xf32>, vector<4x8x8xf32>, vector<4x8x8xf32> -> vector<4x8x8xf32>
    "tpu.trace_stop"() : () -> ()
    %287 = vector.extract_strided_slice %286 {offsets = [0, 0, 0], sizes = [1, 8, 8], strides = [1, 1, 1]} : vector<4x8x8xf32> to vector<1x8x8xf32>
    %288 = vector.shape_cast %287 : vector<1x8x8xf32> to vector<8x8xf32>
    %289 = vector.extract_strided_slice %286 {offsets = [1, 0, 0], sizes = [1, 8, 8], strides = [1, 1, 1]} : vector<4x8x8xf32> to vector<1x8x8xf32>
    %290 = vector.shape_cast %289 : vector<1x8x8xf32> to vector<8x8xf32>
    %291 = vector.extract_strided_slice %286 {offsets = [2, 0, 0], sizes = [1, 8, 8], strides = [1, 1, 1]} : vector<4x8x8xf32> to vector<1x8x8xf32>
    %292 = vector.shape_cast %291 : vector<1x8x8xf32> to vector<8x8xf32>
    %293 = vector.extract_strided_slice %286 {offsets = [3, 0, 0], sizes = [1, 8, 8], strides = [1, 1, 1]} : vector<4x8x8xf32> to vector<1x8x8xf32>
    %294 = vector.shape_cast %293 : vector<1x8x8xf32> to vector<8x8xf32>
    %295 = tpu.concatenate %288, %290, %292, %294 in 1 : vector<8x8xf32>, vector<8x8xf32>, vector<8x8xf32>, vector<8x8xf32> -> vector<8x32xf32>
    %cst_117 = arith.constant dense<0.000000e+00> : vector<8x32xf32>
    %296 = tpu.matmul %295, %241, %cst_117 {dimension_numbers = #tpu.dot_dimension_numbers<[1], [0], [0], [1], [0, 0, 1, 1], [], []>} : vector<8x32xf32>, vector<32x32xf32>, vector<8x32xf32> -> vector<8x32xf32>
    %297 = vector.extract_strided_slice %235 {offsets = [0, 0], sizes = [1, 32], strides = [1, 1]} : vector<6x32xf32> to vector<1x32xf32>
    %298 = vector.extract_strided_slice %235 {offsets = [1, 0], sizes = [1, 32], strides = [1, 1]} : vector<6x32xf32> to vector<1x32xf32>
    %299 = arith.addf %230, %296 : vector<8x32xf32>
    %cst_118 = arith.constant dense<0.000000e+00> : vector<8xf32>
    %300 = vector.multi_reduction <add>, %299, %cst_118 [1] : vector<8x32xf32> to vector<8xf32>
    %301 = vector.shape_cast %300 : vector<8xf32> to vector<8x1xf32>
    %cst_119 = arith.constant 3.200000e+01 : f32
    %302 = vector.broadcast %cst_119 : f32 to vector<8x1xf32>
    %303 = arith.divf %301, %302 : vector<8x1xf32>
    %304 = vector.broadcast %303 : vector<8x1xf32> to vector<8x32xf32>
    %305 = arith.subf %299, %304 : vector<8x32xf32>
    %306 = arith.mulf %305, %305 : vector<8x32xf32>
    %cst_120 = arith.constant dense<0.000000e+00> : vector<8xf32>
    %307 = vector.multi_reduction <add>, %306, %cst_120 [1] : vector<8x32xf32> to vector<8xf32>
    %308 = vector.shape_cast %307 : vector<8xf32> to vector<8x1xf32>
    %cst_121 = arith.constant 3.200000e+01 : f32
    %309 = vector.broadcast %cst_121 : f32 to vector<8x1xf32>
    %310 = arith.divf %308, %309 : vector<8x1xf32>
    %311 = vector.broadcast %303 : vector<8x1xf32> to vector<8x32xf32>
    %312 = arith.subf %299, %311 : vector<8x32xf32>
    %cst_122 = arith.constant 9.99999974E-6 : f32
    %313 = vector.broadcast %cst_122 : f32 to vector<8x1xf32>
    %314 = arith.addf %310, %313 : vector<8x1xf32>
    %315 = math.rsqrt %314 : vector<8x1xf32>
    %316 = vector.broadcast %315 : vector<8x1xf32> to vector<8x32xf32>
    %317 = arith.mulf %312, %316 : vector<8x32xf32>
    %318 = vector.broadcast %297 : vector<1x32xf32> to vector<8x32xf32>
    %319 = arith.mulf %317, %318 : vector<8x32xf32>
    %320 = vector.broadcast %298 : vector<1x32xf32> to vector<8x32xf32>
    %321 = arith.addf %319, %320 : vector<8x32xf32>
    %c1_123 = arith.constant 1 : index
    %c0_124 = arith.constant 0 : index
    %c0_125 = arith.constant 0 : index
    %322 = vector.load %arg9[%c1_123, %c0_124, %c0_125] : memref<2x32x32xf32, #tpu.memory_space<vmem>>, vector<1x32x32xf32>
    %323 = vector.shape_cast %322 : vector<1x32x32xf32> to vector<32x32xf32>
    %c1_126 = arith.constant 1 : index
    %c0_127 = arith.constant 0 : index
    %c0_128 = arith.constant 0 : index
    %324 = vector.load %arg10[%c1_126, %c0_127, %c0_128] : memref<2x32x64xf32, #tpu.memory_space<vmem>>, vector<1x32x64xf32>
    %325 = vector.shape_cast %324 : vector<1x32x64xf32> to vector<32x64xf32>
    %c1_129 = arith.constant 1 : index
    %c0_130 = arith.constant 0 : index
    %c0_131 = arith.constant 0 : index
    %326 = vector.load %arg11[%c1_129, %c0_130, %c0_131] : memref<2x32x32xf32, #tpu.memory_space<vmem>>, vector<1x32x32xf32>
    %327 = vector.shape_cast %326 : vector<1x32x32xf32> to vector<32x32xf32>
    %cst_132 = arith.constant dense<0.000000e+00> : vector<8x32xf32>
    %328 = tpu.matmul %321, %323, %cst_132 {dimension_numbers = #tpu.dot_dimension_numbers<[1], [0], [0], [1], [0, 0, 1, 1], [], []>} : vector<8x32xf32>, vector<32x32xf32>, vector<8x32xf32> -> vector<8x32xf32>
    %cst_133 = arith.constant dense<0.000000e+00> : vector<8x64xf32>
    %329 = tpu.matmul %3, %325, %cst_133 {dimension_numbers = #tpu.dot_dimension_numbers<[1], [0], [0], [1], [0, 0, 1, 1], [], []>} : vector<8x32xf32>, vector<32x64xf32>, vector<8x64xf32> -> vector<8x64xf32>
    %330 = vector.extract_strided_slice %328 {offsets = [0, 0], sizes = [8, 8], strides = [1, 1]} : vector<8x32xf32> to vector<8x8xf32>
    %331 = vector.extract_strided_slice %328 {offsets = [0, 8], sizes = [8, 8], strides = [1, 1]} : vector<8x32xf32> to vector<8x8xf32>
    %332 = vector.extract_strided_slice %328 {offsets = [0, 16], sizes = [8, 8], strides = [1, 1]} : vector<8x32xf32> to vector<8x8xf32>
    %333 = vector.extract_strided_slice %328 {offsets = [0, 24], sizes = [8, 8], strides = [1, 1]} : vector<8x32xf32> to vector<8x8xf32>
    %334 = vector.shape_cast %330 : vector<8x8xf32> to vector<1x8x8xf32>
    %335 = vector.shape_cast %331 : vector<8x8xf32> to vector<1x8x8xf32>
    %336 = vector.shape_cast %332 : vector<8x8xf32> to vector<1x8x8xf32>
    %337 = vector.shape_cast %333 : vector<8x8xf32> to vector<1x8x8xf32>
    %338 = tpu.concatenate %334, %335, %336, %337 in 0 : vector<1x8x8xf32>, vector<1x8x8xf32>, vector<1x8x8xf32>, vector<1x8x8xf32> -> vector<4x8x8xf32>
    %339 = vector.extract_strided_slice %329 {offsets = [0, 0], sizes = [8, 8], strides = [1, 1]} : vector<8x64xf32> to vector<8x8xf32>
    %340 = vector.extract_strided_slice %329 {offsets = [0, 8], sizes = [8, 8], strides = [1, 1]} : vector<8x64xf32> to vector<8x8xf32>
    %341 = vector.extract_strided_slice %329 {offsets = [0, 16], sizes = [8, 8], strides = [1, 1]} : vector<8x64xf32> to vector<8x8xf32>
    %342 = vector.extract_strided_slice %329 {offsets = [0, 24], sizes = [8, 8], strides = [1, 1]} : vector<8x64xf32> to vector<8x8xf32>
    %343 = vector.shape_cast %339 : vector<8x8xf32> to vector<1x8x8xf32>
    %344 = vector.shape_cast %340 : vector<8x8xf32> to vector<1x8x8xf32>
    %345 = vector.shape_cast %341 : vector<8x8xf32> to vector<1x8x8xf32>
    %346 = vector.shape_cast %342 : vector<8x8xf32> to vector<1x8x8xf32>
    %347 = tpu.concatenate %343, %344, %345, %346 in 0 : vector<1x8x8xf32>, vector<1x8x8xf32>, vector<1x8x8xf32>, vector<1x8x8xf32> -> vector<4x8x8xf32>
    %348 = vector.extract_strided_slice %329 {offsets = [0, 32], sizes = [8, 8], strides = [1, 1]} : vector<8x64xf32> to vector<8x8xf32>
    %349 = vector.extract_strided_slice %329 {offsets = [0, 40], sizes = [8, 8], strides = [1, 1]} : vector<8x64xf32> to vector<8x8xf32>
    %350 = vector.extract_strided_slice %329 {offsets = [0, 48], sizes = [8, 8], strides = [1, 1]} : vector<8x64xf32> to vector<8x8xf32>
    %351 = vector.extract_strided_slice %329 {offsets = [0, 56], sizes = [8, 8], strides = [1, 1]} : vector<8x64xf32> to vector<8x8xf32>
    %352 = vector.shape_cast %348 : vector<8x8xf32> to vector<1x8x8xf32>
    %353 = vector.shape_cast %349 : vector<8x8xf32> to vector<1x8x8xf32>
    %354 = vector.shape_cast %350 : vector<8x8xf32> to vector<1x8x8xf32>
    %355 = vector.shape_cast %351 : vector<8x8xf32> to vector<1x8x8xf32>
    %356 = tpu.concatenate %352, %353, %354, %355 in 0 : vector<1x8x8xf32>, vector<1x8x8xf32>, vector<1x8x8xf32>, vector<1x8x8xf32> -> vector<4x8x8xf32>
    "tpu.trace_start"() <{level = 10 : i32, message = "hqd,hkd->hqk"}> : () -> ()
    %cst_134 = arith.constant dense<0.000000e+00> : vector<4x8x8xf32>
    %357 = tpu.matmul %338, %347, %cst_134 {dimension_numbers = #tpu.dot_dimension_numbers<[2], [2], [1], [1], [0, 0, 0, 1, 1, 1], [0], [0]>} : vector<4x8x8xf32>, vector<4x8x8xf32>, vector<4x8x8xf32> -> vector<4x8x8xf32>
    "tpu.trace_stop"() : () -> ()
    %cst_135 = arith.constant 0.353553385 : f32
    %358 = vector.broadcast %cst_135 : f32 to vector<4x8x8xf32>
    %359 = arith.mulf %357, %358 : vector<4x8x8xf32>
    %cst_136 = arith.constant dense<0xFF800000> : vector<4x8xf32>
    %360 = vector.multi_reduction <maximumf>, %359, %cst_136 [2] : vector<4x8x8xf32> to vector<4x8xf32>
    %361 = vector.shape_cast %360 : vector<4x8xf32> to vector<4x8x1xf32>
    %362 = vector.broadcast %361 : vector<4x8x1xf32> to vector<4x8x8xf32>
    %363 = arith.subf %359, %362 : vector<4x8x8xf32>
    %364 = math.exp %363 : vector<4x8x8xf32>
    %cst_137 = arith.constant dense<0.000000e+00> : vector<4x8xf32>
    %365 = vector.multi_reduction <add>, %364, %cst_137 [2] : vector<4x8x8xf32> to vector<4x8xf32>
    %366 = vector.shape_cast %365 : vector<4x8xf32> to vector<4x8x1xf32>
    %367 = vector.broadcast %366 : vector<4x8x1xf32> to vector<4x8x8xf32>
    %368 = arith.divf %364, %367 : vector<4x8x8xf32>
    %c1_138 = arith.constant 1 : index
    %c0_139 = arith.constant 0 : index
    %c0_140 = arith.constant 0 : index
    %c0_141 = arith.constant 0 : index
    %369 = vector.load %arg22[%c1_138, %c0_139, %c0_140, %c0_141] : memref<2x4x8x8xf32, #tpu.memory_space<vmem>>, vector<1x4x8x8xf32>
    %370 = vector.shape_cast %369 : vector<1x4x8x8xf32> to vector<4x8x8xf32>
    %371 = vector.shape_cast %368 : vector<4x8x8xf32> to vector<1x4x8x8xf32>
    tpu.vector_store %arg22[%c1_138, %c0_139, %c0_140, %c0_141], %371 {strides = array<i32>} : memref<2x4x8x8xf32, #tpu.memory_space<vmem>>, vector<1x4x8x8xf32>,
    "tpu.trace_start"() <{level = 10 : i32, message = "hqk,hkd->hqd"}> : () -> ()
    %cst_142 = arith.constant dense<0.000000e+00> : vector<4x8x8xf32>
    %372 = tpu.matmul %368, %356, %cst_142 {dimension_numbers = #tpu.dot_dimension_numbers<[2], [1], [1], [2], [0, 0, 0, 1, 1, 2], [0], [0]>} : vector<4x8x8xf32>, vector<4x8x8xf32>, vector<4x8x8xf32> -> vector<4x8x8xf32>
    "tpu.trace_stop"() : () -> ()
    %373 = vector.extract_strided_slice %372 {offsets = [0, 0, 0], sizes = [1, 8, 8], strides = [1, 1, 1]} : vector<4x8x8xf32> to vector<1x8x8xf32>
    %374 = vector.shape_cast %373 : vector<1x8x8xf32> to vector<8x8xf32>
    %375 = vector.extract_strided_slice %372 {offsets = [1, 0, 0], sizes = [1, 8, 8], strides = [1, 1, 1]} : vector<4x8x8xf32> to vector<1x8x8xf32>
    %376 = vector.shape_cast %375 : vector<1x8x8xf32> to vector<8x8xf32>
    %377 = vector.extract_strided_slice %372 {offsets = [2, 0, 0], sizes = [1, 8, 8], strides = [1, 1, 1]} : vector<4x8x8xf32> to vector<1x8x8xf32>
    %378 = vector.shape_cast %377 : vector<1x8x8xf32> to vector<8x8xf32>
    %379 = vector.extract_strided_slice %372 {offsets = [3, 0, 0], sizes = [1, 8, 8], strides = [1, 1, 1]} : vector<4x8x8xf32> to vector<1x8x8xf32>
    %380 = vector.shape_cast %379 : vector<1x8x8xf32> to vector<8x8xf32>
    %381 = tpu.concatenate %374, %376, %378, %380 in 1 : vector<8x8xf32>, vector<8x8xf32>, vector<8x8xf32>, vector<8x8xf32> -> vector<8x32xf32>
    %cst_143 = arith.constant dense<0.000000e+00> : vector<8x32xf32>
    %382 = tpu.matmul %381, %327, %cst_143 {dimension_numbers = #tpu.dot_dimension_numbers<[1], [0], [0], [1], [0, 0, 1, 1], [], []>} : vector<8x32xf32>, vector<32x32xf32>, vector<8x32xf32> -> vector<8x32xf32>
    %383 = vector.extract_strided_slice %235 {offsets = [2, 0], sizes = [1, 32], strides = [1, 1]} : vector<6x32xf32> to vector<1x32xf32>
    %384 = vector.extract_strided_slice %235 {offsets = [3, 0], sizes = [1, 32], strides = [1, 1]} : vector<6x32xf32> to vector<1x32xf32>
    %385 = arith.addf %321, %382 : vector<8x32xf32>
    %cst_144 = arith.constant dense<0.000000e+00> : vector<8xf32>
    %386 = vector.multi_reduction <add>, %385, %cst_144 [1] : vector<8x32xf32> to vector<8xf32>
    %387 = vector.shape_cast %386 : vector<8xf32> to vector<8x1xf32>
    %cst_145 = arith.constant 3.200000e+01 : f32
    %388 = vector.broadcast %cst_145 : f32 to vector<8x1xf32>
    %389 = arith.divf %387, %388 : vector<8x1xf32>
    %390 = vector.broadcast %389 : vector<8x1xf32> to vector<8x32xf32>
    %391 = arith.subf %385, %390 : vector<8x32xf32>
    %392 = arith.mulf %391, %391 : vector<8x32xf32>
    %cst_146 = arith.constant dense<0.000000e+00> : vector<8xf32>
    %393 = vector.multi_reduction <add>, %392, %cst_146 [1] : vector<8x32xf32> to vector<8xf32>
    %394 = vector.shape_cast %393 : vector<8xf32> to vector<8x1xf32>
    %cst_147 = arith.constant 3.200000e+01 : f32
    %395 = vector.broadcast %cst_147 : f32 to vector<8x1xf32>
    %396 = arith.divf %394, %395 : vector<8x1xf32>
    %397 = vector.broadcast %389 : vector<8x1xf32> to vector<8x32xf32>
    %398 = arith.subf %385, %397 : vector<8x32xf32>
    %cst_148 = arith.constant 9.99999974E-6 : f32
    %399 = vector.broadcast %cst_148 : f32 to vector<8x1xf32>
    %400 = arith.addf %396, %399 : vector<8x1xf32>
    %401 = math.rsqrt %400 : vector<8x1xf32>
    %402 = vector.broadcast %401 : vector<8x1xf32> to vector<8x32xf32>
    %403 = arith.mulf %398, %402 : vector<8x32xf32>
    %404 = vector.broadcast %383 : vector<1x32xf32> to vector<8x32xf32>
    %405 = arith.mulf %403, %404 : vector<8x32xf32>
    %406 = vector.broadcast %384 : vector<1x32xf32> to vector<8x32xf32>
    %407 = arith.addf %405, %406 : vector<8x32xf32>
    %c1_149 = arith.constant 1 : index
    %c0_150 = arith.constant 0 : index
    %c0_151 = arith.constant 0 : index
    %408 = vector.load %arg12[%c1_149, %c0_150, %c0_151] : memref<2x32x64xf32, #tpu.memory_space<vmem>>, vector<1x32x64xf32>
    %409 = vector.shape_cast %408 : vector<1x32x64xf32> to vector<32x64xf32>
    %cst_152 = arith.constant dense<0.000000e+00> : vector<8x64xf32>
    %410 = tpu.matmul %407, %409, %cst_152 {dimension_numbers = #tpu.dot_dimension_numbers<[1], [0], [0], [1], [0, 0, 1, 1], [], []>} : vector<8x32xf32>, vector<32x64xf32>, vector<8x64xf32> -> vector<8x64xf32>
    %c1_153 = arith.constant 1 : index
    %c0_154 = arith.constant 0 : index
    %c0_155 = arith.constant 0 : index
    %411 = vector.load %arg13[%c1_153, %c0_154, %c0_155] : memref<2x1x64xf32, #tpu.memory_space<vmem>>, vector<1x1x64xf32>
    %412 = vector.shape_cast %411 : vector<1x1x64xf32> to vector<1x64xf32>
    %413 = vector.broadcast %412 : vector<1x64xf32> to vector<8x64xf32>
    %414 = arith.addf %410, %413 : vector<8x64xf32>
    %cst_156 = arith.constant 0.000000e+00 : f32
    %415 = vector.broadcast %cst_156 : f32 to vector<8x64xf32>
    %416 = arith.maximumf %414, %415 : vector<8x64xf32>
    %c1_157 = arith.constant 1 : index
    %c0_158 = arith.constant 0 : index
    %c0_159 = arith.constant 0 : index
    %417 = vector.load %arg14[%c1_157, %c0_158, %c0_159] : memref<2x64x32xf32, #tpu.memory_space<vmem>>, vector<1x64x32xf32>
    %418 = vector.shape_cast %417 : vector<1x64x32xf32> to vector<64x32xf32>
    %cst_160 = arith.constant dense<0.000000e+00> : vector<8x32xf32>
    %419 = tpu.matmul %416, %418, %cst_160 {dimension_numbers = #tpu.dot_dimension_numbers<[1], [0], [0], [1], [0, 0, 1, 1], [], []>} : vector<8x64xf32>, vector<64x32xf32>, vector<8x32xf32> -> vector<8x32xf32>
    %c1_161 = arith.constant 1 : index
    %c0_162 = arith.constant 0 : index
    %c0_163 = arith.constant 0 : index
    %420 = vector.load %arg15[%c1_161, %c0_162, %c0_163] : memref<2x1x32xf32, #tpu.memory_space<vmem>>, vector<1x1x32xf32>
    %421 = vector.shape_cast %420 : vector<1x1x32xf32> to vector<1x32xf32>
    %422 = vector.broadcast %421 : vector<1x32xf32> to vector<8x32xf32>
    %423 = arith.addf %419, %422 : vector<8x32xf32>
    %424 = vector.extract_strided_slice %235 {offsets = [4, 0], sizes = [1, 32], strides = [1, 1]} : vector<6x32xf32> to vector<1x32xf32>
    %425 = vector.extract_strided_slice %235 {offsets = [5, 0], sizes = [1, 32], strides = [1, 1]} : vector<6x32xf32> to vector<1x32xf32>
    %426 = arith.addf %407, %423 : vector<8x32xf32>
    %cst_164 = arith.constant dense<0.000000e+00> : vector<8xf32>
    %427 = vector.multi_reduction <add>, %426, %cst_164 [1] : vector<8x32xf32> to vector<8xf32>
    %428 = vector.shape_cast %427 : vector<8xf32> to vector<8x1xf32>
    %cst_165 = arith.constant 3.200000e+01 : f32
    %429 = vector.broadcast %cst_165 : f32 to vector<8x1xf32>
    %430 = arith.divf %428, %429 : vector<8x1xf32>
    %431 = vector.broadcast %430 : vector<8x1xf32> to vector<8x32xf32>
    %432 = arith.subf %426, %431 : vector<8x32xf32>
    %433 = arith.mulf %432, %432 : vector<8x32xf32>
    %cst_166 = arith.constant dense<0.000000e+00> : vector<8xf32>
    %434 = vector.multi_reduction <add>, %433, %cst_166 [1] : vector<8x32xf32> to vector<8xf32>
    %435 = vector.shape_cast %434 : vector<8xf32> to vector<8x1xf32>
    %cst_167 = arith.constant 3.200000e+01 : f32
    %436 = vector.broadcast %cst_167 : f32 to vector<8x1xf32>
    %437 = arith.divf %435, %436 : vector<8x1xf32>
    %438 = vector.broadcast %430 : vector<8x1xf32> to vector<8x32xf32>
    %439 = arith.subf %426, %438 : vector<8x32xf32>
    %cst_168 = arith.constant 9.99999974E-6 : f32
    %440 = vector.broadcast %cst_168 : f32 to vector<8x1xf32>
    %441 = arith.addf %437, %440 : vector<8x1xf32>
    %442 = math.rsqrt %441 : vector<8x1xf32>
    %443 = vector.broadcast %442 : vector<8x1xf32> to vector<8x32xf32>
    %444 = arith.mulf %439, %443 : vector<8x32xf32>
    %445 = vector.broadcast %424 : vector<1x32xf32> to vector<8x32xf32>
    %446 = arith.mulf %444, %445 : vector<8x32xf32>
    %447 = vector.broadcast %425 : vector<1x32xf32> to vector<8x32xf32>
    %448 = arith.addf %446, %447 : vector<8x32xf32>
    %449 = vector.extract_strided_slice %448 {offsets = [7, 0], sizes = [1, 32], strides = [1, 1]} : vector<8x32xf32> to vector<1x32xf32>
    %c0_169 = arith.constant 0 : index
    %c0_170 = arith.constant 0 : index
    %450 = vector.load %arg17[%c0_169, %c0_170] : memref<32x16xf32, #tpu.memory_space<vmem>>, vector<32x16xf32>
    %cst_171 = arith.constant dense<0.000000e+00> : vector<1x16xf32>
    %451 = tpu.matmul %449, %450, %cst_171 {dimension_numbers = #tpu.dot_dimension_numbers<[1], [0], [0], [1], [0, 0, 1, 1], [], []>} : vector<1x32xf32>, vector<32x16xf32>, vector<1x16xf32> -> vector<1x16xf32>
    %c0_172 = arith.constant 0 : index
    %c0_173 = arith.constant 0 : index
    %452 = vector.load %arg18[%c0_172, %c0_173] : memref<1x16xf32, #tpu.memory_space<vmem>>, vector<1x16xf32>
    %453 = arith.addf %451, %452 : vector<1x16xf32>
    %c0_174 = arith.constant 0 : index
    %c0_175 = arith.constant 0 : index
    %c0_176 = arith.constant 0 : index
    %454 = vector.load %arg19[%c0_174, %c0_175, %c0_176] : memref<1x1x16xf32, #tpu.memory_space<vmem>>, vector<1x1x16xf32>
    %455 = vector.shape_cast %454 : vector<1x1x16xf32> to vector<1x16xf32>
    %456 = vector.shape_cast %453 : vector<1x16xf32> to vector<1x1x16xf32>
    tpu.vector_store %arg19[%c0_174, %c0_175, %c0_176], %456 {strides = array<i32>} : memref<1x1x16xf32, #tpu.memory_space<vmem>>, vector<1x1x16xf32>,
    return
  }
  func.func @transform_0(%arg0: i32) -> (i32, i32, i32) {
    %c0_i32 = arith.constant 0 : i32
    %c0_i32_0 = arith.constant 0 : i32
    %c0_i32_1 = arith.constant 0 : i32
    return %arg0, %c0_i32, %c0_i32_0 : i32, i32, i32
  }
  func.func @transform_1(%arg0: i32) -> (i32, i32, i32) {
    %c0_i32 = arith.constant 0 : i32
    %c0_i32_0 = arith.constant 0 : i32
    %c0_i32_1 = arith.constant 0 : i32
    return %arg0, %c0_i32, %c0_i32_0 : i32, i32, i32
  }
  func.func @transform_2(%arg0: i32) -> (i32, i32) {
    %c0_i32 = arith.constant 0 : i32
    %c0_i32_0 = arith.constant 0 : i32
    %c0_i32_1 = arith.constant 0 : i32
    return %c0_i32, %c0_i32_0 : i32, i32
  }
  func.func @transform_3(%arg0: i32) -> (i32, i32) {
    %c0_i32 = arith.constant 0 : i32
    %c0_i32_0 = arith.constant 0 : i32
    %c0_i32_1 = arith.constant 0 : i32
    return %c0_i32, %c0_i32_0 : i32, i32
  }
  func.func @transform_4(%arg0: i32) -> (i32, i32) {
    %c0_i32 = arith.constant 0 : i32
    %c0_i32_0 = arith.constant 0 : i32
    %c0_i32_1 = arith.constant 0 : i32
    return %c0_i32, %c0_i32_0 : i32, i32
  }
  func.func @transform_5(%arg0: i32) -> (i32, i32, i32) {
    %c0_i32 = arith.constant 0 : i32
    %c0_i32_0 = arith.constant 0 : i32
    %c0_i32_1 = arith.constant 0 : i32
    %c0_i32_2 = arith.constant 0 : i32
    return %c0_i32, %c0_i32_0, %c0_i32_1 : i32, i32, i32
  }
  func.func @transform_6(%arg0: i32) -> (i32, i32, i32) {
    %c0_i32 = arith.constant 0 : i32
    %c0_i32_0 = arith.constant 0 : i32
    %c0_i32_1 = arith.constant 0 : i32
    %c0_i32_2 = arith.constant 0 : i32
    return %c0_i32, %c0_i32_0, %c0_i32_1 : i32, i32, i32
  }
  func.func @transform_7(%arg0: i32) -> (i32, i32, i32) {
    %c0_i32 = arith.constant 0 : i32
    %c0_i32_0 = arith.constant 0 : i32
    %c0_i32_1 = arith.constant 0 : i32
    %c0_i32_2 = arith.constant 0 : i32
    return %c0_i32, %c0_i32_0, %c0_i32_1 : i32, i32, i32
  }
  func.func @transform_8(%arg0: i32) -> (i32, i32, i32) {
    %c0_i32 = arith.constant 0 : i32
    %c0_i32_0 = arith.constant 0 : i32
    %c0_i32_1 = arith.constant 0 : i32
    %c0_i32_2 = arith.constant 0 : i32
    return %c0_i32, %c0_i32_0, %c0_i32_1 : i32, i32, i32
  }
  func.func @transform_9(%arg0: i32) -> (i32, i32, i32) {
    %c0_i32 = arith.constant 0 : i32
    %c0_i32_0 = arith.constant 0 : i32
    %c0_i32_1 = arith.constant 0 : i32
    %c0_i32_2 = arith.constant 0 : i32
    return %c0_i32, %c0_i32_0, %c0_i32_1 : i32, i32, i32
  }
  func.func @transform_10(%arg0: i32) -> (i32, i32, i32) {
    %c0_i32 = arith.constant 0 : i32
    %c0_i32_0 = arith.constant 0 : i32
    %c0_i32_1 = arith.constant 0 : i32
    %c0_i32_2 = arith.constant 0 : i32
    return %c0_i32, %c0_i32_0, %c0_i32_1 : i32, i32, i32
  }
  func.func @transform_11(%arg0: i32) -> (i32, i32, i32) {
    %c0_i32 = arith.constant 0 : i32
    %c0_i32_0 = arith.constant 0 : i32
    %c0_i32_1 = arith.constant 0 : i32
    %c0_i32_2 = arith.constant 0 : i32
    return %c0_i32, %c0_i32_0, %c0_i32_1 : i32, i32, i32
  }
  func.func @transform_12(%arg0: i32) -> (i32, i32, i32) {
    %c0_i32 = arith.constant 0 : i32
    %c0_i32_0 = arith.constant 0 : i32
    %c0_i32_1 = arith.constant 0 : i32
    %c0_i32_2 = arith.constant 0 : i32
    return %c0_i32, %c0_i32_0, %c0_i32_1 : i32, i32, i32
  }
  func.func @transform_13(%arg0: i32) -> (i32, i32, i32) {
    %c0_i32 = arith.constant 0 : i32
    %c0_i32_0 = arith.constant 0 : i32
    %c0_i32_1 = arith.constant 0 : i32
    %c0_i32_2 = arith.constant 0 : i32
    return %c0_i32, %c0_i32_0, %c0_i32_1 : i32, i32, i32
  }
  func.func @transform_14(%arg0: i32) -> (i32, i32, i32) {
    %c0_i32 = arith.constant 0 : i32
    %c0_i32_0 = arith.constant 0 : i32
    %c0_i32_1 = arith.constant 0 : i32
    %c0_i32_2 = arith.constant 0 : i32
    return %c0_i32, %c0_i32_0, %c0_i32_1 : i32, i32, i32
  }
  func.func @transform_15(%arg0: i32) -> (i32, i32, i32) {
    %c0_i32 = arith.constant 0 : i32
    %c0_i32_0 = arith.constant 0 : i32
    %c0_i32_1 = arith.constant 0 : i32
    %c0_i32_2 = arith.constant 0 : i32
    return %c0_i32, %c0_i32_0, %c0_i32_1 : i32, i32, i32
  }
  func.func @transform_16(%arg0: i32) -> (i32, i32) {
    %c0_i32 = arith.constant 0 : i32
    %c0_i32_0 = arith.constant 0 : i32
    %c0_i32_1 = arith.constant 0 : i32
    return %c0_i32, %c0_i32_0 : i32, i32
  }
  func.func @transform_17(%arg0: i32) -> (i32, i32) {
    %c0_i32 = arith.constant 0 : i32
    %c0_i32_0 = arith.constant 0 : i32
    %c0_i32_1 = arith.constant 0 : i32
    return %c0_i32, %c0_i32_0 : i32, i32
  }
  func.func @transform_18(%arg0: i32) -> (i32, i32, i32) {
    %c0_i32 = arith.constant 0 : i32
    %c0_i32_0 = arith.constant 0 : i32
    %c0_i32_1 = arith.constant 0 : i32
    return %arg0, %c0_i32, %c0_i32_0 : i32, i32, i32
  }
  func.func @transform_19(%arg0: i32) -> (i32, i32, i32, i32) {
    %c0_i32 = arith.constant 0 : i32
    %c0_i32_0 = arith.constant 0 : i32
    %c0_i32_1 = arith.constant 0 : i32
    %c0_i32_2 = arith.constant 0 : i32
    return %c0_i32, %arg0, %c0_i32_0, %c0_i32_1 : i32, i32, i32, i32
  }
  func.func @transform_20(%arg0: i32) -> (i32, i32, i32, i32) {
    %c0_i32 = arith.constant 0 : i32
    %c0_i32_0 = arith.constant 0 : i32
    %c0_i32_1 = arith.constant 0 : i32
    %c0_i32_2 = arith.constant 0 : i32
    return %c0_i32, %arg0, %c0_i32_0, %c0_i32_1 : i32, i32, i32, i32
  }
  func.func @transform_21(%arg0: i32) -> (i32, i32, i32, i32) {
    %c0_i32 = arith.constant 0 : i32
    %c0_i32_0 = arith.constant 0 : i32
    %c0_i32_1 = arith.constant 0 : i32
    %c0_i32_2 = arith.constant 0 : i32
    return %c0_i32, %arg0, %c0_i32_0, %c0_i32_1 : i32, i32, i32, i32
  }
}

</mosaic_0001>

<llo_original>
// kernel: transformer_decoder_forward.1
$region0: #{transformer_decoder_forward.1}
  #allocation0 [shape = 'u32[]', space=smem, size = 0x4, offset = 0x4, fixed_abs, tag = 'smem constant byte address 0x4 - core index']
  #allocation1 [shape = 'u32[144,128]{1,0:T(1,128)}', space=vmem, size = 0x12000, scoped, tag = 'internal scratch']
  %s0 = inlined_call_operand.hbm [shape: f32[2,8,16], index: 0, kind: input, shape index: {}]
  %s1 = inlined_call_operand.hbm [shape: f32[2,8,32], index: 1, kind: input, shape index: {}]
  %s2 = inlined_call_operand.hbm [shape: f32[16,32], index: 2, kind: input, shape index: {}]
  %s3 = inlined_call_operand.vmem [shape: f32[1,32], index: 3, kind: input, shape index: {}]
  %s4 = inlined_call_operand.vmem [shape: f32[8,32], index: 4, kind: input, shape index: {}]
  %s5 = inlined_call_operand.vmem [shape: f32[2,32,32], index: 5, kind: input, shape index: {}]
  %s6 = inlined_call_operand.vmem [shape: f32[2,32,64], index: 6, kind: input, shape index: {}]
  %s7 = inlined_call_operand.vmem [shape: f32[2,32,32], index: 7, kind: input, shape index: {}]
  %s8 = inlined_call_operand.vmem [shape: f32[2,32,32], index: 8, kind: input, shape index: {}]
  %s9 = inlined_call_operand.hbm [shape: f32[2,32,64], index: 9, kind: input, shape index: {}]
  %s10 = inlined_call_operand.hbm [shape: f32[2,32,32], index: 10, kind: input, shape index: {}]
  %s11 = inlined_call_operand.vmem [shape: f32[2,32,64], index: 11, kind: input, shape index: {}]
  %s12 = inlined_call_operand.hbm [shape: f32[2,1,64], index: 12, kind: input, shape index: {}]
  %s13 = inlined_call_operand.vmem [shape: f32[2,64,32], index: 13, kind: input, shape index: {}]
  %s14 = inlined_call_operand.hbm [shape: f32[2,1,32], index: 14, kind: input, shape index: {}]
  %s15 = inlined_call_operand.vmem [shape: f32[2,6,32], index: 15, kind: input, shape index: {}]
  %s16 = inlined_call_operand.vmem [shape: f32[32,16], index: 16, kind: input, shape index: {}]
  %s17 = inlined_call_operand.hbm [shape: f32[1,16], index: 17, kind: input, shape index: {}]
  %s18 = inlined_call_operand.hbm [shape: f32[2,1,16], index: 18, kind: output, shape index: {0}]
  %s19 = inlined_call_operand.vmem [shape: f32[2,2,8,32], index: 19, kind: output, shape index: {1}]
  %s20 = inlined_call_operand.vmem [shape: f32[2,8,8,8], index: 20, kind: output, shape index: {2}]
  %s21 = inlined_call_operand.vmem [shape: f32[2,8,8,8], index: 21, kind: output, shape index: {3}]
  %22 = xla_tuple %s18, %s19, %s20, %s21
  %s23 = sld [smem:[#allocation0]]
  $region263: #{transformer_decoder_forward.1} parent=0
    _
  %s25 = ssub.s32 1, %s23
  %s26 = scalar_select 0, %s25, %s23
  $region1: #{transformer_decoder_forward.1} parent=0
    #allocation2 [shape = 'u8[8192]{0}', space=vmem, size = 0x2000, scoped, tag = 'input window, operand 0']
    #allocation3 [shape = 's32[2]{0}', space=sflag, size = 0x8, scoped, tag = 'scoped memory for transformer_decoder_forward.1']
    #allocation4 [shape = 's32[2]{0}', space=sflag, size = 0x8, scoped, tag = 'scoped memory for transformer_decoder_forward.1']
    #allocation5 [shape = 'u8[8192]{0}', space=vmem, size = 0x2000, scoped, tag = 'input window, operand 1']
    #allocation6 [shape = 's32[2]{0}', space=sflag, size = 0x8, scoped, tag = 'scoped memory for transformer_decoder_forward.1']
    #allocation7 [shape = 'u8[8192]{0}', space=vmem, size = 0x2000, scoped, tag = 'input window, operand 2, single buffered']
    #allocation8 [shape = 'u8[32768]{0}', space=vmem, size = 0x8000, scoped, tag = 'input window, operand 9, single buffered']
    #allocation9 [shape = 's32[1]{0}', space=sflag, size = 0x4, scoped, tag = 'scoped memory for transformer_decoder_forward.1']
    #allocation10 [shape = 'u8[32768]{0}', space=vmem, size = 0x8000, scoped, tag = 'input window, operand 10, single buffered']
    #allocation11 [shape = 'u8[1024]{0}', space=vmem, size = 0x400, scoped, tag = 'input window, operand 12, single buffered']
    #allocation12 [shape = 's32[1]{0}', space=sflag, size = 0x4, scoped, tag = 'scoped memory for transformer_decoder_forward.1']
    #allocation13 [shape = 'u8[1024]{0}', space=vmem, size = 0x400, scoped, tag = 'input window, operand 14, single buffered']
    #allocation14 [shape = 'u8[512]{0}', space=vmem, size = 0x400, scoped, tag = 'input window, operand 17, single buffered']
    #allocation15 [shape = 's32[1]{0}', space=sflag, size = 0x4, scoped, tag = 'scoped memory for transformer_decoder_forward.1']
    #allocation16 [shape = 'u8[1024]{0}', space=vmem, size = 0x400, scoped, tag = 'output window, operand 0']
    #allocation17 [shape = 'u8[16384]{0}', space=vmem, size = 0x4000, scoped, tag = 'output window, operand 1']
    #allocation18 [shape = 'u8[65536]{0}', space=vmem, size = 0x10000, scoped, tag = 'output window, operand 2']
    #allocation19 [shape = 'u8[65536]{0}', space=vmem, size = 0x10000, scoped, tag = 'output window, operand 3']
    %27 = vsyncpa [#allocation3], 0
    %s28 = scalar_lea.sflag [#allocation3], 1
    %29 = vsyncpa %s28, 0
    %30 = vsyncpa [#allocation6], 0
    %s31 = scalar_lea.sflag [#allocation6], 1
    %32 = vsyncpa %s31, 0
    %33 = vsyncpa [#allocation9], 0
    %34 = vsyncpa [#allocation12], 0
    %35 = vsyncpa [#allocation15], 0
    %36 = vsyncpa [#allocation4], 0
    %s37 = scalar_lea.sflag [#allocation4], 1
    %38 = vsyncpa %s37, 0
    loop: start=0, step=1, limit=4
    $region2: #{transformer_decoder_forward.1} parent=1 // loop_pre_header
      _
    $region3: #{transformer_decoder_forward.1} parent=1 // loop_header
      %s40 = sphi 0, %s44
      %p41 = scmp.ge.s32.totalorder %s40, 4
      %s50 = sphi 0, %s52
      %s53 = sphi 0, %s50
      %s54 = sphi 0, %s53
      %s70 = sphi 0, %s54
      %s76 = sphi 0, %s78
      %s79 = sphi 0, %s76
      %s80 = sphi 0, %s79
      %s96 = sphi 0, %s80
      %s100 = sphi 0, %s100
      %s102 = sphi 0, %s100
      %s103 = sphi 0, %s102
      %s117 = sphi 0, %s103
      %s121 = sphi 0, %s121
      %s123 = sphi 0, %s121
      %s124 = sphi 0, %s123
      %s138 = sphi 0, %s124
      %s142 = sphi 0, %s142
      %s144 = sphi 0, %s142
      %s145 = sphi 0, %s144
      %s159 = sphi 0, %s145
      %s163 = sphi 0, %s163
      %s165 = sphi 0, %s163
      %s166 = sphi 0, %s165
      %s180 = sphi 0, %s166
      %s184 = sphi 0, %s184
      %s186 = sphi 0, %s184
      %s187 = sphi 0, %s186
      %s201 = sphi 0, %s187
      %s205 = sphi 0, %s205
      %s207 = sphi 0, %s205
      %s208 = sphi 0, %s207
      %s222 = sphi 0, %s208
      %s226 = sphi 0, %s226
      %s228 = sphi 0, %s226
      %s229 = sphi 0, %s228
      %s243 = sphi 0, %s229
      %s247 = sphi 0, %s247
      %s249 = sphi 0, %s247
      %s250 = sphi 0, %s249
      %s264 = sphi 0, %s250
      %s268 = sphi 0, %s268
      %s270 = sphi 0, %s268
      %s271 = sphi 0, %s270
      %s285 = sphi 0, %s271
      %s289 = sphi 0, %s289
      %s291 = sphi 0, %s289
      %s292 = sphi 0, %s291
      %s306 = sphi 0, %s292
      %s310 = sphi 0, %s310
      %s312 = sphi 0, %s310
      %s313 = sphi 0, %s312
      %s327 = sphi 0, %s313
      %s331 = sphi 0, %s331
      %s333 = sphi 0, %s331
      %s334 = sphi 0, %s333
      %s348 = sphi 0, %s334
      %s352 = sphi 0, %s352
      %s354 = sphi 0, %s352
      %s355 = sphi 0, %s354
      %s369 = sphi 0, %s355
      %s373 = sphi 0, %s373
      %s375 = sphi 0, %s373
      %s376 = sphi 0, %s375
      %s390 = sphi 0, %s376
      %s394 = sphi 0, %s394
      %s396 = sphi 0, %s394
      %s397 = sphi 0, %s396
      %s411 = sphi 0, %s397
      %s415 = sphi 0, %s415
      %s417 = sphi 0, %s415
      %s418 = sphi 0, %s417
      %s432 = sphi 0, %s418
      %s438 = sphi 0, %s440
      %s441 = sphi 0, %s438
      %s442 = sphi 0, %s441
      %s458 = sphi 0, %s442
      %s464 = sphi 0, %s466
      %s467 = sphi 0, %s464
      %s468 = sphi 0, %s467
      %s484 = sphi 0, %s468
      %s490 = sphi 0, %s492
      %s493 = sphi 0, %s490
      %s494 = sphi 0, %s493
      %s510 = sphi 0, %s494
      %s516 = sphi 0, %s518
      %s519 = sphi 0, %s516
      %s520 = sphi 0, %s519
      %s536 = sphi 0, %s520
    $region4: #{transformer_decoder_forward.1} parent=1 // loop_header_branch
      %43 = sbr.rel (%p41) target = $region8
    $region5: #{transformer_decoder_forward.1} parent=1 // loop_body
      %s45 = ssub.s32 %s40, 1
      %s46 = ssub.s32 %s40, 2
      %s47 = sadd.s32 %s40, 1
      %s48 = ssub.s32 %s40, %s47
      %p49 = scmp.eq.s32.totalorder %s48, 0
      %s51 = sadd.s32 %s50, 1
      %s52 = scalar_select %p49, %s50, %s51
      %p55 = pneg %p49
      %p56 = scmp.eq.s32.totalorder %s40, 1
      %p57 = por %p55, %p56
      %p58 = scmp.ne.s32.totalorder %s50, %s53
      %p59 = scmp.eq.s32.totalorder %s40, 0
      %p60 = por %p58, %p59
      %p61 = scmp.ne.s32.totalorder %s50, %s53
      %p62 = scmp.eq.s32.totalorder %s45, 1
      %p63 = por %p61, %p62
      %p64 = scmp.ne.s32.totalorder %s53, %s54
      %p65 = scmp.eq.s32.totalorder %s45, 0
      %p66 = por %p64, %p65
      %p67 = scmp.ne.s32.totalorder %s53, %s54
      %p68 = scmp.eq.s32.totalorder %s46, 1
      %p69 = por %p67, %p68
      %p71 = scmp.ne.s32.totalorder %s54, %s70
      %p72 = scmp.eq.s32.totalorder %s46, 0
      %p73 = por %p71, %p72
      %s74 = ssub.s32 %s40, %s47
      %p75 = scmp.eq.s32.totalorder %s74, 0
      %s77 = sadd.s32 %s76, 1
      %s78 = scalar_select %p75, %s76, %s77
      %p81 = pneg %p75
      %p82 = scmp.eq.s32.totalorder %s40, 1
      %p83 = por %p81, %p82
      %p84 = scmp.ne.s32.totalorder %s76, %s79
      %p85 = scmp.eq.s32.totalorder %s40, 0
      %p86 = por %p84, %p85
      %p87 = scmp.ne.s32.totalorder %s76, %s79
      %p88 = scmp.eq.s32.totalorder %s45, 1
      %p89 = por %p87, %p88
      %p90 = scmp.ne.s32.totalorder %s79, %s80
      %p91 = scmp.eq.s32.totalorder %s45, 0
      %p92 = por %p90, %p91
      %p93 = scmp.ne.s32.totalorder %s79, %s80
      %p94 = scmp.eq.s32.totalorder %s46, 1
      %p95 = por %p93, %p94
      %p97 = scmp.ne.s32.totalorder %s80, %s96
      %p98 = scmp.eq.s32.totalorder %s46, 0
      %p99 = por %p97, %p98
      %s101 = sadd.s32 %s100, 1
      %p104 = scmp.eq.s32.totalorder %s40, 1
      %p105 = scmp.ne.s32.totalorder %s100, %s102
      %p106 = scmp.eq.s32.totalorder %s40, 0
      %p107 = por %p105, %p106
      %p108 = scmp.ne.s32.totalorder %s100, %s102
      %p109 = scmp.eq.s32.totalorder %s45, 1
      %p110 = por %p108, %p109
      %p111 = scmp.ne.s32.totalorder %s102, %s103
      %p112 = scmp.eq.s32.totalorder %s45, 0
      %p113 = por %p111, %p112
      %p114 = scmp.ne.s32.totalorder %s102, %s103
      %p115 = scmp.eq.s32.totalorder %s46, 1
      %p116 = por %p114, %p115
      %p118 = scmp.ne.s32.totalorder %s103, %s117
      %p119 = scmp.eq.s32.totalorder %s46, 0
      %p120 = por %p118, %p119
      %s122 = sadd.s32 %s121, 1
      %p125 = scmp.eq.s32.totalorder %s40, 1
      %p126 = scmp.ne.s32.totalorder %s121, %s123
      %p127 = scmp.eq.s32.totalorder %s40, 0
      %p128 = por %p126, %p127
      %p129 = scmp.ne.s32.totalorder %s121, %s123
      %p130 = scmp.eq.s32.totalorder %s45, 1
      %p131 = por %p129, %p130
      %p132 = scmp.ne.s32.totalorder %s123, %s124
      %p133 = scmp.eq.s32.totalorder %s45, 0
      %p134 = por %p132, %p133
      %p135 = scmp.ne.s32.totalorder %s123, %s124
      %p136 = scmp.eq.s32.totalorder %s46, 1
      %p137 = por %p135, %p136
      %p139 = scmp.ne.s32.totalorder %s124, %s138
      %p140 = scmp.eq.s32.totalorder %s46, 0
      %p141 = por %p139, %p140
      %s143 = sadd.s32 %s142, 1
      %p146 = scmp.eq.s32.totalorder %s40, 1
      %p147 = scmp.ne.s32.totalorder %s142, %s144
      %p148 = scmp.eq.s32.totalorder %s40, 0
      %p149 = por %p147, %p148
      %p150 = scmp.ne.s32.totalorder %s142, %s144
      %p151 = scmp.eq.s32.totalorder %s45, 1
      %p152 = por %p150, %p151
      %p153 = scmp.ne.s32.totalorder %s144, %s145
      %p154 = scmp.eq.s32.totalorder %s45, 0
      %p155 = por %p153, %p154
      %p156 = scmp.ne.s32.totalorder %s144, %s145
      %p157 = scmp.eq.s32.totalorder %s46, 1
      %p158 = por %p156, %p157
      %p160 = scmp.ne.s32.totalorder %s145, %s159
      %p161 = scmp.eq.s32.totalorder %s46, 0
      %p162 = por %p160, %p161
      %s164 = sadd.s32 %s163, 1
      %p167 = scmp.eq.s32.totalorder %s40, 1
      %p168 = scmp.ne.s32.totalorder %s163, %s165
      %p169 = scmp.eq.s32.totalorder %s40, 0
      %p170 = por %p168, %p169
      %p171 = scmp.ne.s32.totalorder %s163, %s165
      %p172 = scmp.eq.s32.totalorder %s45, 1
      %p173 = por %p171, %p172
      %p174 = scmp.ne.s32.totalorder %s165, %s166
      %p175 = scmp.eq.s32.totalorder %s45, 0
      %p176 = por %p174, %p175
      %p177 = scmp.ne.s32.totalorder %s165, %s166
      %p178 = scmp.eq.s32.totalorder %s46, 1
      %p179 = por %p177, %p178
      %p181 = scmp.ne.s32.totalorder %s166, %s180
      %p182 = scmp.eq.s32.totalorder %s46, 0
      %p183 = por %p181, %p182
      %s185 = sadd.s32 %s184, 1
      %p188 = scmp.eq.s32.totalorder %s40, 1
      %p189 = scmp.ne.s32.totalorder %s184, %s186
      %p190 = scmp.eq.s32.totalorder %s40, 0
      %p191 = por %p189, %p190
      %p192 = scmp.ne.s32.totalorder %s184, %s186
      %p193 = scmp.eq.s32.totalorder %s45, 1
      %p194 = por %p192, %p193
      %p195 = scmp.ne.s32.totalorder %s186, %s187
      %p196 = scmp.eq.s32.totalorder %s45, 0
      %p197 = por %p195, %p196
      %p198 = scmp.ne.s32.totalorder %s186, %s187
      %p199 = scmp.eq.s32.totalorder %s46, 1
      %p200 = por %p198, %p199
      %p202 = scmp.ne.s32.totalorder %s187, %s201
      %p203 = scmp.eq.s32.totalorder %s46, 0
      %p204 = por %p202, %p203
      %s206 = sadd.s32 %s205, 1
      %p209 = scmp.eq.s32.totalorder %s40, 1
      %p210 = scmp.ne.s32.totalorder %s205, %s207
      %p211 = scmp.eq.s32.totalorder %s40, 0
      %p212 = por %p210, %p211
      %p213 = scmp.ne.s32.totalorder %s205, %s207
      %p214 = scmp.eq.s32.totalorder %s45, 1
      %p215 = por %p213, %p214
      %p216 = scmp.ne.s32.totalorder %s207, %s208
      %p217 = scmp.eq.s32.totalorder %s45, 0
      %p218 = por %p216, %p217
      %p219 = scmp.ne.s32.totalorder %s207, %s208
      %p220 = scmp.eq.s32.totalorder %s46, 1
      %p221 = por %p219, %p220
      %p223 = scmp.ne.s32.totalorder %s208, %s222
      %p224 = scmp.eq.s32.totalorder %s46, 0
      %p225 = por %p223, %p224
      %s227 = sadd.s32 %s226, 1
      %p230 = scmp.eq.s32.totalorder %s40, 1
      %p231 = scmp.ne.s32.totalorder %s226, %s228
      %p232 = scmp.eq.s32.totalorder %s40, 0
      %p233 = por %p231, %p232
      %p234 = scmp.ne.s32.totalorder %s226, %s228
      %p235 = scmp.eq.s32.totalorder %s45, 1
      %p236 = por %p234, %p235
      %p237 = scmp.ne.s32.totalorder %s228, %s229
      %p238 = scmp.eq.s32.totalorder %s45, 0
      %p239 = por %p237, %p238
      %p240 = scmp.ne.s32.totalorder %s228, %s229
      %p241 = scmp.eq.s32.totalorder %s46, 1
      %p242 = por %p240, %p241
      %p244 = scmp.ne.s32.totalorder %s229, %s243
      %p245 = scmp.eq.s32.totalorder %s46, 0
      %p246 = por %p244, %p245
      %s248 = sadd.s32 %s247, 1
      %p251 = scmp.eq.s32.totalorder %s40, 1
      %p252 = scmp.ne.s32.totalorder %s247, %s249
      %p253 = scmp.eq.s32.totalorder %s40, 0
      %p254 = por %p252, %p253
      %p255 = scmp.ne.s32.totalorder %s247, %s249
      %p256 = scmp.eq.s32.totalorder %s45, 1
      %p257 = por %p255, %p256
      %p258 = scmp.ne.s32.totalorder %s249, %s250
      %p259 = scmp.eq.s32.totalorder %s45, 0
      %p260 = por %p258, %p259
      %p261 = scmp.ne.s32.totalorder %s249, %s250
      %p262 = scmp.eq.s32.totalorder %s46, 1
      %p263 = por %p261, %p262
      %p265 = scmp.ne.s32.totalorder %s250, %s264
      %p266 = scmp.eq.s32.totalorder %s46, 0
      %p267 = por %p265, %p266
      %s269 = sadd.s32 %s268, 1
      %p272 = scmp.eq.s32.totalorder %s40, 1
      %p273 = scmp.ne.s32.totalorder %s268, %s270
      %p274 = scmp.eq.s32.totalorder %s40, 0
      %p275 = por %p273, %p274
      %p276 = scmp.ne.s32.totalorder %s268, %s270
      %p277 = scmp.eq.s32.totalorder %s45, 1
      %p278 = por %p276, %p277
      %p279 = scmp.ne.s32.totalorder %s270, %s271
      %p280 = scmp.eq.s32.totalorder %s45, 0
      %p281 = por %p279, %p280
      %p282 = scmp.ne.s32.totalorder %s270, %s271
      %p283 = scmp.eq.s32.totalorder %s46, 1
      %p284 = por %p282, %p283
      %p286 = scmp.ne.s32.totalorder %s271, %s285
      %p287 = scmp.eq.s32.totalorder %s46, 0
      %p288 = por %p286, %p287
      %s290 = sadd.s32 %s289, 1
      %p293 = scmp.eq.s32.totalorder %s40, 1
      %p294 = scmp.ne.s32.totalorder %s289, %s291
      %p295 = scmp.eq.s32.totalorder %s40, 0
      %p296 = por %p294, %p295
      %p297 = scmp.ne.s32.totalorder %s289, %s291
      %p298 = scmp.eq.s32.totalorder %s45, 1
      %p299 = por %p297, %p298
      %p300 = scmp.ne.s32.totalorder %s291, %s292
      %p301 = scmp.eq.s32.totalorder %s45, 0
      %p302 = por %p300, %p301
      %p303 = scmp.ne.s32.totalorder %s291, %s292
      %p304 = scmp.eq.s32.totalorder %s46, 1
      %p305 = por %p303, %p304
      %p307 = scmp.ne.s32.totalorder %s292, %s306
      %p308 = scmp.eq.s32.totalorder %s46, 0
      %p309 = por %p307, %p308
      %s311 = sadd.s32 %s310, 1
      %p314 = scmp.eq.s32.totalorder %s40, 1
      %p315 = scmp.ne.s32.totalorder %s310, %s312
      %p316 = scmp.eq.s32.totalorder %s40, 0
      %p317 = por %p315, %p316
      %p318 = scmp.ne.s32.totalorder %s310, %s312
      %p319 = scmp.eq.s32.totalorder %s45, 1
      %p320 = por %p318, %p319
      %p321 = scmp.ne.s32.totalorder %s312, %s313
      %p322 = scmp.eq.s32.totalorder %s45, 0
      %p323 = por %p321, %p322
      %p324 = scmp.ne.s32.totalorder %s312, %s313
      %p325 = scmp.eq.s32.totalorder %s46, 1
      %p326 = por %p324, %p325
      %p328 = scmp.ne.s32.totalorder %s313, %s327
      %p329 = scmp.eq.s32.totalorder %s46, 0
      %p330 = por %p328, %p329
      %s332 = sadd.s32 %s331, 1
      %p335 = scmp.eq.s32.totalorder %s40, 1
      %p336 = scmp.ne.s32.totalorder %s331, %s333
      %p337 = scmp.eq.s32.totalorder %s40, 0
      %p338 = por %p336, %p337
      %p339 = scmp.ne.s32.totalorder %s331, %s333
      %p340 = scmp.eq.s32.totalorder %s45, 1
      %p341 = por %p339, %p340
      %p342 = scmp.ne.s32.totalorder %s333, %s334
      %p343 = scmp.eq.s32.totalorder %s45, 0
      %p344 = por %p342, %p343
      %p345 = scmp.ne.s32.totalorder %s333, %s334
      %p346 = scmp.eq.s32.totalorder %s46, 1
      %p347 = por %p345, %p346
      %p349 = scmp.ne.s32.totalorder %s334, %s348
      %p350 = scmp.eq.s32.totalorder %s46, 0
      %p351 = por %p349, %p350
      %s353 = sadd.s32 %s352, 1
      %p356 = scmp.eq.s32.totalorder %s40, 1
      %p357 = scmp.ne.s32.totalorder %s352, %s354
      %p358 = scmp.eq.s32.totalorder %s40, 0
      %p359 = por %p357, %p358
      %p360 = scmp.ne.s32.totalorder %s352, %s354
      %p361 = scmp.eq.s32.totalorder %s45, 1
      %p362 = por %p360, %p361
      %p363 = scmp.ne.s32.totalorder %s354, %s355
      %p364 = scmp.eq.s32.totalorder %s45, 0
      %p365 = por %p363, %p364
      %p366 = scmp.ne.s32.totalorder %s354, %s355
      %p367 = scmp.eq.s32.totalorder %s46, 1
      %p368 = por %p366, %p367
      %p370 = scmp.ne.s32.totalorder %s355, %s369
      %p371 = scmp.eq.s32.totalorder %s46, 0
      %p372 = por %p370, %p371
      %s374 = sadd.s32 %s373, 1
      %p377 = scmp.eq.s32.totalorder %s40, 1
      %p378 = scmp.ne.s32.totalorder %s373, %s375
      %p379 = scmp.eq.s32.totalorder %s40, 0
      %p380 = por %p378, %p379
      %p381 = scmp.ne.s32.totalorder %s373, %s375
      %p382 = scmp.eq.s32.totalorder %s45, 1
      %p383 = por %p381, %p382
      %p384 = scmp.ne.s32.totalorder %s375, %s376
      %p385 = scmp.eq.s32.totalorder %s45, 0
      %p386 = por %p384, %p385
      %p387 = scmp.ne.s32.totalorder %s375, %s376
      %p388 = scmp.eq.s32.totalorder %s46, 1
      %p389 = por %p387, %p388
      %p391 = scmp.ne.s32.totalorder %s376, %s390
      %p392 = scmp.eq.s32.totalorder %s46, 0
      %p393 = por %p391, %p392
      %s395 = sadd.s32 %s394, 1
      %p398 = scmp.eq.s32.totalorder %s40, 1
      %p399 = scmp.ne.s32.totalorder %s394, %s396
      %p400 = scmp.eq.s32.totalorder %s40, 0
      %p401 = por %p399, %p400
      %p402 = scmp.ne.s32.totalorder %s394, %s396
      %p403 = scmp.eq.s32.totalorder %s45, 1
      %p404 = por %p402, %p403
      %p405 = scmp.ne.s32.totalorder %s396, %s397
      %p406 = scmp.eq.s32.totalorder %s45, 0
      %p407 = por %p405, %p406
      %p408 = scmp.ne.s32.totalorder %s396, %s397
      %p409 = scmp.eq.s32.totalorder %s46, 1
      %p410 = por %p408, %p409
      %p412 = scmp.ne.s32.totalorder %s397, %s411
      %p413 = scmp.eq.s32.totalorder %s46, 0
      %p414 = por %p412, %p413
      %s416 = sadd.s32 %s415, 1
      %p419 = scmp.eq.s32.totalorder %s40, 1
      %p420 = scmp.ne.s32.totalorder %s415, %s417
      %p421 = scmp.eq.s32.totalorder %s40, 0
      %p422 = por %p420, %p421
      %p423 = scmp.ne.s32.totalorder %s415, %s417
      %p424 = scmp.eq.s32.totalorder %s45, 1
      %p425 = por %p423, %p424
      %p426 = scmp.ne.s32.totalorder %s417, %s418
      %p427 = scmp.eq.s32.totalorder %s45, 0
      %p428 = por %p426, %p427
      %p429 = scmp.ne.s32.totalorder %s417, %s418
      %p430 = scmp.eq.s32.totalorder %s46, 1
      %p431 = por %p429, %p430
      %p433 = scmp.ne.s32.totalorder %s418, %s432
      %p434 = scmp.eq.s32.totalorder %s46, 0
      %p435 = por %p433, %p434
      %s436 = ssub.s32 %s40, %s47
      %p437 = scmp.eq.s32.totalorder %s436, 0
      %s439 = sadd.s32 %s438, 1
      %s440 = scalar_select %p437, %s438, %s439
      %p443 = pneg %p437
      %p444 = scmp.eq.s32.totalorder %s40, 1
      %p445 = por %p443, %p444
      %p446 = scmp.ne.s32.totalorder %s438, %s441
      %p447 = scmp.eq.s32.totalorder %s40, 0
      %p448 = por %p446, %p447
      %p449 = scmp.ne.s32.totalorder %s438, %s441
      %p450 = scmp.eq.s32.totalorder %s45, 1
      %p451 = por %p449, %p450
      %p452 = scmp.ne.s32.totalorder %s441, %s442
      %p453 = scmp.eq.s32.totalorder %s45, 0
      %p454 = por %p452, %p453
      %p455 = scmp.ne.s32.totalorder %s441, %s442
      %p456 = scmp.eq.s32.totalorder %s46, 1
      %p457 = por %p455, %p456
      %p459 = scmp.ne.s32.totalorder %s442, %s458
      %p460 = scmp.eq.s32.totalorder %s46, 0
      %p461 = por %p459, %p460
      %s462 = ssub.s32 %s40, %s47
      %p463 = scmp.eq.s32.totalorder %s462, 0
      %s465 = sadd.s32 %s464, 1
      %s466 = scalar_select %p463, %s464, %s465
      %p469 = pneg %p463
      %p470 = scmp.eq.s32.totalorder %s40, 1
      %p471 = por %p469, %p470
      %p472 = scmp.ne.s32.totalorder %s464, %s467
      %p473 = scmp.eq.s32.totalorder %s40, 0
      %p474 = por %p472, %p473
      %p475 = scmp.ne.s32.totalorder %s464, %s467
      %p476 = scmp.eq.s32.totalorder %s45, 1
      %p477 = por %p475, %p476
      %p478 = scmp.ne.s32.totalorder %s467, %s468
      %p479 = scmp.eq.s32.totalorder %s45, 0
      %p480 = por %p478, %p479
      %p481 = scmp.ne.s32.totalorder %s467, %s468
      %p482 = scmp.eq.s32.totalorder %s46, 1
      %p483 = por %p481, %p482
      %p485 = scmp.ne.s32.totalorder %s468, %s484
      %p486 = scmp.eq.s32.totalorder %s46, 0
      %p487 = por %p485, %p486
      %s488 = ssub.s32 %s40, %s47
      %p489 = scmp.eq.s32.totalorder %s488, 0
      %s491 = sadd.s32 %s490, 1
      %s492 = scalar_select %p489, %s490, %s491
      %p495 = pneg %p489
      %p496 = scmp.eq.s32.totalorder %s40, 1
      %p497 = por %p495, %p496
      %p498 = scmp.ne.s32.totalorder %s490, %s493
      %p499 = scmp.eq.s32.totalorder %s40, 0
      %p500 = por %p498, %p499
      %p501 = scmp.ne.s32.totalorder %s490, %s493
      %p502 = scmp.eq.s32.totalorder %s45, 1
      %p503 = por %p501, %p502
      %p504 = scmp.ne.s32.totalorder %s493, %s494
      %p505 = scmp.eq.s32.totalorder %s45, 0
      %p506 = por %p504, %p505
      %p507 = scmp.ne.s32.totalorder %s493, %s494
      %p508 = scmp.eq.s32.totalorder %s46, 1
      %p509 = por %p507, %p508
      %p511 = scmp.ne.s32.totalorder %s494, %s510
      %p512 = scmp.eq.s32.totalorder %s46, 0
      %p513 = por %p511, %p512
      %s514 = ssub.s32 %s40, %s47
      %p515 = scmp.eq.s32.totalorder %s514, 0
      %s517 = sadd.s32 %s516, 1
      %s518 = scalar_select %p515, %s516, %s517
      %p521 = pneg %p515
      %p522 = scmp.eq.s32.totalorder %s40, 1
      %p523 = por %p521, %p522
      %p524 = scmp.ne.s32.totalorder %s516, %s519
      %p525 = scmp.eq.s32.totalorder %s40, 0
      %p526 = por %p524, %p525
      %p527 = scmp.ne.s32.totalorder %s516, %s519
      %p528 = scmp.eq.s32.totalorder %s45, 1
      %p529 = por %p527, %p528
      %p530 = scmp.ne.s32.totalorder %s519, %s520
      %p531 = scmp.eq.s32.totalorder %s45, 0
      %p532 = por %p530, %p531
      %p533 = scmp.ne.s32.totalorder %s519, %s520
      %p534 = scmp.eq.s32.totalorder %s46, 1
      %p535 = por %p533, %p534
      %p537 = scmp.ne.s32.totalorder %s520, %s536
      %p538 = scmp.eq.s32.totalorder %s46, 0
      %p539 = por %p537, %p538
      %p540 = scmp.le.s32.totalorder 1, %s40
      %p541 = scmp.lt.s32.totalorder %s40, 3
      %p542 = pnand %p540, %p541
      %p543 = pneg %p542
      // Predicated region
      $region9: #{transformer_decoder_forward.1} parent=5 // pred_check
        _
      $region10: #{transformer_decoder_forward.1} parent=5 // pred_check_branch
        %545 = sbr.rel (%p542) target = $region12
      $region11: #{transformer_decoder_forward.1} parent=5 // pred_region
        %s546 = ssub.s32 %s40, 1
        // Predicated region
        $region13: #{transformer_decoder_forward.1} parent=11 // pred_check
          %p547 = pneg %p113
        $region14: #{transformer_decoder_forward.1} parent=11 // pred_check_branch
          %549 = sbr.rel (%p547) target = $region16
        $region15: #{transformer_decoder_forward.1} parent=11 // pred_region
          %s551 = ssub.s32 256, 256
          %552 = vsyncadd [#allocation6], %s551
          %s553 = sshll.u32 [#allocation7], 4
          %s554 = int_to_ptr.vmem [resolvable:$true] %s553
          %559 = dma.hbm_to_vmem [thread:$0]  %s2, 256, %s554, [#allocation6], 128, 128, 8
        $region16: #{transformer_decoder_forward.1} parent=11 // pred_fallthru
          _
        // Predicated region
        $region17: #{transformer_decoder_forward.1} parent=11 // pred_check
          %p560 = pneg %p134
        $region18: #{transformer_decoder_forward.1} parent=11 // pred_check_branch
          %562 = sbr.rel (%p560) target = $region20
        $region19: #{transformer_decoder_forward.1} parent=11 // pred_region
          _
        $region20: #{transformer_decoder_forward.1} parent=11 // pred_fallthru
          _
        // Predicated region
        $region21: #{transformer_decoder_forward.1} parent=11 // pred_check
          %p563 = pneg %p155
        $region22: #{transformer_decoder_forward.1} parent=11 // pred_check_branch
          %565 = sbr.rel (%p563) target = $region24
        $region23: #{transformer_decoder_forward.1} parent=11 // pred_region
          _
        $region24: #{transformer_decoder_forward.1} parent=11 // pred_fallthru
          _
        // Predicated region
        $region25: #{transformer_decoder_forward.1} parent=11 // pred_check
          %p566 = pneg %p176
        $region26: #{transformer_decoder_forward.1} parent=11 // pred_check_branch
          %568 = sbr.rel (%p566) target = $region28
        $region27: #{transformer_decoder_forward.1} parent=11 // pred_region
          _
        $region28: #{transformer_decoder_forward.1} parent=11 // pred_fallthru
          _
        // Predicated region
        $region29: #{transformer_decoder_forward.1} parent=11 // pred_check
          %p569 = pneg %p197
        $region30: #{transformer_decoder_forward.1} parent=11 // pred_check_branch
          %571 = sbr.rel (%p569) target = $region32
        $region31: #{transformer_decoder_forward.1} parent=11 // pred_region
          _
        $region32: #{transformer_decoder_forward.1} parent=11 // pred_fallthru
          _
        // Predicated region
        $region33: #{transformer_decoder_forward.1} parent=11 // pred_check
          %p572 = pneg %p218
        $region34: #{transformer_decoder_forward.1} parent=11 // pred_check_branch
          %574 = sbr.rel (%p572) target = $region36
        $region35: #{transformer_decoder_forward.1} parent=11 // pred_region
          _
        $region36: #{transformer_decoder_forward.1} parent=11 // pred_fallthru
          _
        // Predicated region
        $region37: #{transformer_decoder_forward.1} parent=11 // pred_check
          %p575 = pneg %p239
        $region38: #{transformer_decoder_forward.1} parent=11 // pred_check_branch
          %577 = sbr.rel (%p575) target = $region40
        $region39: #{transformer_decoder_forward.1} parent=11 // pred_region
          _
        $region40: #{transformer_decoder_forward.1} parent=11 // pred_fallthru
          _
        // Predicated region
        $region41: #{transformer_decoder_forward.1} parent=11 // pred_check
          %p578 = pneg %p260
        $region42: #{transformer_decoder_forward.1} parent=11 // pred_check_branch
          %580 = sbr.rel (%p578) target = $region44
        $region43: #{transformer_decoder_forward.1} parent=11 // pred_region
          %s582 = ssub.s32 1024, 1024
          %583 = vsyncadd [#allocation9], %s582
          %s584 = sshll.u32 [#allocation8], 4
          %s585 = int_to_ptr.vmem [resolvable:$true] %s584
          %590 = dma.hbm_to_vmem [thread:$0]  %s9, 1024, %s585, [#allocation9], 128, 128, 8
        $region44: #{transformer_decoder_forward.1} parent=11 // pred_fallthru
          _
        // Predicated region
        $region45: #{transformer_decoder_forward.1} parent=11 // pred_check
          %p591 = pneg %p281
        $region46: #{transformer_decoder_forward.1} parent=11 // pred_check_branch
          %593 = sbr.rel (%p591) target = $region48
        $region47: #{transformer_decoder_forward.1} parent=11 // pred_region
          %s595 = ssub.s32 1024, 1024
          %596 = vsyncadd [#allocation9], %s595
          %s597 = sshll.u32 [#allocation10], 4
          %s598 = int_to_ptr.vmem [resolvable:$true] %s597
          %603 = dma.hbm_to_vmem [thread:$0]  %s10, 1024, %s598, [#allocation9], 128, 128, 8
        $region48: #{transformer_decoder_forward.1} parent=11 // pred_fallthru
          _
        // Predicated region
        $region49: #{transformer_decoder_forward.1} parent=11 // pred_check
          %p604 = pneg %p302
        $region50: #{transformer_decoder_forward.1} parent=11 // pred_check_branch
          %606 = sbr.rel (%p604) target = $region52
        $region51: #{transformer_decoder_forward.1} parent=11 // pred_region
          _
        $region52: #{transformer_decoder_forward.1} parent=11 // pred_fallthru
          _
        // Predicated region
        $region53: #{transformer_decoder_forward.1} parent=11 // pred_check
          %p607 = pneg %p323
        $region54: #{transformer_decoder_forward.1} parent=11 // pred_check_branch
          %609 = sbr.rel (%p607) target = $region56
        $region55: #{transformer_decoder_forward.1} parent=11 // pred_region
          %s611 = ssub.s32 32, 32
          %612 = vsyncadd [#allocation12], %s611
          %s613 = sshll.u32 [#allocation11], 4
          %s614 = int_to_ptr.vmem [resolvable:$true] %s613
          %619 = dma.hbm_to_vmem [thread:$0]  %s12, 32, %s614, [#allocation12], 16, 16, 1
        $region56: #{transformer_decoder_forward.1} parent=11 // pred_fallthru
          _
        // Predicated region
        $region57: #{transformer_decoder_forward.1} parent=11 // pred_check
          %p620 = pneg %p344
        $region58: #{transformer_decoder_forward.1} parent=11 // pred_check_branch
          %622 = sbr.rel (%p620) target = $region60
        $region59: #{transformer_decoder_forward.1} parent=11 // pred_region
          _
        $region60: #{transformer_decoder_forward.1} parent=11 // pred_fallthru
          _
        // Predicated region
        $region61: #{transformer_decoder_forward.1} parent=11 // pred_check
          %p623 = pneg %p365
        $region62: #{transformer_decoder_forward.1} parent=11 // pred_check_branch
          %625 = sbr.rel (%p623) target = $region64
        $region63: #{transformer_decoder_forward.1} parent=11 // pred_region
          %s627 = ssub.s32 32, 32
          %628 = vsyncadd [#allocation12], %s627
          %s629 = sshll.u32 [#allocation13], 4
          %s630 = int_to_ptr.vmem [resolvable:$true] %s629
          %635 = dma.hbm_to_vmem [thread:$0]  %s14, 32, %s630, [#allocation12], 16, 16, 1
        $region64: #{transformer_decoder_forward.1} parent=11 // pred_fallthru
          _
        // Predicated region
        $region65: #{transformer_decoder_forward.1} parent=11 // pred_check
          %p636 = pneg %p386
        $region66: #{transformer_decoder_forward.1} parent=11 // pred_check_branch
          %638 = sbr.rel (%p636) target = $region68
        $region67: #{transformer_decoder_forward.1} parent=11 // pred_region
          _
        $region68: #{transformer_decoder_forward.1} parent=11 // pred_fallthru
          _
        // Predicated region
        $region69: #{transformer_decoder_forward.1} parent=11 // pred_check
          %p639 = pneg %p407
        $region70: #{transformer_decoder_forward.1} parent=11 // pred_check_branch
          %641 = sbr.rel (%p639) target = $region72
        $region71: #{transformer_decoder_forward.1} parent=11 // pred_region
          _
        $region72: #{transformer_decoder_forward.1} parent=11 // pred_fallthru
          _
        // Predicated region
        $region73: #{transformer_decoder_forward.1} parent=11 // pred_check
          %p642 = pneg %p428
        $region74: #{transformer_decoder_forward.1} parent=11 // pred_check_branch
          %644 = sbr.rel (%p642) target = $region76
        $region75: #{transformer_decoder_forward.1} parent=11 // pred_region
          %s646 = ssub.s32 16, 16
          %647 = vsyncadd [#allocation15], %s646
          %s649 = sshll.u32 [#allocation14], 4
          %s650 = int_to_ptr.vmem [resolvable:$true] %s649
          %652 = dma.hbm_to_vmem [thread:$0]  %s17, 16, %s650, [#allocation15]
        $region76: #{transformer_decoder_forward.1} parent=11 // pred_fallthru
          _
      $region12: #{transformer_decoder_forward.1} parent=5 // pred_fallthru
        _
      %p653 = scmp.lt.s32.totalorder %s40, 2
      // Predicated region
      $region77: #{transformer_decoder_forward.1} parent=5 // pred_check
        %p654 = pneg %p653
      $region78: #{transformer_decoder_forward.1} parent=5 // pred_check_branch
        %656 = sbr.rel (%p654) target = $region80
      $region79: #{transformer_decoder_forward.1} parent=5 // pred_region
        // Predicated region
        $region81: #{transformer_decoder_forward.1} parent=79 // pred_check
          %p657 = pneg %p60
        $region82: #{transformer_decoder_forward.1} parent=79 // pred_check_branch
          %659 = sbr.rel (%p657) target = $region84
        $region83: #{transformer_decoder_forward.1} parent=79 // pred_region
          %s660 = sand.u32 %s50, 1
          %s661 = scalar_lea.sflag [#allocation3], %s660
          %s662 = sand.u32 %s50, 1
          %s663 = smul.addr %s662, 8
          %s664 = scalar_lea.vmem [#allocation2], %s663
          %s666 = ssub.s32 128, 128
          %667 = vsyncadd %s661, %s666
          %s668 = smul.addr %s40, 128
          %s669 = scalar_lea.hbm %s0, %s668
          %s671 = sshll.u32 %s664, 4
          %s672 = int_to_ptr.vmem [resolvable:$true] %s671
          %674 = dma.hbm_to_vmem [thread:$0]  %s669, 128, %s672, %s661
        $region84: #{transformer_decoder_forward.1} parent=79 // pred_fallthru
          _
        // Predicated region
        $region85: #{transformer_decoder_forward.1} parent=79 // pred_check
          %p675 = pneg %p86
        $region86: #{transformer_decoder_forward.1} parent=79 // pred_check_branch
          %677 = sbr.rel (%p675) target = $region88
        $region87: #{transformer_decoder_forward.1} parent=79 // pred_region
          %s678 = sand.u32 %s40, 1
          %s679 = scalar_lea.sflag [#allocation6], %s678
          %s680 = sand.u32 %s76, 1
          %s681 = smul.addr %s680, 8
          %s682 = scalar_lea.vmem [#allocation5], %s681
          %s684 = ssub.s32 128, 128
          %685 = vsyncadd %s679, %s684
          %s686 = smul.addr %s40, 128
          %s687 = scalar_lea.hbm %s1, %s686
          %s689 = sshll.u32 %s682, 4
          %s690 = int_to_ptr.vmem [resolvable:$true] %s689
          %692 = dma.hbm_to_vmem [thread:$0]  %s687, 128, %s690, %s679
        $region88: #{transformer_decoder_forward.1} parent=79 // pred_fallthru
          _
      $region80: #{transformer_decoder_forward.1} parent=5 // pred_fallthru
        _
      %p693 = scmp.le.s32.totalorder 1, %s40
      %p694 = scmp.lt.s32.totalorder %s40, 3
      %p695 = pnand %p693, %p694
      %p696 = pneg %p695
      // Predicated region
      $region89: #{transformer_decoder_forward.1} parent=5 // pred_check
        _
      $region90: #{transformer_decoder_forward.1} parent=5 // pred_check_branch
        %698 = sbr.rel (%p695) target = $region92
      $region91: #{transformer_decoder_forward.1} parent=5 // pred_region
        %s699 = ssub.s32 %s40, 1
        %s700 = sand.u32 %s53, 1
        %s701 = scalar_lea.sflag [#allocation3], %s700
        %s702 = sand.u32 %s53, 1
        %s703 = smul.addr %s702, 8
        %s704 = scalar_lea.vmem [#allocation2], %s703
        // Predicated region
        $region93: #{transformer_decoder_forward.1} parent=91 // pred_check
          %p705 = pneg %p66
        $region94: #{transformer_decoder_forward.1} parent=91 // pred_check_branch
          %707 = sbr.rel (%p705) target = $region96
        $region95: #{transformer_decoder_forward.1} parent=91 // pred_region
          %708 = dma.done %s701, 128
        $region96: #{transformer_decoder_forward.1} parent=91 // pred_fallthru
          _
        %s709 = sand.u32 %s45, 1
        %s710 = scalar_lea.sflag [#allocation6], %s709
        %s711 = sand.u32 %s79, 1
        %s712 = smul.addr %s711, 8
        %s713 = scalar_lea.vmem [#allocation5], %s712
        // Predicated region
        $region97: #{transformer_decoder_forward.1} parent=91 // pred_check
          %p714 = pneg %p92
        $region98: #{transformer_decoder_forward.1} parent=91 // pred_check_branch
          %716 = sbr.rel (%p714) target = $region100
        $region99: #{transformer_decoder_forward.1} parent=91 // pred_region
          %717 = dma.done %s710, 128
        $region100: #{transformer_decoder_forward.1} parent=91 // pred_fallthru
          _
        // Predicated region
        $region101: #{transformer_decoder_forward.1} parent=91 // pred_check
          %p718 = pneg %p113
        $region102: #{transformer_decoder_forward.1} parent=91 // pred_check_branch
          %720 = sbr.rel (%p718) target = $region104
        $region103: #{transformer_decoder_forward.1} parent=91 // pred_region
          %721 = dma.done [#allocation6], 256
        $region104: #{transformer_decoder_forward.1} parent=91 // pred_fallthru
          _
        // Predicated region
        $region105: #{transformer_decoder_forward.1} parent=91 // pred_check
          %p722 = pneg %p260
        $region106: #{transformer_decoder_forward.1} parent=91 // pred_check_branch
          %724 = sbr.rel (%p722) target = $region108
        $region107: #{transformer_decoder_forward.1} parent=91 // pred_region
          %725 = dma.done [#allocation9], 1024
        $region108: #{transformer_decoder_forward.1} parent=91 // pred_fallthru
          _
        // Predicated region
        $region109: #{transformer_decoder_forward.1} parent=91 // pred_check
          %p726 = pneg %p281
        $region110: #{transformer_decoder_forward.1} parent=91 // pred_check_branch
          %728 = sbr.rel (%p726) target = $region112
        $region111: #{transformer_decoder_forward.1} parent=91 // pred_region
          %729 = dma.done [#allocation9], 1024
        $region112: #{transformer_decoder_forward.1} parent=91 // pred_fallthru
          _
        // Predicated region
        $region113: #{transformer_decoder_forward.1} parent=91 // pred_check
          %p730 = pneg %p323
        $region114: #{transformer_decoder_forward.1} parent=91 // pred_check_branch
          %732 = sbr.rel (%p730) target = $region116
        $region115: #{transformer_decoder_forward.1} parent=91 // pred_region
          %733 = dma.done [#allocation12], 32
        $region116: #{transformer_decoder_forward.1} parent=91 // pred_fallthru
          _
        // Predicated region
        $region117: #{transformer_decoder_forward.1} parent=91 // pred_check
          %p734 = pneg %p365
        $region118: #{transformer_decoder_forward.1} parent=91 // pred_check_branch
          %736 = sbr.rel (%p734) target = $region120
        $region119: #{transformer_decoder_forward.1} parent=91 // pred_region
          %737 = dma.done [#allocation12], 32
        $region120: #{transformer_decoder_forward.1} parent=91 // pred_fallthru
          _
        // Predicated region
        $region121: #{transformer_decoder_forward.1} parent=91 // pred_check
          %p738 = pneg %p428
        $region122: #{transformer_decoder_forward.1} parent=91 // pred_check_branch
          %740 = sbr.rel (%p738) target = $region124
        $region123: #{transformer_decoder_forward.1} parent=91 // pred_region
          %741 = dma.done [#allocation15], 16
        $region124: #{transformer_decoder_forward.1} parent=91 // pred_fallthru
          _
        %s742 = sand.u32 %s53, 1
        %s743 = scalar_lea.sflag [#allocation3], %s742
        %s744 = sand.u32 %s53, 1
        %s745 = smul.addr %s744, 8
        %s746 = scalar_lea.vmem [#allocation2], %s745
        %p747 = pneg %p66
        %p748 = pneg %p63
        %s749 = sand.u32 %s45, 1
        %s750 = scalar_lea.sflag [#allocation6], %s749
        %s751 = sand.u32 %s79, 1
        %s752 = smul.addr %s751, 8
        %s753 = scalar_lea.vmem [#allocation5], %s752
        %p754 = pneg %p92
        %p755 = pneg %p89
        %p756 = pneg %p113
        %p757 = pneg %p110
        %p758 = pneg %p134
        %p759 = pneg %p131
        %p760 = pneg %p155
        %p761 = pneg %p152
        %p762 = pneg %p176
        %p763 = pneg %p173
        %p764 = pneg %p197
        %p765 = pneg %p194
        %p766 = pneg %p218
        %p767 = pneg %p215
        %p768 = pneg %p239
        %p769 = pneg %p236
        %p770 = pneg %p260
        %p771 = pneg %p257
        %p772 = pneg %p281
        %p773 = pneg %p278
        %p774 = pneg %p302
        %p775 = pneg %p299
        %p776 = pneg %p323
        %p777 = pneg %p320
        %p778 = pneg %p344
        %p779 = pneg %p341
        %p780 = pneg %p365
        %p781 = pneg %p362
        %p782 = pneg %p386
        %p783 = pneg %p383
        %p784 = pneg %p407
        %p785 = pneg %p404
        %p786 = pneg %p428
        %p787 = pneg %p425
        %p788 = pneg %p454
        %p789 = pneg %p451
        %s790 = sand.u32 %s441, 1
        %s791 = scalar_lea.sflag [#allocation4], %s790
        %s792 = sand.u32 %s441, 1
        %s793 = scalar_lea.vmem [#allocation16], %s792
        %p794 = pneg %p480
        %p795 = pneg %p477
        %s796 = sand.u32 %s467, 1
        %s797 = sand.u32 %s467, 1
        %s798 = smul.addr %s797, 16
        %s799 = scalar_lea.vmem [#allocation17], %s798
        %p800 = pneg %p506
        %p801 = pneg %p503
        %s802 = sand.u32 %s493, 1
        %s803 = sand.u32 %s493, 1
        %s804 = smul.addr %s803, 64
        %s805 = scalar_lea.vmem [#allocation18], %s804
        %p806 = pneg %p532
        %p807 = pneg %p529
        %s808 = sand.u32 %s519, 1
        %s809 = sand.u32 %s519, 1
        %s810 = smul.addr %s809, 64
        %s811 = scalar_lea.vmem [#allocation19], %s810
        %s812 = smul.u32 4, %s45
        %s813 = smul.u32 4, %s45
        %v814 = vld [vmem:[%s704] sm:$0xff]
        %v815 = vld [vmem:[%s713] sm:$0xff]
        %v816 = vld [vmem:[#allocation7] sm:$0xff]
        %v817 = vld [vmem:[#allocation7 + $0x8] sm:$0xff]
        %v818 = vld [vmem:[%s3] sm:$0x1]
        %v820 = vlaneseq
        %v821 = vshrl.u32 %v820, 7
        %v822 = vsub.s32 0, %v821
        %v823 = vrot.slane %v818, %v822
        %vm825 = vcmask 130048
        %v827 = vsel %vm825, %v814, 0
        %829 = vmatprep.subr.mxu0 0.0
        %830 = vmatpush1.msra.mxu0 0.0
        %831 = vmatprep.subr.mxu0 0.0
        %832 = vmatpush1.msra.mxu0 0.0
        %833 = vmatprep.subr.mxu0 0.0
        %834 = vmatpush1.msra.mxu0 0.0
        %835 = vmatprep.subr.mxu0 0.0
        %836 = vmatpush1.msra.mxu0 0.0
        %837 = vmatprep.subr.mxu0 0.0
        %838 = vmatpush1.msra.mxu0 0.0
        %839 = vmatprep.subr.mxu0 0.0
        %840 = vmatpush1.msra.mxu0 0.0
        %841 = vmatprep.subr.mxu0 0.0
        %842 = vmatpush1.msra.mxu0 0.0
        %843 = vmatprep.subr.mxu0 0.0
        %844 = vmatpush1.msra.mxu0 0.0
        %845 = vmatprep.subr.mxu0 0.0
        %846 = vmatpush1.msra.mxu0 0.0
        %847 = vmatprep.subr.mxu0 0.0
        %848 = vmatpush1.msra.mxu0 0.0
        %849 = vmatprep.subr.mxu0 0.0
        %850 = vmatpush1.msra.mxu0 0.0
        %851 = vmatprep.subr.mxu0 0.0
        %852 = vmatpush1.msra.mxu0 0.0
        %853 = vmatprep.subr.mxu0 0.0
        %854 = vmatpush1.msra.mxu0 0.0
        %855 = vmatprep.subr.mxu0 0.0
        %856 = vmatpush1.msra.mxu0 0.0
        %857 = vmatprep.subr.mxu0 0.0
        %858 = vmatpush1.msra.mxu0 %v817
        %859 = vmatprep.subr.mxu0 0.0
        %860 = vmatpush1.msra.mxu0 %v816
        %861 = vmatprep.subr.mxu0 0.0
        %862 = vmatpush2.msra.mxu0 0.0
        %863 = vmatprep.subr.mxu0 0.0
        %864 = vmatpush2.msra.mxu0 0.0
        %865 = vmatprep.subr.mxu0 0.0
        %866 = vmatpush2.msra.mxu0 0.0
        %867 = vmatprep.subr.mxu0 0.0
        %868 = vmatpush2.msra.mxu0 0.0
        %869 = vmatprep.subr.mxu0 0.0
        %870 = vmatpush2.msra.mxu0 0.0
        %871 = vmatprep.subr.mxu0 0.0
        %872 = vmatpush2.msra.mxu0 0.0
        %873 = vmatprep.subr.mxu0 0.0
        %874 = vmatpush2.msra.mxu0 0.0
        %875 = vmatprep.subr.mxu0 0.0
        %876 = vmatpush2.msra.mxu0 0.0
        %877 = vmatprep.subr.mxu0 0.0
        %878 = vmatpush2.msra.mxu0 0.0
        %879 = vmatprep.subr.mxu0 0.0
        %880 = vmatpush2.msra.mxu0 0.0
        %881 = vmatprep.subr.mxu0 0.0
        %882 = vmatpush2.msra.mxu0 0.0
        %883 = vmatprep.subr.mxu0 0.0
        %884 = vmatpush2.msra.mxu0 0.0
        %885 = vmatprep.subr.mxu0 0.0
        %886 = vmatpush2.msra.mxu0 0.0
        %887 = vmatprep.subr.mxu0 0.0
        %888 = vmatpush2.msra.mxu0 0.0
        %889 = vmatprep.subr.mxu0 0.0
        %890 = vmatpush2.msra.mxu0 0.0
        %891 = vmatprep.subr.mxu0 0.0
        %892 = vmatpush2.msra.mxu0 0.0
        %893 = vmatprep.mubr.f32.mxu0 0.0
        %894 = vmatmul.mubr.f32.gmra.mxu0 %v827
        %v895 = vpop.f32.mrf.mxu0
        %v896 = vadd.f32 %v823, %v895
        %v897 = vpop.f32.mrf.mxu0
        %898 = vdwg.mxu0
        %v899 = vmul.f32 %v896, 5.656854
        %v900 = vld [vmem:[%s4] sm:$0xff]
        %v901 = vadd.f32 %v899, %v900
        %vm902 = vcmask 261120
        %903 = vst.msk [vmem:[%s799] sm:$0xff] %vm902, %v901
        %v904 = vld [vmem:[%s15] sm:$0x3f]
        %v905 = vld [vmem:[%s5] sm:$0xff]
        %v906 = vld [vmem:[%s5 + $0x8] sm:$0xff]
        %v907 = vld [vmem:[%s5 + $0x10] sm:$0xff]
        %v908 = vld [vmem:[%s5 + $0x18] sm:$0xff]
        %v909 = vld [vmem:[%s6] sm:$0xff]
        %v910 = vld [vmem:[%s6 + $0x8] sm:$0xff]
        %v911 = vld [vmem:[%s6 + $0x10] sm:$0xff]
        %v912 = vld [vmem:[%s6 + $0x18] sm:$0xff]
        %v913 = vld [vmem:[%s7] sm:$0xff]
        %v914 = vld [vmem:[%s7 + $0x8] sm:$0xff]
        %v915 = vld [vmem:[%s7 + $0x10] sm:$0xff]
        %v916 = vld [vmem:[%s7 + $0x18] sm:$0xff]
        %v918 = vsel %vm902, %v901, 0
        %920 = vmatprep.subr.mxu0 0.0
        %921 = vmatpush1.msra.mxu0 0.0
        %922 = vmatprep.subr.mxu0 0.0
        %923 = vmatpush1.msra.mxu0 0.0
        %924 = vmatprep.subr.mxu0 0.0
        %925 = vmatpush1.msra.mxu0 0.0
        %926 = vmatprep.subr.mxu0 0.0
        %927 = vmatpush1.msra.mxu0 0.0
        %928 = vmatprep.subr.mxu0 0.0
        %929 = vmatpush1.msra.mxu0 0.0
        %930 = vmatprep.subr.mxu0 0.0
        %931 = vmatpush1.msra.mxu0 0.0
        %932 = vmatprep.subr.mxu0 0.0
        %933 = vmatpush1.msra.mxu0 0.0
        %934 = vmatprep.subr.mxu0 0.0
        %935 = vmatpush1.msra.mxu0 0.0
        %936 = vmatprep.subr.mxu0 0.0
        %937 = vmatpush1.msra.mxu0 0.0
        %938 = vmatprep.subr.mxu0 0.0
        %939 = vmatpush1.msra.mxu0 0.0
        %940 = vmatprep.subr.mxu0 0.0
        %941 = vmatpush1.msra.mxu0 0.0
        %942 = vmatprep.subr.mxu0 0.0
        %943 = vmatpush1.msra.mxu0 0.0
        %944 = vmatprep.subr.mxu0 0.0
        %945 = vmatpush1.msra.mxu0 %v908
        %946 = vmatprep.subr.mxu0 0.0
        %947 = vmatpush1.msra.mxu0 %v907
        %948 = vmatprep.subr.mxu0 0.0
        %949 = vmatpush1.msra.mxu0 %v906
        %950 = vmatprep.subr.mxu0 0.0
        %951 = vmatpush1.msra.mxu0 %v905
        %952 = vmatprep.subr.mxu0 0.0
        %953 = vmatpush2.msra.mxu0 0.0
        %954 = vmatprep.subr.mxu0 0.0
        %955 = vmatpush2.msra.mxu0 0.0
        %956 = vmatprep.subr.mxu0 0.0
        %957 = vmatpush2.msra.mxu0 0.0
        %958 = vmatprep.subr.mxu0 0.0
        %959 = vmatpush2.msra.mxu0 0.0
        %960 = vmatprep.subr.mxu0 0.0
        %961 = vmatpush2.msra.mxu0 0.0
        %962 = vmatprep.subr.mxu0 0.0
        %963 = vmatpush2.msra.mxu0 0.0
        %964 = vmatprep.subr.mxu0 0.0
        %965 = vmatpush2.msra.mxu0 0.0
        %966 = vmatprep.subr.mxu0 0.0
        %967 = vmatpush2.msra.mxu0 0.0
        %968 = vmatprep.subr.mxu0 0.0
        %969 = vmatpush2.msra.mxu0 0.0
        %970 = vmatprep.subr.mxu0 0.0
        %971 = vmatpush2.msra.mxu0 0.0
        %972 = vmatprep.subr.mxu0 0.0
        %973 = vmatpush2.msra.mxu0 0.0
        %974 = vmatprep.subr.mxu0 0.0
        %975 = vmatpush2.msra.mxu0 0.0
        %976 = vmatprep.subr.mxu0 0.0
        %977 = vmatpush2.msra.mxu0 0.0
        %978 = vmatprep.subr.mxu0 0.0
        %979 = vmatpush2.msra.mxu0 0.0
        %980 = vmatprep.subr.mxu0 0.0
        %981 = vmatpush2.msra.mxu0 0.0
        %982 = vmatprep.subr.mxu0 0.0
        %983 = vmatpush2.msra.mxu0 0.0
        %984 = vmatprep.mubr.f32.mxu0 0.0
        %985 = vmatmul.mubr.f32.gmra.mxu0 %v918
        %v986 = vpop.f32.mrf.mxu0
        %v987 = vadd.f32 0.0, %v986
        %v988 = vpop.f32.mrf.mxu0
        %989 = vdwg.mxu0
        %990 = vmatprep.subr.mxu0 0.0
        %991 = vmatpush1.msra.mxu0 0.0
        %992 = vmatprep.subr.mxu0 0.0
        %993 = vmatpush1.msra.mxu0 0.0
        %994 = vmatprep.subr.mxu0 0.0
        %995 = vmatpush1.msra.mxu0 0.0
        %996 = vmatprep.subr.mxu0 0.0
        %997 = vmatpush1.msra.mxu0 0.0
        %998 = vmatprep.subr.mxu0 0.0
        %999 = vmatpush1.msra.mxu0 0.0
        %1000 = vmatprep.subr.mxu0 0.0
        %1001 = vmatpush1.msra.mxu0 0.0
        %1002 = vmatprep.subr.mxu0 0.0
        %1003 = vmatpush1.msra.mxu0 0.0
        %1004 = vmatprep.subr.mxu0 0.0
        %1005 = vmatpush1.msra.mxu0 0.0
        %1006 = vmatprep.subr.mxu0 0.0
        %1007 = vmatpush1.msra.mxu0 0.0
        %1008 = vmatprep.subr.mxu0 0.0
        %1009 = vmatpush1.msra.mxu0 0.0
        %1010 = vmatprep.subr.mxu0 0.0
        %1011 = vmatpush1.msra.mxu0 0.0
        %1012 = vmatprep.subr.mxu0 0.0
        %1013 = vmatpush1.msra.mxu0 0.0
        %1014 = vmatprep.subr.mxu0 0.0
        %1015 = vmatpush1.msra.mxu0 %v912
        %1016 = vmatprep.subr.mxu0 0.0
        %1017 = vmatpush1.msra.mxu0 %v911
        %1018 = vmatprep.subr.mxu0 0.0
        %1019 = vmatpush1.msra.mxu0 %v910
        %1020 = vmatprep.subr.mxu0 0.0
        %1021 = vmatpush1.msra.mxu0 %v909
        %1022 = vmatprep.subr.mxu0 0.0
        %1023 = vmatpush2.msra.mxu0 0.0
        %1024 = vmatprep.subr.mxu0 0.0
        %1025 = vmatpush2.msra.mxu0 0.0
        %1026 = vmatprep.subr.mxu0 0.0
        %1027 = vmatpush2.msra.mxu0 0.0
        %1028 = vmatprep.subr.mxu0 0.0
        %1029 = vmatpush2.msra.mxu0 0.0
        %1030 = vmatprep.subr.mxu0 0.0
        %1031 = vmatpush2.msra.mxu0 0.0
        %1032 = vmatprep.subr.mxu0 0.0
        %1033 = vmatpush2.msra.mxu0 0.0
        %1034 = vmatprep.subr.mxu0 0.0
        %1035 = vmatpush2.msra.mxu0 0.0
        %1036 = vmatprep.subr.mxu0 0.0
        %1037 = vmatpush2.msra.mxu0 0.0
        %1038 = vmatprep.subr.mxu0 0.0
        %1039 = vmatpush2.msra.mxu0 0.0
        %1040 = vmatprep.subr.mxu0 0.0
        %1041 = vmatpush2.msra.mxu0 0.0
        %1042 = vmatprep.subr.mxu0 0.0
        %1043 = vmatpush2.msra.mxu0 0.0
        %1044 = vmatprep.subr.mxu0 0.0
        %1045 = vmatpush2.msra.mxu0 0.0
        %1046 = vmatprep.subr.mxu0 0.0
        %1047 = vmatpush2.msra.mxu0 0.0
        %1048 = vmatprep.subr.mxu0 0.0
        %1049 = vmatpush2.msra.mxu0 0.0
        %1050 = vmatprep.subr.mxu0 0.0
        %1051 = vmatpush2.msra.mxu0 0.0
        %1052 = vmatprep.subr.mxu0 0.0
        %1053 = vmatpush2.msra.mxu0 0.0
        %1054 = vmatprep.mubr.f32.mxu0 0.0
        %1055 = vmatmul.mubr.f32.gmra.mxu0 %v918
        %v1056 = vpop.f32.mrf.mxu0
        %v1057 = vadd.f32 0.0, %v1056
        %v1058 = vpop.f32.mrf.mxu0
        %1059 = vdwg.mxu0
        %1061 = vrot.lane.b32.xlu0 %v987, 120
        %v1062 = vpop.permute.xlu0 %1061
        %1063 = vrot.lane.b32.xlu0 %v987, 112
        %v1064 = vpop.permute.xlu0 %1063
        %1065 = vrot.lane.b32.xlu0 %v987, 104
        %v1066 = vpop.permute.xlu0 %1065
        %1068 = vrot.lane.b32.xlu0 %v1057, 120
        %v1069 = vpop.permute.xlu0 %1068
        %1070 = vrot.lane.b32.xlu0 %v1057, 112
        %v1071 = vpop.permute.xlu0 %1070
        %1072 = vrot.lane.b32.xlu0 %v1057, 104
        %v1073 = vpop.permute.xlu0 %1072
        %vm1074 = vcmask 64512
        %v1075 = vsel %vm1074, %v987, 0
        %v1077 = vsel %vm1074, %v1057, 0
        %1079 = vmatprep.subr.mxu0 0.0
        %1080 = vmatpush1.xpose.msra.mxu0 0.0
        %1081 = vmatprep.subr.mxu0 0.0
        %1082 = vmatpush1.xpose.msra.mxu0 0.0
        %1083 = vmatprep.subr.mxu0 0.0
        %1084 = vmatpush1.xpose.msra.mxu0 0.0
        %1085 = vmatprep.subr.mxu0 0.0
        %1086 = vmatpush1.xpose.msra.mxu0 0.0
        %1087 = vmatprep.subr.mxu0 0.0
        %1088 = vmatpush1.xpose.msra.mxu0 0.0
        %1089 = vmatprep.subr.mxu0 0.0
        %1090 = vmatpush1.xpose.msra.mxu0 0.0
        %1091 = vmatprep.subr.mxu0 0.0
        %1092 = vmatpush1.xpose.msra.mxu0 0.0
        %1093 = vmatprep.subr.mxu0 0.0
        %1094 = vmatpush1.xpose.msra.mxu0 0.0
        %1095 = vmatprep.subr.mxu0 0.0
        %1096 = vmatpush1.xpose.msra.mxu0 0.0
        %1097 = vmatprep.subr.mxu0 0.0
        %1098 = vmatpush1.xpose.msra.mxu0 0.0
        %1099 = vmatprep.subr.mxu0 0.0
        %1100 = vmatpush1.xpose.msra.mxu0 0.0
        %1101 = vmatprep.subr.mxu0 0.0
        %1102 = vmatpush1.xpose.msra.mxu0 0.0
        %1103 = vmatprep.subr.mxu0 0.0
        %1104 = vmatpush1.xpose.msra.mxu0 0.0
        %1105 = vmatprep.subr.mxu0 0.0
        %1106 = vmatpush1.xpose.msra.mxu0 0.0
        %1107 = vmatprep.subr.mxu0 0.0
        %1108 = vmatpush1.xpose.msra.mxu0 0.0
        %1109 = vmatprep.subr.mxu0 0.0
        %1110 = vmatpush1.xpose.msra.mxu0 %v1077
        %1111 = vmatprep.subr.mxu0 0.0
        %1112 = vmatpush2.xpose.msra.mxu0 0.0
        %1113 = vmatprep.subr.mxu0 0.0
        %1114 = vmatpush2.xpose.msra.mxu0 0.0
        %1115 = vmatprep.subr.mxu0 0.0
        %1116 = vmatpush2.xpose.msra.mxu0 0.0
        %1117 = vmatprep.subr.mxu0 0.0
        %1118 = vmatpush2.xpose.msra.mxu0 0.0
        %1119 = vmatprep.subr.mxu0 0.0
        %1120 = vmatpush2.xpose.msra.mxu0 0.0
        %1121 = vmatprep.subr.mxu0 0.0
        %1122 = vmatpush2.xpose.msra.mxu0 0.0
        %1123 = vmatprep.subr.mxu0 0.0
        %1124 = vmatpush2.xpose.msra.mxu0 0.0
        %1125 = vmatprep.subr.mxu0 0.0
        %1126 = vmatpush2.xpose.msra.mxu0 0.0
        %1127 = vmatprep.subr.mxu0 0.0
        %1128 = vmatpush2.xpose.msra.mxu0 0.0
        %1129 = vmatprep.subr.mxu0 0.0
        %1130 = vmatpush2.xpose.msra.mxu0 0.0
        %1131 = vmatprep.subr.mxu0 0.0
        %1132 = vmatpush2.xpose.msra.mxu0 0.0
        %1133 = vmatprep.subr.mxu0 0.0
        %1134 = vmatpush2.xpose.msra.mxu0 0.0
        %1135 = vmatprep.subr.mxu0 0.0
        %1136 = vmatpush2.xpose.msra.mxu0 0.0
        %1137 = vmatprep.subr.mxu0 0.0
        %1138 = vmatpush2.xpose.msra.mxu0 0.0
        %1139 = vmatprep.subr.mxu0 0.0
        %1140 = vmatpush2.xpose.msra.mxu0 0.0
        %1141 = vmatprep.subr.mxu0 0.0
        %1142 = vmatpush2.xpose.msra.mxu0 0.0
        %1143 = vmatprep.mubr.f32.mxu0 0.0
        %1144 = vmatmul.mubr.f32.gmra.mxu0 %v1075
        %v1145 = vpop.f32.mrf.mxu0
        %v1146 = vadd.f32 0.0, %v1145
        %v1147 = vpop.f32.mrf.mxu0
        %1148 = vdwg.mxu0
        %v1149 = vsel %vm1074, %v1062, 0
        %v1151 = vsel %vm1074, %v1069, 0
        %1153 = vmatprep.subr.mxu0 0.0
        %1154 = vmatpush1.xpose.msra.mxu0 0.0
        %1155 = vmatprep.subr.mxu0 0.0
        %1156 = vmatpush1.xpose.msra.mxu0 0.0
        %1157 = vmatprep.subr.mxu0 0.0
        %1158 = vmatpush1.xpose.msra.mxu0 0.0
        %1159 = vmatprep.subr.mxu0 0.0
        %1160 = vmatpush1.xpose.msra.mxu0 0.0
        %1161 = vmatprep.subr.mxu0 0.0
        %1162 = vmatpush1.xpose.msra.mxu0 0.0
        %1163 = vmatprep.subr.mxu0 0.0
        %1164 = vmatpush1.xpose.msra.mxu0 0.0
        %1165 = vmatprep.subr.mxu0 0.0
        %1166 = vmatpush1.xpose.msra.mxu0 0.0
        %1167 = vmatprep.subr.mxu0 0.0
        %1168 = vmatpush1.xpose.msra.mxu0 0.0
        %1169 = vmatprep.subr.mxu0 0.0
        %1170 = vmatpush1.xpose.msra.mxu0 0.0
        %1171 = vmatprep.subr.mxu0 0.0
        %1172 = vmatpush1.xpose.msra.mxu0 0.0
        %1173 = vmatprep.subr.mxu0 0.0
        %1174 = vmatpush1.xpose.msra.mxu0 0.0
        %1175 = vmatprep.subr.mxu0 0.0
        %1176 = vmatpush1.xpose.msra.mxu0 0.0
        %1177 = vmatprep.subr.mxu0 0.0
        %1178 = vmatpush1.xpose.msra.mxu0 0.0
        %1179 = vmatprep.subr.mxu0 0.0
        %1180 = vmatpush1.xpose.msra.mxu0 0.0
        %1181 = vmatprep.subr.mxu0 0.0
        %1182 = vmatpush1.xpose.msra.mxu0 0.0
        %1183 = vmatprep.subr.mxu0 0.0
        %1184 = vmatpush1.xpose.msra.mxu0 %v1151
        %1185 = vmatprep.subr.mxu0 0.0
        %1186 = vmatpush2.xpose.msra.mxu0 0.0
        %1187 = vmatprep.subr.mxu0 0.0
        %1188 = vmatpush2.xpose.msra.mxu0 0.0
        %1189 = vmatprep.subr.mxu0 0.0
        %1190 = vmatpush2.xpose.msra.mxu0 0.0
        %1191 = vmatprep.subr.mxu0 0.0
        %1192 = vmatpush2.xpose.msra.mxu0 0.0
        %1193 = vmatprep.subr.mxu0 0.0
        %1194 = vmatpush2.xpose.msra.mxu0 0.0
        %1195 = vmatprep.subr.mxu0 0.0
        %1196 = vmatpush2.xpose.msra.mxu0 0.0
        %1197 = vmatprep.subr.mxu0 0.0
        %1198 = vmatpush2.xpose.msra.mxu0 0.0
        %1199 = vmatprep.subr.mxu0 0.0
        %1200 = vmatpush2.xpose.msra.mxu0 0.0
        %1201 = vmatprep.subr.mxu0 0.0
        %1202 = vmatpush2.xpose.msra.mxu0 0.0
        %1203 = vmatprep.subr.mxu0 0.0
        %1204 = vmatpush2.xpose.msra.mxu0 0.0
        %1205 = vmatprep.subr.mxu0 0.0
        %1206 = vmatpush2.xpose.msra.mxu0 0.0
        %1207 = vmatprep.subr.mxu0 0.0
        %1208 = vmatpush2.xpose.msra.mxu0 0.0
        %1209 = vmatprep.subr.mxu0 0.0
        %1210 = vmatpush2.xpose.msra.mxu0 0.0
        %1211 = vmatprep.subr.mxu0 0.0
        %1212 = vmatpush2.xpose.msra.mxu0 0.0
        %1213 = vmatprep.subr.mxu0 0.0
        %1214 = vmatpush2.xpose.msra.mxu0 0.0
        %1215 = vmatprep.subr.mxu0 0.0
        %1216 = vmatpush2.xpose.msra.mxu0 0.0
        %1217 = vmatprep.mubr.f32.mxu0 0.0
        %1218 = vmatmul.mubr.f32.gmra.mxu0 %v1149
        %v1219 = vpop.f32.mrf.mxu0
        %v1220 = vadd.f32 0.0, %v1219
        %v1221 = vpop.f32.mrf.mxu0
        %1222 = vdwg.mxu0
        %v1223 = vsel %vm1074, %v1064, 0
        %v1225 = vsel %vm1074, %v1071, 0
        %1227 = vmatprep.subr.mxu0 0.0
        %1228 = vmatpush1.xpose.msra.mxu0 0.0
        %1229 = vmatprep.subr.mxu0 0.0
        %1230 = vmatpush1.xpose.msra.mxu0 0.0
        %1231 = vmatprep.subr.mxu0 0.0
        %1232 = vmatpush1.xpose.msra.mxu0 0.0
        %1233 = vmatprep.subr.mxu0 0.0
        %1234 = vmatpush1.xpose.msra.mxu0 0.0
        %1235 = vmatprep.subr.mxu0 0.0
        %1236 = vmatpush1.xpose.msra.mxu0 0.0
        %1237 = vmatprep.subr.mxu0 0.0
        %1238 = vmatpush1.xpose.msra.mxu0 0.0
        %1239 = vmatprep.subr.mxu0 0.0
        %1240 = vmatpush1.xpose.msra.mxu0 0.0
        %1241 = vmatprep.subr.mxu0 0.0
        %1242 = vmatpush1.xpose.msra.mxu0 0.0
        %1243 = vmatprep.subr.mxu0 0.0
        %1244 = vmatpush1.xpose.msra.mxu0 0.0
        %1245 = vmatprep.subr.mxu0 0.0
        %1246 = vmatpush1.xpose.msra.mxu0 0.0
        %1247 = vmatprep.subr.mxu0 0.0
        %1248 = vmatpush1.xpose.msra.mxu0 0.0
        %1249 = vmatprep.subr.mxu0 0.0
        %1250 = vmatpush1.xpose.msra.mxu0 0.0
        %1251 = vmatprep.subr.mxu0 0.0
        %1252 = vmatpush1.xpose.msra.mxu0 0.0
        %1253 = vmatprep.subr.mxu0 0.0
        %1254 = vmatpush1.xpose.msra.mxu0 0.0
        %1255 = vmatprep.subr.mxu0 0.0
        %1256 = vmatpush1.xpose.msra.mxu0 0.0
        %1257 = vmatprep.subr.mxu0 0.0
        %1258 = vmatpush1.xpose.msra.mxu0 %v1225
        %1259 = vmatprep.subr.mxu0 0.0
        %1260 = vmatpush2.xpose.msra.mxu0 0.0
        %1261 = vmatprep.subr.mxu0 0.0
        %1262 = vmatpush2.xpose.msra.mxu0 0.0
        %1263 = vmatprep.subr.mxu0 0.0
        %1264 = vmatpush2.xpose.msra.mxu0 0.0
        %1265 = vmatprep.subr.mxu0 0.0
        %1266 = vmatpush2.xpose.msra.mxu0 0.0
        %1267 = vmatprep.subr.mxu0 0.0
        %1268 = vmatpush2.xpose.msra.mxu0 0.0
        %1269 = vmatprep.subr.mxu0 0.0
        %1270 = vmatpush2.xpose.msra.mxu0 0.0
        %1271 = vmatprep.subr.mxu0 0.0
        %1272 = vmatpush2.xpose.msra.mxu0 0.0
        %1273 = vmatprep.subr.mxu0 0.0
        %1274 = vmatpush2.xpose.msra.mxu0 0.0
        %1275 = vmatprep.subr.mxu0 0.0
        %1276 = vmatpush2.xpose.msra.mxu0 0.0
        %1277 = vmatprep.subr.mxu0 0.0
        %1278 = vmatpush2.xpose.msra.mxu0 0.0
        %1279 = vmatprep.subr.mxu0 0.0
        %1280 = vmatpush2.xpose.msra.mxu0 0.0
        %1281 = vmatprep.subr.mxu0 0.0
        %1282 = vmatpush2.xpose.msra.mxu0 0.0
        %1283 = vmatprep.subr.mxu0 0.0
        %1284 = vmatpush2.xpose.msra.mxu0 0.0
        %1285 = vmatprep.subr.mxu0 0.0
        %1286 = vmatpush2.xpose.msra.mxu0 0.0
        %1287 = vmatprep.subr.mxu0 0.0
        %1288 = vmatpush2.xpose.msra.mxu0 0.0
        %1289 = vmatprep.subr.mxu0 0.0
        %1290 = vmatpush2.xpose.msra.mxu0 0.0
        %1291 = vmatprep.mubr.f32.mxu0 0.0
        %1292 = vmatmul.mubr.f32.gmra.mxu0 %v1223
        %v1293 = vpop.f32.mrf.mxu0
        %v1294 = vadd.f32 0.0, %v1293
        %v1295 = vpop.f32.mrf.mxu0
        %1296 = vdwg.mxu0
        %v1297 = vsel %vm1074, %v1066, 0
        %v1299 = vsel %vm1074, %v1073, 0
        %1301 = vmatprep.subr.mxu0 0.0
        %1302 = vmatpush1.xpose.msra.mxu0 0.0
        %1303 = vmatprep.subr.mxu0 0.0
        %1304 = vmatpush1.xpose.msra.mxu0 0.0
        %1305 = vmatprep.subr.mxu0 0.0
        %1306 = vmatpush1.xpose.msra.mxu0 0.0
        %1307 = vmatprep.subr.mxu0 0.0
        %1308 = vmatpush1.xpose.msra.mxu0 0.0
        %1309 = vmatprep.subr.mxu0 0.0
        %1310 = vmatpush1.xpose.msra.mxu0 0.0
        %1311 = vmatprep.subr.mxu0 0.0
        %1312 = vmatpush1.xpose.msra.mxu0 0.0
        %1313 = vmatprep.subr.mxu0 0.0
        %1314 = vmatpush1.xpose.msra.mxu0 0.0
        %1315 = vmatprep.subr.mxu0 0.0
        %1316 = vmatpush1.xpose.msra.mxu0 0.0
        %1317 = vmatprep.subr.mxu0 0.0
        %1318 = vmatpush1.xpose.msra.mxu0 0.0
        %1319 = vmatprep.subr.mxu0 0.0
        %1320 = vmatpush1.xpose.msra.mxu0 0.0
        %1321 = vmatprep.subr.mxu0 0.0
        %1322 = vmatpush1.xpose.msra.mxu0 0.0
        %1323 = vmatprep.subr.mxu0 0.0
        %1324 = vmatpush1.xpose.msra.mxu0 0.0
        %1325 = vmatprep.subr.mxu0 0.0
        %1326 = vmatpush1.xpose.msra.mxu0 0.0
        %1327 = vmatprep.subr.mxu0 0.0
        %1328 = vmatpush1.xpose.msra.mxu0 0.0
        %1329 = vmatprep.subr.mxu0 0.0
        %1330 = vmatpush1.xpose.msra.mxu0 0.0
        %1331 = vmatprep.subr.mxu0 0.0
        %1332 = vmatpush1.xpose.msra.mxu0 %v1299
        %1333 = vmatprep.subr.mxu0 0.0
        %1334 = vmatpush2.xpose.msra.mxu0 0.0
        %1335 = vmatprep.subr.mxu0 0.0
        %1336 = vmatpush2.xpose.msra.mxu0 0.0
        %1337 = vmatprep.subr.mxu0 0.0
        %1338 = vmatpush2.xpose.msra.mxu0 0.0
        %1339 = vmatprep.subr.mxu0 0.0
        %1340 = vmatpush2.xpose.msra.mxu0 0.0
        %1341 = vmatprep.subr.mxu0 0.0
        %1342 = vmatpush2.xpose.msra.mxu0 0.0
        %1343 = vmatprep.subr.mxu0 0.0
        %1344 = vmatpush2.xpose.msra.mxu0 0.0
        %1345 = vmatprep.subr.mxu0 0.0
        %1346 = vmatpush2.xpose.msra.mxu0 0.0
        %1347 = vmatprep.subr.mxu0 0.0
        %1348 = vmatpush2.xpose.msra.mxu0 0.0
        %1349 = vmatprep.subr.mxu0 0.0
        %1350 = vmatpush2.xpose.msra.mxu0 0.0
        %1351 = vmatprep.subr.mxu0 0.0
        %1352 = vmatpush2.xpose.msra.mxu0 0.0
        %1353 = vmatprep.subr.mxu0 0.0
        %1354 = vmatpush2.xpose.msra.mxu0 0.0
        %1355 = vmatprep.subr.mxu0 0.0
        %1356 = vmatpush2.xpose.msra.mxu0 0.0
        %1357 = vmatprep.subr.mxu0 0.0
        %1358 = vmatpush2.xpose.msra.mxu0 0.0
        %1359 = vmatprep.subr.mxu0 0.0
        %1360 = vmatpush2.xpose.msra.mxu0 0.0
        %1361 = vmatprep.subr.mxu0 0.0
        %1362 = vmatpush2.xpose.msra.mxu0 0.0
        %1363 = vmatprep.subr.mxu0 0.0
        %1364 = vmatpush2.xpose.msra.mxu0 0.0
        %1365 = vmatprep.mubr.f32.mxu0 0.0
        %1366 = vmatmul.mubr.f32.gmra.mxu0 %v1297
        %v1367 = vpop.f32.mrf.mxu0
        %v1368 = vadd.f32 0.0, %v1367
        %v1369 = vpop.f32.mrf.mxu0
        %1370 = vdwg.mxu0
        %v1371 = vmul.f32 %v1146, 0.35355338
        %v1372 = vmul.f32 %v1220, 0.35355338
        %v1373 = vmul.f32 %v1294, 0.35355338
        %v1374 = vmul.f32 %v1368, 0.35355338
        %v1375 = vsel %vm1074, %v1371, -inf
        %1376 = vmax.xlane.f32.xlu0 %v1375
        %v1377 = vpop.xlane.xlu0 %1376
        %v1378 = vsel %vm1074, %v1372, -inf
        %1379 = vmax.xlane.f32.xlu0 %v1378
        %v1380 = vpop.xlane.xlu0 %1379
        %v1381 = vsel %vm1074, %v1373, -inf
        %1382 = vmax.xlane.f32.xlu0 %v1381
        %v1383 = vpop.xlane.xlu0 %1382
        %v1384 = vsel %vm1074, %v1374, -inf
        %1385 = vmax.xlane.f32.xlu0 %v1384
        %v1386 = vpop.xlane.xlu0 %1385
        %v1387 = vsub.f32 %v1371, %v1377
        %v1388 = vsub.f32 %v1372, %v1380
        %v1389 = vsub.f32 %v1373, %v1383
        %v1390 = vsub.f32 %v1374, %v1386
        %v1391 = vmul.f32 %v1387, 1.442695
        %v1392 = vpow.pop %v1391
        %v1393 = vmul.f32 %v1388, 1.442695
        %v1394 = vpow.pop %v1393
        %v1395 = vmul.f32 %v1389, 1.442695
        %v1396 = vpow.pop %v1395
        %v1397 = vmul.f32 %v1390, 1.442695
        %v1398 = vpow.pop %v1397
        %v1399 = vsel %vm1074, %v1392, 0.0
        %1400 = vadd.xlane.f32.xlu0 %v1399
        %v1401 = vpop.xlane.xlu0 %1400
        %v1402 = vsel %vm1074, %v1394, 0.0
        %1403 = vadd.xlane.f32.xlu0 %v1402
        %v1404 = vpop.xlane.xlu0 %1403
        %v1405 = vsel %vm1074, %v1396, 0.0
        %1406 = vadd.xlane.f32.xlu0 %v1405
        %v1407 = vpop.xlane.xlu0 %1406
        %v1408 = vsel %vm1074, %v1398, 0.0
        %1409 = vadd.xlane.f32.xlu0 %v1408
        %v1410 = vpop.xlane.xlu0 %1409
        %v1411 = vrcp.pop %v1401
        %v1412 = vmul.f32 %v1392, %v1411
        %v1413 = vrcp.pop %v1404
        %v1414 = vmul.f32 %v1394, %v1413
        %v1415 = vrcp.pop %v1407
        %v1416 = vmul.f32 %v1396, %v1415
        %v1417 = vrcp.pop %v1410
        %v1418 = vmul.f32 %v1398, %v1417
        %1419 = vst.msk [vmem:[%s805] sm:$0xff] %vm1074, %v1412
        %1420 = vst.msk [vmem:[%s805 + $0x8] sm:$0xff] %vm1074, %v1414
        %1421 = vst.msk [vmem:[%s805 + $0x10] sm:$0xff] %vm1074, %v1416
        %1422 = vst.msk [vmem:[%s805 + $0x18] sm:$0xff] %vm1074, %v1418
        %1423 = vrot.lane.b32.xlu0 %v1057, 96
        %v1424 = vpop.permute.xlu0 %1423
        %v1427 = vsel %vm1074, %v1412, 0
        %1429 = vmatprep.subr.mxu0 0.0
        %1430 = vmatpush1.msra.mxu0 0.0
        %1431 = vmatprep.subr.mxu0 0.0
        %1432 = vmatpush1.msra.mxu0 0.0
        %1433 = vmatprep.subr.mxu0 0.0
        %1434 = vmatpush1.msra.mxu0 0.0
        %1435 = vmatprep.subr.mxu0 0.0
        %1436 = vmatpush1.msra.mxu0 0.0
        %1437 = vmatprep.subr.mxu0 0.0
        %1438 = vmatpush1.msra.mxu0 0.0
        %1439 = vmatprep.subr.mxu0 0.0
        %1440 = vmatpush1.msra.mxu0 0.0
        %1441 = vmatprep.subr.mxu0 0.0
        %1442 = vmatpush1.msra.mxu0 0.0
        %1443 = vmatprep.subr.mxu0 0.0
        %1444 = vmatpush1.msra.mxu0 0.0
        %1445 = vmatprep.subr.mxu0 0.0
        %1446 = vmatpush1.msra.mxu0 0.0
        %1447 = vmatprep.subr.mxu0 0.0
        %1448 = vmatpush1.msra.mxu0 0.0
        %1449 = vmatprep.subr.mxu0 0.0
        %1450 = vmatpush1.msra.mxu0 0.0
        %1451 = vmatprep.subr.mxu0 0.0
        %1452 = vmatpush1.msra.mxu0 0.0
        %1453 = vmatprep.subr.mxu0 0.0
        %1454 = vmatpush1.msra.mxu0 0.0
        %1455 = vmatprep.subr.mxu0 0.0
        %1456 = vmatpush1.msra.mxu0 0.0
        %1457 = vmatprep.subr.mxu0 0.0
        %1458 = vmatpush1.msra.mxu0 0.0
        %1459 = vmatprep.subr.mxu0 0.0
        %1460 = vmatpush1.msra.mxu0 %v1424
        %1461 = vmatprep.subr.mxu0 0.0
        %1462 = vmatpush2.msra.mxu0 0.0
        %1463 = vmatprep.subr.mxu0 0.0
        %1464 = vmatpush2.msra.mxu0 0.0
        %1465 = vmatprep.subr.mxu0 0.0
        %1466 = vmatpush2.msra.mxu0 0.0
        %1467 = vmatprep.subr.mxu0 0.0
        %1468 = vmatpush2.msra.mxu0 0.0
        %1469 = vmatprep.subr.mxu0 0.0
        %1470 = vmatpush2.msra.mxu0 0.0
        %1471 = vmatprep.subr.mxu0 0.0
        %1472 = vmatpush2.msra.mxu0 0.0
        %1473 = vmatprep.subr.mxu0 0.0
        %1474 = vmatpush2.msra.mxu0 0.0
        %1475 = vmatprep.subr.mxu0 0.0
        %1476 = vmatpush2.msra.mxu0 0.0
        %1477 = vmatprep.subr.mxu0 0.0
        %1478 = vmatpush2.msra.mxu0 0.0
        %1479 = vmatprep.subr.mxu0 0.0
        %1480 = vmatpush2.msra.mxu0 0.0
        %1481 = vmatprep.subr.mxu0 0.0
        %1482 = vmatpush2.msra.mxu0 0.0
        %1483 = vmatprep.subr.mxu0 0.0
        %1484 = vmatpush2.msra.mxu0 0.0
        %1485 = vmatprep.subr.mxu0 0.0
        %1486 = vmatpush2.msra.mxu0 0.0
        %1487 = vmatprep.subr.mxu0 0.0
        %1488 = vmatpush2.msra.mxu0 0.0
        %1489 = vmatprep.subr.mxu0 0.0
        %1490 = vmatpush2.msra.mxu0 0.0
        %1491 = vmatprep.subr.mxu0 0.0
        %1492 = vmatpush2.msra.mxu0 0.0
        %1493 = vmatprep.mubr.f32.mxu0 0.0
        %1494 = vmatmul.mubr.f32.gmra.mxu0 %v1427
        %v1495 = vpop.f32.mrf.mxu0
        %v1496 = vadd.f32 0.0, %v1495
        %v1497 = vpop.f32.mrf.mxu0
        %1498 = vdwg.mxu0
        %1499 = vrot.lane.b32.xlu0 %v1069, 96
        %v1500 = vpop.permute.xlu0 %1499
        %v1503 = vsel %vm1074, %v1414, 0
        %1505 = vmatprep.subr.mxu0 0.0
        %1506 = vmatpush1.msra.mxu0 0.0
        %1507 = vmatprep.subr.mxu0 0.0
        %1508 = vmatpush1.msra.mxu0 0.0
        %1509 = vmatprep.subr.mxu0 0.0
        %1510 = vmatpush1.msra.mxu0 0.0
        %1511 = vmatprep.subr.mxu0 0.0
        %1512 = vmatpush1.msra.mxu0 0.0
        %1513 = vmatprep.subr.mxu0 0.0
        %1514 = vmatpush1.msra.mxu0 0.0
        %1515 = vmatprep.subr.mxu0 0.0
        %1516 = vmatpush1.msra.mxu0 0.0
        %1517 = vmatprep.subr.mxu0 0.0
        %1518 = vmatpush1.msra.mxu0 0.0
        %1519 = vmatprep.subr.mxu0 0.0
        %1520 = vmatpush1.msra.mxu0 0.0
        %1521 = vmatprep.subr.mxu0 0.0
        %1522 = vmatpush1.msra.mxu0 0.0
        %1523 = vmatprep.subr.mxu0 0.0
        %1524 = vmatpush1.msra.mxu0 0.0
        %1525 = vmatprep.subr.mxu0 0.0
        %1526 = vmatpush1.msra.mxu0 0.0
        %1527 = vmatprep.subr.mxu0 0.0
        %1528 = vmatpush1.msra.mxu0 0.0
        %1529 = vmatprep.subr.mxu0 0.0
        %1530 = vmatpush1.msra.mxu0 0.0
        %1531 = vmatprep.subr.mxu0 0.0
        %1532 = vmatpush1.msra.mxu0 0.0
        %1533 = vmatprep.subr.mxu0 0.0
        %1534 = vmatpush1.msra.mxu0 0.0
        %1535 = vmatprep.subr.mxu0 0.0
        %1536 = vmatpush1.msra.mxu0 %v1500
        %1537 = vmatprep.subr.mxu0 0.0
        %1538 = vmatpush2.msra.mxu0 0.0
        %1539 = vmatprep.subr.mxu0 0.0
        %1540 = vmatpush2.msra.mxu0 0.0
        %1541 = vmatprep.subr.mxu0 0.0
        %1542 = vmatpush2.msra.mxu0 0.0
        %1543 = vmatprep.subr.mxu0 0.0
        %1544 = vmatpush2.msra.mxu0 0.0
        %1545 = vmatprep.subr.mxu0 0.0
        %1546 = vmatpush2.msra.mxu0 0.0
        %1547 = vmatprep.subr.mxu0 0.0
        %1548 = vmatpush2.msra.mxu0 0.0
        %1549 = vmatprep.subr.mxu0 0.0
        %1550 = vmatpush2.msra.mxu0 0.0
        %1551 = vmatprep.subr.mxu0 0.0
        %1552 = vmatpush2.msra.mxu0 0.0
        %1553 = vmatprep.subr.mxu0 0.0
        %1554 = vmatpush2.msra.mxu0 0.0
        %1555 = vmatprep.subr.mxu0 0.0
        %1556 = vmatpush2.msra.mxu0 0.0
        %1557 = vmatprep.subr.mxu0 0.0
        %1558 = vmatpush2.msra.mxu0 0.0
        %1559 = vmatprep.subr.mxu0 0.0
        %1560 = vmatpush2.msra.mxu0 0.0
        %1561 = vmatprep.subr.mxu0 0.0
        %1562 = vmatpush2.msra.mxu0 0.0
        %1563 = vmatprep.subr.mxu0 0.0
        %1564 = vmatpush2.msra.mxu0 0.0
        %1565 = vmatprep.subr.mxu0 0.0
        %1566 = vmatpush2.msra.mxu0 0.0
        %1567 = vmatprep.subr.mxu0 0.0
        %1568 = vmatpush2.msra.mxu0 0.0
        %1569 = vmatprep.mubr.f32.mxu0 0.0
        %1570 = vmatmul.mubr.f32.gmra.mxu0 %v1503
        %v1571 = vpop.f32.mrf.mxu0
        %v1572 = vadd.f32 0.0, %v1571
        %v1573 = vpop.f32.mrf.mxu0
        %1574 = vdwg.mxu0
        %1575 = vrot.lane.b32.xlu0 %v1071, 96
        %v1576 = vpop.permute.xlu0 %1575
        %v1579 = vsel %vm1074, %v1416, 0
        %1581 = vmatprep.subr.mxu0 0.0
        %1582 = vmatpush1.msra.mxu0 0.0
        %1583 = vmatprep.subr.mxu0 0.0
        %1584 = vmatpush1.msra.mxu0 0.0
        %1585 = vmatprep.subr.mxu0 0.0
        %1586 = vmatpush1.msra.mxu0 0.0
        %1587 = vmatprep.subr.mxu0 0.0
        %1588 = vmatpush1.msra.mxu0 0.0
        %1589 = vmatprep.subr.mxu0 0.0
        %1590 = vmatpush1.msra.mxu0 0.0
        %1591 = vmatprep.subr.mxu0 0.0
        %1592 = vmatpush1.msra.mxu0 0.0
        %1593 = vmatprep.subr.mxu0 0.0
        %1594 = vmatpush1.msra.mxu0 0.0
        %1595 = vmatprep.subr.mxu0 0.0
        %1596 = vmatpush1.msra.mxu0 0.0
        %1597 = vmatprep.subr.mxu0 0.0
        %1598 = vmatpush1.msra.mxu0 0.0
        %1599 = vmatprep.subr.mxu0 0.0
        %1600 = vmatpush1.msra.mxu0 0.0
        %1601 = vmatprep.subr.mxu0 0.0
        %1602 = vmatpush1.msra.mxu0 0.0
        %1603 = vmatprep.subr.mxu0 0.0
        %1604 = vmatpush1.msra.mxu0 0.0
        %1605 = vmatprep.subr.mxu0 0.0
        %1606 = vmatpush1.msra.mxu0 0.0
        %1607 = vmatprep.subr.mxu0 0.0
        %1608 = vmatpush1.msra.mxu0 0.0
        %1609 = vmatprep.subr.mxu0 0.0
        %1610 = vmatpush1.msra.mxu0 0.0
        %1611 = vmatprep.subr.mxu0 0.0
        %1612 = vmatpush1.msra.mxu0 %v1576
        %1613 = vmatprep.subr.mxu0 0.0
        %1614 = vmatpush2.msra.mxu0 0.0
        %1615 = vmatprep.subr.mxu0 0.0
        %1616 = vmatpush2.msra.mxu0 0.0
        %1617 = vmatprep.subr.mxu0 0.0
        %1618 = vmatpush2.msra.mxu0 0.0
        %1619 = vmatprep.subr.mxu0 0.0
        %1620 = vmatpush2.msra.mxu0 0.0
        %1621 = vmatprep.subr.mxu0 0.0
        %1622 = vmatpush2.msra.mxu0 0.0
        %1623 = vmatprep.subr.mxu0 0.0
        %1624 = vmatpush2.msra.mxu0 0.0
        %1625 = vmatprep.subr.mxu0 0.0
        %1626 = vmatpush2.msra.mxu0 0.0
        %1627 = vmatprep.subr.mxu0 0.0
        %1628 = vmatpush2.msra.mxu0 0.0
        %1629 = vmatprep.subr.mxu0 0.0
        %1630 = vmatpush2.msra.mxu0 0.0
        %1631 = vmatprep.subr.mxu0 0.0
        %1632 = vmatpush2.msra.mxu0 0.0
        %1633 = vmatprep.subr.mxu0 0.0
        %1634 = vmatpush2.msra.mxu0 0.0
        %1635 = vmatprep.subr.mxu0 0.0
        %1636 = vmatpush2.msra.mxu0 0.0
        %1637 = vmatprep.subr.mxu0 0.0
        %1638 = vmatpush2.msra.mxu0 0.0
        %1639 = vmatprep.subr.mxu0 0.0
        %1640 = vmatpush2.msra.mxu0 0.0
        %1641 = vmatprep.subr.mxu0 0.0
        %1642 = vmatpush2.msra.mxu0 0.0
        %1643 = vmatprep.subr.mxu0 0.0
        %1644 = vmatpush2.msra.mxu0 0.0
        %1645 = vmatprep.mubr.f32.mxu0 0.0
        %1646 = vmatmul.mubr.f32.gmra.mxu0 %v1579
        %v1647 = vpop.f32.mrf.mxu0
        %v1648 = vadd.f32 0.0, %v1647
        %v1649 = vpop.f32.mrf.mxu0
        %1650 = vdwg.mxu0
        %1651 = vrot.lane.b32.xlu0 %v1073, 96
        %v1652 = vpop.permute.xlu0 %1651
        %v1655 = vsel %vm1074, %v1418, 0
        %1657 = vmatprep.subr.mxu0 0.0
        %1658 = vmatpush1.msra.mxu0 0.0
        %1659 = vmatprep.subr.mxu0 0.0
        %1660 = vmatpush1.msra.mxu0 0.0
        %1661 = vmatprep.subr.mxu0 0.0
        %1662 = vmatpush1.msra.mxu0 0.0
        %1663 = vmatprep.subr.mxu0 0.0
        %1664 = vmatpush1.msra.mxu0 0.0
        %1665 = vmatprep.subr.mxu0 0.0
        %1666 = vmatpush1.msra.mxu0 0.0
        %1667 = vmatprep.subr.mxu0 0.0
        %1668 = vmatpush1.msra.mxu0 0.0
        %1669 = vmatprep.subr.mxu0 0.0
        %1670 = vmatpush1.msra.mxu0 0.0
        %1671 = vmatprep.subr.mxu0 0.0
        %1672 = vmatpush1.msra.mxu0 0.0
        %1673 = vmatprep.subr.mxu0 0.0
        %1674 = vmatpush1.msra.mxu0 0.0
        %1675 = vmatprep.subr.mxu0 0.0
        %1676 = vmatpush1.msra.mxu0 0.0
        %1677 = vmatprep.subr.mxu0 0.0
        %1678 = vmatpush1.msra.mxu0 0.0
        %1679 = vmatprep.subr.mxu0 0.0
        %1680 = vmatpush1.msra.mxu0 0.0
        %1681 = vmatprep.subr.mxu0 0.0
        %1682 = vmatpush1.msra.mxu0 0.0
        %1683 = vmatprep.subr.mxu0 0.0
        %1684 = vmatpush1.msra.mxu0 0.0
        %1685 = vmatprep.subr.mxu0 0.0
        %1686 = vmatpush1.msra.mxu0 0.0
        %1687 = vmatprep.subr.mxu0 0.0
        %1688 = vmatpush1.msra.mxu0 %v1652
        %1689 = vmatprep.subr.mxu0 0.0
        %1690 = vmatpush2.msra.mxu0 0.0
        %1691 = vmatprep.subr.mxu0 0.0
        %1692 = vmatpush2.msra.mxu0 0.0
        %1693 = vmatprep.subr.mxu0 0.0
        %1694 = vmatpush2.msra.mxu0 0.0
        %1695 = vmatprep.subr.mxu0 0.0
        %1696 = vmatpush2.msra.mxu0 0.0
        %1697 = vmatprep.subr.mxu0 0.0
        %1698 = vmatpush2.msra.mxu0 0.0
        %1699 = vmatprep.subr.mxu0 0.0
        %1700 = vmatpush2.msra.mxu0 0.0
        %1701 = vmatprep.subr.mxu0 0.0
        %1702 = vmatpush2.msra.mxu0 0.0
        %1703 = vmatprep.subr.mxu0 0.0
        %1704 = vmatpush2.msra.mxu0 0.0
        %1705 = vmatprep.subr.mxu0 0.0
        %1706 = vmatpush2.msra.mxu0 0.0
        %1707 = vmatprep.subr.mxu0 0.0
        %1708 = vmatpush2.msra.mxu0 0.0
        %1709 = vmatprep.subr.mxu0 0.0
        %1710 = vmatpush2.msra.mxu0 0.0
        %1711 = vmatprep.subr.mxu0 0.0
        %1712 = vmatpush2.msra.mxu0 0.0
        %1713 = vmatprep.subr.mxu0 0.0
        %1714 = vmatpush2.msra.mxu0 0.0
        %1715 = vmatprep.subr.mxu0 0.0
        %1716 = vmatpush2.msra.mxu0 0.0
        %1717 = vmatprep.subr.mxu0 0.0
        %1718 = vmatpush2.msra.mxu0 0.0
        %1719 = vmatprep.subr.mxu0 0.0
        %1720 = vmatpush2.msra.mxu0 0.0
        %1721 = vmatprep.mubr.f32.mxu0 0.0
        %1722 = vmatmul.mubr.f32.gmra.mxu0 %v1655
        %v1723 = vpop.f32.mrf.mxu0
        %v1724 = vadd.f32 0.0, %v1723
        %v1725 = vpop.f32.mrf.mxu0
        %1726 = vdwg.mxu0
        %1728 = vrot.lane.b32.xlu0 %v1572, 8
        %v1729 = vpop.permute.xlu0 %1728
        %1732 = vrot.lane.b32.xlu0 %v1648, 16
        %v1733 = vpop.permute.xlu0 %1732
        %1736 = vrot.lane.b32.xlu0 %v1724, 24
        %v1737 = vpop.permute.xlu0 %1736
        %v1739 = vsel %vm1074, %v1496, %v1729
        %v1740 = vsel %vm825, %v1739, %v1733
        %vm1741 = vcmask 195584
        %v1742 = vsel %vm1741, %v1740, %v1737
        %v1744 = vsel %vm902, %v1742, 0
        %1746 = vmatprep.subr.mxu0 0.0
        %1747 = vmatpush1.msra.mxu0 0.0
        %1748 = vmatprep.subr.mxu0 0.0
        %1749 = vmatpush1.msra.mxu0 0.0
        %1750 = vmatprep.subr.mxu0 0.0
        %1751 = vmatpush1.msra.mxu0 0.0
        %1752 = vmatprep.subr.mxu0 0.0
        %1753 = vmatpush1.msra.mxu0 0.0
        %1754 = vmatprep.subr.mxu0 0.0
        %1755 = vmatpush1.msra.mxu0 0.0
        %1756 = vmatprep.subr.mxu0 0.0
        %1757 = vmatpush1.msra.mxu0 0.0
        %1758 = vmatprep.subr.mxu0 0.0
        %1759 = vmatpush1.msra.mxu0 0.0
        %1760 = vmatprep.subr.mxu0 0.0
        %1761 = vmatpush1.msra.mxu0 0.0
        %1762 = vmatprep.subr.mxu0 0.0
        %1763 = vmatpush1.msra.mxu0 0.0
        %1764 = vmatprep.subr.mxu0 0.0
        %1765 = vmatpush1.msra.mxu0 0.0
        %1766 = vmatprep.subr.mxu0 0.0
        %1767 = vmatpush1.msra.mxu0 0.0
        %1768 = vmatprep.subr.mxu0 0.0
        %1769 = vmatpush1.msra.mxu0 0.0
        %1770 = vmatprep.subr.mxu0 0.0
        %1771 = vmatpush1.msra.mxu0 %v916
        %1772 = vmatprep.subr.mxu0 0.0
        %1773 = vmatpush1.msra.mxu0 %v915
        %1774 = vmatprep.subr.mxu0 0.0
        %1775 = vmatpush1.msra.mxu0 %v914
        %1776 = vmatprep.subr.mxu0 0.0
        %1777 = vmatpush1.msra.mxu0 %v913
        %1778 = vmatprep.subr.mxu0 0.0
        %1779 = vmatpush2.msra.mxu0 0.0
        %1780 = vmatprep.subr.mxu0 0.0
        %1781 = vmatpush2.msra.mxu0 0.0
        %1782 = vmatprep.subr.mxu0 0.0
        %1783 = vmatpush2.msra.mxu0 0.0
        %1784 = vmatprep.subr.mxu0 0.0
        %1785 = vmatpush2.msra.mxu0 0.0
        %1786 = vmatprep.subr.mxu0 0.0
        %1787 = vmatpush2.msra.mxu0 0.0
        %1788 = vmatprep.subr.mxu0 0.0
        %1789 = vmatpush2.msra.mxu0 0.0
        %1790 = vmatprep.subr.mxu0 0.0
        %1791 = vmatpush2.msra.mxu0 0.0
        %1792 = vmatprep.subr.mxu0 0.0
        %1793 = vmatpush2.msra.mxu0 0.0
        %1794 = vmatprep.subr.mxu0 0.0
        %1795 = vmatpush2.msra.mxu0 0.0
        %1796 = vmatprep.subr.mxu0 0.0
        %1797 = vmatpush2.msra.mxu0 0.0
        %1798 = vmatprep.subr.mxu0 0.0
        %1799 = vmatpush2.msra.mxu0 0.0
        %1800 = vmatprep.subr.mxu0 0.0
        %1801 = vmatpush2.msra.mxu0 0.0
        %1802 = vmatprep.subr.mxu0 0.0
        %1803 = vmatpush2.msra.mxu0 0.0
        %1804 = vmatprep.subr.mxu0 0.0
        %1805 = vmatpush2.msra.mxu0 0.0
        %1806 = vmatprep.subr.mxu0 0.0
        %1807 = vmatpush2.msra.mxu0 0.0
        %1808 = vmatprep.subr.mxu0 0.0
        %1809 = vmatpush2.msra.mxu0 0.0
        %1810 = vmatprep.mubr.f32.mxu0 0.0
        %1811 = vmatmul.mubr.f32.gmra.mxu0 %v1744
        %v1812 = vpop.f32.mrf.mxu0
        %v1813 = vadd.f32 0.0, %v1812
        %v1814 = vpop.f32.mrf.mxu0
        %1815 = vdwg.mxu0
        %v1816 = vadd.f32 %v901, %v1813
        %v1817 = vsel %vm902, %v1816, 0.0
        %1818 = vadd.xlane.f32.xlu0 %v1817
        %v1819 = vpop.xlane.xlu0 %1818
        %v1820 = vrcp.pop 32.0
        %v1821 = vmul.f32 %v1819, %v1820
        %v1822 = vsub.f32 %v1816, %v1821
        %v1823 = vmul.f32 %v1822, %v1822
        %v1824 = vsel %vm902, %v1823, 0.0
        %1825 = vadd.xlane.f32.xlu0 %v1824
        %v1826 = vpop.xlane.xlu0 %1825
        %v1827 = vmul.f32 %v1826, %v1820
        %v1828 = vadd.f32 %v1827, 1e-05
        %v1829 = vrsqrt.pop %v1828
        %v1830 = vmul.f32 %v1822, %v1829
        %v1831 = vlaneseq
        %v1832 = vshrl.u32 %v1831, 7
        %v1833 = vsub.s32 0, %v1832
        %v1834 = vrot.slane %v904, %v1833
        %v1835 = vmul.f32 %v1830, %v1834
        %v1836 = vlaneseq
        %v1837 = vshrl.u32 %v1836, 7
        %v1838 = vsub.s32 1, %v1837
        %v1839 = vrot.slane %v904, %v1838
        %v1840 = vadd.f32 %v1835, %v1839
        %v1841 = vld [vmem:[%s8] sm:$0xff]
        %v1842 = vld [vmem:[%s8 + $0x8] sm:$0xff]
        %v1843 = vld [vmem:[%s8 + $0x10] sm:$0xff]
        %v1844 = vld [vmem:[%s8 + $0x18] sm:$0xff]
        %v1845 = vld [vmem:[#allocation8] sm:$0xff]
        %v1846 = vld [vmem:[#allocation8 + $0x8] sm:$0xff]
        %v1847 = vld [vmem:[#allocation8 + $0x10] sm:$0xff]
        %v1848 = vld [vmem:[#allocation8 + $0x18] sm:$0xff]
        %v1849 = vld [vmem:[#allocation10] sm:$0xff]
        %v1850 = vld [vmem:[#allocation10 + $0x8] sm:$0xff]
        %v1851 = vld [vmem:[#allocation10 + $0x10] sm:$0xff]
        %v1852 = vld [vmem:[#allocation10 + $0x18] sm:$0xff]
        %v1854 = vsel %vm902, %v1840, 0
        %1856 = vmatprep.subr.mxu0 0.0
        %1857 = vmatpush1.msra.mxu0 0.0
        %1858 = vmatprep.subr.mxu0 0.0
        %1859 = vmatpush1.msra.mxu0 0.0
        %1860 = vmatprep.subr.mxu0 0.0
        %1861 = vmatpush1.msra.mxu0 0.0
        %1862 = vmatprep.subr.mxu0 0.0
        %1863 = vmatpush1.msra.mxu0 0.0
        %1864 = vmatprep.subr.mxu0 0.0
        %1865 = vmatpush1.msra.mxu0 0.0
        %1866 = vmatprep.subr.mxu0 0.0
        %1867 = vmatpush1.msra.mxu0 0.0
        %1868 = vmatprep.subr.mxu0 0.0
        %1869 = vmatpush1.msra.mxu0 0.0
        %1870 = vmatprep.subr.mxu0 0.0
        %1871 = vmatpush1.msra.mxu0 0.0
        %1872 = vmatprep.subr.mxu0 0.0
        %1873 = vmatpush1.msra.mxu0 0.0
        %1874 = vmatprep.subr.mxu0 0.0
        %1875 = vmatpush1.msra.mxu0 0.0
        %1876 = vmatprep.subr.mxu0 0.0
        %1877 = vmatpush1.msra.mxu0 0.0
        %1878 = vmatprep.subr.mxu0 0.0
        %1879 = vmatpush1.msra.mxu0 0.0
        %1880 = vmatprep.subr.mxu0 0.0
        %1881 = vmatpush1.msra.mxu0 %v1844
        %1882 = vmatprep.subr.mxu0 0.0
        %1883 = vmatpush1.msra.mxu0 %v1843
        %1884 = vmatprep.subr.mxu0 0.0
        %1885 = vmatpush1.msra.mxu0 %v1842
        %1886 = vmatprep.subr.mxu0 0.0
        %1887 = vmatpush1.msra.mxu0 %v1841
        %1888 = vmatprep.subr.mxu0 0.0
        %1889 = vmatpush2.msra.mxu0 0.0
        %1890 = vmatprep.subr.mxu0 0.0
        %1891 = vmatpush2.msra.mxu0 0.0
        %1892 = vmatprep.subr.mxu0 0.0
        %1893 = vmatpush2.msra.mxu0 0.0
        %1894 = vmatprep.subr.mxu0 0.0
        %1895 = vmatpush2.msra.mxu0 0.0
        %1896 = vmatprep.subr.mxu0 0.0
        %1897 = vmatpush2.msra.mxu0 0.0
        %1898 = vmatprep.subr.mxu0 0.0
        %1899 = vmatpush2.msra.mxu0 0.0
        %1900 = vmatprep.subr.mxu0 0.0
        %1901 = vmatpush2.msra.mxu0 0.0
        %1902 = vmatprep.subr.mxu0 0.0
        %1903 = vmatpush2.msra.mxu0 0.0
        %1904 = vmatprep.subr.mxu0 0.0
        %1905 = vmatpush2.msra.mxu0 0.0
        %1906 = vmatprep.subr.mxu0 0.0
        %1907 = vmatpush2.msra.mxu0 0.0
        %1908 = vmatprep.subr.mxu0 0.0
        %1909 = vmatpush2.msra.mxu0 0.0
        %1910 = vmatprep.subr.mxu0 0.0
        %1911 = vmatpush2.msra.mxu0 0.0
        %1912 = vmatprep.subr.mxu0 0.0
        %1913 = vmatpush2.msra.mxu0 0.0
        %1914 = vmatprep.subr.mxu0 0.0
        %1915 = vmatpush2.msra.mxu0 0.0
        %1916 = vmatprep.subr.mxu0 0.0
        %1917 = vmatpush2.msra.mxu0 0.0
        %1918 = vmatprep.subr.mxu0 0.0
        %1919 = vmatpush2.msra.mxu0 0.0
        %1920 = vmatprep.mubr.f32.mxu0 0.0
        %1921 = vmatmul.mubr.f32.gmra.mxu0 %v1854
        %v1922 = vpop.f32.mrf.mxu0
        %v1923 = vadd.f32 0.0, %v1922
        %v1924 = vpop.f32.mrf.mxu0
        %1925 = vdwg.mxu0
        %v1927 = vsel %vm902, %v815, 0
        %1929 = vmatprep.subr.mxu0 0.0
        %1930 = vmatpush1.msra.mxu0 0.0
        %1931 = vmatprep.subr.mxu0 0.0
        %1932 = vmatpush1.msra.mxu0 0.0
        %1933 = vmatprep.subr.mxu0 0.0
        %1934 = vmatpush1.msra.mxu0 0.0
        %1935 = vmatprep.subr.mxu0 0.0
        %1936 = vmatpush1.msra.mxu0 0.0
        %1937 = vmatprep.subr.mxu0 0.0
        %1938 = vmatpush1.msra.mxu0 0.0
        %1939 = vmatprep.subr.mxu0 0.0
        %1940 = vmatpush1.msra.mxu0 0.0
        %1941 = vmatprep.subr.mxu0 0.0
        %1942 = vmatpush1.msra.mxu0 0.0
        %1943 = vmatprep.subr.mxu0 0.0
        %1944 = vmatpush1.msra.mxu0 0.0
        %1945 = vmatprep.subr.mxu0 0.0
        %1946 = vmatpush1.msra.mxu0 0.0
        %1947 = vmatprep.subr.mxu0 0.0
        %1948 = vmatpush1.msra.mxu0 0.0
        %1949 = vmatprep.subr.mxu0 0.0
        %1950 = vmatpush1.msra.mxu0 0.0
        %1951 = vmatprep.subr.mxu0 0.0
        %1952 = vmatpush1.msra.mxu0 0.0
        %1953 = vmatprep.subr.mxu0 0.0
        %1954 = vmatpush1.msra.mxu0 %v1848
        %1955 = vmatprep.subr.mxu0 0.0
        %1956 = vmatpush1.msra.mxu0 %v1847
        %1957 = vmatprep.subr.mxu0 0.0
        %1958 = vmatpush1.msra.mxu0 %v1846
        %1959 = vmatprep.subr.mxu0 0.0
        %1960 = vmatpush1.msra.mxu0 %v1845
        %1961 = vmatprep.subr.mxu0 0.0
        %1962 = vmatpush2.msra.mxu0 0.0
        %1963 = vmatprep.subr.mxu0 0.0
        %1964 = vmatpush2.msra.mxu0 0.0
        %1965 = vmatprep.subr.mxu0 0.0
        %1966 = vmatpush2.msra.mxu0 0.0
        %1967 = vmatprep.subr.mxu0 0.0
        %1968 = vmatpush2.msra.mxu0 0.0
        %1969 = vmatprep.subr.mxu0 0.0
        %1970 = vmatpush2.msra.mxu0 0.0
        %1971 = vmatprep.subr.mxu0 0.0
        %1972 = vmatpush2.msra.mxu0 0.0
        %1973 = vmatprep.subr.mxu0 0.0
        %1974 = vmatpush2.msra.mxu0 0.0
        %1975 = vmatprep.subr.mxu0 0.0
        %1976 = vmatpush2.msra.mxu0 0.0
        %1977 = vmatprep.subr.mxu0 0.0
        %1978 = vmatpush2.msra.mxu0 0.0
        %1979 = vmatprep.subr.mxu0 0.0
        %1980 = vmatpush2.msra.mxu0 0.0
        %1981 = vmatprep.subr.mxu0 0.0
        %1982 = vmatpush2.msra.mxu0 0.0
        %1983 = vmatprep.subr.mxu0 0.0
        %1984 = vmatpush2.msra.mxu0 0.0
        %1985 = vmatprep.subr.mxu0 0.0
        %1986 = vmatpush2.msra.mxu0 0.0
        %1987 = vmatprep.subr.mxu0 0.0
        %1988 = vmatpush2.msra.mxu0 0.0
        %1989 = vmatprep.subr.mxu0 0.0
        %1990 = vmatpush2.msra.mxu0 0.0
        %1991 = vmatprep.subr.mxu0 0.0
        %1992 = vmatpush2.msra.mxu0 0.0
        %1993 = vmatprep.mubr.f32.mxu0 0.0
        %1994 = vmatmul.mubr.f32.gmra.mxu0 %v1927
        %v1995 = vpop.f32.mrf.mxu0
        %v1996 = vadd.f32 0.0, %v1995
        %v1997 = vpop.f32.mrf.mxu0
        %1998 = vdwg.mxu0
        %2000 = vrot.lane.b32.xlu0 %v1923, 120
        %v2001 = vpop.permute.xlu0 %2000
        %2002 = vrot.lane.b32.xlu0 %v1923, 112
        %v2003 = vpop.permute.xlu0 %2002
        %2004 = vrot.lane.b32.xlu0 %v1923, 104
        %v2005 = vpop.permute.xlu0 %2004
        %2007 = vrot.lane.b32.xlu0 %v1996, 120
        %v2008 = vpop.permute.xlu0 %2007
        %2009 = vrot.lane.b32.xlu0 %v1996, 112
        %v2010 = vpop.permute.xlu0 %2009
        %2011 = vrot.lane.b32.xlu0 %v1996, 104
        %v2012 = vpop.permute.xlu0 %2011
        %v2013 = vsel %vm1074, %v1923, 0
        %v2015 = vsel %vm1074, %v1996, 0
        %2017 = vmatprep.subr.mxu0 0.0
        %2018 = vmatpush1.xpose.msra.mxu0 0.0
        %2019 = vmatprep.subr.mxu0 0.0
        %2020 = vmatpush1.xpose.msra.mxu0 0.0
        %2021 = vmatprep.subr.mxu0 0.0
        %2022 = vmatpush1.xpose.msra.mxu0 0.0
        %2023 = vmatprep.subr.mxu0 0.0
        %2024 = vmatpush1.xpose.msra.mxu0 0.0
        %2025 = vmatprep.subr.mxu0 0.0
        %2026 = vmatpush1.xpose.msra.mxu0 0.0
        %2027 = vmatprep.subr.mxu0 0.0
        %2028 = vmatpush1.xpose.msra.mxu0 0.0
        %2029 = vmatprep.subr.mxu0 0.0
        %2030 = vmatpush1.xpose.msra.mxu0 0.0
        %2031 = vmatprep.subr.mxu0 0.0
        %2032 = vmatpush1.xpose.msra.mxu0 0.0
        %2033 = vmatprep.subr.mxu0 0.0
        %2034 = vmatpush1.xpose.msra.mxu0 0.0
        %2035 = vmatprep.subr.mxu0 0.0
        %2036 = vmatpush1.xpose.msra.mxu0 0.0
        %2037 = vmatprep.subr.mxu0 0.0
        %2038 = vmatpush1.xpose.msra.mxu0 0.0
        %2039 = vmatprep.subr.mxu0 0.0
        %2040 = vmatpush1.xpose.msra.mxu0 0.0
        %2041 = vmatprep.subr.mxu0 0.0
        %2042 = vmatpush1.xpose.msra.mxu0 0.0
        %2043 = vmatprep.subr.mxu0 0.0
        %2044 = vmatpush1.xpose.msra.mxu0 0.0
        %2045 = vmatprep.subr.mxu0 0.0
        %2046 = vmatpush1.xpose.msra.mxu0 0.0
        %2047 = vmatprep.subr.mxu0 0.0
        %2048 = vmatpush1.xpose.msra.mxu0 %v2015
        %2049 = vmatprep.subr.mxu0 0.0
        %2050 = vmatpush2.xpose.msra.mxu0 0.0
        %2051 = vmatprep.subr.mxu0 0.0
        %2052 = vmatpush2.xpose.msra.mxu0 0.0
        %2053 = vmatprep.subr.mxu0 0.0
        %2054 = vmatpush2.xpose.msra.mxu0 0.0
        %2055 = vmatprep.subr.mxu0 0.0
        %2056 = vmatpush2.xpose.msra.mxu0 0.0
        %2057 = vmatprep.subr.mxu0 0.0
        %2058 = vmatpush2.xpose.msra.mxu0 0.0
        %2059 = vmatprep.subr.mxu0 0.0
        %2060 = vmatpush2.xpose.msra.mxu0 0.0
        %2061 = vmatprep.subr.mxu0 0.0
        %2062 = vmatpush2.xpose.msra.mxu0 0.0
        %2063 = vmatprep.subr.mxu0 0.0
        %2064 = vmatpush2.xpose.msra.mxu0 0.0
        %2065 = vmatprep.subr.mxu0 0.0
        %2066 = vmatpush2.xpose.msra.mxu0 0.0
        %2067 = vmatprep.subr.mxu0 0.0
        %2068 = vmatpush2.xpose.msra.mxu0 0.0
        %2069 = vmatprep.subr.mxu0 0.0
        %2070 = vmatpush2.xpose.msra.mxu0 0.0
        %2071 = vmatprep.subr.mxu0 0.0
        %2072 = vmatpush2.xpose.msra.mxu0 0.0
        %2073 = vmatprep.subr.mxu0 0.0
        %2074 = vmatpush2.xpose.msra.mxu0 0.0
        %2075 = vmatprep.subr.mxu0 0.0
        %2076 = vmatpush2.xpose.msra.mxu0 0.0
        %2077 = vmatprep.subr.mxu0 0.0
        %2078 = vmatpush2.xpose.msra.mxu0 0.0
        %2079 = vmatprep.subr.mxu0 0.0
        %2080 = vmatpush2.xpose.msra.mxu0 0.0
        %2081 = vmatprep.mubr.f32.mxu0 0.0
        %2082 = vmatmul.mubr.f32.gmra.mxu0 %v2013
        %v2083 = vpop.f32.mrf.mxu0
        %v2084 = vadd.f32 0.0, %v2083
        %v2085 = vpop.f32.mrf.mxu0
        %2086 = vdwg.mxu0
        %v2087 = vsel %vm1074, %v2001, 0
        %v2089 = vsel %vm1074, %v2008, 0
        %2091 = vmatprep.subr.mxu0 0.0
        %2092 = vmatpush1.xpose.msra.mxu0 0.0
        %2093 = vmatprep.subr.mxu0 0.0
        %2094 = vmatpush1.xpose.msra.mxu0 0.0
        %2095 = vmatprep.subr.mxu0 0.0
        %2096 = vmatpush1.xpose.msra.mxu0 0.0
        %2097 = vmatprep.subr.mxu0 0.0
        %2098 = vmatpush1.xpose.msra.mxu0 0.0
        %2099 = vmatprep.subr.mxu0 0.0
        %2100 = vmatpush1.xpose.msra.mxu0 0.0
        %2101 = vmatprep.subr.mxu0 0.0
        %2102 = vmatpush1.xpose.msra.mxu0 0.0
        %2103 = vmatprep.subr.mxu0 0.0
        %2104 = vmatpush1.xpose.msra.mxu0 0.0
        %2105 = vmatprep.subr.mxu0 0.0
        %2106 = vmatpush1.xpose.msra.mxu0 0.0
        %2107 = vmatprep.subr.mxu0 0.0
        %2108 = vmatpush1.xpose.msra.mxu0 0.0
        %2109 = vmatprep.subr.mxu0 0.0
        %2110 = vmatpush1.xpose.msra.mxu0 0.0
        %2111 = vmatprep.subr.mxu0 0.0
        %2112 = vmatpush1.xpose.msra.mxu0 0.0
        %2113 = vmatprep.subr.mxu0 0.0
        %2114 = vmatpush1.xpose.msra.mxu0 0.0
        %2115 = vmatprep.subr.mxu0 0.0
        %2116 = vmatpush1.xpose.msra.mxu0 0.0
        %2117 = vmatprep.subr.mxu0 0.0
        %2118 = vmatpush1.xpose.msra.mxu0 0.0
        %2119 = vmatprep.subr.mxu0 0.0
        %2120 = vmatpush1.xpose.msra.mxu0 0.0
        %2121 = vmatprep.subr.mxu0 0.0
        %2122 = vmatpush1.xpose.msra.mxu0 %v2089
        %2123 = vmatprep.subr.mxu0 0.0
        %2124 = vmatpush2.xpose.msra.mxu0 0.0
        %2125 = vmatprep.subr.mxu0 0.0
        %2126 = vmatpush2.xpose.msra.mxu0 0.0
        %2127 = vmatprep.subr.mxu0 0.0
        %2128 = vmatpush2.xpose.msra.mxu0 0.0
        %2129 = vmatprep.subr.mxu0 0.0
        %2130 = vmatpush2.xpose.msra.mxu0 0.0
        %2131 = vmatprep.subr.mxu0 0.0
        %2132 = vmatpush2.xpose.msra.mxu0 0.0
        %2133 = vmatprep.subr.mxu0 0.0
        %2134 = vmatpush2.xpose.msra.mxu0 0.0
        %2135 = vmatprep.subr.mxu0 0.0
        %2136 = vmatpush2.xpose.msra.mxu0 0.0
        %2137 = vmatprep.subr.mxu0 0.0
        %2138 = vmatpush2.xpose.msra.mxu0 0.0
        %2139 = vmatprep.subr.mxu0 0.0
        %2140 = vmatpush2.xpose.msra.mxu0 0.0
        %2141 = vmatprep.subr.mxu0 0.0
        %2142 = vmatpush2.xpose.msra.mxu0 0.0
        %2143 = vmatprep.subr.mxu0 0.0
        %2144 = vmatpush2.xpose.msra.mxu0 0.0
        %2145 = vmatprep.subr.mxu0 0.0
        %2146 = vmatpush2.xpose.msra.mxu0 0.0
        %2147 = vmatprep.subr.mxu0 0.0
        %2148 = vmatpush2.xpose.msra.mxu0 0.0
        %2149 = vmatprep.subr.mxu0 0.0
        %2150 = vmatpush2.xpose.msra.mxu0 0.0
        %2151 = vmatprep.subr.mxu0 0.0
        %2152 = vmatpush2.xpose.msra.mxu0 0.0
        %2153 = vmatprep.subr.mxu0 0.0
        %2154 = vmatpush2.xpose.msra.mxu0 0.0
        %2155 = vmatprep.mubr.f32.mxu0 0.0
        %2156 = vmatmul.mubr.f32.gmra.mxu0 %v2087
        %v2157 = vpop.f32.mrf.mxu0
        %v2158 = vadd.f32 0.0, %v2157
        %v2159 = vpop.f32.mrf.mxu0
        %2160 = vdwg.mxu0
        %v2161 = vsel %vm1074, %v2003, 0
        %v2163 = vsel %vm1074, %v2010, 0
        %2165 = vmatprep.subr.mxu0 0.0
        %2166 = vmatpush1.xpose.msra.mxu0 0.0
        %2167 = vmatprep.subr.mxu0 0.0
        %2168 = vmatpush1.xpose.msra.mxu0 0.0
        %2169 = vmatprep.subr.mxu0 0.0
        %2170 = vmatpush1.xpose.msra.mxu0 0.0
        %2171 = vmatprep.subr.mxu0 0.0
        %2172 = vmatpush1.xpose.msra.mxu0 0.0
        %2173 = vmatprep.subr.mxu0 0.0
        %2174 = vmatpush1.xpose.msra.mxu0 0.0
        %2175 = vmatprep.subr.mxu0 0.0
        %2176 = vmatpush1.xpose.msra.mxu0 0.0
        %2177 = vmatprep.subr.mxu0 0.0
        %2178 = vmatpush1.xpose.msra.mxu0 0.0
        %2179 = vmatprep.subr.mxu0 0.0
        %2180 = vmatpush1.xpose.msra.mxu0 0.0
        %2181 = vmatprep.subr.mxu0 0.0
        %2182 = vmatpush1.xpose.msra.mxu0 0.0
        %2183 = vmatprep.subr.mxu0 0.0
        %2184 = vmatpush1.xpose.msra.mxu0 0.0
        %2185 = vmatprep.subr.mxu0 0.0
        %2186 = vmatpush1.xpose.msra.mxu0 0.0
        %2187 = vmatprep.subr.mxu0 0.0
        %2188 = vmatpush1.xpose.msra.mxu0 0.0
        %2189 = vmatprep.subr.mxu0 0.0
        %2190 = vmatpush1.xpose.msra.mxu0 0.0
        %2191 = vmatprep.subr.mxu0 0.0
        %2192 = vmatpush1.xpose.msra.mxu0 0.0
        %2193 = vmatprep.subr.mxu0 0.0
        %2194 = vmatpush1.xpose.msra.mxu0 0.0
        %2195 = vmatprep.subr.mxu0 0.0
        %2196 = vmatpush1.xpose.msra.mxu0 %v2163
        %2197 = vmatprep.subr.mxu0 0.0
        %2198 = vmatpush2.xpose.msra.mxu0 0.0
        %2199 = vmatprep.subr.mxu0 0.0
        %2200 = vmatpush2.xpose.msra.mxu0 0.0
        %2201 = vmatprep.subr.mxu0 0.0
        %2202 = vmatpush2.xpose.msra.mxu0 0.0
        %2203 = vmatprep.subr.mxu0 0.0
        %2204 = vmatpush2.xpose.msra.mxu0 0.0
        %2205 = vmatprep.subr.mxu0 0.0
        %2206 = vmatpush2.xpose.msra.mxu0 0.0
        %2207 = vmatprep.subr.mxu0 0.0
        %2208 = vmatpush2.xpose.msra.mxu0 0.0
        %2209 = vmatprep.subr.mxu0 0.0
        %2210 = vmatpush2.xpose.msra.mxu0 0.0
        %2211 = vmatprep.subr.mxu0 0.0
        %2212 = vmatpush2.xpose.msra.mxu0 0.0
        %2213 = vmatprep.subr.mxu0 0.0
        %2214 = vmatpush2.xpose.msra.mxu0 0.0
        %2215 = vmatprep.subr.mxu0 0.0
        %2216 = vmatpush2.xpose.msra.mxu0 0.0
        %2217 = vmatprep.subr.mxu0 0.0
        %2218 = vmatpush2.xpose.msra.mxu0 0.0
        %2219 = vmatprep.subr.mxu0 0.0
        %2220 = vmatpush2.xpose.msra.mxu0 0.0
        %2221 = vmatprep.subr.mxu0 0.0
        %2222 = vmatpush2.xpose.msra.mxu0 0.0
        %2223 = vmatprep.subr.mxu0 0.0
        %2224 = vmatpush2.xpose.msra.mxu0 0.0
        %2225 = vmatprep.subr.mxu0 0.0
        %2226 = vmatpush2.xpose.msra.mxu0 0.0
        %2227 = vmatprep.subr.mxu0 0.0
        %2228 = vmatpush2.xpose.msra.mxu0 0.0
        %2229 = vmatprep.mubr.f32.mxu0 0.0
        %2230 = vmatmul.mubr.f32.gmra.mxu0 %v2161
        %v2231 = vpop.f32.mrf.mxu0
        %v2232 = vadd.f32 0.0, %v2231
        %v2233 = vpop.f32.mrf.mxu0
        %2234 = vdwg.mxu0
        %v2235 = vsel %vm1074, %v2005, 0
        %v2237 = vsel %vm1074, %v2012, 0
        %2239 = vmatprep.subr.mxu0 0.0
        %2240 = vmatpush1.xpose.msra.mxu0 0.0
        %2241 = vmatprep.subr.mxu0 0.0
        %2242 = vmatpush1.xpose.msra.mxu0 0.0
        %2243 = vmatprep.subr.mxu0 0.0
        %2244 = vmatpush1.xpose.msra.mxu0 0.0
        %2245 = vmatprep.subr.mxu0 0.0
        %2246 = vmatpush1.xpose.msra.mxu0 0.0
        %2247 = vmatprep.subr.mxu0 0.0
        %2248 = vmatpush1.xpose.msra.mxu0 0.0
        %2249 = vmatprep.subr.mxu0 0.0
        %2250 = vmatpush1.xpose.msra.mxu0 0.0
        %2251 = vmatprep.subr.mxu0 0.0
        %2252 = vmatpush1.xpose.msra.mxu0 0.0
        %2253 = vmatprep.subr.mxu0 0.0
        %2254 = vmatpush1.xpose.msra.mxu0 0.0
        %2255 = vmatprep.subr.mxu0 0.0
        %2256 = vmatpush1.xpose.msra.mxu0 0.0
        %2257 = vmatprep.subr.mxu0 0.0
        %2258 = vmatpush1.xpose.msra.mxu0 0.0
        %2259 = vmatprep.subr.mxu0 0.0
        %2260 = vmatpush1.xpose.msra.mxu0 0.0
        %2261 = vmatprep.subr.mxu0 0.0
        %2262 = vmatpush1.xpose.msra.mxu0 0.0
        %2263 = vmatprep.subr.mxu0 0.0
        %2264 = vmatpush1.xpose.msra.mxu0 0.0
        %2265 = vmatprep.subr.mxu0 0.0
        %2266 = vmatpush1.xpose.msra.mxu0 0.0
        %2267 = vmatprep.subr.mxu0 0.0
        %2268 = vmatpush1.xpose.msra.mxu0 0.0
        %2269 = vmatprep.subr.mxu0 0.0
        %2270 = vmatpush1.xpose.msra.mxu0 %v2237
        %2271 = vmatprep.subr.mxu0 0.0
        %2272 = vmatpush2.xpose.msra.mxu0 0.0
        %2273 = vmatprep.subr.mxu0 0.0
        %2274 = vmatpush2.xpose.msra.mxu0 0.0
        %2275 = vmatprep.subr.mxu0 0.0
        %2276 = vmatpush2.xpose.msra.mxu0 0.0
        %2277 = vmatprep.subr.mxu0 0.0
        %2278 = vmatpush2.xpose.msra.mxu0 0.0
        %2279 = vmatprep.subr.mxu0 0.0
        %2280 = vmatpush2.xpose.msra.mxu0 0.0
        %2281 = vmatprep.subr.mxu0 0.0
        %2282 = vmatpush2.xpose.msra.mxu0 0.0
        %2283 = vmatprep.subr.mxu0 0.0
        %2284 = vmatpush2.xpose.msra.mxu0 0.0
        %2285 = vmatprep.subr.mxu0 0.0
        %2286 = vmatpush2.xpose.msra.mxu0 0.0
        %2287 = vmatprep.subr.mxu0 0.0
        %2288 = vmatpush2.xpose.msra.mxu0 0.0
        %2289 = vmatprep.subr.mxu0 0.0
        %2290 = vmatpush2.xpose.msra.mxu0 0.0
        %2291 = vmatprep.subr.mxu0 0.0
        %2292 = vmatpush2.xpose.msra.mxu0 0.0
        %2293 = vmatprep.subr.mxu0 0.0
        %2294 = vmatpush2.xpose.msra.mxu0 0.0
        %2295 = vmatprep.subr.mxu0 0.0
        %2296 = vmatpush2.xpose.msra.mxu0 0.0
        %2297 = vmatprep.subr.mxu0 0.0
        %2298 = vmatpush2.xpose.msra.mxu0 0.0
        %2299 = vmatprep.subr.mxu0 0.0
        %2300 = vmatpush2.xpose.msra.mxu0 0.0
        %2301 = vmatprep.subr.mxu0 0.0
        %2302 = vmatpush2.xpose.msra.mxu0 0.0
        %2303 = vmatprep.mubr.f32.mxu0 0.0
        %2304 = vmatmul.mubr.f32.gmra.mxu0 %v2235
        %v2305 = vpop.f32.mrf.mxu0
        %v2306 = vadd.f32 0.0, %v2305
        %v2307 = vpop.f32.mrf.mxu0
        %2308 = vdwg.mxu0
        %v2309 = vmul.f32 %v2084, 0.35355338
        %v2310 = vmul.f32 %v2158, 0.35355338
        %v2311 = vmul.f32 %v2232, 0.35355338
        %v2312 = vmul.f32 %v2306, 0.35355338
        %v2313 = vsel %vm1074, %v2309, -inf
        %2314 = vmax.xlane.f32.xlu0 %v2313
        %v2315 = vpop.xlane.xlu0 %2314
        %v2316 = vsel %vm1074, %v2310, -inf
        %2317 = vmax.xlane.f32.xlu0 %v2316
        %v2318 = vpop.xlane.xlu0 %2317
        %v2319 = vsel %vm1074, %v2311, -inf
        %2320 = vmax.xlane.f32.xlu0 %v2319
        %v2321 = vpop.xlane.xlu0 %2320
        %v2322 = vsel %vm1074, %v2312, -inf
        %2323 = vmax.xlane.f32.xlu0 %v2322
        %v2324 = vpop.xlane.xlu0 %2323
        %v2325 = vsub.f32 %v2309, %v2315
        %v2326 = vsub.f32 %v2310, %v2318
        %v2327 = vsub.f32 %v2311, %v2321
        %v2328 = vsub.f32 %v2312, %v2324
        %v2329 = vmul.f32 %v2325, 1.442695
        %v2330 = vpow.pop %v2329
        %v2331 = vmul.f32 %v2326, 1.442695
        %v2332 = vpow.pop %v2331
        %v2333 = vmul.f32 %v2327, 1.442695
        %v2334 = vpow.pop %v2333
        %v2335 = vmul.f32 %v2328, 1.442695
        %v2336 = vpow.pop %v2335
        %v2337 = vsel %vm1074, %v2330, 0.0
        %2338 = vadd.xlane.f32.xlu0 %v2337
        %v2339 = vpop.xlane.xlu0 %2338
        %v2340 = vsel %vm1074, %v2332, 0.0
        %2341 = vadd.xlane.f32.xlu0 %v2340
        %v2342 = vpop.xlane.xlu0 %2341
        %v2343 = vsel %vm1074, %v2334, 0.0
        %2344 = vadd.xlane.f32.xlu0 %v2343
        %v2345 = vpop.xlane.xlu0 %2344
        %v2346 = vsel %vm1074, %v2336, 0.0
        %2347 = vadd.xlane.f32.xlu0 %v2346
        %v2348 = vpop.xlane.xlu0 %2347
        %v2349 = vrcp.pop %v2339
        %v2350 = vmul.f32 %v2330, %v2349
        %v2351 = vrcp.pop %v2342
        %v2352 = vmul.f32 %v2332, %v2351
        %v2353 = vrcp.pop %v2345
        %v2354 = vmul.f32 %v2334, %v2353
        %v2355 = vrcp.pop %v2348
        %v2356 = vmul.f32 %v2336, %v2355
        %2357 = vst.msk [vmem:[%s811] sm:$0xff] %vm1074, %v2350
        %2358 = vst.msk [vmem:[%s811 + $0x8] sm:$0xff] %vm1074, %v2352
        %2359 = vst.msk [vmem:[%s811 + $0x10] sm:$0xff] %vm1074, %v2354
        %2360 = vst.msk [vmem:[%s811 + $0x18] sm:$0xff] %vm1074, %v2356
        %2361 = vrot.lane.b32.xlu0 %v1996, 96
        %v2362 = vpop.permute.xlu0 %2361
        %v2365 = vsel %vm1074, %v2350, 0
        %2367 = vmatprep.subr.mxu0 0.0
        %2368 = vmatpush1.msra.mxu0 0.0
        %2369 = vmatprep.subr.mxu0 0.0
        %2370 = vmatpush1.msra.mxu0 0.0
        %2371 = vmatprep.subr.mxu0 0.0
        %2372 = vmatpush1.msra.mxu0 0.0
        %2373 = vmatprep.subr.mxu0 0.0
        %2374 = vmatpush1.msra.mxu0 0.0
        %2375 = vmatprep.subr.mxu0 0.0
        %2376 = vmatpush1.msra.mxu0 0.0
        %2377 = vmatprep.subr.mxu0 0.0
        %2378 = vmatpush1.msra.mxu0 0.0
        %2379 = vmatprep.subr.mxu0 0.0
        %2380 = vmatpush1.msra.mxu0 0.0
        %2381 = vmatprep.subr.mxu0 0.0
        %2382 = vmatpush1.msra.mxu0 0.0
        %2383 = vmatprep.subr.mxu0 0.0
        %2384 = vmatpush1.msra.mxu0 0.0
        %2385 = vmatprep.subr.mxu0 0.0
        %2386 = vmatpush1.msra.mxu0 0.0
        %2387 = vmatprep.subr.mxu0 0.0
        %2388 = vmatpush1.msra.mxu0 0.0
        %2389 = vmatprep.subr.mxu0 0.0
        %2390 = vmatpush1.msra.mxu0 0.0
        %2391 = vmatprep.subr.mxu0 0.0
        %2392 = vmatpush1.msra.mxu0 0.0
        %2393 = vmatprep.subr.mxu0 0.0
        %2394 = vmatpush1.msra.mxu0 0.0
        %2395 = vmatprep.subr.mxu0 0.0
        %2396 = vmatpush1.msra.mxu0 0.0
        %2397 = vmatprep.subr.mxu0 0.0
        %2398 = vmatpush1.msra.mxu0 %v2362
        %2399 = vmatprep.subr.mxu0 0.0
        %2400 = vmatpush2.msra.mxu0 0.0
        %2401 = vmatprep.subr.mxu0 0.0
        %2402 = vmatpush2.msra.mxu0 0.0
        %2403 = vmatprep.subr.mxu0 0.0
        %2404 = vmatpush2.msra.mxu0 0.0
        %2405 = vmatprep.subr.mxu0 0.0
        %2406 = vmatpush2.msra.mxu0 0.0
        %2407 = vmatprep.subr.mxu0 0.0
        %2408 = vmatpush2.msra.mxu0 0.0
        %2409 = vmatprep.subr.mxu0 0.0
        %2410 = vmatpush2.msra.mxu0 0.0
        %2411 = vmatprep.subr.mxu0 0.0
        %2412 = vmatpush2.msra.mxu0 0.0
        %2413 = vmatprep.subr.mxu0 0.0
        %2414 = vmatpush2.msra.mxu0 0.0
        %2415 = vmatprep.subr.mxu0 0.0
        %2416 = vmatpush2.msra.mxu0 0.0
        %2417 = vmatprep.subr.mxu0 0.0
        %2418 = vmatpush2.msra.mxu0 0.0
        %2419 = vmatprep.subr.mxu0 0.0
        %2420 = vmatpush2.msra.mxu0 0.0
        %2421 = vmatprep.subr.mxu0 0.0
        %2422 = vmatpush2.msra.mxu0 0.0
        %2423 = vmatprep.subr.mxu0 0.0
        %2424 = vmatpush2.msra.mxu0 0.0
        %2425 = vmatprep.subr.mxu0 0.0
        %2426 = vmatpush2.msra.mxu0 0.0
        %2427 = vmatprep.subr.mxu0 0.0
        %2428 = vmatpush2.msra.mxu0 0.0
        %2429 = vmatprep.subr.mxu0 0.0
        %2430 = vmatpush2.msra.mxu0 0.0
        %2431 = vmatprep.mubr.f32.mxu0 0.0
        %2432 = vmatmul.mubr.f32.gmra.mxu0 %v2365
        %v2433 = vpop.f32.mrf.mxu0
        %v2434 = vadd.f32 0.0, %v2433
        %v2435 = vpop.f32.mrf.mxu0
        %2436 = vdwg.mxu0
        %2437 = vrot.lane.b32.xlu0 %v2008, 96
        %v2438 = vpop.permute.xlu0 %2437
        %v2441 = vsel %vm1074, %v2352, 0
        %2443 = vmatprep.subr.mxu0 0.0
        %2444 = vmatpush1.msra.mxu0 0.0
        %2445 = vmatprep.subr.mxu0 0.0
        %2446 = vmatpush1.msra.mxu0 0.0
        %2447 = vmatprep.subr.mxu0 0.0
        %2448 = vmatpush1.msra.mxu0 0.0
        %2449 = vmatprep.subr.mxu0 0.0
        %2450 = vmatpush1.msra.mxu0 0.0
        %2451 = vmatprep.subr.mxu0 0.0
        %2452 = vmatpush1.msra.mxu0 0.0
        %2453 = vmatprep.subr.mxu0 0.0
        %2454 = vmatpush1.msra.mxu0 0.0
        %2455 = vmatprep.subr.mxu0 0.0
        %2456 = vmatpush1.msra.mxu0 0.0
        %2457 = vmatprep.subr.mxu0 0.0
        %2458 = vmatpush1.msra.mxu0 0.0
        %2459 = vmatprep.subr.mxu0 0.0
        %2460 = vmatpush1.msra.mxu0 0.0
        %2461 = vmatprep.subr.mxu0 0.0
        %2462 = vmatpush1.msra.mxu0 0.0
        %2463 = vmatprep.subr.mxu0 0.0
        %2464 = vmatpush1.msra.mxu0 0.0
        %2465 = vmatprep.subr.mxu0 0.0
        %2466 = vmatpush1.msra.mxu0 0.0
        %2467 = vmatprep.subr.mxu0 0.0
        %2468 = vmatpush1.msra.mxu0 0.0
        %2469 = vmatprep.subr.mxu0 0.0
        %2470 = vmatpush1.msra.mxu0 0.0
        %2471 = vmatprep.subr.mxu0 0.0
        %2472 = vmatpush1.msra.mxu0 0.0
        %2473 = vmatprep.subr.mxu0 0.0
        %2474 = vmatpush1.msra.mxu0 %v2438
        %2475 = vmatprep.subr.mxu0 0.0
        %2476 = vmatpush2.msra.mxu0 0.0
        %2477 = vmatprep.subr.mxu0 0.0
        %2478 = vmatpush2.msra.mxu0 0.0
        %2479 = vmatprep.subr.mxu0 0.0
        %2480 = vmatpush2.msra.mxu0 0.0
        %2481 = vmatprep.subr.mxu0 0.0
        %2482 = vmatpush2.msra.mxu0 0.0
        %2483 = vmatprep.subr.mxu0 0.0
        %2484 = vmatpush2.msra.mxu0 0.0
        %2485 = vmatprep.subr.mxu0 0.0
        %2486 = vmatpush2.msra.mxu0 0.0
        %2487 = vmatprep.subr.mxu0 0.0
        %2488 = vmatpush2.msra.mxu0 0.0
        %2489 = vmatprep.subr.mxu0 0.0
        %2490 = vmatpush2.msra.mxu0 0.0
        %2491 = vmatprep.subr.mxu0 0.0
        %2492 = vmatpush2.msra.mxu0 0.0
        %2493 = vmatprep.subr.mxu0 0.0
        %2494 = vmatpush2.msra.mxu0 0.0
        %2495 = vmatprep.subr.mxu0 0.0
        %2496 = vmatpush2.msra.mxu0 0.0
        %2497 = vmatprep.subr.mxu0 0.0
        %2498 = vmatpush2.msra.mxu0 0.0
        %2499 = vmatprep.subr.mxu0 0.0
        %2500 = vmatpush2.msra.mxu0 0.0
        %2501 = vmatprep.subr.mxu0 0.0
        %2502 = vmatpush2.msra.mxu0 0.0
        %2503 = vmatprep.subr.mxu0 0.0
        %2504 = vmatpush2.msra.mxu0 0.0
        %2505 = vmatprep.subr.mxu0 0.0
        %2506 = vmatpush2.msra.mxu0 0.0
        %2507 = vmatprep.mubr.f32.mxu0 0.0
        %2508 = vmatmul.mubr.f32.gmra.mxu0 %v2441
        %v2509 = vpop.f32.mrf.mxu0
        %v2510 = vadd.f32 0.0, %v2509
        %v2511 = vpop.f32.mrf.mxu0
        %2512 = vdwg.mxu0
        %2513 = vrot.lane.b32.xlu0 %v2010, 96
        %v2514 = vpop.permute.xlu0 %2513
        %v2517 = vsel %vm1074, %v2354, 0
        %2519 = vmatprep.subr.mxu0 0.0
        %2520 = vmatpush1.msra.mxu0 0.0
        %2521 = vmatprep.subr.mxu0 0.0
        %2522 = vmatpush1.msra.mxu0 0.0
        %2523 = vmatprep.subr.mxu0 0.0
        %2524 = vmatpush1.msra.mxu0 0.0
        %2525 = vmatprep.subr.mxu0 0.0
        %2526 = vmatpush1.msra.mxu0 0.0
        %2527 = vmatprep.subr.mxu0 0.0
        %2528 = vmatpush1.msra.mxu0 0.0
        %2529 = vmatprep.subr.mxu0 0.0
        %2530 = vmatpush1.msra.mxu0 0.0
        %2531 = vmatprep.subr.mxu0 0.0
        %2532 = vmatpush1.msra.mxu0 0.0
        %2533 = vmatprep.subr.mxu0 0.0
        %2534 = vmatpush1.msra.mxu0 0.0
        %2535 = vmatprep.subr.mxu0 0.0
        %2536 = vmatpush1.msra.mxu0 0.0
        %2537 = vmatprep.subr.mxu0 0.0
        %2538 = vmatpush1.msra.mxu0 0.0
        %2539 = vmatprep.subr.mxu0 0.0
        %2540 = vmatpush1.msra.mxu0 0.0
        %2541 = vmatprep.subr.mxu0 0.0
        %2542 = vmatpush1.msra.mxu0 0.0
        %2543 = vmatprep.subr.mxu0 0.0
        %2544 = vmatpush1.msra.mxu0 0.0
        %2545 = vmatprep.subr.mxu0 0.0
        %2546 = vmatpush1.msra.mxu0 0.0
        %2547 = vmatprep.subr.mxu0 0.0
        %2548 = vmatpush1.msra.mxu0 0.0
        %2549 = vmatprep.subr.mxu0 0.0
        %2550 = vmatpush1.msra.mxu0 %v2514
        %2551 = vmatprep.subr.mxu0 0.0
        %2552 = vmatpush2.msra.mxu0 0.0
        %2553 = vmatprep.subr.mxu0 0.0
        %2554 = vmatpush2.msra.mxu0 0.0
        %2555 = vmatprep.subr.mxu0 0.0
        %2556 = vmatpush2.msra.mxu0 0.0
        %2557 = vmatprep.subr.mxu0 0.0
        %2558 = vmatpush2.msra.mxu0 0.0
        %2559 = vmatprep.subr.mxu0 0.0
        %2560 = vmatpush2.msra.mxu0 0.0
        %2561 = vmatprep.subr.mxu0 0.0
        %2562 = vmatpush2.msra.mxu0 0.0
        %2563 = vmatprep.subr.mxu0 0.0
        %2564 = vmatpush2.msra.mxu0 0.0
        %2565 = vmatprep.subr.mxu0 0.0
        %2566 = vmatpush2.msra.mxu0 0.0
        %2567 = vmatprep.subr.mxu0 0.0
        %2568 = vmatpush2.msra.mxu0 0.0
        %2569 = vmatprep.subr.mxu0 0.0
        %2570 = vmatpush2.msra.mxu0 0.0
        %2571 = vmatprep.subr.mxu0 0.0
        %2572 = vmatpush2.msra.mxu0 0.0
        %2573 = vmatprep.subr.mxu0 0.0
        %2574 = vmatpush2.msra.mxu0 0.0
        %2575 = vmatprep.subr.mxu0 0.0
        %2576 = vmatpush2.msra.mxu0 0.0
        %2577 = vmatprep.subr.mxu0 0.0
        %2578 = vmatpush2.msra.mxu0 0.0
        %2579 = vmatprep.subr.mxu0 0.0
        %2580 = vmatpush2.msra.mxu0 0.0
        %2581 = vmatprep.subr.mxu0 0.0
        %2582 = vmatpush2.msra.mxu0 0.0
        %2583 = vmatprep.mubr.f32.mxu0 0.0
        %2584 = vmatmul.mubr.f32.gmra.mxu0 %v2517
        %v2585 = vpop.f32.mrf.mxu0
        %v2586 = vadd.f32 0.0, %v2585
        %v2587 = vpop.f32.mrf.mxu0
        %2588 = vdwg.mxu0
        %2589 = vrot.lane.b32.xlu0 %v2012, 96
        %v2590 = vpop.permute.xlu0 %2589
        %v2593 = vsel %vm1074, %v2356, 0
        %2595 = vmatprep.subr.mxu0 0.0
        %2596 = vmatpush1.msra.mxu0 0.0
        %2597 = vmatprep.subr.mxu0 0.0
        %2598 = vmatpush1.msra.mxu0 0.0
        %2599 = vmatprep.subr.mxu0 0.0
        %2600 = vmatpush1.msra.mxu0 0.0
        %2601 = vmatprep.subr.mxu0 0.0
        %2602 = vmatpush1.msra.mxu0 0.0
        %2603 = vmatprep.subr.mxu0 0.0
        %2604 = vmatpush1.msra.mxu0 0.0
        %2605 = vmatprep.subr.mxu0 0.0
        %2606 = vmatpush1.msra.mxu0 0.0
        %2607 = vmatprep.subr.mxu0 0.0
        %2608 = vmatpush1.msra.mxu0 0.0
        %2609 = vmatprep.subr.mxu0 0.0
        %2610 = vmatpush1.msra.mxu0 0.0
        %2611 = vmatprep.subr.mxu0 0.0
        %2612 = vmatpush1.msra.mxu0 0.0
        %2613 = vmatprep.subr.mxu0 0.0
        %2614 = vmatpush1.msra.mxu0 0.0
        %2615 = vmatprep.subr.mxu0 0.0
        %2616 = vmatpush1.msra.mxu0 0.0
        %2617 = vmatprep.subr.mxu0 0.0
        %2618 = vmatpush1.msra.mxu0 0.0
        %2619 = vmatprep.subr.mxu0 0.0
        %2620 = vmatpush1.msra.mxu0 0.0
        %2621 = vmatprep.subr.mxu0 0.0
        %2622 = vmatpush1.msra.mxu0 0.0
        %2623 = vmatprep.subr.mxu0 0.0
        %2624 = vmatpush1.msra.mxu0 0.0
        %2625 = vmatprep.subr.mxu0 0.0
        %2626 = vmatpush1.msra.mxu0 %v2590
        %2627 = vmatprep.subr.mxu0 0.0
        %2628 = vmatpush2.msra.mxu0 0.0
        %2629 = vmatprep.subr.mxu0 0.0
        %2630 = vmatpush2.msra.mxu0 0.0
        %2631 = vmatprep.subr.mxu0 0.0
        %2632 = vmatpush2.msra.mxu0 0.0
        %2633 = vmatprep.subr.mxu0 0.0
        %2634 = vmatpush2.msra.mxu0 0.0
        %2635 = vmatprep.subr.mxu0 0.0
        %2636 = vmatpush2.msra.mxu0 0.0
        %2637 = vmatprep.subr.mxu0 0.0
        %2638 = vmatpush2.msra.mxu0 0.0
        %2639 = vmatprep.subr.mxu0 0.0
        %2640 = vmatpush2.msra.mxu0 0.0
        %2641 = vmatprep.subr.mxu0 0.0
        %2642 = vmatpush2.msra.mxu0 0.0
        %2643 = vmatprep.subr.mxu0 0.0
        %2644 = vmatpush2.msra.mxu0 0.0
        %2645 = vmatprep.subr.mxu0 0.0
        %2646 = vmatpush2.msra.mxu0 0.0
        %2647 = vmatprep.subr.mxu0 0.0
        %2648 = vmatpush2.msra.mxu0 0.0
        %2649 = vmatprep.subr.mxu0 0.0
        %2650 = vmatpush2.msra.mxu0 0.0
        %2651 = vmatprep.subr.mxu0 0.0
        %2652 = vmatpush2.msra.mxu0 0.0
        %2653 = vmatprep.subr.mxu0 0.0
        %2654 = vmatpush2.msra.mxu0 0.0
        %2655 = vmatprep.subr.mxu0 0.0
        %2656 = vmatpush2.msra.mxu0 0.0
        %2657 = vmatprep.subr.mxu0 0.0
        %2658 = vmatpush2.msra.mxu0 0.0
        %2659 = vmatprep.mubr.f32.mxu0 0.0
        %2660 = vmatmul.mubr.f32.gmra.mxu0 %v2593
        %v2661 = vpop.f32.mrf.mxu0
        %v2662 = vadd.f32 0.0, %v2661
        %v2663 = vpop.f32.mrf.mxu0
        %2664 = vdwg.mxu0
        %2666 = vrot.lane.b32.xlu0 %v2510, 8
        %v2667 = vpop.permute.xlu0 %2666
        %2670 = vrot.lane.b32.xlu0 %v2586, 16
        %v2671 = vpop.permute.xlu0 %2670
        %2674 = vrot.lane.b32.xlu0 %v2662, 24
        %v2675 = vpop.permute.xlu0 %2674
        %v2677 = vsel %vm1074, %v2434, %v2667
        %v2678 = vsel %vm825, %v2677, %v2671
        %v2679 = vsel %vm1741, %v2678, %v2675
        %v2681 = vsel %vm902, %v2679, 0
        %2683 = vmatprep.subr.mxu0 0.0
        %2684 = vmatpush1.msra.mxu0 0.0
        %2685 = vmatprep.subr.mxu0 0.0
        %2686 = vmatpush1.msra.mxu0 0.0
        %2687 = vmatprep.subr.mxu0 0.0
        %2688 = vmatpush1.msra.mxu0 0.0
        %2689 = vmatprep.subr.mxu0 0.0
        %2690 = vmatpush1.msra.mxu0 0.0
        %2691 = vmatprep.subr.mxu0 0.0
        %2692 = vmatpush1.msra.mxu0 0.0
        %2693 = vmatprep.subr.mxu0 0.0
        %2694 = vmatpush1.msra.mxu0 0.0
        %2695 = vmatprep.subr.mxu0 0.0
        %2696 = vmatpush1.msra.mxu0 0.0
        %2697 = vmatprep.subr.mxu0 0.0
        %2698 = vmatpush1.msra.mxu0 0.0
        %2699 = vmatprep.subr.mxu0 0.0
        %2700 = vmatpush1.msra.mxu0 0.0
        %2701 = vmatprep.subr.mxu0 0.0
        %2702 = vmatpush1.msra.mxu0 0.0
        %2703 = vmatprep.subr.mxu0 0.0
        %2704 = vmatpush1.msra.mxu0 0.0
        %2705 = vmatprep.subr.mxu0 0.0
        %2706 = vmatpush1.msra.mxu0 0.0
        %2707 = vmatprep.subr.mxu0 0.0
        %2708 = vmatpush1.msra.mxu0 %v1852
        %2709 = vmatprep.subr.mxu0 0.0
        %2710 = vmatpush1.msra.mxu0 %v1851
        %2711 = vmatprep.subr.mxu0 0.0
        %2712 = vmatpush1.msra.mxu0 %v1850
        %2713 = vmatprep.subr.mxu0 0.0
        %2714 = vmatpush1.msra.mxu0 %v1849
        %2715 = vmatprep.subr.mxu0 0.0
        %2716 = vmatpush2.msra.mxu0 0.0
        %2717 = vmatprep.subr.mxu0 0.0
        %2718 = vmatpush2.msra.mxu0 0.0
        %2719 = vmatprep.subr.mxu0 0.0
        %2720 = vmatpush2.msra.mxu0 0.0
        %2721 = vmatprep.subr.mxu0 0.0
        %2722 = vmatpush2.msra.mxu0 0.0
        %2723 = vmatprep.subr.mxu0 0.0
        %2724 = vmatpush2.msra.mxu0 0.0
        %2725 = vmatprep.subr.mxu0 0.0
        %2726 = vmatpush2.msra.mxu0 0.0
        %2727 = vmatprep.subr.mxu0 0.0
        %2728 = vmatpush2.msra.mxu0 0.0
        %2729 = vmatprep.subr.mxu0 0.0
        %2730 = vmatpush2.msra.mxu0 0.0
        %2731 = vmatprep.subr.mxu0 0.0
        %2732 = vmatpush2.msra.mxu0 0.0
        %2733 = vmatprep.subr.mxu0 0.0
        %2734 = vmatpush2.msra.mxu0 0.0
        %2735 = vmatprep.subr.mxu0 0.0
        %2736 = vmatpush2.msra.mxu0 0.0
        %2737 = vmatprep.subr.mxu0 0.0
        %2738 = vmatpush2.msra.mxu0 0.0
        %2739 = vmatprep.subr.mxu0 0.0
        %2740 = vmatpush2.msra.mxu0 0.0
        %2741 = vmatprep.subr.mxu0 0.0
        %2742 = vmatpush2.msra.mxu0 0.0
        %2743 = vmatprep.subr.mxu0 0.0
        %2744 = vmatpush2.msra.mxu0 0.0
        %2745 = vmatprep.subr.mxu0 0.0
        %2746 = vmatpush2.msra.mxu0 0.0
        %2747 = vmatprep.mubr.f32.mxu0 0.0
        %2748 = vmatmul.mubr.f32.gmra.mxu0 %v2681
        %v2749 = vpop.f32.mrf.mxu0
        %v2750 = vadd.f32 0.0, %v2749
        %v2751 = vpop.f32.mrf.mxu0
        %2752 = vdwg.mxu0
        %v2753 = vadd.f32 %v1840, %v2750
        %v2754 = vsel %vm902, %v2753, 0.0
        %2755 = vadd.xlane.f32.xlu0 %v2754
        %v2756 = vpop.xlane.xlu0 %2755
        %v2757 = vmul.f32 %v2756, %v1820
        %v2758 = vsub.f32 %v2753, %v2757
        %v2759 = vmul.f32 %v2758, %v2758
        %v2760 = vsel %vm902, %v2759, 0.0
        %2761 = vadd.xlane.f32.xlu0 %v2760
        %v2762 = vpop.xlane.xlu0 %2761
        %v2763 = vmul.f32 %v2762, %v1820
        %v2764 = vadd.f32 %v2763, 1e-05
        %v2765 = vrsqrt.pop %v2764
        %v2766 = vmul.f32 %v2758, %v2765
        %v2767 = vlaneseq
        %v2768 = vshrl.u32 %v2767, 7
        %v2769 = vsub.s32 2, %v2768
        %v2770 = vrot.slane %v904, %v2769
        %v2771 = vmul.f32 %v2766, %v2770
        %v2772 = vlaneseq
        %v2773 = vshrl.u32 %v2772, 7
        %v2774 = vsub.s32 3, %v2773
        %v2775 = vrot.slane %v904, %v2774
        %v2776 = vadd.f32 %v2771, %v2775
        %v2777 = vld [vmem:[%s11] sm:$0xff]
        %v2778 = vld [vmem:[%s11 + $0x8] sm:$0xff]
        %v2779 = vld [vmem:[%s11 + $0x10] sm:$0xff]
        %v2780 = vld [vmem:[%s11 + $0x18] sm:$0xff]
        %v2781 = vld [vmem:[#allocation11] sm:$0x1]
        %v2783 = vlaneseq
        %v2784 = vshrl.u32 %v2783, 7
        %v2785 = vsub.s32 0, %v2784
        %v2786 = vrot.slane %v2781, %v2785
        %v2789 = vsel %vm902, %v2776, 0
        %2791 = vmatprep.subr.mxu0 0.0
        %2792 = vmatpush1.msra.mxu0 0.0
        %2793 = vmatprep.subr.mxu0 0.0
        %2794 = vmatpush1.msra.mxu0 0.0
        %2795 = vmatprep.subr.mxu0 0.0
        %2796 = vmatpush1.msra.mxu0 0.0
        %2797 = vmatprep.subr.mxu0 0.0
        %2798 = vmatpush1.msra.mxu0 0.0
        %2799 = vmatprep.subr.mxu0 0.0
        %2800 = vmatpush1.msra.mxu0 0.0
        %2801 = vmatprep.subr.mxu0 0.0
        %2802 = vmatpush1.msra.mxu0 0.0
        %2803 = vmatprep.subr.mxu0 0.0
        %2804 = vmatpush1.msra.mxu0 0.0
        %2805 = vmatprep.subr.mxu0 0.0
        %2806 = vmatpush1.msra.mxu0 0.0
        %2807 = vmatprep.subr.mxu0 0.0
        %2808 = vmatpush1.msra.mxu0 0.0
        %2809 = vmatprep.subr.mxu0 0.0
        %2810 = vmatpush1.msra.mxu0 0.0
        %2811 = vmatprep.subr.mxu0 0.0
        %2812 = vmatpush1.msra.mxu0 0.0
        %2813 = vmatprep.subr.mxu0 0.0
        %2814 = vmatpush1.msra.mxu0 0.0
        %2815 = vmatprep.subr.mxu0 0.0
        %2816 = vmatpush1.msra.mxu0 %v2780
        %2817 = vmatprep.subr.mxu0 0.0
        %2818 = vmatpush1.msra.mxu0 %v2779
        %2819 = vmatprep.subr.mxu0 0.0
        %2820 = vmatpush1.msra.mxu0 %v2778
        %2821 = vmatprep.subr.mxu0 0.0
        %2822 = vmatpush1.msra.mxu0 %v2777
        %2823 = vmatprep.subr.mxu0 0.0
        %2824 = vmatpush2.msra.mxu0 0.0
        %2825 = vmatprep.subr.mxu0 0.0
        %2826 = vmatpush2.msra.mxu0 0.0
        %2827 = vmatprep.subr.mxu0 0.0
        %2828 = vmatpush2.msra.mxu0 0.0
        %2829 = vmatprep.subr.mxu0 0.0
        %2830 = vmatpush2.msra.mxu0 0.0
        %2831 = vmatprep.subr.mxu0 0.0
        %2832 = vmatpush2.msra.mxu0 0.0
        %2833 = vmatprep.subr.mxu0 0.0
        %2834 = vmatpush2.msra.mxu0 0.0
        %2835 = vmatprep.subr.mxu0 0.0
        %2836 = vmatpush2.msra.mxu0 0.0
        %2837 = vmatprep.subr.mxu0 0.0
        %2838 = vmatpush2.msra.mxu0 0.0
        %2839 = vmatprep.subr.mxu0 0.0
        %2840 = vmatpush2.msra.mxu0 0.0
        %2841 = vmatprep.subr.mxu0 0.0
        %2842 = vmatpush2.msra.mxu0 0.0
        %2843 = vmatprep.subr.mxu0 0.0
        %2844 = vmatpush2.msra.mxu0 0.0
        %2845 = vmatprep.subr.mxu0 0.0
        %2846 = vmatpush2.msra.mxu0 0.0
        %2847 = vmatprep.subr.mxu0 0.0
        %2848 = vmatpush2.msra.mxu0 0.0
        %2849 = vmatprep.subr.mxu0 0.0
        %2850 = vmatpush2.msra.mxu0 0.0
        %2851 = vmatprep.subr.mxu0 0.0
        %2852 = vmatpush2.msra.mxu0 0.0
        %2853 = vmatprep.subr.mxu0 0.0
        %2854 = vmatpush2.msra.mxu0 0.0
        %2855 = vmatprep.mubr.f32.mxu0 0.0
        %2856 = vmatmul.mubr.f32.gmra.mxu0 %v2789
        %v2857 = vpop.f32.mrf.mxu0
        %v2858 = vadd.f32 %v2786, %v2857
        %v2859 = vpop.f32.mrf.mxu0
        %2860 = vdwg.mxu0
        %v2861 = vmax.f32 %v2858, 0.0
        %v2862 = vld [vmem:[%s13] sm:$0xff]
        %v2863 = vld [vmem:[%s13 + $0x8] sm:$0xff]
        %v2864 = vld [vmem:[%s13 + $0x10] sm:$0xff]
        %v2865 = vld [vmem:[%s13 + $0x18] sm:$0xff]
        %v2866 = vld [vmem:[%s13 + $0x20] sm:$0xff]
        %v2867 = vld [vmem:[%s13 + $0x28] sm:$0xff]
        %v2868 = vld [vmem:[%s13 + $0x30] sm:$0xff]
        %v2869 = vld [vmem:[%s13 + $0x38] sm:$0xff]
        %v2870 = vld [vmem:[#allocation13] sm:$0x1]
        %v2872 = vlaneseq
        %v2873 = vshrl.u32 %v2872, 7
        %v2874 = vsub.s32 0, %v2873
        %v2875 = vrot.slane %v2870, %v2874
        %vm2877 = vcmask 523264
        %v2879 = vsel %vm2877, %v2861, 0
        %2881 = vmatprep.subr.mxu0 0.0
        %2882 = vmatpush1.msra.mxu0 0.0
        %2883 = vmatprep.subr.mxu0 0.0
        %2884 = vmatpush1.msra.mxu0 0.0
        %2885 = vmatprep.subr.mxu0 0.0
        %2886 = vmatpush1.msra.mxu0 0.0
        %2887 = vmatprep.subr.mxu0 0.0
        %2888 = vmatpush1.msra.mxu0 0.0
        %2889 = vmatprep.subr.mxu0 0.0
        %2890 = vmatpush1.msra.mxu0 0.0
        %2891 = vmatprep.subr.mxu0 0.0
        %2892 = vmatpush1.msra.mxu0 0.0
        %2893 = vmatprep.subr.mxu0 0.0
        %2894 = vmatpush1.msra.mxu0 0.0
        %2895 = vmatprep.subr.mxu0 0.0
        %2896 = vmatpush1.msra.mxu0 0.0
        %2897 = vmatprep.subr.mxu0 0.0
        %2898 = vmatpush1.msra.mxu0 %v2869
        %2899 = vmatprep.subr.mxu0 0.0
        %2900 = vmatpush1.msra.mxu0 %v2868
        %2901 = vmatprep.subr.mxu0 0.0
        %2902 = vmatpush1.msra.mxu0 %v2867
        %2903 = vmatprep.subr.mxu0 0.0
        %2904 = vmatpush1.msra.mxu0 %v2866
        %2905 = vmatprep.subr.mxu0 0.0
        %2906 = vmatpush1.msra.mxu0 %v2865
        %2907 = vmatprep.subr.mxu0 0.0
        %2908 = vmatpush1.msra.mxu0 %v2864
        %2909 = vmatprep.subr.mxu0 0.0
        %2910 = vmatpush1.msra.mxu0 %v2863
        %2911 = vmatprep.subr.mxu0 0.0
        %2912 = vmatpush1.msra.mxu0 %v2862
        %2913 = vmatprep.subr.mxu0 0.0
        %2914 = vmatpush2.msra.mxu0 0.0
        %2915 = vmatprep.subr.mxu0 0.0
        %2916 = vmatpush2.msra.mxu0 0.0
        %2917 = vmatprep.subr.mxu0 0.0
        %2918 = vmatpush2.msra.mxu0 0.0
        %2919 = vmatprep.subr.mxu0 0.0
        %2920 = vmatpush2.msra.mxu0 0.0
        %2921 = vmatprep.subr.mxu0 0.0
        %2922 = vmatpush2.msra.mxu0 0.0
        %2923 = vmatprep.subr.mxu0 0.0
        %2924 = vmatpush2.msra.mxu0 0.0
        %2925 = vmatprep.subr.mxu0 0.0
        %2926 = vmatpush2.msra.mxu0 0.0
        %2927 = vmatprep.subr.mxu0 0.0
        %2928 = vmatpush2.msra.mxu0 0.0
        %2929 = vmatprep.subr.mxu0 0.0
        %2930 = vmatpush2.msra.mxu0 0.0
        %2931 = vmatprep.subr.mxu0 0.0
        %2932 = vmatpush2.msra.mxu0 0.0
        %2933 = vmatprep.subr.mxu0 0.0
        %2934 = vmatpush2.msra.mxu0 0.0
        %2935 = vmatprep.subr.mxu0 0.0
        %2936 = vmatpush2.msra.mxu0 0.0
        %2937 = vmatprep.subr.mxu0 0.0
        %2938 = vmatpush2.msra.mxu0 0.0
        %2939 = vmatprep.subr.mxu0 0.0
        %2940 = vmatpush2.msra.mxu0 0.0
        %2941 = vmatprep.subr.mxu0 0.0
        %2942 = vmatpush2.msra.mxu0 0.0
        %2943 = vmatprep.subr.mxu0 0.0
        %2944 = vmatpush2.msra.mxu0 0.0
        %2945 = vmatprep.mubr.f32.mxu0 0.0
        %2946 = vmatmul.mubr.f32.gmra.mxu0 %v2879
        %v2947 = vpop.f32.mrf.mxu0
        %v2948 = vadd.f32 %v2875, %v2947
        %v2949 = vpop.f32.mrf.mxu0
        %2950 = vdwg.mxu0
        %v2951 = vadd.f32 %v2776, %v2948
        %v2952 = vsel %vm902, %v2951, 0.0
        %2953 = vadd.xlane.f32.xlu0 %v2952
        %v2954 = vpop.xlane.xlu0 %2953
        %v2955 = vmul.f32 %v2954, %v1820
        %v2956 = vsub.f32 %v2951, %v2955
        %v2957 = vmul.f32 %v2956, %v2956
        %v2958 = vsel %vm902, %v2957, 0.0
        %2959 = vadd.xlane.f32.xlu0 %v2958
        %v2960 = vpop.xlane.xlu0 %2959
        %v2961 = vmul.f32 %v2960, %v1820
        %v2962 = vadd.f32 %v2961, 1e-05
        %v2963 = vrsqrt.pop %v2962
        %v2964 = vmul.f32 %v2956, %v2963
        %v2965 = vlaneseq
        %v2966 = vshrl.u32 %v2965, 7
        %v2967 = vsub.s32 4, %v2966
        %v2968 = vrot.slane %v904, %v2967
        %v2969 = vmul.f32 %v2964, %v2968
        %v2970 = vlaneseq
        %v2971 = vshrl.u32 %v2970, 7
        %v2972 = vsub.s32 5, %v2971
        %v2973 = vrot.slane %v904, %v2972
        %v2974 = vadd.f32 %v2969, %v2973
        %s2975 = scalar_lea.vmem %s799, 8 [#allocation17]
        %2976 = vst.msk [vmem:[%s2975] sm:$0xff] %vm902, %v2974
        %s2977 = scalar_lea.vmem %s15, 8
        %v2978 = vld [vmem:[%s2977] sm:$0x3f]
        %s2979 = scalar_lea.vmem %s5, 32
        %v2980 = vld [vmem:[%s2979] sm:$0xff]
        %v2981 = vld [vmem:[%s2979 + $0x8] sm:$0xff]
        %v2982 = vld [vmem:[%s2979 + $0x10] sm:$0xff]
        %v2983 = vld [vmem:[%s2979 + $0x18] sm:$0xff]
        %s2984 = scalar_lea.vmem %s6, 32
        %v2985 = vld [vmem:[%s2984] sm:$0xff]
        %v2986 = vld [vmem:[%s2984 + $0x8] sm:$0xff]
        %v2987 = vld [vmem:[%s2984 + $0x10] sm:$0xff]
        %v2988 = vld [vmem:[%s2984 + $0x18] sm:$0xff]
        %s2989 = scalar_lea.vmem %s7, 32
        %v2990 = vld [vmem:[%s2989] sm:$0xff]
        %v2991 = vld [vmem:[%s2989 + $0x8] sm:$0xff]
        %v2992 = vld [vmem:[%s2989 + $0x10] sm:$0xff]
        %v2993 = vld [vmem:[%s2989 + $0x18] sm:$0xff]
        %v2995 = vsel %vm902, %v2974, 0
        %2997 = vmatprep.subr.mxu0 0.0
        %2998 = vmatpush1.msra.mxu0 0.0
        %2999 = vmatprep.subr.mxu0 0.0
        %3000 = vmatpush1.msra.mxu0 0.0
        %3001 = vmatprep.subr.mxu0 0.0
        %3002 = vmatpush1.msra.mxu0 0.0
        %3003 = vmatprep.subr.mxu0 0.0
        %3004 = vmatpush1.msra.mxu0 0.0
        %3005 = vmatprep.subr.mxu0 0.0
        %3006 = vmatpush1.msra.mxu0 0.0
        %3007 = vmatprep.subr.mxu0 0.0
        %3008 = vmatpush1.msra.mxu0 0.0
        %3009 = vmatprep.subr.mxu0 0.0
        %3010 = vmatpush1.msra.mxu0 0.0
        %3011 = vmatprep.subr.mxu0 0.0
        %3012 = vmatpush1.msra.mxu0 0.0
        %3013 = vmatprep.subr.mxu0 0.0
        %3014 = vmatpush1.msra.mxu0 0.0
        %3015 = vmatprep.subr.mxu0 0.0
        %3016 = vmatpush1.msra.mxu0 0.0
        %3017 = vmatprep.subr.mxu0 0.0
        %3018 = vmatpush1.msra.mxu0 0.0
        %3019 = vmatprep.subr.mxu0 0.0
        %3020 = vmatpush1.msra.mxu0 0.0
        %3021 = vmatprep.subr.mxu0 0.0
        %3022 = vmatpush1.msra.mxu0 %v2983
        %3023 = vmatprep.subr.mxu0 0.0
        %3024 = vmatpush1.msra.mxu0 %v2982
        %3025 = vmatprep.subr.mxu0 0.0
        %3026 = vmatpush1.msra.mxu0 %v2981
        %3027 = vmatprep.subr.mxu0 0.0
        %3028 = vmatpush1.msra.mxu0 %v2980
        %3029 = vmatprep.subr.mxu0 0.0
        %3030 = vmatpush2.msra.mxu0 0.0
        %3031 = vmatprep.subr.mxu0 0.0
        %3032 = vmatpush2.msra.mxu0 0.0
        %3033 = vmatprep.subr.mxu0 0.0
        %3034 = vmatpush2.msra.mxu0 0.0
        %3035 = vmatprep.subr.mxu0 0.0
        %3036 = vmatpush2.msra.mxu0 0.0
        %3037 = vmatprep.subr.mxu0 0.0
        %3038 = vmatpush2.msra.mxu0 0.0
        %3039 = vmatprep.subr.mxu0 0.0
        %3040 = vmatpush2.msra.mxu0 0.0
        %3041 = vmatprep.subr.mxu0 0.0
        %3042 = vmatpush2.msra.mxu0 0.0
        %3043 = vmatprep.subr.mxu0 0.0
        %3044 = vmatpush2.msra.mxu0 0.0
        %3045 = vmatprep.subr.mxu0 0.0
        %3046 = vmatpush2.msra.mxu0 0.0
        %3047 = vmatprep.subr.mxu0 0.0
        %3048 = vmatpush2.msra.mxu0 0.0
        %3049 = vmatprep.subr.mxu0 0.0
        %3050 = vmatpush2.msra.mxu0 0.0
        %3051 = vmatprep.subr.mxu0 0.0
        %3052 = vmatpush2.msra.mxu0 0.0
        %3053 = vmatprep.subr.mxu0 0.0
        %3054 = vmatpush2.msra.mxu0 0.0
        %3055 = vmatprep.subr.mxu0 0.0
        %3056 = vmatpush2.msra.mxu0 0.0
        %3057 = vmatprep.subr.mxu0 0.0
        %3058 = vmatpush2.msra.mxu0 0.0
        %3059 = vmatprep.subr.mxu0 0.0
        %3060 = vmatpush2.msra.mxu0 0.0
        %3061 = vmatprep.mubr.f32.mxu0 0.0
        %3062 = vmatmul.mubr.f32.gmra.mxu0 %v2995
        %v3063 = vpop.f32.mrf.mxu0
        %v3064 = vadd.f32 0.0, %v3063
        %v3065 = vpop.f32.mrf.mxu0
        %3066 = vdwg.mxu0
        %3067 = vmatprep.subr.mxu0 0.0
        %3068 = vmatpush1.msra.mxu0 0.0
        %3069 = vmatprep.subr.mxu0 0.0
        %3070 = vmatpush1.msra.mxu0 0.0
        %3071 = vmatprep.subr.mxu0 0.0
        %3072 = vmatpush1.msra.mxu0 0.0
        %3073 = vmatprep.subr.mxu0 0.0
        %3074 = vmatpush1.msra.mxu0 0.0
        %3075 = vmatprep.subr.mxu0 0.0
        %3076 = vmatpush1.msra.mxu0 0.0
        %3077 = vmatprep.subr.mxu0 0.0
        %3078 = vmatpush1.msra.mxu0 0.0
        %3079 = vmatprep.subr.mxu0 0.0
        %3080 = vmatpush1.msra.mxu0 0.0
        %3081 = vmatprep.subr.mxu0 0.0
        %3082 = vmatpush1.msra.mxu0 0.0
        %3083 = vmatprep.subr.mxu0 0.0
        %3084 = vmatpush1.msra.mxu0 0.0
        %3085 = vmatprep.subr.mxu0 0.0
        %3086 = vmatpush1.msra.mxu0 0.0
        %3087 = vmatprep.subr.mxu0 0.0
        %3088 = vmatpush1.msra.mxu0 0.0
        %3089 = vmatprep.subr.mxu0 0.0
        %3090 = vmatpush1.msra.mxu0 0.0
        %3091 = vmatprep.subr.mxu0 0.0
        %3092 = vmatpush1.msra.mxu0 %v2988
        %3093 = vmatprep.subr.mxu0 0.0
        %3094 = vmatpush1.msra.mxu0 %v2987
        %3095 = vmatprep.subr.mxu0 0.0
        %3096 = vmatpush1.msra.mxu0 %v2986
        %3097 = vmatprep.subr.mxu0 0.0
        %3098 = vmatpush1.msra.mxu0 %v2985
        %3099 = vmatprep.subr.mxu0 0.0
        %3100 = vmatpush2.msra.mxu0 0.0
        %3101 = vmatprep.subr.mxu0 0.0
        %3102 = vmatpush2.msra.mxu0 0.0
        %3103 = vmatprep.subr.mxu0 0.0
        %3104 = vmatpush2.msra.mxu0 0.0
        %3105 = vmatprep.subr.mxu0 0.0
        %3106 = vmatpush2.msra.mxu0 0.0
        %3107 = vmatprep.subr.mxu0 0.0
        %3108 = vmatpush2.msra.mxu0 0.0
        %3109 = vmatprep.subr.mxu0 0.0
        %3110 = vmatpush2.msra.mxu0 0.0
        %3111 = vmatprep.subr.mxu0 0.0
        %3112 = vmatpush2.msra.mxu0 0.0
        %3113 = vmatprep.subr.mxu0 0.0
        %3114 = vmatpush2.msra.mxu0 0.0
        %3115 = vmatprep.subr.mxu0 0.0
        %3116 = vmatpush2.msra.mxu0 0.0
        %3117 = vmatprep.subr.mxu0 0.0
        %3118 = vmatpush2.msra.mxu0 0.0
        %3119 = vmatprep.subr.mxu0 0.0
        %3120 = vmatpush2.msra.mxu0 0.0
        %3121 = vmatprep.subr.mxu0 0.0
        %3122 = vmatpush2.msra.mxu0 0.0
        %3123 = vmatprep.subr.mxu0 0.0
        %3124 = vmatpush2.msra.mxu0 0.0
        %3125 = vmatprep.subr.mxu0 0.0
        %3126 = vmatpush2.msra.mxu0 0.0
        %3127 = vmatprep.subr.mxu0 0.0
        %3128 = vmatpush2.msra.mxu0 0.0
        %3129 = vmatprep.subr.mxu0 0.0
        %3130 = vmatpush2.msra.mxu0 0.0
        %3131 = vmatprep.mubr.f32.mxu0 0.0
        %3132 = vmatmul.mubr.f32.gmra.mxu0 %v2995
        %v3133 = vpop.f32.mrf.mxu0
        %v3134 = vadd.f32 0.0, %v3133
        %v3135 = vpop.f32.mrf.mxu0
        %3136 = vdwg.mxu0
        %3138 = vrot.lane.b32.xlu0 %v3064, 120
        %v3139 = vpop.permute.xlu0 %3138
        %3140 = vrot.lane.b32.xlu0 %v3064, 112
        %v3141 = vpop.permute.xlu0 %3140
        %3142 = vrot.lane.b32.xlu0 %v3064, 104
        %v3143 = vpop.permute.xlu0 %3142
        %3145 = vrot.lane.b32.xlu0 %v3134, 120
        %v3146 = vpop.permute.xlu0 %3145
        %3147 = vrot.lane.b32.xlu0 %v3134, 112
        %v3148 = vpop.permute.xlu0 %3147
        %3149 = vrot.lane.b32.xlu0 %v3134, 104
        %v3150 = vpop.permute.xlu0 %3149
        %v3151 = vsel %vm1074, %v3064, 0
        %v3153 = vsel %vm1074, %v3134, 0
        %3155 = vmatprep.subr.mxu0 0.0
        %3156 = vmatpush1.xpose.msra.mxu0 0.0
        %3157 = vmatprep.subr.mxu0 0.0
        %3158 = vmatpush1.xpose.msra.mxu0 0.0
        %3159 = vmatprep.subr.mxu0 0.0
        %3160 = vmatpush1.xpose.msra.mxu0 0.0
        %3161 = vmatprep.subr.mxu0 0.0
        %3162 = vmatpush1.xpose.msra.mxu0 0.0
        %3163 = vmatprep.subr.mxu0 0.0
        %3164 = vmatpush1.xpose.msra.mxu0 0.0
        %3165 = vmatprep.subr.mxu0 0.0
        %3166 = vmatpush1.xpose.msra.mxu0 0.0
        %3167 = vmatprep.subr.mxu0 0.0
        %3168 = vmatpush1.xpose.msra.mxu0 0.0
        %3169 = vmatprep.subr.mxu0 0.0
        %3170 = vmatpush1.xpose.msra.mxu0 0.0
        %3171 = vmatprep.subr.mxu0 0.0
        %3172 = vmatpush1.xpose.msra.mxu0 0.0
        %3173 = vmatprep.subr.mxu0 0.0
        %3174 = vmatpush1.xpose.msra.mxu0 0.0
        %3175 = vmatprep.subr.mxu0 0.0
        %3176 = vmatpush1.xpose.msra.mxu0 0.0
        %3177 = vmatprep.subr.mxu0 0.0
        %3178 = vmatpush1.xpose.msra.mxu0 0.0
        %3179 = vmatprep.subr.mxu0 0.0
        %3180 = vmatpush1.xpose.msra.mxu0 0.0
        %3181 = vmatprep.subr.mxu0 0.0
        %3182 = vmatpush1.xpose.msra.mxu0 0.0
        %3183 = vmatprep.subr.mxu0 0.0
        %3184 = vmatpush1.xpose.msra.mxu0 0.0
        %3185 = vmatprep.subr.mxu0 0.0
        %3186 = vmatpush1.xpose.msra.mxu0 %v3153
        %3187 = vmatprep.subr.mxu0 0.0
        %3188 = vmatpush2.xpose.msra.mxu0 0.0
        %3189 = vmatprep.subr.mxu0 0.0
        %3190 = vmatpush2.xpose.msra.mxu0 0.0
        %3191 = vmatprep.subr.mxu0 0.0
        %3192 = vmatpush2.xpose.msra.mxu0 0.0
        %3193 = vmatprep.subr.mxu0 0.0
        %3194 = vmatpush2.xpose.msra.mxu0 0.0
        %3195 = vmatprep.subr.mxu0 0.0
        %3196 = vmatpush2.xpose.msra.mxu0 0.0
        %3197 = vmatprep.subr.mxu0 0.0
        %3198 = vmatpush2.xpose.msra.mxu0 0.0
        %3199 = vmatprep.subr.mxu0 0.0
        %3200 = vmatpush2.xpose.msra.mxu0 0.0
        %3201 = vmatprep.subr.mxu0 0.0
        %3202 = vmatpush2.xpose.msra.mxu0 0.0
        %3203 = vmatprep.subr.mxu0 0.0
        %3204 = vmatpush2.xpose.msra.mxu0 0.0
        %3205 = vmatprep.subr.mxu0 0.0
        %3206 = vmatpush2.xpose.msra.mxu0 0.0
        %3207 = vmatprep.subr.mxu0 0.0
        %3208 = vmatpush2.xpose.msra.mxu0 0.0
        %3209 = vmatprep.subr.mxu0 0.0
        %3210 = vmatpush2.xpose.msra.mxu0 0.0
        %3211 = vmatprep.subr.mxu0 0.0
        %3212 = vmatpush2.xpose.msra.mxu0 0.0
        %3213 = vmatprep.subr.mxu0 0.0
        %3214 = vmatpush2.xpose.msra.mxu0 0.0
        %3215 = vmatprep.subr.mxu0 0.0
        %3216 = vmatpush2.xpose.msra.mxu0 0.0
        %3217 = vmatprep.subr.mxu0 0.0
        %3218 = vmatpush2.xpose.msra.mxu0 0.0
        %3219 = vmatprep.mubr.f32.mxu0 0.0
        %3220 = vmatmul.mubr.f32.gmra.mxu0 %v3151
        %v3221 = vpop.f32.mrf.mxu0
        %v3222 = vadd.f32 0.0, %v3221
        %v3223 = vpop.f32.mrf.mxu0
        %3224 = vdwg.mxu0
        %v3225 = vsel %vm1074, %v3139, 0
        %v3227 = vsel %vm1074, %v3146, 0
        %3229 = vmatprep.subr.mxu0 0.0
        %3230 = vmatpush1.xpose.msra.mxu0 0.0
        %3231 = vmatprep.subr.mxu0 0.0
        %3232 = vmatpush1.xpose.msra.mxu0 0.0
        %3233 = vmatprep.subr.mxu0 0.0
        %3234 = vmatpush1.xpose.msra.mxu0 0.0
        %3235 = vmatprep.subr.mxu0 0.0
        %3236 = vmatpush1.xpose.msra.mxu0 0.0
        %3237 = vmatprep.subr.mxu0 0.0
        %3238 = vmatpush1.xpose.msra.mxu0 0.0
        %3239 = vmatprep.subr.mxu0 0.0
        %3240 = vmatpush1.xpose.msra.mxu0 0.0
        %3241 = vmatprep.subr.mxu0 0.0
        %3242 = vmatpush1.xpose.msra.mxu0 0.0
        %3243 = vmatprep.subr.mxu0 0.0
        %3244 = vmatpush1.xpose.msra.mxu0 0.0
        %3245 = vmatprep.subr.mxu0 0.0
        %3246 = vmatpush1.xpose.msra.mxu0 0.0
        %3247 = vmatprep.subr.mxu0 0.0
        %3248 = vmatpush1.xpose.msra.mxu0 0.0
        %3249 = vmatprep.subr.mxu0 0.0
        %3250 = vmatpush1.xpose.msra.mxu0 0.0
        %3251 = vmatprep.subr.mxu0 0.0
        %3252 = vmatpush1.xpose.msra.mxu0 0.0
        %3253 = vmatprep.subr.mxu0 0.0
        %3254 = vmatpush1.xpose.msra.mxu0 0.0
        %3255 = vmatprep.subr.mxu0 0.0
        %3256 = vmatpush1.xpose.msra.mxu0 0.0
        %3257 = vmatprep.subr.mxu0 0.0
        %3258 = vmatpush1.xpose.msra.mxu0 0.0
        %3259 = vmatprep.subr.mxu0 0.0
        %3260 = vmatpush1.xpose.msra.mxu0 %v3227
        %3261 = vmatprep.subr.mxu0 0.0
        %3262 = vmatpush2.xpose.msra.mxu0 0.0
        %3263 = vmatprep.subr.mxu0 0.0
        %3264 = vmatpush2.xpose.msra.mxu0 0.0
        %3265 = vmatprep.subr.mxu0 0.0
        %3266 = vmatpush2.xpose.msra.mxu0 0.0
        %3267 = vmatprep.subr.mxu0 0.0
        %3268 = vmatpush2.xpose.msra.mxu0 0.0
        %3269 = vmatprep.subr.mxu0 0.0
        %3270 = vmatpush2.xpose.msra.mxu0 0.0
        %3271 = vmatprep.subr.mxu0 0.0
        %3272 = vmatpush2.xpose.msra.mxu0 0.0
        %3273 = vmatprep.subr.mxu0 0.0
        %3274 = vmatpush2.xpose.msra.mxu0 0.0
        %3275 = vmatprep.subr.mxu0 0.0
        %3276 = vmatpush2.xpose.msra.mxu0 0.0
        %3277 = vmatprep.subr.mxu0 0.0
        %3278 = vmatpush2.xpose.msra.mxu0 0.0
        %3279 = vmatprep.subr.mxu0 0.0
        %3280 = vmatpush2.xpose.msra.mxu0 0.0
        %3281 = vmatprep.subr.mxu0 0.0
        %3282 = vmatpush2.xpose.msra.mxu0 0.0
        %3283 = vmatprep.subr.mxu0 0.0
        %3284 = vmatpush2.xpose.msra.mxu0 0.0
        %3285 = vmatprep.subr.mxu0 0.0
        %3286 = vmatpush2.xpose.msra.mxu0 0.0
        %3287 = vmatprep.subr.mxu0 0.0
        %3288 = vmatpush2.xpose.msra.mxu0 0.0
        %3289 = vmatprep.subr.mxu0 0.0
        %3290 = vmatpush2.xpose.msra.mxu0 0.0
        %3291 = vmatprep.subr.mxu0 0.0
        %3292 = vmatpush2.xpose.msra.mxu0 0.0
        %3293 = vmatprep.mubr.f32.mxu0 0.0
        %3294 = vmatmul.mubr.f32.gmra.mxu0 %v3225
        %v3295 = vpop.f32.mrf.mxu0
        %v3296 = vadd.f32 0.0, %v3295
        %v3297 = vpop.f32.mrf.mxu0
        %3298 = vdwg.mxu0
        %v3299 = vsel %vm1074, %v3141, 0
        %v3301 = vsel %vm1074, %v3148, 0
        %3303 = vmatprep.subr.mxu0 0.0
        %3304 = vmatpush1.xpose.msra.mxu0 0.0
        %3305 = vmatprep.subr.mxu0 0.0
        %3306 = vmatpush1.xpose.msra.mxu0 0.0
        %3307 = vmatprep.subr.mxu0 0.0
        %3308 = vmatpush1.xpose.msra.mxu0 0.0
        %3309 = vmatprep.subr.mxu0 0.0
        %3310 = vmatpush1.xpose.msra.mxu0 0.0
        %3311 = vmatprep.subr.mxu0 0.0
        %3312 = vmatpush1.xpose.msra.mxu0 0.0
        %3313 = vmatprep.subr.mxu0 0.0
        %3314 = vmatpush1.xpose.msra.mxu0 0.0
        %3315 = vmatprep.subr.mxu0 0.0
        %3316 = vmatpush1.xpose.msra.mxu0 0.0
        %3317 = vmatprep.subr.mxu0 0.0
        %3318 = vmatpush1.xpose.msra.mxu0 0.0
        %3319 = vmatprep.subr.mxu0 0.0
        %3320 = vmatpush1.xpose.msra.mxu0 0.0
        %3321 = vmatprep.subr.mxu0 0.0
        %3322 = vmatpush1.xpose.msra.mxu0 0.0
        %3323 = vmatprep.subr.mxu0 0.0
        %3324 = vmatpush1.xpose.msra.mxu0 0.0
        %3325 = vmatprep.subr.mxu0 0.0
        %3326 = vmatpush1.xpose.msra.mxu0 0.0
        %3327 = vmatprep.subr.mxu0 0.0
        %3328 = vmatpush1.xpose.msra.mxu0 0.0
        %3329 = vmatprep.subr.mxu0 0.0
        %3330 = vmatpush1.xpose.msra.mxu0 0.0
        %3331 = vmatprep.subr.mxu0 0.0
        %3332 = vmatpush1.xpose.msra.mxu0 0.0
        %3333 = vmatprep.subr.mxu0 0.0
        %3334 = vmatpush1.xpose.msra.mxu0 %v3301
        %3335 = vmatprep.subr.mxu0 0.0
        %3336 = vmatpush2.xpose.msra.mxu0 0.0
        %3337 = vmatprep.subr.mxu0 0.0
        %3338 = vmatpush2.xpose.msra.mxu0 0.0
        %3339 = vmatprep.subr.mxu0 0.0
        %3340 = vmatpush2.xpose.msra.mxu0 0.0
        %3341 = vmatprep.subr.mxu0 0.0
        %3342 = vmatpush2.xpose.msra.mxu0 0.0
        %3343 = vmatprep.subr.mxu0 0.0
        %3344 = vmatpush2.xpose.msra.mxu0 0.0
        %3345 = vmatprep.subr.mxu0 0.0
        %3346 = vmatpush2.xpose.msra.mxu0 0.0
        %3347 = vmatprep.subr.mxu0 0.0
        %3348 = vmatpush2.xpose.msra.mxu0 0.0
        %3349 = vmatprep.subr.mxu0 0.0
        %3350 = vmatpush2.xpose.msra.mxu0 0.0
        %3351 = vmatprep.subr.mxu0 0.0
        %3352 = vmatpush2.xpose.msra.mxu0 0.0
        %3353 = vmatprep.subr.mxu0 0.0
        %3354 = vmatpush2.xpose.msra.mxu0 0.0
        %3355 = vmatprep.subr.mxu0 0.0
        %3356 = vmatpush2.xpose.msra.mxu0 0.0
        %3357 = vmatprep.subr.mxu0 0.0
        %3358 = vmatpush2.xpose.msra.mxu0 0.0
        %3359 = vmatprep.subr.mxu0 0.0
        %3360 = vmatpush2.xpose.msra.mxu0 0.0
        %3361 = vmatprep.subr.mxu0 0.0
        %3362 = vmatpush2.xpose.msra.mxu0 0.0
        %3363 = vmatprep.subr.mxu0 0.0
        %3364 = vmatpush2.xpose.msra.mxu0 0.0
        %3365 = vmatprep.subr.mxu0 0.0
        %3366 = vmatpush2.xpose.msra.mxu0 0.0
        %3367 = vmatprep.mubr.f32.mxu0 0.0
        %3368 = vmatmul.mubr.f32.gmra.mxu0 %v3299
        %v3369 = vpop.f32.mrf.mxu0
        %v3370 = vadd.f32 0.0, %v3369
        %v3371 = vpop.f32.mrf.mxu0
        %3372 = vdwg.mxu0
        %v3373 = vsel %vm1074, %v3143, 0
        %v3375 = vsel %vm1074, %v3150, 0
        %3377 = vmatprep.subr.mxu0 0.0
        %3378 = vmatpush1.xpose.msra.mxu0 0.0
        %3379 = vmatprep.subr.mxu0 0.0
        %3380 = vmatpush1.xpose.msra.mxu0 0.0
        %3381 = vmatprep.subr.mxu0 0.0
        %3382 = vmatpush1.xpose.msra.mxu0 0.0
        %3383 = vmatprep.subr.mxu0 0.0
        %3384 = vmatpush1.xpose.msra.mxu0 0.0
        %3385 = vmatprep.subr.mxu0 0.0
        %3386 = vmatpush1.xpose.msra.mxu0 0.0
        %3387 = vmatprep.subr.mxu0 0.0
        %3388 = vmatpush1.xpose.msra.mxu0 0.0
        %3389 = vmatprep.subr.mxu0 0.0
        %3390 = vmatpush1.xpose.msra.mxu0 0.0
        %3391 = vmatprep.subr.mxu0 0.0
        %3392 = vmatpush1.xpose.msra.mxu0 0.0
        %3393 = vmatprep.subr.mxu0 0.0
        %3394 = vmatpush1.xpose.msra.mxu0 0.0
        %3395 = vmatprep.subr.mxu0 0.0
        %3396 = vmatpush1.xpose.msra.mxu0 0.0
        %3397 = vmatprep.subr.mxu0 0.0
        %3398 = vmatpush1.xpose.msra.mxu0 0.0
        %3399 = vmatprep.subr.mxu0 0.0
        %3400 = vmatpush1.xpose.msra.mxu0 0.0
        %3401 = vmatprep.subr.mxu0 0.0
        %3402 = vmatpush1.xpose.msra.mxu0 0.0
        %3403 = vmatprep.subr.mxu0 0.0
        %3404 = vmatpush1.xpose.msra.mxu0 0.0
        %3405 = vmatprep.subr.mxu0 0.0
        %3406 = vmatpush1.xpose.msra.mxu0 0.0
        %3407 = vmatprep.subr.mxu0 0.0
        %3408 = vmatpush1.xpose.msra.mxu0 %v3375
        %3409 = vmatprep.subr.mxu0 0.0
        %3410 = vmatpush2.xpose.msra.mxu0 0.0
        %3411 = vmatprep.subr.mxu0 0.0
        %3412 = vmatpush2.xpose.msra.mxu0 0.0
        %3413 = vmatprep.subr.mxu0 0.0
        %3414 = vmatpush2.xpose.msra.mxu0 0.0
        %3415 = vmatprep.subr.mxu0 0.0
        %3416 = vmatpush2.xpose.msra.mxu0 0.0
        %3417 = vmatprep.subr.mxu0 0.0
        %3418 = vmatpush2.xpose.msra.mxu0 0.0
        %3419 = vmatprep.subr.mxu0 0.0
        %3420 = vmatpush2.xpose.msra.mxu0 0.0
        %3421 = vmatprep.subr.mxu0 0.0
        %3422 = vmatpush2.xpose.msra.mxu0 0.0
        %3423 = vmatprep.subr.mxu0 0.0
        %3424 = vmatpush2.xpose.msra.mxu0 0.0
        %3425 = vmatprep.subr.mxu0 0.0
        %3426 = vmatpush2.xpose.msra.mxu0 0.0
        %3427 = vmatprep.subr.mxu0 0.0
        %3428 = vmatpush2.xpose.msra.mxu0 0.0
        %3429 = vmatprep.subr.mxu0 0.0
        %3430 = vmatpush2.xpose.msra.mxu0 0.0
        %3431 = vmatprep.subr.mxu0 0.0
        %3432 = vmatpush2.xpose.msra.mxu0 0.0
        %3433 = vmatprep.subr.mxu0 0.0
        %3434 = vmatpush2.xpose.msra.mxu0 0.0
        %3435 = vmatprep.subr.mxu0 0.0
        %3436 = vmatpush2.xpose.msra.mxu0 0.0
        %3437 = vmatprep.subr.mxu0 0.0
        %3438 = vmatpush2.xpose.msra.mxu0 0.0
        %3439 = vmatprep.subr.mxu0 0.0
        %3440 = vmatpush2.xpose.msra.mxu0 0.0
        %3441 = vmatprep.mubr.f32.mxu0 0.0
        %3442 = vmatmul.mubr.f32.gmra.mxu0 %v3373
        %v3443 = vpop.f32.mrf.mxu0
        %v3444 = vadd.f32 0.0, %v3443
        %v3445 = vpop.f32.mrf.mxu0
        %3446 = vdwg.mxu0
        %v3447 = vmul.f32 %v3222, 0.35355338
        %v3448 = vmul.f32 %v3296, 0.35355338
        %v3449 = vmul.f32 %v3370, 0.35355338
        %v3450 = vmul.f32 %v3444, 0.35355338
        %v3451 = vsel %vm1074, %v3447, -inf
        %3452 = vmax.xlane.f32.xlu0 %v3451
        %v3453 = vpop.xlane.xlu0 %3452
        %v3454 = vsel %vm1074, %v3448, -inf
        %3455 = vmax.xlane.f32.xlu0 %v3454
        %v3456 = vpop.xlane.xlu0 %3455
        %v3457 = vsel %vm1074, %v3449, -inf
        %3458 = vmax.xlane.f32.xlu0 %v3457
        %v3459 = vpop.xlane.xlu0 %3458
        %v3460 = vsel %vm1074, %v3450, -inf
        %3461 = vmax.xlane.f32.xlu0 %v3460
        %v3462 = vpop.xlane.xlu0 %3461
        %v3463 = vsub.f32 %v3447, %v3453
        %v3464 = vsub.f32 %v3448, %v3456
        %v3465 = vsub.f32 %v3449, %v3459
        %v3466 = vsub.f32 %v3450, %v3462
        %v3467 = vmul.f32 %v3463, 1.442695
        %v3468 = vpow.pop %v3467
        %v3469 = vmul.f32 %v3464, 1.442695
        %v3470 = vpow.pop %v3469
        %v3471 = vmul.f32 %v3465, 1.442695
        %v3472 = vpow.pop %v3471
        %v3473 = vmul.f32 %v3466, 1.442695
        %v3474 = vpow.pop %v3473
        %v3475 = vsel %vm1074, %v3468, 0.0
        %3476 = vadd.xlane.f32.xlu0 %v3475
        %v3477 = vpop.xlane.xlu0 %3476
        %v3478 = vsel %vm1074, %v3470, 0.0
        %3479 = vadd.xlane.f32.xlu0 %v3478
        %v3480 = vpop.xlane.xlu0 %3479
        %v3481 = vsel %vm1074, %v3472, 0.0
        %3482 = vadd.xlane.f32.xlu0 %v3481
        %v3483 = vpop.xlane.xlu0 %3482
        %v3484 = vsel %vm1074, %v3474, 0.0
        %3485 = vadd.xlane.f32.xlu0 %v3484
        %v3486 = vpop.xlane.xlu0 %3485
        %v3487 = vrcp.pop %v3477
        %v3488 = vmul.f32 %v3468, %v3487
        %v3489 = vrcp.pop %v3480
        %v3490 = vmul.f32 %v3470, %v3489
        %v3491 = vrcp.pop %v3483
        %v3492 = vmul.f32 %v3472, %v3491
        %v3493 = vrcp.pop %v3486
        %v3494 = vmul.f32 %v3474, %v3493
        %s3495 = scalar_lea.vmem %s805, 32 [#allocation18]
        %3496 = vst.msk [vmem:[%s3495] sm:$0xff] %vm1074, %v3488
        %3497 = vst.msk [vmem:[%s3495 + $0x8] sm:$0xff] %vm1074, %v3490
        %3498 = vst.msk [vmem:[%s3495 + $0x10] sm:$0xff] %vm1074, %v3492
        %3499 = vst.msk [vmem:[%s3495 + $0x18] sm:$0xff] %vm1074, %v3494
        %3500 = vrot.lane.b32.xlu0 %v3134, 96
        %v3501 = vpop.permute.xlu0 %3500
        %v3504 = vsel %vm1074, %v3488, 0
        %3506 = vmatprep.subr.mxu0 0.0
        %3507 = vmatpush1.msra.mxu0 0.0
        %3508 = vmatprep.subr.mxu0 0.0
        %3509 = vmatpush1.msra.mxu0 0.0
        %3510 = vmatprep.subr.mxu0 0.0
        %3511 = vmatpush1.msra.mxu0 0.0
        %3512 = vmatprep.subr.mxu0 0.0
        %3513 = vmatpush1.msra.mxu0 0.0
        %3514 = vmatprep.subr.mxu0 0.0
        %3515 = vmatpush1.msra.mxu0 0.0
        %3516 = vmatprep.subr.mxu0 0.0
        %3517 = vmatpush1.msra.mxu0 0.0
        %3518 = vmatprep.subr.mxu0 0.0
        %3519 = vmatpush1.msra.mxu0 0.0
        %3520 = vmatprep.subr.mxu0 0.0
        %3521 = vmatpush1.msra.mxu0 0.0
        %3522 = vmatprep.subr.mxu0 0.0
        %3523 = vmatpush1.msra.mxu0 0.0
        %3524 = vmatprep.subr.mxu0 0.0
        %3525 = vmatpush1.msra.mxu0 0.0
        %3526 = vmatprep.subr.mxu0 0.0
        %3527 = vmatpush1.msra.mxu0 0.0
        %3528 = vmatprep.subr.mxu0 0.0
        %3529 = vmatpush1.msra.mxu0 0.0
        %3530 = vmatprep.subr.mxu0 0.0
        %3531 = vmatpush1.msra.mxu0 0.0
        %3532 = vmatprep.subr.mxu0 0.0
        %3533 = vmatpush1.msra.mxu0 0.0
        %3534 = vmatprep.subr.mxu0 0.0
        %3535 = vmatpush1.msra.mxu0 0.0
        %3536 = vmatprep.subr.mxu0 0.0
        %3537 = vmatpush1.msra.mxu0 %v3501
        %3538 = vmatprep.subr.mxu0 0.0
        %3539 = vmatpush2.msra.mxu0 0.0
        %3540 = vmatprep.subr.mxu0 0.0
        %3541 = vmatpush2.msra.mxu0 0.0
        %3542 = vmatprep.subr.mxu0 0.0
        %3543 = vmatpush2.msra.mxu0 0.0
        %3544 = vmatprep.subr.mxu0 0.0
        %3545 = vmatpush2.msra.mxu0 0.0
        %3546 = vmatprep.subr.mxu0 0.0
        %3547 = vmatpush2.msra.mxu0 0.0
        %3548 = vmatprep.subr.mxu0 0.0
        %3549 = vmatpush2.msra.mxu0 0.0
        %3550 = vmatprep.subr.mxu0 0.0
        %3551 = vmatpush2.msra.mxu0 0.0
        %3552 = vmatprep.subr.mxu0 0.0
        %3553 = vmatpush2.msra.mxu0 0.0
        %3554 = vmatprep.subr.mxu0 0.0
        %3555 = vmatpush2.msra.mxu0 0.0
        %3556 = vmatprep.subr.mxu0 0.0
        %3557 = vmatpush2.msra.mxu0 0.0
        %3558 = vmatprep.subr.mxu0 0.0
        %3559 = vmatpush2.msra.mxu0 0.0
        %3560 = vmatprep.subr.mxu0 0.0
        %3561 = vmatpush2.msra.mxu0 0.0
        %3562 = vmatprep.subr.mxu0 0.0
        %3563 = vmatpush2.msra.mxu0 0.0
        %3564 = vmatprep.subr.mxu0 0.0
        %3565 = vmatpush2.msra.mxu0 0.0
        %3566 = vmatprep.subr.mxu0 0.0
        %3567 = vmatpush2.msra.mxu0 0.0
        %3568 = vmatprep.subr.mxu0 0.0
        %3569 = vmatpush2.msra.mxu0 0.0
        %3570 = vmatprep.mubr.f32.mxu0 0.0
        %3571 = vmatmul.mubr.f32.gmra.mxu0 %v3504
        %v3572 = vpop.f32.mrf.mxu0
        %v3573 = vadd.f32 0.0, %v3572
        %v3574 = vpop.f32.mrf.mxu0
        %3575 = vdwg.mxu0
        %3576 = vrot.lane.b32.xlu0 %v3146, 96
        %v3577 = vpop.permute.xlu0 %3576
        %v3580 = vsel %vm1074, %v3490, 0
        %3582 = vmatprep.subr.mxu0 0.0
        %3583 = vmatpush1.msra.mxu0 0.0
        %3584 = vmatprep.subr.mxu0 0.0
        %3585 = vmatpush1.msra.mxu0 0.0
        %3586 = vmatprep.subr.mxu0 0.0
        %3587 = vmatpush1.msra.mxu0 0.0
        %3588 = vmatprep.subr.mxu0 0.0
        %3589 = vmatpush1.msra.mxu0 0.0
        %3590 = vmatprep.subr.mxu0 0.0
        %3591 = vmatpush1.msra.mxu0 0.0
        %3592 = vmatprep.subr.mxu0 0.0
        %3593 = vmatpush1.msra.mxu0 0.0
        %3594 = vmatprep.subr.mxu0 0.0
        %3595 = vmatpush1.msra.mxu0 0.0
        %3596 = vmatprep.subr.mxu0 0.0
        %3597 = vmatpush1.msra.mxu0 0.0
        %3598 = vmatprep.subr.mxu0 0.0
        %3599 = vmatpush1.msra.mxu0 0.0
        %3600 = vmatprep.subr.mxu0 0.0
        %3601 = vmatpush1.msra.mxu0 0.0
        %3602 = vmatprep.subr.mxu0 0.0
        %3603 = vmatpush1.msra.mxu0 0.0
        %3604 = vmatprep.subr.mxu0 0.0
        %3605 = vmatpush1.msra.mxu0 0.0
        %3606 = vmatprep.subr.mxu0 0.0
        %3607 = vmatpush1.msra.mxu0 0.0
        %3608 = vmatprep.subr.mxu0 0.0
        %3609 = vmatpush1.msra.mxu0 0.0
        %3610 = vmatprep.subr.mxu0 0.0
        %3611 = vmatpush1.msra.mxu0 0.0
        %3612 = vmatprep.subr.mxu0 0.0
        %3613 = vmatpush1.msra.mxu0 %v3577
        %3614 = vmatprep.subr.mxu0 0.0
        %3615 = vmatpush2.msra.mxu0 0.0
        %3616 = vmatprep.subr.mxu0 0.0
        %3617 = vmatpush2.msra.mxu0 0.0
        %3618 = vmatprep.subr.mxu0 0.0
        %3619 = vmatpush2.msra.mxu0 0.0
        %3620 = vmatprep.subr.mxu0 0.0
        %3621 = vmatpush2.msra.mxu0 0.0
        %3622 = vmatprep.subr.mxu0 0.0
        %3623 = vmatpush2.msra.mxu0 0.0
        %3624 = vmatprep.subr.mxu0 0.0
        %3625 = vmatpush2.msra.mxu0 0.0
        %3626 = vmatprep.subr.mxu0 0.0
        %3627 = vmatpush2.msra.mxu0 0.0
        %3628 = vmatprep.subr.mxu0 0.0
        %3629 = vmatpush2.msra.mxu0 0.0
        %3630 = vmatprep.subr.mxu0 0.0
        %3631 = vmatpush2.msra.mxu0 0.0
        %3632 = vmatprep.subr.mxu0 0.0
        %3633 = vmatpush2.msra.mxu0 0.0
        %3634 = vmatprep.subr.mxu0 0.0
        %3635 = vmatpush2.msra.mxu0 0.0
        %3636 = vmatprep.subr.mxu0 0.0
        %3637 = vmatpush2.msra.mxu0 0.0
        %3638 = vmatprep.subr.mxu0 0.0
        %3639 = vmatpush2.msra.mxu0 0.0
        %3640 = vmatprep.subr.mxu0 0.0
        %3641 = vmatpush2.msra.mxu0 0.0
        %3642 = vmatprep.subr.mxu0 0.0
        %3643 = vmatpush2.msra.mxu0 0.0
        %3644 = vmatprep.subr.mxu0 0.0
        %3645 = vmatpush2.msra.mxu0 0.0
        %3646 = vmatprep.mubr.f32.mxu0 0.0
        %3647 = vmatmul.mubr.f32.gmra.mxu0 %v3580
        %v3648 = vpop.f32.mrf.mxu0
        %v3649 = vadd.f32 0.0, %v3648
        %v3650 = vpop.f32.mrf.mxu0
        %3651 = vdwg.mxu0
        %3652 = vrot.lane.b32.xlu0 %v3148, 96
        %v3653 = vpop.permute.xlu0 %3652
        %v3656 = vsel %vm1074, %v3492, 0
        %3658 = vmatprep.subr.mxu0 0.0
        %3659 = vmatpush1.msra.mxu0 0.0
        %3660 = vmatprep.subr.mxu0 0.0
        %3661 = vmatpush1.msra.mxu0 0.0
        %3662 = vmatprep.subr.mxu0 0.0
        %3663 = vmatpush1.msra.mxu0 0.0
        %3664 = vmatprep.subr.mxu0 0.0
        %3665 = vmatpush1.msra.mxu0 0.0
        %3666 = vmatprep.subr.mxu0 0.0
        %3667 = vmatpush1.msra.mxu0 0.0
        %3668 = vmatprep.subr.mxu0 0.0
        %3669 = vmatpush1.msra.mxu0 0.0
        %3670 = vmatprep.subr.mxu0 0.0
        %3671 = vmatpush1.msra.mxu0 0.0
        %3672 = vmatprep.subr.mxu0 0.0
        %3673 = vmatpush1.msra.mxu0 0.0
        %3674 = vmatprep.subr.mxu0 0.0
        %3675 = vmatpush1.msra.mxu0 0.0
        %3676 = vmatprep.subr.mxu0 0.0
        %3677 = vmatpush1.msra.mxu0 0.0
        %3678 = vmatprep.subr.mxu0 0.0
        %3679 = vmatpush1.msra.mxu0 0.0
        %3680 = vmatprep.subr.mxu0 0.0
        %3681 = vmatpush1.msra.mxu0 0.0
        %3682 = vmatprep.subr.mxu0 0.0
        %3683 = vmatpush1.msra.mxu0 0.0
        %3684 = vmatprep.subr.mxu0 0.0
        %3685 = vmatpush1.msra.mxu0 0.0
        %3686 = vmatprep.subr.mxu0 0.0
        %3687 = vmatpush1.msra.mxu0 0.0
        %3688 = vmatprep.subr.mxu0 0.0
        %3689 = vmatpush1.msra.mxu0 %v3653
        %3690 = vmatprep.subr.mxu0 0.0
        %3691 = vmatpush2.msra.mxu0 0.0
        %3692 = vmatprep.subr.mxu0 0.0
        %3693 = vmatpush2.msra.mxu0 0.0
        %3694 = vmatprep.subr.mxu0 0.0
        %3695 = vmatpush2.msra.mxu0 0.0
        %3696 = vmatprep.subr.mxu0 0.0
        %3697 = vmatpush2.msra.mxu0 0.0
        %3698 = vmatprep.subr.mxu0 0.0
        %3699 = vmatpush2.msra.mxu0 0.0
        %3700 = vmatprep.subr.mxu0 0.0
        %3701 = vmatpush2.msra.mxu0 0.0
        %3702 = vmatprep.subr.mxu0 0.0
        %3703 = vmatpush2.msra.mxu0 0.0
        %3704 = vmatprep.subr.mxu0 0.0
        %3705 = vmatpush2.msra.mxu0 0.0
        %3706 = vmatprep.subr.mxu0 0.0
        %3707 = vmatpush2.msra.mxu0 0.0
        %3708 = vmatprep.subr.mxu0 0.0
        %3709 = vmatpush2.msra.mxu0 0.0
        %3710 = vmatprep.subr.mxu0 0.0
        %3711 = vmatpush2.msra.mxu0 0.0
        %3712 = vmatprep.subr.mxu0 0.0
        %3713 = vmatpush2.msra.mxu0 0.0
        %3714 = vmatprep.subr.mxu0 0.0
        %3715 = vmatpush2.msra.mxu0 0.0
        %3716 = vmatprep.subr.mxu0 0.0
        %3717 = vmatpush2.msra.mxu0 0.0
        %3718 = vmatprep.subr.mxu0 0.0
        %3719 = vmatpush2.msra.mxu0 0.0
        %3720 = vmatprep.subr.mxu0 0.0
        %3721 = vmatpush2.msra.mxu0 0.0
        %3722 = vmatprep.mubr.f32.mxu0 0.0
        %3723 = vmatmul.mubr.f32.gmra.mxu0 %v3656
        %v3724 = vpop.f32.mrf.mxu0
        %v3725 = vadd.f32 0.0, %v3724
        %v3726 = vpop.f32.mrf.mxu0
        %3727 = vdwg.mxu0
        %3728 = vrot.lane.b32.xlu0 %v3150, 96
        %v3729 = vpop.permute.xlu0 %3728
        %v3732 = vsel %vm1074, %v3494, 0
        %3734 = vmatprep.subr.mxu0 0.0
        %3735 = vmatpush1.msra.mxu0 0.0
        %3736 = vmatprep.subr.mxu0 0.0
        %3737 = vmatpush1.msra.mxu0 0.0
        %3738 = vmatprep.subr.mxu0 0.0
        %3739 = vmatpush1.msra.mxu0 0.0
        %3740 = vmatprep.subr.mxu0 0.0
        %3741 = vmatpush1.msra.mxu0 0.0
        %3742 = vmatprep.subr.mxu0 0.0
        %3743 = vmatpush1.msra.mxu0 0.0
        %3744 = vmatprep.subr.mxu0 0.0
        %3745 = vmatpush1.msra.mxu0 0.0
        %3746 = vmatprep.subr.mxu0 0.0
        %3747 = vmatpush1.msra.mxu0 0.0
        %3748 = vmatprep.subr.mxu0 0.0
        %3749 = vmatpush1.msra.mxu0 0.0
        %3750 = vmatprep.subr.mxu0 0.0
        %3751 = vmatpush1.msra.mxu0 0.0
        %3752 = vmatprep.subr.mxu0 0.0
        %3753 = vmatpush1.msra.mxu0 0.0
        %3754 = vmatprep.subr.mxu0 0.0
        %3755 = vmatpush1.msra.mxu0 0.0
        %3756 = vmatprep.subr.mxu0 0.0
        %3757 = vmatpush1.msra.mxu0 0.0
        %3758 = vmatprep.subr.mxu0 0.0
        %3759 = vmatpush1.msra.mxu0 0.0
        %3760 = vmatprep.subr.mxu0 0.0
        %3761 = vmatpush1.msra.mxu0 0.0
        %3762 = vmatprep.subr.mxu0 0.0
        %3763 = vmatpush1.msra.mxu0 0.0
        %3764 = vmatprep.subr.mxu0 0.0
        %3765 = vmatpush1.msra.mxu0 %v3729
        %3766 = vmatprep.subr.mxu0 0.0
        %3767 = vmatpush2.msra.mxu0 0.0
        %3768 = vmatprep.subr.mxu0 0.0
        %3769 = vmatpush2.msra.mxu0 0.0
        %3770 = vmatprep.subr.mxu0 0.0
        %3771 = vmatpush2.msra.mxu0 0.0
        %3772 = vmatprep.subr.mxu0 0.0
        %3773 = vmatpush2.msra.mxu0 0.0
        %3774 = vmatprep.subr.mxu0 0.0
        %3775 = vmatpush2.msra.mxu0 0.0
        %3776 = vmatprep.subr.mxu0 0.0
        %3777 = vmatpush2.msra.mxu0 0.0
        %3778 = vmatprep.subr.mxu0 0.0
        %3779 = vmatpush2.msra.mxu0 0.0
        %3780 = vmatprep.subr.mxu0 0.0
        %3781 = vmatpush2.msra.mxu0 0.0
        %3782 = vmatprep.subr.mxu0 0.0
        %3783 = vmatpush2.msra.mxu0 0.0
        %3784 = vmatprep.subr.mxu0 0.0
        %3785 = vmatpush2.msra.mxu0 0.0
        %3786 = vmatprep.subr.mxu0 0.0
        %3787 = vmatpush2.msra.mxu0 0.0
        %3788 = vmatprep.subr.mxu0 0.0
        %3789 = vmatpush2.msra.mxu0 0.0
        %3790 = vmatprep.subr.mxu0 0.0
        %3791 = vmatpush2.msra.mxu0 0.0
        %3792 = vmatprep.subr.mxu0 0.0
        %3793 = vmatpush2.msra.mxu0 0.0
        %3794 = vmatprep.subr.mxu0 0.0
        %3795 = vmatpush2.msra.mxu0 0.0
        %3796 = vmatprep.subr.mxu0 0.0
        %3797 = vmatpush2.msra.mxu0 0.0
        %3798 = vmatprep.mubr.f32.mxu0 0.0
        %3799 = vmatmul.mubr.f32.gmra.mxu0 %v3732
        %v3800 = vpop.f32.mrf.mxu0
        %v3801 = vadd.f32 0.0, %v3800
        %v3802 = vpop.f32.mrf.mxu0
        %3803 = vdwg.mxu0
        %3805 = vrot.lane.b32.xlu0 %v3649, 8
        %v3806 = vpop.permute.xlu0 %3805
        %3809 = vrot.lane.b32.xlu0 %v3725, 16
        %v3810 = vpop.permute.xlu0 %3809
        %3813 = vrot.lane.b32.xlu0 %v3801, 24
        %v3814 = vpop.permute.xlu0 %3813
        %v3816 = vsel %vm1074, %v3573, %v3806
        %v3817 = vsel %vm825, %v3816, %v3810
        %v3818 = vsel %vm1741, %v3817, %v3814
        %v3820 = vsel %vm902, %v3818, 0
        %3822 = vmatprep.subr.mxu0 0.0
        %3823 = vmatpush1.msra.mxu0 0.0
        %3824 = vmatprep.subr.mxu0 0.0
        %3825 = vmatpush1.msra.mxu0 0.0
        %3826 = vmatprep.subr.mxu0 0.0
        %3827 = vmatpush1.msra.mxu0 0.0
        %3828 = vmatprep.subr.mxu0 0.0
        %3829 = vmatpush1.msra.mxu0 0.0
        %3830 = vmatprep.subr.mxu0 0.0
        %3831 = vmatpush1.msra.mxu0 0.0
        %3832 = vmatprep.subr.mxu0 0.0
        %3833 = vmatpush1.msra.mxu0 0.0
        %3834 = vmatprep.subr.mxu0 0.0
        %3835 = vmatpush1.msra.mxu0 0.0
        %3836 = vmatprep.subr.mxu0 0.0
        %3837 = vmatpush1.msra.mxu0 0.0
        %3838 = vmatprep.subr.mxu0 0.0
        %3839 = vmatpush1.msra.mxu0 0.0
        %3840 = vmatprep.subr.mxu0 0.0
        %3841 = vmatpush1.msra.mxu0 0.0
        %3842 = vmatprep.subr.mxu0 0.0
        %3843 = vmatpush1.msra.mxu0 0.0
        %3844 = vmatprep.subr.mxu0 0.0
        %3845 = vmatpush1.msra.mxu0 0.0
        %3846 = vmatprep.subr.mxu0 0.0
        %3847 = vmatpush1.msra.mxu0 %v2993
        %3848 = vmatprep.subr.mxu0 0.0
        %3849 = vmatpush1.msra.mxu0 %v2992
        %3850 = vmatprep.subr.mxu0 0.0
        %3851 = vmatpush1.msra.mxu0 %v2991
        %3852 = vmatprep.subr.mxu0 0.0
        %3853 = vmatpush1.msra.mxu0 %v2990
        %3854 = vmatprep.subr.mxu0 0.0
        %3855 = vmatpush2.msra.mxu0 0.0
        %3856 = vmatprep.subr.mxu0 0.0
        %3857 = vmatpush2.msra.mxu0 0.0
        %3858 = vmatprep.subr.mxu0 0.0
        %3859 = vmatpush2.msra.mxu0 0.0
        %3860 = vmatprep.subr.mxu0 0.0
        %3861 = vmatpush2.msra.mxu0 0.0
        %3862 = vmatprep.subr.mxu0 0.0
        %3863 = vmatpush2.msra.mxu0 0.0
        %3864 = vmatprep.subr.mxu0 0.0
        %3865 = vmatpush2.msra.mxu0 0.0
        %3866 = vmatprep.subr.mxu0 0.0
        %3867 = vmatpush2.msra.mxu0 0.0
        %3868 = vmatprep.subr.mxu0 0.0
        %3869 = vmatpush2.msra.mxu0 0.0
        %3870 = vmatprep.subr.mxu0 0.0
        %3871 = vmatpush2.msra.mxu0 0.0
        %3872 = vmatprep.subr.mxu0 0.0
        %3873 = vmatpush2.msra.mxu0 0.0
        %3874 = vmatprep.subr.mxu0 0.0
        %3875 = vmatpush2.msra.mxu0 0.0
        %3876 = vmatprep.subr.mxu0 0.0
        %3877 = vmatpush2.msra.mxu0 0.0
        %3878 = vmatprep.subr.mxu0 0.0
        %3879 = vmatpush2.msra.mxu0 0.0
        %3880 = vmatprep.subr.mxu0 0.0
        %3881 = vmatpush2.msra.mxu0 0.0
        %3882 = vmatprep.subr.mxu0 0.0
        %3883 = vmatpush2.msra.mxu0 0.0
        %3884 = vmatprep.subr.mxu0 0.0
        %3885 = vmatpush2.msra.mxu0 0.0
        %3886 = vmatprep.mubr.f32.mxu0 0.0
        %3887 = vmatmul.mubr.f32.gmra.mxu0 %v3820
        %v3888 = vpop.f32.mrf.mxu0
        %v3889 = vadd.f32 0.0, %v3888
        %v3890 = vpop.f32.mrf.mxu0
        %3891 = vdwg.mxu0
        %v3892 = vadd.f32 %v2974, %v3889
        %v3893 = vsel %vm902, %v3892, 0.0
        %3894 = vadd.xlane.f32.xlu0 %v3893
        %v3895 = vpop.xlane.xlu0 %3894
        %v3896 = vmul.f32 %v3895, %v1820
        %v3897 = vsub.f32 %v3892, %v3896
        %v3898 = vmul.f32 %v3897, %v3897
        %v3899 = vsel %vm902, %v3898, 0.0
        %3900 = vadd.xlane.f32.xlu0 %v3899
        %v3901 = vpop.xlane.xlu0 %3900
        %v3902 = vmul.f32 %v3901, %v1820
        %v3903 = vadd.f32 %v3902, 1e-05
        %v3904 = vrsqrt.pop %v3903
        %v3905 = vmul.f32 %v3897, %v3904
        %v3906 = vlaneseq
        %v3907 = vshrl.u32 %v3906, 7
        %v3908 = vsub.s32 0, %v3907
        %v3909 = vrot.slane %v2978, %v3908
        %v3910 = vmul.f32 %v3905, %v3909
        %v3911 = vlaneseq
        %v3912 = vshrl.u32 %v3911, 7
        %v3913 = vsub.s32 1, %v3912
        %v3914 = vrot.slane %v2978, %v3913
        %v3915 = vadd.f32 %v3910, %v3914
        %s3916 = scalar_lea.vmem %s8, 32
        %v3917 = vld [vmem:[%s3916] sm:$0xff]
        %v3918 = vld [vmem:[%s3916 + $0x8] sm:$0xff]
        %v3919 = vld [vmem:[%s3916 + $0x10] sm:$0xff]
        %v3920 = vld [vmem:[%s3916 + $0x18] sm:$0xff]
        %s3921 = scalar_lea.vmem [#allocation8], 32
        %v3922 = vld [vmem:[%s3921] sm:$0xff]
        %v3923 = vld [vmem:[%s3921 + $0x8] sm:$0xff]
        %v3924 = vld [vmem:[%s3921 + $0x10] sm:$0xff]
        %v3925 = vld [vmem:[%s3921 + $0x18] sm:$0xff]
        %s3926 = scalar_lea.vmem [#allocation10], 32
        %v3927 = vld [vmem:[%s3926] sm:$0xff]
        %v3928 = vld [vmem:[%s3926 + $0x8] sm:$0xff]
        %v3929 = vld [vmem:[%s3926 + $0x10] sm:$0xff]
        %v3930 = vld [vmem:[%s3926 + $0x18] sm:$0xff]
        %v3932 = vsel %vm902, %v3915, 0
        %3934 = vmatprep.subr.mxu0 0.0
        %3935 = vmatpush1.msra.mxu0 0.0
        %3936 = vmatprep.subr.mxu0 0.0
        %3937 = vmatpush1.msra.mxu0 0.0
        %3938 = vmatprep.subr.mxu0 0.0
        %3939 = vmatpush1.msra.mxu0 0.0
        %3940 = vmatprep.subr.mxu0 0.0
        %3941 = vmatpush1.msra.mxu0 0.0
        %3942 = vmatprep.subr.mxu0 0.0
        %3943 = vmatpush1.msra.mxu0 0.0
        %3944 = vmatprep.subr.mxu0 0.0
        %3945 = vmatpush1.msra.mxu0 0.0
        %3946 = vmatprep.subr.mxu0 0.0
        %3947 = vmatpush1.msra.mxu0 0.0
        %3948 = vmatprep.subr.mxu0 0.0
        %3949 = vmatpush1.msra.mxu0 0.0
        %3950 = vmatprep.subr.mxu0 0.0
        %3951 = vmatpush1.msra.mxu0 0.0
        %3952 = vmatprep.subr.mxu0 0.0
        %3953 = vmatpush1.msra.mxu0 0.0
        %3954 = vmatprep.subr.mxu0 0.0
        %3955 = vmatpush1.msra.mxu0 0.0
        %3956 = vmatprep.subr.mxu0 0.0
        %3957 = vmatpush1.msra.mxu0 0.0
        %3958 = vmatprep.subr.mxu0 0.0
        %3959 = vmatpush1.msra.mxu0 %v3920
        %3960 = vmatprep.subr.mxu0 0.0
        %3961 = vmatpush1.msra.mxu0 %v3919
        %3962 = vmatprep.subr.mxu0 0.0
        %3963 = vmatpush1.msra.mxu0 %v3918
        %3964 = vmatprep.subr.mxu0 0.0
        %3965 = vmatpush1.msra.mxu0 %v3917
        %3966 = vmatprep.subr.mxu0 0.0
        %3967 = vmatpush2.msra.mxu0 0.0
        %3968 = vmatprep.subr.mxu0 0.0
        %3969 = vmatpush2.msra.mxu0 0.0
        %3970 = vmatprep.subr.mxu0 0.0
        %3971 = vmatpush2.msra.mxu0 0.0
        %3972 = vmatprep.subr.mxu0 0.0
        %3973 = vmatpush2.msra.mxu0 0.0
        %3974 = vmatprep.subr.mxu0 0.0
        %3975 = vmatpush2.msra.mxu0 0.0
        %3976 = vmatprep.subr.mxu0 0.0
        %3977 = vmatpush2.msra.mxu0 0.0
        %3978 = vmatprep.subr.mxu0 0.0
        %3979 = vmatpush2.msra.mxu0 0.0
        %3980 = vmatprep.subr.mxu0 0.0
        %3981 = vmatpush2.msra.mxu0 0.0
        %3982 = vmatprep.subr.mxu0 0.0
        %3983 = vmatpush2.msra.mxu0 0.0
        %3984 = vmatprep.subr.mxu0 0.0
        %3985 = vmatpush2.msra.mxu0 0.0
        %3986 = vmatprep.subr.mxu0 0.0
        %3987 = vmatpush2.msra.mxu0 0.0
        %3988 = vmatprep.subr.mxu0 0.0
        %3989 = vmatpush2.msra.mxu0 0.0
        %3990 = vmatprep.subr.mxu0 0.0
        %3991 = vmatpush2.msra.mxu0 0.0
        %3992 = vmatprep.subr.mxu0 0.0
        %3993 = vmatpush2.msra.mxu0 0.0
        %3994 = vmatprep.subr.mxu0 0.0
        %3995 = vmatpush2.msra.mxu0 0.0
        %3996 = vmatprep.subr.mxu0 0.0
        %3997 = vmatpush2.msra.mxu0 0.0
        %3998 = vmatprep.mubr.f32.mxu0 0.0
        %3999 = vmatmul.mubr.f32.gmra.mxu0 %v3932
        %v4000 = vpop.f32.mrf.mxu0
        %v4001 = vadd.f32 0.0, %v4000
        %v4002 = vpop.f32.mrf.mxu0
        %4003 = vdwg.mxu0
        %4004 = vmatprep.subr.mxu0 0.0
        %4005 = vmatpush1.msra.mxu0 0.0
        %4006 = vmatprep.subr.mxu0 0.0
        %4007 = vmatpush1.msra.mxu0 0.0
        %4008 = vmatprep.subr.mxu0 0.0
        %4009 = vmatpush1.msra.mxu0 0.0
        %4010 = vmatprep.subr.mxu0 0.0
        %4011 = vmatpush1.msra.mxu0 0.0
        %4012 = vmatprep.subr.mxu0 0.0
        %4013 = vmatpush1.msra.mxu0 0.0
        %4014 = vmatprep.subr.mxu0 0.0
        %4015 = vmatpush1.msra.mxu0 0.0
        %4016 = vmatprep.subr.mxu0 0.0
        %4017 = vmatpush1.msra.mxu0 0.0
        %4018 = vmatprep.subr.mxu0 0.0
        %4019 = vmatpush1.msra.mxu0 0.0
        %4020 = vmatprep.subr.mxu0 0.0
        %4021 = vmatpush1.msra.mxu0 0.0
        %4022 = vmatprep.subr.mxu0 0.0
        %4023 = vmatpush1.msra.mxu0 0.0
        %4024 = vmatprep.subr.mxu0 0.0
        %4025 = vmatpush1.msra.mxu0 0.0
        %4026 = vmatprep.subr.mxu0 0.0
        %4027 = vmatpush1.msra.mxu0 0.0
        %4028 = vmatprep.subr.mxu0 0.0
        %4029 = vmatpush1.msra.mxu0 %v3925
        %4030 = vmatprep.subr.mxu0 0.0
        %4031 = vmatpush1.msra.mxu0 %v3924
        %4032 = vmatprep.subr.mxu0 0.0
        %4033 = vmatpush1.msra.mxu0 %v3923
        %4034 = vmatprep.subr.mxu0 0.0
        %4035 = vmatpush1.msra.mxu0 %v3922
        %4036 = vmatprep.subr.mxu0 0.0
        %4037 = vmatpush2.msra.mxu0 0.0
        %4038 = vmatprep.subr.mxu0 0.0
        %4039 = vmatpush2.msra.mxu0 0.0
        %4040 = vmatprep.subr.mxu0 0.0
        %4041 = vmatpush2.msra.mxu0 0.0
        %4042 = vmatprep.subr.mxu0 0.0
        %4043 = vmatpush2.msra.mxu0 0.0
        %4044 = vmatprep.subr.mxu0 0.0
        %4045 = vmatpush2.msra.mxu0 0.0
        %4046 = vmatprep.subr.mxu0 0.0
        %4047 = vmatpush2.msra.mxu0 0.0
        %4048 = vmatprep.subr.mxu0 0.0
        %4049 = vmatpush2.msra.mxu0 0.0
        %4050 = vmatprep.subr.mxu0 0.0
        %4051 = vmatpush2.msra.mxu0 0.0
        %4052 = vmatprep.subr.mxu0 0.0
        %4053 = vmatpush2.msra.mxu0 0.0
        %4054 = vmatprep.subr.mxu0 0.0
        %4055 = vmatpush2.msra.mxu0 0.0
        %4056 = vmatprep.subr.mxu0 0.0
        %4057 = vmatpush2.msra.mxu0 0.0
        %4058 = vmatprep.subr.mxu0 0.0
        %4059 = vmatpush2.msra.mxu0 0.0
        %4060 = vmatprep.subr.mxu0 0.0
        %4061 = vmatpush2.msra.mxu0 0.0
        %4062 = vmatprep.subr.mxu0 0.0
        %4063 = vmatpush2.msra.mxu0 0.0
        %4064 = vmatprep.subr.mxu0 0.0
        %4065 = vmatpush2.msra.mxu0 0.0
        %4066 = vmatprep.subr.mxu0 0.0
        %4067 = vmatpush2.msra.mxu0 0.0
        %4068 = vmatprep.mubr.f32.mxu0 0.0
        %4069 = vmatmul.mubr.f32.gmra.mxu0 %v1927
        %v4070 = vpop.f32.mrf.mxu0
        %v4071 = vadd.f32 0.0, %v4070
        %v4072 = vpop.f32.mrf.mxu0
        %4073 = vdwg.mxu0
        %4075 = vrot.lane.b32.xlu0 %v4001, 120
        %v4076 = vpop.permute.xlu0 %4075
        %4077 = vrot.lane.b32.xlu0 %v4001, 112
        %v4078 = vpop.permute.xlu0 %4077
        %4079 = vrot.lane.b32.xlu0 %v4001, 104
        %v4080 = vpop.permute.xlu0 %4079
        %4082 = vrot.lane.b32.xlu0 %v4071, 120
        %v4083 = vpop.permute.xlu0 %4082
        %4084 = vrot.lane.b32.xlu0 %v4071, 112
        %v4085 = vpop.permute.xlu0 %4084
        %4086 = vrot.lane.b32.xlu0 %v4071, 104
        %v4087 = vpop.permute.xlu0 %4086
        %v4088 = vsel %vm1074, %v4001, 0
        %v4090 = vsel %vm1074, %v4071, 0
        %4092 = vmatprep.subr.mxu0 0.0
        %4093 = vmatpush1.xpose.msra.mxu0 0.0
        %4094 = vmatprep.subr.mxu0 0.0
        %4095 = vmatpush1.xpose.msra.mxu0 0.0
        %4096 = vmatprep.subr.mxu0 0.0
        %4097 = vmatpush1.xpose.msra.mxu0 0.0
        %4098 = vmatprep.subr.mxu0 0.0
        %4099 = vmatpush1.xpose.msra.mxu0 0.0
        %4100 = vmatprep.subr.mxu0 0.0
        %4101 = vmatpush1.xpose.msra.mxu0 0.0
        %4102 = vmatprep.subr.mxu0 0.0
        %4103 = vmatpush1.xpose.msra.mxu0 0.0
        %4104 = vmatprep.subr.mxu0 0.0
        %4105 = vmatpush1.xpose.msra.mxu0 0.0
        %4106 = vmatprep.subr.mxu0 0.0
        %4107 = vmatpush1.xpose.msra.mxu0 0.0
        %4108 = vmatprep.subr.mxu0 0.0
        %4109 = vmatpush1.xpose.msra.mxu0 0.0
        %4110 = vmatprep.subr.mxu0 0.0
        %4111 = vmatpush1.xpose.msra.mxu0 0.0
        %4112 = vmatprep.subr.mxu0 0.0
        %4113 = vmatpush1.xpose.msra.mxu0 0.0
        %4114 = vmatprep.subr.mxu0 0.0
        %4115 = vmatpush1.xpose.msra.mxu0 0.0
        %4116 = vmatprep.subr.mxu0 0.0
        %4117 = vmatpush1.xpose.msra.mxu0 0.0
        %4118 = vmatprep.subr.mxu0 0.0
        %4119 = vmatpush1.xpose.msra.mxu0 0.0
        %4120 = vmatprep.subr.mxu0 0.0
        %4121 = vmatpush1.xpose.msra.mxu0 0.0
        %4122 = vmatprep.subr.mxu0 0.0
        %4123 = vmatpush1.xpose.msra.mxu0 %v4090
        %4124 = vmatprep.subr.mxu0 0.0
        %4125 = vmatpush2.xpose.msra.mxu0 0.0
        %4126 = vmatprep.subr.mxu0 0.0
        %4127 = vmatpush2.xpose.msra.mxu0 0.0
        %4128 = vmatprep.subr.mxu0 0.0
        %4129 = vmatpush2.xpose.msra.mxu0 0.0
        %4130 = vmatprep.subr.mxu0 0.0
        %4131 = vmatpush2.xpose.msra.mxu0 0.0
        %4132 = vmatprep.subr.mxu0 0.0
        %4133 = vmatpush2.xpose.msra.mxu0 0.0
        %4134 = vmatprep.subr.mxu0 0.0
        %4135 = vmatpush2.xpose.msra.mxu0 0.0
        %4136 = vmatprep.subr.mxu0 0.0
        %4137 = vmatpush2.xpose.msra.mxu0 0.0
        %4138 = vmatprep.subr.mxu0 0.0
        %4139 = vmatpush2.xpose.msra.mxu0 0.0
        %4140 = vmatprep.subr.mxu0 0.0
        %4141 = vmatpush2.xpose.msra.mxu0 0.0
        %4142 = vmatprep.subr.mxu0 0.0
        %4143 = vmatpush2.xpose.msra.mxu0 0.0
        %4144 = vmatprep.subr.mxu0 0.0
        %4145 = vmatpush2.xpose.msra.mxu0 0.0
        %4146 = vmatprep.subr.mxu0 0.0
        %4147 = vmatpush2.xpose.msra.mxu0 0.0
        %4148 = vmatprep.subr.mxu0 0.0
        %4149 = vmatpush2.xpose.msra.mxu0 0.0
        %4150 = vmatprep.subr.mxu0 0.0
        %4151 = vmatpush2.xpose.msra.mxu0 0.0
        %4152 = vmatprep.subr.mxu0 0.0
        %4153 = vmatpush2.xpose.msra.mxu0 0.0
        %4154 = vmatprep.subr.mxu0 0.0
        %4155 = vmatpush2.xpose.msra.mxu0 0.0
        %4156 = vmatprep.mubr.f32.mxu0 0.0
        %4157 = vmatmul.mubr.f32.gmra.mxu0 %v4088
        %v4158 = vpop.f32.mrf.mxu0
        %v4159 = vadd.f32 0.0, %v4158
        %v4160 = vpop.f32.mrf.mxu0
        %4161 = vdwg.mxu0
        %v4162 = vsel %vm1074, %v4076, 0
        %v4164 = vsel %vm1074, %v4083, 0
        %4166 = vmatprep.subr.mxu0 0.0
        %4167 = vmatpush1.xpose.msra.mxu0 0.0
        %4168 = vmatprep.subr.mxu0 0.0
        %4169 = vmatpush1.xpose.msra.mxu0 0.0
        %4170 = vmatprep.subr.mxu0 0.0
        %4171 = vmatpush1.xpose.msra.mxu0 0.0
        %4172 = vmatprep.subr.mxu0 0.0
        %4173 = vmatpush1.xpose.msra.mxu0 0.0
        %4174 = vmatprep.subr.mxu0 0.0
        %4175 = vmatpush1.xpose.msra.mxu0 0.0
        %4176 = vmatprep.subr.mxu0 0.0
        %4177 = vmatpush1.xpose.msra.mxu0 0.0
        %4178 = vmatprep.subr.mxu0 0.0
        %4179 = vmatpush1.xpose.msra.mxu0 0.0
        %4180 = vmatprep.subr.mxu0 0.0
        %4181 = vmatpush1.xpose.msra.mxu0 0.0
        %4182 = vmatprep.subr.mxu0 0.0
        %4183 = vmatpush1.xpose.msra.mxu0 0.0
        %4184 = vmatprep.subr.mxu0 0.0
        %4185 = vmatpush1.xpose.msra.mxu0 0.0
        %4186 = vmatprep.subr.mxu0 0.0
        %4187 = vmatpush1.xpose.msra.mxu0 0.0
        %4188 = vmatprep.subr.mxu0 0.0
        %4189 = vmatpush1.xpose.msra.mxu0 0.0
        %4190 = vmatprep.subr.mxu0 0.0
        %4191 = vmatpush1.xpose.msra.mxu0 0.0
        %4192 = vmatprep.subr.mxu0 0.0
        %4193 = vmatpush1.xpose.msra.mxu0 0.0
        %4194 = vmatprep.subr.mxu0 0.0
        %4195 = vmatpush1.xpose.msra.mxu0 0.0
        %4196 = vmatprep.subr.mxu0 0.0
        %4197 = vmatpush1.xpose.msra.mxu0 %v4164
        %4198 = vmatprep.subr.mxu0 0.0
        %4199 = vmatpush2.xpose.msra.mxu0 0.0
        %4200 = vmatprep.subr.mxu0 0.0
        %4201 = vmatpush2.xpose.msra.mxu0 0.0
        %4202 = vmatprep.subr.mxu0 0.0
        %4203 = vmatpush2.xpose.msra.mxu0 0.0
        %4204 = vmatprep.subr.mxu0 0.0
        %4205 = vmatpush2.xpose.msra.mxu0 0.0
        %4206 = vmatprep.subr.mxu0 0.0
        %4207 = vmatpush2.xpose.msra.mxu0 0.0
        %4208 = vmatprep.subr.mxu0 0.0
        %4209 = vmatpush2.xpose.msra.mxu0 0.0
        %4210 = vmatprep.subr.mxu0 0.0
        %4211 = vmatpush2.xpose.msra.mxu0 0.0
        %4212 = vmatprep.subr.mxu0 0.0
        %4213 = vmatpush2.xpose.msra.mxu0 0.0
        %4214 = vmatprep.subr.mxu0 0.0
        %4215 = vmatpush2.xpose.msra.mxu0 0.0
        %4216 = vmatprep.subr.mxu0 0.0
        %4217 = vmatpush2.xpose.msra.mxu0 0.0
        %4218 = vmatprep.subr.mxu0 0.0
        %4219 = vmatpush2.xpose.msra.mxu0 0.0
        %4220 = vmatprep.subr.mxu0 0.0
        %4221 = vmatpush2.xpose.msra.mxu0 0.0
        %4222 = vmatprep.subr.mxu0 0.0
        %4223 = vmatpush2.xpose.msra.mxu0 0.0
        %4224 = vmatprep.subr.mxu0 0.0
        %4225 = vmatpush2.xpose.msra.mxu0 0.0
        %4226 = vmatprep.subr.mxu0 0.0
        %4227 = vmatpush2.xpose.msra.mxu0 0.0
        %4228 = vmatprep.subr.mxu0 0.0
        %4229 = vmatpush2.xpose.msra.mxu0 0.0
        %4230 = vmatprep.mubr.f32.mxu0 0.0
        %4231 = vmatmul.mubr.f32.gmra.mxu0 %v4162
        %v4232 = vpop.f32.mrf.mxu0
        %v4233 = vadd.f32 0.0, %v4232
        %v4234 = vpop.f32.mrf.mxu0
        %4235 = vdwg.mxu0
        %v4236 = vsel %vm1074, %v4078, 0
        %v4238 = vsel %vm1074, %v4085, 0
        %4240 = vmatprep.subr.mxu0 0.0
        %4241 = vmatpush1.xpose.msra.mxu0 0.0
        %4242 = vmatprep.subr.mxu0 0.0
        %4243 = vmatpush1.xpose.msra.mxu0 0.0
        %4244 = vmatprep.subr.mxu0 0.0
        %4245 = vmatpush1.xpose.msra.mxu0 0.0
        %4246 = vmatprep.subr.mxu0 0.0
        %4247 = vmatpush1.xpose.msra.mxu0 0.0
        %4248 = vmatprep.subr.mxu0 0.0
        %4249 = vmatpush1.xpose.msra.mxu0 0.0
        %4250 = vmatprep.subr.mxu0 0.0
        %4251 = vmatpush1.xpose.msra.mxu0 0.0
        %4252 = vmatprep.subr.mxu0 0.0
        %4253 = vmatpush1.xpose.msra.mxu0 0.0
        %4254 = vmatprep.subr.mxu0 0.0
        %4255 = vmatpush1.xpose.msra.mxu0 0.0
        %4256 = vmatprep.subr.mxu0 0.0
        %4257 = vmatpush1.xpose.msra.mxu0 0.0
        %4258 = vmatprep.subr.mxu0 0.0
        %4259 = vmatpush1.xpose.msra.mxu0 0.0
        %4260 = vmatprep.subr.mxu0 0.0
        %4261 = vmatpush1.xpose.msra.mxu0 0.0
        %4262 = vmatprep.subr.mxu0 0.0
        %4263 = vmatpush1.xpose.msra.mxu0 0.0
        %4264 = vmatprep.subr.mxu0 0.0
        %4265 = vmatpush1.xpose.msra.mxu0 0.0
        %4266 = vmatprep.subr.mxu0 0.0
        %4267 = vmatpush1.xpose.msra.mxu0 0.0
        %4268 = vmatprep.subr.mxu0 0.0
        %4269 = vmatpush1.xpose.msra.mxu0 0.0
        %4270 = vmatprep.subr.mxu0 0.0
        %4271 = vmatpush1.xpose.msra.mxu0 %v4238
        %4272 = vmatprep.subr.mxu0 0.0
        %4273 = vmatpush2.xpose.msra.mxu0 0.0
        %4274 = vmatprep.subr.mxu0 0.0
        %4275 = vmatpush2.xpose.msra.mxu0 0.0
        %4276 = vmatprep.subr.mxu0 0.0
        %4277 = vmatpush2.xpose.msra.mxu0 0.0
        %4278 = vmatprep.subr.mxu0 0.0
        %4279 = vmatpush2.xpose.msra.mxu0 0.0
        %4280 = vmatprep.subr.mxu0 0.0
        %4281 = vmatpush2.xpose.msra.mxu0 0.0
        %4282 = vmatprep.subr.mxu0 0.0
        %4283 = vmatpush2.xpose.msra.mxu0 0.0
        %4284 = vmatprep.subr.mxu0 0.0
        %4285 = vmatpush2.xpose.msra.mxu0 0.0
        %4286 = vmatprep.subr.mxu0 0.0
        %4287 = vmatpush2.xpose.msra.mxu0 0.0
        %4288 = vmatprep.subr.mxu0 0.0
        %4289 = vmatpush2.xpose.msra.mxu0 0.0
        %4290 = vmatprep.subr.mxu0 0.0
        %4291 = vmatpush2.xpose.msra.mxu0 0.0
        %4292 = vmatprep.subr.mxu0 0.0
        %4293 = vmatpush2.xpose.msra.mxu0 0.0
        %4294 = vmatprep.subr.mxu0 0.0
        %4295 = vmatpush2.xpose.msra.mxu0 0.0
        %4296 = vmatprep.subr.mxu0 0.0
        %4297 = vmatpush2.xpose.msra.mxu0 0.0
        %4298 = vmatprep.subr.mxu0 0.0
        %4299 = vmatpush2.xpose.msra.mxu0 0.0
        %4300 = vmatprep.subr.mxu0 0.0
        %4301 = vmatpush2.xpose.msra.mxu0 0.0
        %4302 = vmatprep.subr.mxu0 0.0
        %4303 = vmatpush2.xpose.msra.mxu0 0.0
        %4304 = vmatprep.mubr.f32.mxu0 0.0
        %4305 = vmatmul.mubr.f32.gmra.mxu0 %v4236
        %v4306 = vpop.f32.mrf.mxu0
        %v4307 = vadd.f32 0.0, %v4306
        %v4308 = vpop.f32.mrf.mxu0
        %4309 = vdwg.mxu0
        %v4310 = vsel %vm1074, %v4080, 0
        %v4312 = vsel %vm1074, %v4087, 0
        %4314 = vmatprep.subr.mxu0 0.0
        %4315 = vmatpush1.xpose.msra.mxu0 0.0
        %4316 = vmatprep.subr.mxu0 0.0
        %4317 = vmatpush1.xpose.msra.mxu0 0.0
        %4318 = vmatprep.subr.mxu0 0.0
        %4319 = vmatpush1.xpose.msra.mxu0 0.0
        %4320 = vmatprep.subr.mxu0 0.0
        %4321 = vmatpush1.xpose.msra.mxu0 0.0
        %4322 = vmatprep.subr.mxu0 0.0
        %4323 = vmatpush1.xpose.msra.mxu0 0.0
        %4324 = vmatprep.subr.mxu0 0.0
        %4325 = vmatpush1.xpose.msra.mxu0 0.0
        %4326 = vmatprep.subr.mxu0 0.0
        %4327 = vmatpush1.xpose.msra.mxu0 0.0
        %4328 = vmatprep.subr.mxu0 0.0
        %4329 = vmatpush1.xpose.msra.mxu0 0.0
        %4330 = vmatprep.subr.mxu0 0.0
        %4331 = vmatpush1.xpose.msra.mxu0 0.0
        %4332 = vmatprep.subr.mxu0 0.0
        %4333 = vmatpush1.xpose.msra.mxu0 0.0
        %4334 = vmatprep.subr.mxu0 0.0
        %4335 = vmatpush1.xpose.msra.mxu0 0.0
        %4336 = vmatprep.subr.mxu0 0.0
        %4337 = vmatpush1.xpose.msra.mxu0 0.0
        %4338 = vmatprep.subr.mxu0 0.0
        %4339 = vmatpush1.xpose.msra.mxu0 0.0
        %4340 = vmatprep.subr.mxu0 0.0
        %4341 = vmatpush1.xpose.msra.mxu0 0.0
        %4342 = vmatprep.subr.mxu0 0.0
        %4343 = vmatpush1.xpose.msra.mxu0 0.0
        %4344 = vmatprep.subr.mxu0 0.0
        %4345 = vmatpush1.xpose.msra.mxu0 %v4312
        %4346 = vmatprep.subr.mxu0 0.0
        %4347 = vmatpush2.xpose.msra.mxu0 0.0
        %4348 = vmatprep.subr.mxu0 0.0
        %4349 = vmatpush2.xpose.msra.mxu0 0.0
        %4350 = vmatprep.subr.mxu0 0.0
        %4351 = vmatpush2.xpose.msra.mxu0 0.0
        %4352 = vmatprep.subr.mxu0 0.0
        %4353 = vmatpush2.xpose.msra.mxu0 0.0
        %4354 = vmatprep.subr.mxu0 0.0
        %4355 = vmatpush2.xpose.msra.mxu0 0.0
        %4356 = vmatprep.subr.mxu0 0.0
        %4357 = vmatpush2.xpose.msra.mxu0 0.0
        %4358 = vmatprep.subr.mxu0 0.0
        %4359 = vmatpush2.xpose.msra.mxu0 0.0
        %4360 = vmatprep.subr.mxu0 0.0
        %4361 = vmatpush2.xpose.msra.mxu0 0.0
        %4362 = vmatprep.subr.mxu0 0.0
        %4363 = vmatpush2.xpose.msra.mxu0 0.0
        %4364 = vmatprep.subr.mxu0 0.0
        %4365 = vmatpush2.xpose.msra.mxu0 0.0
        %4366 = vmatprep.subr.mxu0 0.0
        %4367 = vmatpush2.xpose.msra.mxu0 0.0
        %4368 = vmatprep.subr.mxu0 0.0
        %4369 = vmatpush2.xpose.msra.mxu0 0.0
        %4370 = vmatprep.subr.mxu0 0.0
        %4371 = vmatpush2.xpose.msra.mxu0 0.0
        %4372 = vmatprep.subr.mxu0 0.0
        %4373 = vmatpush2.xpose.msra.mxu0 0.0
        %4374 = vmatprep.subr.mxu0 0.0
        %4375 = vmatpush2.xpose.msra.mxu0 0.0
        %4376 = vmatprep.subr.mxu0 0.0
        %4377 = vmatpush2.xpose.msra.mxu0 0.0
        %4378 = vmatprep.mubr.f32.mxu0 0.0
        %4379 = vmatmul.mubr.f32.gmra.mxu0 %v4310
        %v4380 = vpop.f32.mrf.mxu0
        %v4381 = vadd.f32 0.0, %v4380
        %v4382 = vpop.f32.mrf.mxu0
        %4383 = vdwg.mxu0
        %v4384 = vmul.f32 %v4159, 0.35355338
        %v4385 = vmul.f32 %v4233, 0.35355338
        %v4386 = vmul.f32 %v4307, 0.35355338
        %v4387 = vmul.f32 %v4381, 0.35355338
        %v4388 = vsel %vm1074, %v4384, -inf
        %4389 = vmax.xlane.f32.xlu0 %v4388
        %v4390 = vpop.xlane.xlu0 %4389
        %v4391 = vsel %vm1074, %v4385, -inf
        %4392 = vmax.xlane.f32.xlu0 %v4391
        %v4393 = vpop.xlane.xlu0 %4392
        %v4394 = vsel %vm1074, %v4386, -inf
        %4395 = vmax.xlane.f32.xlu0 %v4394
        %v4396 = vpop.xlane.xlu0 %4395
        %v4397 = vsel %vm1074, %v4387, -inf
        %4398 = vmax.xlane.f32.xlu0 %v4397
        %v4399 = vpop.xlane.xlu0 %4398
        %v4400 = vsub.f32 %v4384, %v4390
        %v4401 = vsub.f32 %v4385, %v4393
        %v4402 = vsub.f32 %v4386, %v4396
        %v4403 = vsub.f32 %v4387, %v4399
        %v4404 = vmul.f32 %v4400, 1.442695
        %v4405 = vpow.pop %v4404
        %v4406 = vmul.f32 %v4401, 1.442695
        %v4407 = vpow.pop %v4406
        %v4408 = vmul.f32 %v4402, 1.442695
        %v4409 = vpow.pop %v4408
        %v4410 = vmul.f32 %v4403, 1.442695
        %v4411 = vpow.pop %v4410
        %v4412 = vsel %vm1074, %v4405, 0.0
        %4413 = vadd.xlane.f32.xlu0 %v4412
        %v4414 = vpop.xlane.xlu0 %4413
        %v4415 = vsel %vm1074, %v4407, 0.0
        %4416 = vadd.xlane.f32.xlu0 %v4415
        %v4417 = vpop.xlane.xlu0 %4416
        %v4418 = vsel %vm1074, %v4409, 0.0
        %4419 = vadd.xlane.f32.xlu0 %v4418
        %v4420 = vpop.xlane.xlu0 %4419
        %v4421 = vsel %vm1074, %v4411, 0.0
        %4422 = vadd.xlane.f32.xlu0 %v4421
        %v4423 = vpop.xlane.xlu0 %4422
        %v4424 = vrcp.pop %v4414
        %v4425 = vmul.f32 %v4405, %v4424
        %v4426 = vrcp.pop %v4417
        %v4427 = vmul.f32 %v4407, %v4426
        %v4428 = vrcp.pop %v4420
        %v4429 = vmul.f32 %v4409, %v4428
        %v4430 = vrcp.pop %v4423
        %v4431 = vmul.f32 %v4411, %v4430
        %s4432 = scalar_lea.vmem %s811, 32 [#allocation19]
        %4433 = vst.msk [vmem:[%s4432] sm:$0xff] %vm1074, %v4425
        %4434 = vst.msk [vmem:[%s4432 + $0x8] sm:$0xff] %vm1074, %v4427
        %4435 = vst.msk [vmem:[%s4432 + $0x10] sm:$0xff] %vm1074, %v4429
        %4436 = vst.msk [vmem:[%s4432 + $0x18] sm:$0xff] %vm1074, %v4431
        %4437 = vrot.lane.b32.xlu0 %v4071, 96
        %v4438 = vpop.permute.xlu0 %4437
        %v4441 = vsel %vm1074, %v4425, 0
        %4443 = vmatprep.subr.mxu0 0.0
        %4444 = vmatpush1.msra.mxu0 0.0
        %4445 = vmatprep.subr.mxu0 0.0
        %4446 = vmatpush1.msra.mxu0 0.0
        %4447 = vmatprep.subr.mxu0 0.0
        %4448 = vmatpush1.msra.mxu0 0.0
        %4449 = vmatprep.subr.mxu0 0.0
        %4450 = vmatpush1.msra.mxu0 0.0
        %4451 = vmatprep.subr.mxu0 0.0
        %4452 = vmatpush1.msra.mxu0 0.0
        %4453 = vmatprep.subr.mxu0 0.0
        %4454 = vmatpush1.msra.mxu0 0.0
        %4455 = vmatprep.subr.mxu0 0.0
        %4456 = vmatpush1.msra.mxu0 0.0
        %4457 = vmatprep.subr.mxu0 0.0
        %4458 = vmatpush1.msra.mxu0 0.0
        %4459 = vmatprep.subr.mxu0 0.0
        %4460 = vmatpush1.msra.mxu0 0.0
        %4461 = vmatprep.subr.mxu0 0.0
        %4462 = vmatpush1.msra.mxu0 0.0
        %4463 = vmatprep.subr.mxu0 0.0
        %4464 = vmatpush1.msra.mxu0 0.0
        %4465 = vmatprep.subr.mxu0 0.0
        %4466 = vmatpush1.msra.mxu0 0.0
        %4467 = vmatprep.subr.mxu0 0.0
        %4468 = vmatpush1.msra.mxu0 0.0
        %4469 = vmatprep.subr.mxu0 0.0
        %4470 = vmatpush1.msra.mxu0 0.0
        %4471 = vmatprep.subr.mxu0 0.0
        %4472 = vmatpush1.msra.mxu0 0.0
        %4473 = vmatprep.subr.mxu0 0.0
        %4474 = vmatpush1.msra.mxu0 %v4438
        %4475 = vmatprep.subr.mxu0 0.0
        %4476 = vmatpush2.msra.mxu0 0.0
        %4477 = vmatprep.subr.mxu0 0.0
        %4478 = vmatpush2.msra.mxu0 0.0
        %4479 = vmatprep.subr.mxu0 0.0
        %4480 = vmatpush2.msra.mxu0 0.0
        %4481 = vmatprep.subr.mxu0 0.0
        %4482 = vmatpush2.msra.mxu0 0.0
        %4483 = vmatprep.subr.mxu0 0.0
        %4484 = vmatpush2.msra.mxu0 0.0
        %4485 = vmatprep.subr.mxu0 0.0
        %4486 = vmatpush2.msra.mxu0 0.0
        %4487 = vmatprep.subr.mxu0 0.0
        %4488 = vmatpush2.msra.mxu0 0.0
        %4489 = vmatprep.subr.mxu0 0.0
        %4490 = vmatpush2.msra.mxu0 0.0
        %4491 = vmatprep.subr.mxu0 0.0
        %4492 = vmatpush2.msra.mxu0 0.0
        %4493 = vmatprep.subr.mxu0 0.0
        %4494 = vmatpush2.msra.mxu0 0.0
        %4495 = vmatprep.subr.mxu0 0.0
        %4496 = vmatpush2.msra.mxu0 0.0
        %4497 = vmatprep.subr.mxu0 0.0
        %4498 = vmatpush2.msra.mxu0 0.0
        %4499 = vmatprep.subr.mxu0 0.0
        %4500 = vmatpush2.msra.mxu0 0.0
        %4501 = vmatprep.subr.mxu0 0.0
        %4502 = vmatpush2.msra.mxu0 0.0
        %4503 = vmatprep.subr.mxu0 0.0
        %4504 = vmatpush2.msra.mxu0 0.0
        %4505 = vmatprep.subr.mxu0 0.0
        %4506 = vmatpush2.msra.mxu0 0.0
        %4507 = vmatprep.mubr.f32.mxu0 0.0
        %4508 = vmatmul.mubr.f32.gmra.mxu0 %v4441
        %v4509 = vpop.f32.mrf.mxu0
        %v4510 = vadd.f32 0.0, %v4509
        %v4511 = vpop.f32.mrf.mxu0
        %4512 = vdwg.mxu0
        %4513 = vrot.lane.b32.xlu0 %v4083, 96
        %v4514 = vpop.permute.xlu0 %4513
        %v4517 = vsel %vm1074, %v4427, 0
        %4519 = vmatprep.subr.mxu0 0.0
        %4520 = vmatpush1.msra.mxu0 0.0
        %4521 = vmatprep.subr.mxu0 0.0
        %4522 = vmatpush1.msra.mxu0 0.0
        %4523 = vmatprep.subr.mxu0 0.0
        %4524 = vmatpush1.msra.mxu0 0.0
        %4525 = vmatprep.subr.mxu0 0.0
        %4526 = vmatpush1.msra.mxu0 0.0
        %4527 = vmatprep.subr.mxu0 0.0
        %4528 = vmatpush1.msra.mxu0 0.0
        %4529 = vmatprep.subr.mxu0 0.0
        %4530 = vmatpush1.msra.mxu0 0.0
        %4531 = vmatprep.subr.mxu0 0.0
        %4532 = vmatpush1.msra.mxu0 0.0
        %4533 = vmatprep.subr.mxu0 0.0
        %4534 = vmatpush1.msra.mxu0 0.0
        %4535 = vmatprep.subr.mxu0 0.0
        %4536 = vmatpush1.msra.mxu0 0.0
        %4537 = vmatprep.subr.mxu0 0.0
        %4538 = vmatpush1.msra.mxu0 0.0
        %4539 = vmatprep.subr.mxu0 0.0
        %4540 = vmatpush1.msra.mxu0 0.0
        %4541 = vmatprep.subr.mxu0 0.0
        %4542 = vmatpush1.msra.mxu0 0.0
        %4543 = vmatprep.subr.mxu0 0.0
        %4544 = vmatpush1.msra.mxu0 0.0
        %4545 = vmatprep.subr.mxu0 0.0
        %4546 = vmatpush1.msra.mxu0 0.0
        %4547 = vmatprep.subr.mxu0 0.0
        %4548 = vmatpush1.msra.mxu0 0.0
        %4549 = vmatprep.subr.mxu0 0.0
        %4550 = vmatpush1.msra.mxu0 %v4514
        %4551 = vmatprep.subr.mxu0 0.0
        %4552 = vmatpush2.msra.mxu0 0.0
        %4553 = vmatprep.subr.mxu0 0.0
        %4554 = vmatpush2.msra.mxu0 0.0
        %4555 = vmatprep.subr.mxu0 0.0
        %4556 = vmatpush2.msra.mxu0 0.0
        %4557 = vmatprep.subr.mxu0 0.0
        %4558 = vmatpush2.msra.mxu0 0.0
        %4559 = vmatprep.subr.mxu0 0.0
        %4560 = vmatpush2.msra.mxu0 0.0
        %4561 = vmatprep.subr.mxu0 0.0
        %4562 = vmatpush2.msra.mxu0 0.0
        %4563 = vmatprep.subr.mxu0 0.0
        %4564 = vmatpush2.msra.mxu0 0.0
        %4565 = vmatprep.subr.mxu0 0.0
        %4566 = vmatpush2.msra.mxu0 0.0
        %4567 = vmatprep.subr.mxu0 0.0
        %4568 = vmatpush2.msra.mxu0 0.0
        %4569 = vmatprep.subr.mxu0 0.0
        %4570 = vmatpush2.msra.mxu0 0.0
        %4571 = vmatprep.subr.mxu0 0.0
        %4572 = vmatpush2.msra.mxu0 0.0
        %4573 = vmatprep.subr.mxu0 0.0
        %4574 = vmatpush2.msra.mxu0 0.0
        %4575 = vmatprep.subr.mxu0 0.0
        %4576 = vmatpush2.msra.mxu0 0.0
        %4577 = vmatprep.subr.mxu0 0.0
        %4578 = vmatpush2.msra.mxu0 0.0
        %4579 = vmatprep.subr.mxu0 0.0
        %4580 = vmatpush2.msra.mxu0 0.0
        %4581 = vmatprep.subr.mxu0 0.0
        %4582 = vmatpush2.msra.mxu0 0.0
        %4583 = vmatprep.mubr.f32.mxu0 0.0
        %4584 = vmatmul.mubr.f32.gmra.mxu0 %v4517
        %v4585 = vpop.f32.mrf.mxu0
        %v4586 = vadd.f32 0.0, %v4585
        %v4587 = vpop.f32.mrf.mxu0
        %4588 = vdwg.mxu0
        %4589 = vrot.lane.b32.xlu0 %v4085, 96
        %v4590 = vpop.permute.xlu0 %4589
        %v4593 = vsel %vm1074, %v4429, 0
        %4595 = vmatprep.subr.mxu0 0.0
        %4596 = vmatpush1.msra.mxu0 0.0
        %4597 = vmatprep.subr.mxu0 0.0
        %4598 = vmatpush1.msra.mxu0 0.0
        %4599 = vmatprep.subr.mxu0 0.0
        %4600 = vmatpush1.msra.mxu0 0.0
        %4601 = vmatprep.subr.mxu0 0.0
        %4602 = vmatpush1.msra.mxu0 0.0
        %4603 = vmatprep.subr.mxu0 0.0
        %4604 = vmatpush1.msra.mxu0 0.0
        %4605 = vmatprep.subr.mxu0 0.0
        %4606 = vmatpush1.msra.mxu0 0.0
        %4607 = vmatprep.subr.mxu0 0.0
        %4608 = vmatpush1.msra.mxu0 0.0
        %4609 = vmatprep.subr.mxu0 0.0
        %4610 = vmatpush1.msra.mxu0 0.0
        %4611 = vmatprep.subr.mxu0 0.0
        %4612 = vmatpush1.msra.mxu0 0.0
        %4613 = vmatprep.subr.mxu0 0.0
        %4614 = vmatpush1.msra.mxu0 0.0
        %4615 = vmatprep.subr.mxu0 0.0
        %4616 = vmatpush1.msra.mxu0 0.0
        %4617 = vmatprep.subr.mxu0 0.0
        %4618 = vmatpush1.msra.mxu0 0.0
        %4619 = vmatprep.subr.mxu0 0.0
        %4620 = vmatpush1.msra.mxu0 0.0
        %4621 = vmatprep.subr.mxu0 0.0
        %4622 = vmatpush1.msra.mxu0 0.0
        %4623 = vmatprep.subr.mxu0 0.0
        %4624 = vmatpush1.msra.mxu0 0.0
        %4625 = vmatprep.subr.mxu0 0.0
        %4626 = vmatpush1.msra.mxu0 %v4590
        %4627 = vmatprep.subr.mxu0 0.0
        %4628 = vmatpush2.msra.mxu0 0.0
        %4629 = vmatprep.subr.mxu0 0.0
        %4630 = vmatpush2.msra.mxu0 0.0
        %4631 = vmatprep.subr.mxu0 0.0
        %4632 = vmatpush2.msra.mxu0 0.0
        %4633 = vmatprep.subr.mxu0 0.0
        %4634 = vmatpush2.msra.mxu0 0.0
        %4635 = vmatprep.subr.mxu0 0.0
        %4636 = vmatpush2.msra.mxu0 0.0
        %4637 = vmatprep.subr.mxu0 0.0
        %4638 = vmatpush2.msra.mxu0 0.0
        %4639 = vmatprep.subr.mxu0 0.0
        %4640 = vmatpush2.msra.mxu0 0.0
        %4641 = vmatprep.subr.mxu0 0.0
        %4642 = vmatpush2.msra.mxu0 0.0
        %4643 = vmatprep.subr.mxu0 0.0
        %4644 = vmatpush2.msra.mxu0 0.0
        %4645 = vmatprep.subr.mxu0 0.0
        %4646 = vmatpush2.msra.mxu0 0.0
        %4647 = vmatprep.subr.mxu0 0.0
        %4648 = vmatpush2.msra.mxu0 0.0
        %4649 = vmatprep.subr.mxu0 0.0
        %4650 = vmatpush2.msra.mxu0 0.0
        %4651 = vmatprep.subr.mxu0 0.0
        %4652 = vmatpush2.msra.mxu0 0.0
        %4653 = vmatprep.subr.mxu0 0.0
        %4654 = vmatpush2.msra.mxu0 0.0
        %4655 = vmatprep.subr.mxu0 0.0
        %4656 = vmatpush2.msra.mxu0 0.0
        %4657 = vmatprep.subr.mxu0 0.0
        %4658 = vmatpush2.msra.mxu0 0.0
        %4659 = vmatprep.mubr.f32.mxu0 0.0
        %4660 = vmatmul.mubr.f32.gmra.mxu0 %v4593
        %v4661 = vpop.f32.mrf.mxu0
        %v4662 = vadd.f32 0.0, %v4661
        %v4663 = vpop.f32.mrf.mxu0
        %4664 = vdwg.mxu0
        %4665 = vrot.lane.b32.xlu0 %v4087, 96
        %v4666 = vpop.permute.xlu0 %4665
        %v4669 = vsel %vm1074, %v4431, 0
        %4671 = vmatprep.subr.mxu0 0.0
        %4672 = vmatpush1.msra.mxu0 0.0
        %4673 = vmatprep.subr.mxu0 0.0
        %4674 = vmatpush1.msra.mxu0 0.0
        %4675 = vmatprep.subr.mxu0 0.0
        %4676 = vmatpush1.msra.mxu0 0.0
        %4677 = vmatprep.subr.mxu0 0.0
        %4678 = vmatpush1.msra.mxu0 0.0
        %4679 = vmatprep.subr.mxu0 0.0
        %4680 = vmatpush1.msra.mxu0 0.0
        %4681 = vmatprep.subr.mxu0 0.0
        %4682 = vmatpush1.msra.mxu0 0.0
        %4683 = vmatprep.subr.mxu0 0.0
        %4684 = vmatpush1.msra.mxu0 0.0
        %4685 = vmatprep.subr.mxu0 0.0
        %4686 = vmatpush1.msra.mxu0 0.0
        %4687 = vmatprep.subr.mxu0 0.0
        %4688 = vmatpush1.msra.mxu0 0.0
        %4689 = vmatprep.subr.mxu0 0.0
        %4690 = vmatpush1.msra.mxu0 0.0
        %4691 = vmatprep.subr.mxu0 0.0
        %4692 = vmatpush1.msra.mxu0 0.0
        %4693 = vmatprep.subr.mxu0 0.0
        %4694 = vmatpush1.msra.mxu0 0.0
        %4695 = vmatprep.subr.mxu0 0.0
        %4696 = vmatpush1.msra.mxu0 0.0
        %4697 = vmatprep.subr.mxu0 0.0
        %4698 = vmatpush1.msra.mxu0 0.0
        %4699 = vmatprep.subr.mxu0 0.0
        %4700 = vmatpush1.msra.mxu0 0.0
        %4701 = vmatprep.subr.mxu0 0.0
        %4702 = vmatpush1.msra.mxu0 %v4666
        %4703 = vmatprep.subr.mxu0 0.0
        %4704 = vmatpush2.msra.mxu0 0.0
        %4705 = vmatprep.subr.mxu0 0.0
        %4706 = vmatpush2.msra.mxu0 0.0
        %4707 = vmatprep.subr.mxu0 0.0
        %4708 = vmatpush2.msra.mxu0 0.0
        %4709 = vmatprep.subr.mxu0 0.0
        %4710 = vmatpush2.msra.mxu0 0.0
        %4711 = vmatprep.subr.mxu0 0.0
        %4712 = vmatpush2.msra.mxu0 0.0
        %4713 = vmatprep.subr.mxu0 0.0
        %4714 = vmatpush2.msra.mxu0 0.0
        %4715 = vmatprep.subr.mxu0 0.0
        %4716 = vmatpush2.msra.mxu0 0.0
        %4717 = vmatprep.subr.mxu0 0.0
        %4718 = vmatpush2.msra.mxu0 0.0
        %4719 = vmatprep.subr.mxu0 0.0
        %4720 = vmatpush2.msra.mxu0 0.0
        %4721 = vmatprep.subr.mxu0 0.0
        %4722 = vmatpush2.msra.mxu0 0.0
        %4723 = vmatprep.subr.mxu0 0.0
        %4724 = vmatpush2.msra.mxu0 0.0
        %4725 = vmatprep.subr.mxu0 0.0
        %4726 = vmatpush2.msra.mxu0 0.0
        %4727 = vmatprep.subr.mxu0 0.0
        %4728 = vmatpush2.msra.mxu0 0.0
        %4729 = vmatprep.subr.mxu0 0.0
        %4730 = vmatpush2.msra.mxu0 0.0
        %4731 = vmatprep.subr.mxu0 0.0
        %4732 = vmatpush2.msra.mxu0 0.0
        %4733 = vmatprep.subr.mxu0 0.0
        %4734 = vmatpush2.msra.mxu0 0.0
        %4735 = vmatprep.mubr.f32.mxu0 0.0
        %4736 = vmatmul.mubr.f32.gmra.mxu0 %v4669
        %v4737 = vpop.f32.mrf.mxu0
        %v4738 = vadd.f32 0.0, %v4737
        %v4739 = vpop.f32.mrf.mxu0
        %4740 = vdwg.mxu0
        %4742 = vrot.lane.b32.xlu0 %v4586, 8
        %v4743 = vpop.permute.xlu0 %4742
        %4746 = vrot.lane.b32.xlu0 %v4662, 16
        %v4747 = vpop.permute.xlu0 %4746
        %4750 = vrot.lane.b32.xlu0 %v4738, 24
        %v4751 = vpop.permute.xlu0 %4750
        %v4753 = vsel %vm1074, %v4510, %v4743
        %v4754 = vsel %vm825, %v4753, %v4747
        %v4755 = vsel %vm1741, %v4754, %v4751
        %v4757 = vsel %vm902, %v4755, 0
        %4759 = vmatprep.subr.mxu0 0.0
        %4760 = vmatpush1.msra.mxu0 0.0
        %4761 = vmatprep.subr.mxu0 0.0
        %4762 = vmatpush1.msra.mxu0 0.0
        %4763 = vmatprep.subr.mxu0 0.0
        %4764 = vmatpush1.msra.mxu0 0.0
        %4765 = vmatprep.subr.mxu0 0.0
        %4766 = vmatpush1.msra.mxu0 0.0
        %4767 = vmatprep.subr.mxu0 0.0
        %4768 = vmatpush1.msra.mxu0 0.0
        %4769 = vmatprep.subr.mxu0 0.0
        %4770 = vmatpush1.msra.mxu0 0.0
        %4771 = vmatprep.subr.mxu0 0.0
        %4772 = vmatpush1.msra.mxu0 0.0
        %4773 = vmatprep.subr.mxu0 0.0
        %4774 = vmatpush1.msra.mxu0 0.0
        %4775 = vmatprep.subr.mxu0 0.0
        %4776 = vmatpush1.msra.mxu0 0.0
        %4777 = vmatprep.subr.mxu0 0.0
        %4778 = vmatpush1.msra.mxu0 0.0
        %4779 = vmatprep.subr.mxu0 0.0
        %4780 = vmatpush1.msra.mxu0 0.0
        %4781 = vmatprep.subr.mxu0 0.0
        %4782 = vmatpush1.msra.mxu0 0.0
        %4783 = vmatprep.subr.mxu0 0.0
        %4784 = vmatpush1.msra.mxu0 %v3930
        %4785 = vmatprep.subr.mxu0 0.0
        %4786 = vmatpush1.msra.mxu0 %v3929
        %4787 = vmatprep.subr.mxu0 0.0
        %4788 = vmatpush1.msra.mxu0 %v3928
        %4789 = vmatprep.subr.mxu0 0.0
        %4790 = vmatpush1.msra.mxu0 %v3927
        %4791 = vmatprep.subr.mxu0 0.0
        %4792 = vmatpush2.msra.mxu0 0.0
        %4793 = vmatprep.subr.mxu0 0.0
        %4794 = vmatpush2.msra.mxu0 0.0
        %4795 = vmatprep.subr.mxu0 0.0
        %4796 = vmatpush2.msra.mxu0 0.0
        %4797 = vmatprep.subr.mxu0 0.0
        %4798 = vmatpush2.msra.mxu0 0.0
        %4799 = vmatprep.subr.mxu0 0.0
        %4800 = vmatpush2.msra.mxu0 0.0
        %4801 = vmatprep.subr.mxu0 0.0
        %4802 = vmatpush2.msra.mxu0 0.0
        %4803 = vmatprep.subr.mxu0 0.0
        %4804 = vmatpush2.msra.mxu0 0.0
        %4805 = vmatprep.subr.mxu0 0.0
        %4806 = vmatpush2.msra.mxu0 0.0
        %4807 = vmatprep.subr.mxu0 0.0
        %4808 = vmatpush2.msra.mxu0 0.0
        %4809 = vmatprep.subr.mxu0 0.0
        %4810 = vmatpush2.msra.mxu0 0.0
        %4811 = vmatprep.subr.mxu0 0.0
        %4812 = vmatpush2.msra.mxu0 0.0
        %4813 = vmatprep.subr.mxu0 0.0
        %4814 = vmatpush2.msra.mxu0 0.0
        %4815 = vmatprep.subr.mxu0 0.0
        %4816 = vmatpush2.msra.mxu0 0.0
        %4817 = vmatprep.subr.mxu0 0.0
        %4818 = vmatpush2.msra.mxu0 0.0
        %4819 = vmatprep.subr.mxu0 0.0
        %4820 = vmatpush2.msra.mxu0 0.0
        %4821 = vmatprep.subr.mxu0 0.0
        %4822 = vmatpush2.msra.mxu0 0.0
        %4823 = vmatprep.mubr.f32.mxu0 0.0
        %4824 = vmatmul.mubr.f32.gmra.mxu0 %v4757
        %v4825 = vpop.f32.mrf.mxu0
        %v4826 = vadd.f32 0.0, %v4825
        %v4827 = vpop.f32.mrf.mxu0
        %4828 = vdwg.mxu0
        %v4829 = vadd.f32 %v3915, %v4826
        %v4830 = vsel %vm902, %v4829, 0.0
        %4831 = vadd.xlane.f32.xlu0 %v4830
        %v4832 = vpop.xlane.xlu0 %4831
        %v4833 = vmul.f32 %v4832, %v1820
        %v4834 = vsub.f32 %v4829, %v4833
        %v4835 = vmul.f32 %v4834, %v4834
        %v4836 = vsel %vm902, %v4835, 0.0
        %4837 = vadd.xlane.f32.xlu0 %v4836
        %v4838 = vpop.xlane.xlu0 %4837
        %v4839 = vmul.f32 %v4838, %v1820
        %v4840 = vadd.f32 %v4839, 1e-05
        %v4841 = vrsqrt.pop %v4840
        %v4842 = vmul.f32 %v4834, %v4841
        %v4843 = vlaneseq
        %v4844 = vshrl.u32 %v4843, 7
        %v4845 = vsub.s32 2, %v4844
        %v4846 = vrot.slane %v2978, %v4845
        %v4847 = vmul.f32 %v4842, %v4846
        %v4848 = vlaneseq
        %v4849 = vshrl.u32 %v4848, 7
        %v4850 = vsub.s32 3, %v4849
        %v4851 = vrot.slane %v2978, %v4850
        %v4852 = vadd.f32 %v4847, %v4851
        %s4853 = scalar_lea.vmem %s11, 32
        %v4854 = vld [vmem:[%s4853] sm:$0xff]
        %v4855 = vld [vmem:[%s4853 + $0x8] sm:$0xff]
        %v4856 = vld [vmem:[%s4853 + $0x10] sm:$0xff]
        %v4857 = vld [vmem:[%s4853 + $0x18] sm:$0xff]
        %s4858 = scalar_lea.vmem [#allocation11], 1
        %v4859 = vld [vmem:[%s4858] sm:$0x1]
        %v4861 = vlaneseq
        %v4862 = vshrl.u32 %v4861, 7
        %v4863 = vsub.s32 0, %v4862
        %v4864 = vrot.slane %v4859, %v4863
        %v4867 = vsel %vm902, %v4852, 0
        %4869 = vmatprep.subr.mxu0 0.0
        %4870 = vmatpush1.msra.mxu0 0.0
        %4871 = vmatprep.subr.mxu0 0.0
        %4872 = vmatpush1.msra.mxu0 0.0
        %4873 = vmatprep.subr.mxu0 0.0
        %4874 = vmatpush1.msra.mxu0 0.0
        %4875 = vmatprep.subr.mxu0 0.0
        %4876 = vmatpush1.msra.mxu0 0.0
        %4877 = vmatprep.subr.mxu0 0.0
        %4878 = vmatpush1.msra.mxu0 0.0
        %4879 = vmatprep.subr.mxu0 0.0
        %4880 = vmatpush1.msra.mxu0 0.0
        %4881 = vmatprep.subr.mxu0 0.0
        %4882 = vmatpush1.msra.mxu0 0.0
        %4883 = vmatprep.subr.mxu0 0.0
        %4884 = vmatpush1.msra.mxu0 0.0
        %4885 = vmatprep.subr.mxu0 0.0
        %4886 = vmatpush1.msra.mxu0 0.0
        %4887 = vmatprep.subr.mxu0 0.0
        %4888 = vmatpush1.msra.mxu0 0.0
        %4889 = vmatprep.subr.mxu0 0.0
        %4890 = vmatpush1.msra.mxu0 0.0
        %4891 = vmatprep.subr.mxu0 0.0
        %4892 = vmatpush1.msra.mxu0 0.0
        %4893 = vmatprep.subr.mxu0 0.0
        %4894 = vmatpush1.msra.mxu0 %v4857
        %4895 = vmatprep.subr.mxu0 0.0
        %4896 = vmatpush1.msra.mxu0 %v4856
        %4897 = vmatprep.subr.mxu0 0.0
        %4898 = vmatpush1.msra.mxu0 %v4855
        %4899 = vmatprep.subr.mxu0 0.0
        %4900 = vmatpush1.msra.mxu0 %v4854
        %4901 = vmatprep.subr.mxu0 0.0
        %4902 = vmatpush2.msra.mxu0 0.0
        %4903 = vmatprep.subr.mxu0 0.0
        %4904 = vmatpush2.msra.mxu0 0.0
        %4905 = vmatprep.subr.mxu0 0.0
        %4906 = vmatpush2.msra.mxu0 0.0
        %4907 = vmatprep.subr.mxu0 0.0
        %4908 = vmatpush2.msra.mxu0 0.0
        %4909 = vmatprep.subr.mxu0 0.0
        %4910 = vmatpush2.msra.mxu0 0.0
        %4911 = vmatprep.subr.mxu0 0.0
        %4912 = vmatpush2.msra.mxu0 0.0
        %4913 = vmatprep.subr.mxu0 0.0
        %4914 = vmatpush2.msra.mxu0 0.0
        %4915 = vmatprep.subr.mxu0 0.0
        %4916 = vmatpush2.msra.mxu0 0.0
        %4917 = vmatprep.subr.mxu0 0.0
        %4918 = vmatpush2.msra.mxu0 0.0
        %4919 = vmatprep.subr.mxu0 0.0
        %4920 = vmatpush2.msra.mxu0 0.0
        %4921 = vmatprep.subr.mxu0 0.0
        %4922 = vmatpush2.msra.mxu0 0.0
        %4923 = vmatprep.subr.mxu0 0.0
        %4924 = vmatpush2.msra.mxu0 0.0
        %4925 = vmatprep.subr.mxu0 0.0
        %4926 = vmatpush2.msra.mxu0 0.0
        %4927 = vmatprep.subr.mxu0 0.0
        %4928 = vmatpush2.msra.mxu0 0.0
        %4929 = vmatprep.subr.mxu0 0.0
        %4930 = vmatpush2.msra.mxu0 0.0
        %4931 = vmatprep.subr.mxu0 0.0
        %4932 = vmatpush2.msra.mxu0 0.0
        %4933 = vmatprep.mubr.f32.mxu0 0.0
        %4934 = vmatmul.mubr.f32.gmra.mxu0 %v4867
        %v4935 = vpop.f32.mrf.mxu0
        %v4936 = vadd.f32 %v4864, %v4935
        %v4937 = vpop.f32.mrf.mxu0
        %4938 = vdwg.mxu0
        %v4939 = vmax.f32 %v4936, 0.0
        %s4940 = scalar_lea.vmem %s13, 64
        %v4941 = vld [vmem:[%s4940] sm:$0xff]
        %v4942 = vld [vmem:[%s4940 + $0x8] sm:$0xff]
        %v4943 = vld [vmem:[%s4940 + $0x10] sm:$0xff]
        %v4944 = vld [vmem:[%s4940 + $0x18] sm:$0xff]
        %v4945 = vld [vmem:[%s4940 + $0x20] sm:$0xff]
        %v4946 = vld [vmem:[%s4940 + $0x28] sm:$0xff]
        %v4947 = vld [vmem:[%s4940 + $0x30] sm:$0xff]
        %v4948 = vld [vmem:[%s4940 + $0x38] sm:$0xff]
        %s4949 = scalar_lea.vmem [#allocation13], 1
        %v4950 = vld [vmem:[%s4949] sm:$0x1]
        %v4952 = vlaneseq
        %v4953 = vshrl.u32 %v4952, 7
        %v4954 = vsub.s32 0, %v4953
        %v4955 = vrot.slane %v4950, %v4954
        %v4958 = vsel %vm2877, %v4939, 0
        %4960 = vmatprep.subr.mxu0 0.0
        %4961 = vmatpush1.msra.mxu0 0.0
        %4962 = vmatprep.subr.mxu0 0.0
        %4963 = vmatpush1.msra.mxu0 0.0
        %4964 = vmatprep.subr.mxu0 0.0
        %4965 = vmatpush1.msra.mxu0 0.0
        %4966 = vmatprep.subr.mxu0 0.0
        %4967 = vmatpush1.msra.mxu0 0.0
        %4968 = vmatprep.subr.mxu0 0.0
        %4969 = vmatpush1.msra.mxu0 0.0
        %4970 = vmatprep.subr.mxu0 0.0
        %4971 = vmatpush1.msra.mxu0 0.0
        %4972 = vmatprep.subr.mxu0 0.0
        %4973 = vmatpush1.msra.mxu0 0.0
        %4974 = vmatprep.subr.mxu0 0.0
        %4975 = vmatpush1.msra.mxu0 0.0
        %4976 = vmatprep.subr.mxu0 0.0
        %4977 = vmatpush1.msra.mxu0 %v4948
        %4978 = vmatprep.subr.mxu0 0.0
        %4979 = vmatpush1.msra.mxu0 %v4947
        %4980 = vmatprep.subr.mxu0 0.0
        %4981 = vmatpush1.msra.mxu0 %v4946
        %4982 = vmatprep.subr.mxu0 0.0
        %4983 = vmatpush1.msra.mxu0 %v4945
        %4984 = vmatprep.subr.mxu0 0.0
        %4985 = vmatpush1.msra.mxu0 %v4944
        %4986 = vmatprep.subr.mxu0 0.0
        %4987 = vmatpush1.msra.mxu0 %v4943
        %4988 = vmatprep.subr.mxu0 0.0
        %4989 = vmatpush1.msra.mxu0 %v4942
        %4990 = vmatprep.subr.mxu0 0.0
        %4991 = vmatpush1.msra.mxu0 %v4941
        %4992 = vmatprep.subr.mxu0 0.0
        %4993 = vmatpush2.msra.mxu0 0.0
        %4994 = vmatprep.subr.mxu0 0.0
        %4995 = vmatpush2.msra.mxu0 0.0
        %4996 = vmatprep.subr.mxu0 0.0
        %4997 = vmatpush2.msra.mxu0 0.0
        %4998 = vmatprep.subr.mxu0 0.0
        %4999 = vmatpush2.msra.mxu0 0.0
        %5000 = vmatprep.subr.mxu0 0.0
        %5001 = vmatpush2.msra.mxu0 0.0
        %5002 = vmatprep.subr.mxu0 0.0
        %5003 = vmatpush2.msra.mxu0 0.0
        %5004 = vmatprep.subr.mxu0 0.0
        %5005 = vmatpush2.msra.mxu0 0.0
        %5006 = vmatprep.subr.mxu0 0.0
        %5007 = vmatpush2.msra.mxu0 0.0
        %5008 = vmatprep.subr.mxu0 0.0
        %5009 = vmatpush2.msra.mxu0 0.0
        %5010 = vmatprep.subr.mxu0 0.0
        %5011 = vmatpush2.msra.mxu0 0.0
        %5012 = vmatprep.subr.mxu0 0.0
        %5013 = vmatpush2.msra.mxu0 0.0
        %5014 = vmatprep.subr.mxu0 0.0
        %5015 = vmatpush2.msra.mxu0 0.0
        %5016 = vmatprep.subr.mxu0 0.0
        %5017 = vmatpush2.msra.mxu0 0.0
        %5018 = vmatprep.subr.mxu0 0.0
        %5019 = vmatpush2.msra.mxu0 0.0
        %5020 = vmatprep.subr.mxu0 0.0
        %5021 = vmatpush2.msra.mxu0 0.0
        %5022 = vmatprep.subr.mxu0 0.0
        %5023 = vmatpush2.msra.mxu0 0.0
        %5024 = vmatprep.mubr.f32.mxu0 0.0
        %5025 = vmatmul.mubr.f32.gmra.mxu0 %v4958
        %v5026 = vpop.f32.mrf.mxu0
        %v5027 = vadd.f32 %v4955, %v5026
        %v5028 = vpop.f32.mrf.mxu0
        %5029 = vdwg.mxu0
        %v5030 = vadd.f32 %v4852, %v5027
        %v5031 = vsel %vm902, %v5030, 0.0
        %5032 = vadd.xlane.f32.xlu0 %v5031
        %v5033 = vpop.xlane.xlu0 %5032
        %v5034 = vmul.f32 %v5033, %v1820
        %v5035 = vsub.f32 %v5030, %v5034
        %v5036 = vmul.f32 %v5035, %v5035
        %v5037 = vsel %vm902, %v5036, 0.0
        %5038 = vadd.xlane.f32.xlu0 %v5037
        %v5039 = vpop.xlane.xlu0 %5038
        %v5040 = vmul.f32 %v5039, %v1820
        %v5041 = vadd.f32 %v5040, 1e-05
        %v5042 = vrsqrt.pop %v5041
        %v5043 = vmul.f32 %v5035, %v5042
        %v5044 = vlaneseq
        %v5045 = vshrl.u32 %v5044, 7
        %v5046 = vsub.s32 4, %v5045
        %v5047 = vrot.slane %v2978, %v5046
        %v5048 = vmul.f32 %v5043, %v5047
        %v5049 = vlaneseq
        %v5050 = vshrl.u32 %v5049, 7
        %v5051 = vsub.s32 5, %v5050
        %v5052 = vrot.slane %v2978, %v5051
        %v5053 = vadd.f32 %v5048, %v5052
        %v5054 = vld [vmem:[%s16] sm:$0xff]
        %v5055 = vld [vmem:[%s16 + $0x8] sm:$0xff]
        %v5056 = vld [vmem:[%s16 + $0x10] sm:$0xff]
        %v5057 = vld [vmem:[%s16 + $0x18] sm:$0xff]
        %v5058 = vld [vmem:[#allocation14] sm:$0x1]
        %v5060 = vrot.slane %v5053, 7
        %v5061 = vsel %vm902, %v5060, 0
        %5063 = vmatprep.subr.mxu0 0.0
        %5064 = vmatpush1.msra.mxu0 0.0
        %5065 = vmatprep.subr.mxu0 0.0
        %5066 = vmatpush1.msra.mxu0 0.0
        %5067 = vmatprep.subr.mxu0 0.0
        %5068 = vmatpush1.msra.mxu0 0.0
        %5069 = vmatprep.subr.mxu0 0.0
        %5070 = vmatpush1.msra.mxu0 0.0
        %5071 = vmatprep.subr.mxu0 0.0
        %5072 = vmatpush1.msra.mxu0 0.0
        %5073 = vmatprep.subr.mxu0 0.0
        %5074 = vmatpush1.msra.mxu0 0.0
        %5075 = vmatprep.subr.mxu0 0.0
        %5076 = vmatpush1.msra.mxu0 0.0
        %5077 = vmatprep.subr.mxu0 0.0
        %5078 = vmatpush1.msra.mxu0 0.0
        %5079 = vmatprep.subr.mxu0 0.0
        %5080 = vmatpush1.msra.mxu0 0.0
        %5081 = vmatprep.subr.mxu0 0.0
        %5082 = vmatpush1.msra.mxu0 0.0
        %5083 = vmatprep.subr.mxu0 0.0
        %5084 = vmatpush1.msra.mxu0 0.0
        %5085 = vmatprep.subr.mxu0 0.0
        %5086 = vmatpush1.msra.mxu0 0.0
        %5087 = vmatprep.subr.mxu0 0.0
        %5088 = vmatpush1.msra.mxu0 %v5057
        %5089 = vmatprep.subr.mxu0 0.0
        %5090 = vmatpush1.msra.mxu0 %v5056
        %5091 = vmatprep.subr.mxu0 0.0
        %5092 = vmatpush1.msra.mxu0 %v5055
        %5093 = vmatprep.subr.mxu0 0.0
        %5094 = vmatpush1.msra.mxu0 %v5054
        %5095 = vmatprep.subr.mxu0 0.0
        %5096 = vmatpush2.msra.mxu0 0.0
        %5097 = vmatprep.subr.mxu0 0.0
        %5098 = vmatpush2.msra.mxu0 0.0
        %5099 = vmatprep.subr.mxu0 0.0
        %5100 = vmatpush2.msra.mxu0 0.0
        %5101 = vmatprep.subr.mxu0 0.0
        %5102 = vmatpush2.msra.mxu0 0.0
        %5103 = vmatprep.subr.mxu0 0.0
        %5104 = vmatpush2.msra.mxu0 0.0
        %5105 = vmatprep.subr.mxu0 0.0
        %5106 = vmatpush2.msra.mxu0 0.0
        %5107 = vmatprep.subr.mxu0 0.0
        %5108 = vmatpush2.msra.mxu0 0.0
        %5109 = vmatprep.subr.mxu0 0.0
        %5110 = vmatpush2.msra.mxu0 0.0
        %5111 = vmatprep.subr.mxu0 0.0
        %5112 = vmatpush2.msra.mxu0 0.0
        %5113 = vmatprep.subr.mxu0 0.0
        %5114 = vmatpush2.msra.mxu0 0.0
        %5115 = vmatprep.subr.mxu0 0.0
        %5116 = vmatpush2.msra.mxu0 0.0
        %5117 = vmatprep.subr.mxu0 0.0
        %5118 = vmatpush2.msra.mxu0 0.0
        %5119 = vmatprep.subr.mxu0 0.0
        %5120 = vmatpush2.msra.mxu0 0.0
        %5121 = vmatprep.subr.mxu0 0.0
        %5122 = vmatpush2.msra.mxu0 0.0
        %5123 = vmatprep.subr.mxu0 0.0
        %5124 = vmatpush2.msra.mxu0 0.0
        %5125 = vmatprep.subr.mxu0 0.0
        %5126 = vmatpush2.msra.mxu0 0.0
        %5127 = vmatprep.mubr.f32.mxu0 0.0
        %5128 = vmatmul.mubr.f32.gmra.mxu0 %v5061
        %v5129 = vpop.f32.mrf.mxu0
        %v5130 = vadd.f32 %v5058, %v5129
        %v5131 = vpop.f32.mrf.mxu0
        %5132 = vdwg.mxu0
        %vm5133 = vcmask 122880
        %5134 = vst.msk [vmem:[%s793] sm:$0x1] %vm5133, %v5130
        %s5135 = sand.u32 %s441, 1
        %s5136 = scalar_lea.sflag [#allocation4], %s5135
        %s5137 = sand.u32 %s441, 1
        %s5138 = scalar_lea.vmem [#allocation16], %s5137
        %s5139 = sand.u32 %s467, 1
        %s5140 = sand.u32 %s467, 1
        %s5141 = smul.addr %s5140, 16
        %s5142 = scalar_lea.vmem [#allocation17], %s5141
        %s5143 = sand.u32 %s493, 1
        %s5144 = sand.u32 %s493, 1
        %s5145 = smul.addr %s5144, 64
        %s5146 = scalar_lea.vmem [#allocation18], %s5145
        %s5147 = sand.u32 %s519, 1
        %s5148 = sand.u32 %s519, 1
        %s5149 = smul.addr %s5148, 64
        %s5150 = scalar_lea.vmem [#allocation19], %s5149
        // Predicated region
        $region125: #{transformer_decoder_forward.1} parent=91 // pred_check
          %p5151 = pneg %p451
        $region126: #{transformer_decoder_forward.1} parent=91 // pred_check_branch
          %5153 = sbr.rel (%p5151) target = $region128
        $region127: #{transformer_decoder_forward.1} parent=91 // pred_region
          %s5155 = ssub.s32 16, 16
          %5156 = vsyncadd %s5136, %s5155
          %s5157 = smul.addr %s45, 16
          %s5158 = scalar_lea.hbm %s18, %s5157
          %s5160 = sshll.u32 %s5138, 4
          %s5161 = int_to_ptr.vmem [resolvable:$true] %s5160
          %5163 = dma.vmem_to_hbm [thread:$0]  %s5161, 16, %s5158, %s5136
        $region128: #{transformer_decoder_forward.1} parent=91 // pred_fallthru
          _
        // Predicated region
        $region129: #{transformer_decoder_forward.1} parent=91 // pred_check
          %p5164 = pneg %p477
        $region130: #{transformer_decoder_forward.1} parent=91 // pred_check_branch
          %5166 = sbr.rel (%p5164) target = $region132
        $region131: #{transformer_decoder_forward.1} parent=91 // pred_region
          %s5167 = smul.addr %s45, 8
          %s5168 = scalar_lea.vmem %s19, %s5167
          // Predicated region
          $region133: #{transformer_decoder_forward.1} parent=131 // pred_check
            _
          $region134: #{transformer_decoder_forward.1} parent=131 // pred_check_branch
            %5170 = sbr.rel (0) target = $region136
          $region135: #{transformer_decoder_forward.1} parent=131 // pred_region
            // Predicated region
            $region137: #{transformer_decoder_forward.1} parent=135 // pred_check
              _
            $region138: #{transformer_decoder_forward.1} parent=135 // pred_check_branch
              %5172 = sbr.rel (0) target = $region140
            $region139: #{transformer_decoder_forward.1} parent=135 // pred_region
              // Predicated region
              $region152: #{transformer_decoder_forward.1} parent=139 // pred_check
                _
              $region153: #{transformer_decoder_forward.1} parent=139 // pred_check_branch
                %5190 = sbr.rel (0) target = $region155
              $region154: #{transformer_decoder_forward.1} parent=139 // pred_region
                loop: start=0, step=1, limit=1
                $region156: #{transformer_decoder_forward.1} parent=154 // loop_pre_header
                  _
                $region157: #{transformer_decoder_forward.1} parent=154 // loop_header
                  %s5192 = sphi 0, %s5196
                  %p5193 = scmp.ge.s32.totalorder %s5192, 1
                  %s5197 = sphi %s5142, %s5142
                  %s5198 = sphi %s5168, %s5168
                $region158: #{transformer_decoder_forward.1} parent=154 // loop_header_branch
                  %5195 = sbr.rel (%p5193) target = $region162
                $region159: #{transformer_decoder_forward.1} parent=154 // loop_body
                  %v5199 = vld [vmem:[%s5197] sm:$0xff]
                  %5200 = vst [vmem:[%s5198] sm:$0xff] %v5199
                  %v5201 = vld [vmem:[%s5197 + $0x8] sm:$0xff]
                  %5202 = vst [vmem:[%s5198 + $0x10] sm:$0xff] %v5201
                $region160: #{transformer_decoder_forward.1} parent=154 // loop_footer
                  %s5196 = sadd.s32 1, %s5192
                $region161: #{transformer_decoder_forward.1} parent=154 // loop_footer_branch
                  %5191 = sbr.rel target = $region157
                $region162: #{transformer_decoder_forward.1} parent=154 // loop_exit
                  _
              $region155: #{transformer_decoder_forward.1} parent=139 // pred_fallthru
                _
              // Predicated region
              $region163: #{transformer_decoder_forward.1} parent=139 // pred_check
                _
              $region164: #{transformer_decoder_forward.1} parent=139 // pred_check_branch
                %5204 = sbr.rel target = $region166
              $region165: #{transformer_decoder_forward.1} parent=139 // pred_region
                _
              $region166: #{transformer_decoder_forward.1} parent=139 // pred_fallthru
                _
            $region140: #{transformer_decoder_forward.1} parent=135 // pred_fallthru
              _
            // Predicated region
            $region141: #{transformer_decoder_forward.1} parent=135 // pred_check
              _
            $region142: #{transformer_decoder_forward.1} parent=135 // pred_check_branch
              %5174 = sbr.rel target = $region144
            $region143: #{transformer_decoder_forward.1} parent=135 // pred_region
              %s5176 = ssub.s32 256, 1
              loop: start=0, step=1, limit=1
              $region145: #{transformer_decoder_forward.1} parent=143 // loop_pre_header
                _
              $region146: #{transformer_decoder_forward.1} parent=143 // loop_header
                %s5178 = sphi 0, %s5182
                %p5179 = scmp.ge.s32.totalorder %s5178, 1
                %s5183 = sphi %s5142, %s5142
                %s5184 = sphi %s5168, %s5168
              $region147: #{transformer_decoder_forward.1} parent=143 // loop_header_branch
                %5181 = sbr.rel (%p5179) target = $region151
              $region148: #{transformer_decoder_forward.1} parent=143 // loop_body
                %v5185 = vld [vmem:[%s5183] sm:%s5176]
                %5186 = vst [vmem:[%s5184] sm:%s5176] %v5185
                %v5187 = vld [vmem:[%s5183 + $0x8] sm:%s5176]
                %5188 = vst [vmem:[%s5184 + $0x10] sm:%s5176] %v5187
              $region149: #{transformer_decoder_forward.1} parent=143 // loop_footer
                %s5182 = sadd.s32 1, %s5178
              $region150: #{transformer_decoder_forward.1} parent=143 // loop_footer_branch
                %5177 = sbr.rel target = $region146
              $region151: #{transformer_decoder_forward.1} parent=143 // loop_exit
                _
            $region144: #{transformer_decoder_forward.1} parent=135 // pred_fallthru
              _
          $region136: #{transformer_decoder_forward.1} parent=131 // pred_fallthru
            _
          %5205 = vnop
        $region132: #{transformer_decoder_forward.1} parent=91 // pred_fallthru
          _
        // Predicated region
        $region167: #{transformer_decoder_forward.1} parent=91 // pred_check
          %p5206 = pneg %p503
        $region168: #{transformer_decoder_forward.1} parent=91 // pred_check_branch
          %5208 = sbr.rel (%p5206) target = $region170
        $region169: #{transformer_decoder_forward.1} parent=91 // pred_region
          %s5209 = smul.u32 4, %s45
          %s5210 = smul.addr %s5209, 8
          %s5211 = scalar_lea.vmem %s20, %s5210
          // Predicated region
          $region171: #{transformer_decoder_forward.1} parent=169 // pred_check
            _
          $region172: #{transformer_decoder_forward.1} parent=169 // pred_check_branch
            %5213 = sbr.rel (0) target = $region174
          $region173: #{transformer_decoder_forward.1} parent=169 // pred_region
            // Predicated region
            $region175: #{transformer_decoder_forward.1} parent=173 // pred_check
              _
            $region176: #{transformer_decoder_forward.1} parent=173 // pred_check_branch
              %5215 = sbr.rel (0) target = $region178
            $region177: #{transformer_decoder_forward.1} parent=173 // pred_region
              // Predicated region
              $region190: #{transformer_decoder_forward.1} parent=177 // pred_check
                _
              $region191: #{transformer_decoder_forward.1} parent=177 // pred_check_branch
                %5245 = sbr.rel (0) target = $region193
              $region192: #{transformer_decoder_forward.1} parent=177 // pred_region
                loop: start=0, step=1, limit=1
                $region194: #{transformer_decoder_forward.1} parent=192 // loop_pre_header
                  _
                $region195: #{transformer_decoder_forward.1} parent=192 // loop_header
                  %s5247 = sphi 0, %s5251
                  %p5248 = scmp.ge.s32.totalorder %s5247, 1
                  %s5252 = sphi %s5146, %s5146
                  %s5253 = sphi %s5211, %s5211
                $region196: #{transformer_decoder_forward.1} parent=192 // loop_header_branch
                  %5250 = sbr.rel (%p5248) target = $region200
                $region197: #{transformer_decoder_forward.1} parent=192 // loop_body
                  %v5254 = vld [vmem:[%s5252] sm:$0xff]
                  %5255 = vst [vmem:[%s5253] sm:$0xff] %v5254
                  %v5256 = vld [vmem:[%s5252 + $0x8] sm:$0xff]
                  %5257 = vst [vmem:[%s5253 + $0x8] sm:$0xff] %v5256
                  %v5258 = vld [vmem:[%s5252 + $0x10] sm:$0xff]
                  %5259 = vst [vmem:[%s5253 + $0x10] sm:$0xff] %v5258
                  %v5260 = vld [vmem:[%s5252 + $0x18] sm:$0xff]
                  %5261 = vst [vmem:[%s5253 + $0x18] sm:$0xff] %v5260
                  %v5262 = vld [vmem:[%s5252 + $0x20] sm:$0xff]
                  %5263 = vst [vmem:[%s5253 + $0x40] sm:$0xff] %v5262
                  %v5264 = vld [vmem:[%s5252 + $0x28] sm:$0xff]
                  %5265 = vst [vmem:[%s5253 + $0x48] sm:$0xff] %v5264
                  %v5266 = vld [vmem:[%s5252 + $0x30] sm:$0xff]
                  %5267 = vst [vmem:[%s5253 + $0x50] sm:$0xff] %v5266
                  %v5268 = vld [vmem:[%s5252 + $0x38] sm:$0xff]
                  %5269 = vst [vmem:[%s5253 + $0x58] sm:$0xff] %v5268
                $region198: #{transformer_decoder_forward.1} parent=192 // loop_footer
                  %s5251 = sadd.s32 1, %s5247
                $region199: #{transformer_decoder_forward.1} parent=192 // loop_footer_branch
                  %5246 = sbr.rel target = $region195
                $region200: #{transformer_decoder_forward.1} parent=192 // loop_exit
                  _
              $region193: #{transformer_decoder_forward.1} parent=177 // pred_fallthru
                _
              // Predicated region
              $region201: #{transformer_decoder_forward.1} parent=177 // pred_check
                _
              $region202: #{transformer_decoder_forward.1} parent=177 // pred_check_branch
                %5271 = sbr.rel target = $region204
              $region203: #{transformer_decoder_forward.1} parent=177 // pred_region
                _
              $region204: #{transformer_decoder_forward.1} parent=177 // pred_fallthru
                _
            $region178: #{transformer_decoder_forward.1} parent=173 // pred_fallthru
              _
            // Predicated region
            $region179: #{transformer_decoder_forward.1} parent=173 // pred_check
              _
            $region180: #{transformer_decoder_forward.1} parent=173 // pred_check_branch
              %5217 = sbr.rel target = $region182
            $region181: #{transformer_decoder_forward.1} parent=173 // pred_region
              %s5219 = ssub.s32 256, 1
              loop: start=0, step=1, limit=1
              $region183: #{transformer_decoder_forward.1} parent=181 // loop_pre_header
                _
              $region184: #{transformer_decoder_forward.1} parent=181 // loop_header
                %s5221 = sphi 0, %s5225
                %p5222 = scmp.ge.s32.totalorder %s5221, 1
                %s5226 = sphi %s5146, %s5146
                %s5227 = sphi %s5211, %s5211
              $region185: #{transformer_decoder_forward.1} parent=181 // loop_header_branch
                %5224 = sbr.rel (%p5222) target = $region189
              $region186: #{transformer_decoder_forward.1} parent=181 // loop_body
                %v5228 = vld [vmem:[%s5226] sm:%s5219]
                %5229 = vst [vmem:[%s5227] sm:%s5219] %v5228
                %v5230 = vld [vmem:[%s5226 + $0x8] sm:%s5219]
                %5231 = vst [vmem:[%s5227 + $0x8] sm:%s5219] %v5230
                %v5232 = vld [vmem:[%s5226 + $0x10] sm:%s5219]
                %5233 = vst [vmem:[%s5227 + $0x10] sm:%s5219] %v5232
                %v5234 = vld [vmem:[%s5226 + $0x18] sm:%s5219]
                %5235 = vst [vmem:[%s5227 + $0x18] sm:%s5219] %v5234
                %v5236 = vld [vmem:[%s5226 + $0x20] sm:%s5219]
                %5237 = vst [vmem:[%s5227 + $0x40] sm:%s5219] %v5236
                %v5238 = vld [vmem:[%s5226 + $0x28] sm:%s5219]
                %5239 = vst [vmem:[%s5227 + $0x48] sm:%s5219] %v5238
                %v5240 = vld [vmem:[%s5226 + $0x30] sm:%s5219]
                %5241 = vst [vmem:[%s5227 + $0x50] sm:%s5219] %v5240
                %v5242 = vld [vmem:[%s5226 + $0x38] sm:%s5219]
                %5243 = vst [vmem:[%s5227 + $0x58] sm:%s5219] %v5242
              $region187: #{transformer_decoder_forward.1} parent=181 // loop_footer
                %s5225 = sadd.s32 1, %s5221
              $region188: #{transformer_decoder_forward.1} parent=181 // loop_footer_branch
                %5220 = sbr.rel target = $region184
              $region189: #{transformer_decoder_forward.1} parent=181 // loop_exit
                _
            $region182: #{transformer_decoder_forward.1} parent=173 // pred_fallthru
              _
          $region174: #{transformer_decoder_forward.1} parent=169 // pred_fallthru
            _
          %5272 = vnop
        $region170: #{transformer_decoder_forward.1} parent=91 // pred_fallthru
          _
        // Predicated region
        $region205: #{transformer_decoder_forward.1} parent=91 // pred_check
          %p5273 = pneg %p529
        $region206: #{transformer_decoder_forward.1} parent=91 // pred_check_branch
          %5275 = sbr.rel (%p5273) target = $region208
        $region207: #{transformer_decoder_forward.1} parent=91 // pred_region
          %s5276 = smul.u32 4, %s45
          %s5277 = smul.addr %s5276, 8
          %s5278 = scalar_lea.vmem %s21, %s5277
          // Predicated region
          $region209: #{transformer_decoder_forward.1} parent=207 // pred_check
            _
          $region210: #{transformer_decoder_forward.1} parent=207 // pred_check_branch
            %5280 = sbr.rel (0) target = $region212
          $region211: #{transformer_decoder_forward.1} parent=207 // pred_region
            // Predicated region
            $region213: #{transformer_decoder_forward.1} parent=211 // pred_check
              _
            $region214: #{transformer_decoder_forward.1} parent=211 // pred_check_branch
              %5282 = sbr.rel (0) target = $region216
            $region215: #{transformer_decoder_forward.1} parent=211 // pred_region
              // Predicated region
              $region228: #{transformer_decoder_forward.1} parent=215 // pred_check
                _
              $region229: #{transformer_decoder_forward.1} parent=215 // pred_check_branch
                %5312 = sbr.rel (0) target = $region231
              $region230: #{transformer_decoder_forward.1} parent=215 // pred_region
                loop: start=0, step=1, limit=1
                $region232: #{transformer_decoder_forward.1} parent=230 // loop_pre_header
                  _
                $region233: #{transformer_decoder_forward.1} parent=230 // loop_header
                  %s5314 = sphi 0, %s5318
                  %p5315 = scmp.ge.s32.totalorder %s5314, 1
                  %s5319 = sphi %s5150, %s5150
                  %s5320 = sphi %s5278, %s5278
                $region234: #{transformer_decoder_forward.1} parent=230 // loop_header_branch
                  %5317 = sbr.rel (%p5315) target = $region238
                $region235: #{transformer_decoder_forward.1} parent=230 // loop_body
                  %v5321 = vld [vmem:[%s5319] sm:$0xff]
                  %5322 = vst [vmem:[%s5320] sm:$0xff] %v5321
                  %v5323 = vld [vmem:[%s5319 + $0x8] sm:$0xff]
                  %5324 = vst [vmem:[%s5320 + $0x8] sm:$0xff] %v5323
                  %v5325 = vld [vmem:[%s5319 + $0x10] sm:$0xff]
                  %5326 = vst [vmem:[%s5320 + $0x10] sm:$0xff] %v5325
                  %v5327 = vld [vmem:[%s5319 + $0x18] sm:$0xff]
                  %5328 = vst [vmem:[%s5320 + $0x18] sm:$0xff] %v5327
                  %v5329 = vld [vmem:[%s5319 + $0x20] sm:$0xff]
                  %5330 = vst [vmem:[%s5320 + $0x40] sm:$0xff] %v5329
                  %v5331 = vld [vmem:[%s5319 + $0x28] sm:$0xff]
                  %5332 = vst [vmem:[%s5320 + $0x48] sm:$0xff] %v5331
                  %v5333 = vld [vmem:[%s5319 + $0x30] sm:$0xff]
                  %5334 = vst [vmem:[%s5320 + $0x50] sm:$0xff] %v5333
                  %v5335 = vld [vmem:[%s5319 + $0x38] sm:$0xff]
                  %5336 = vst [vmem:[%s5320 + $0x58] sm:$0xff] %v5335
                $region236: #{transformer_decoder_forward.1} parent=230 // loop_footer
                  %s5318 = sadd.s32 1, %s5314
                $region237: #{transformer_decoder_forward.1} parent=230 // loop_footer_branch
                  %5313 = sbr.rel target = $region233
                $region238: #{transformer_decoder_forward.1} parent=230 // loop_exit
                  _
              $region231: #{transformer_decoder_forward.1} parent=215 // pred_fallthru
                _
              // Predicated region
              $region239: #{transformer_decoder_forward.1} parent=215 // pred_check
                _
              $region240: #{transformer_decoder_forward.1} parent=215 // pred_check_branch
                %5338 = sbr.rel target = $region242
              $region241: #{transformer_decoder_forward.1} parent=215 // pred_region
                _
              $region242: #{transformer_decoder_forward.1} parent=215 // pred_fallthru
                _
            $region216: #{transformer_decoder_forward.1} parent=211 // pred_fallthru
              _
            // Predicated region
            $region217: #{transformer_decoder_forward.1} parent=211 // pred_check
              _
            $region218: #{transformer_decoder_forward.1} parent=211 // pred_check_branch
              %5284 = sbr.rel target = $region220
            $region219: #{transformer_decoder_forward.1} parent=211 // pred_region
              %s5286 = ssub.s32 256, 1
              loop: start=0, step=1, limit=1
              $region221: #{transformer_decoder_forward.1} parent=219 // loop_pre_header
                _
              $region222: #{transformer_decoder_forward.1} parent=219 // loop_header
                %s5288 = sphi 0, %s5292
                %p5289 = scmp.ge.s32.totalorder %s5288, 1
                %s5293 = sphi %s5150, %s5150
                %s5294 = sphi %s5278, %s5278
              $region223: #{transformer_decoder_forward.1} parent=219 // loop_header_branch
                %5291 = sbr.rel (%p5289) target = $region227
              $region224: #{transformer_decoder_forward.1} parent=219 // loop_body
                %v5295 = vld [vmem:[%s5293] sm:%s5286]
                %5296 = vst [vmem:[%s5294] sm:%s5286] %v5295
                %v5297 = vld [vmem:[%s5293 + $0x8] sm:%s5286]
                %5298 = vst [vmem:[%s5294 + $0x8] sm:%s5286] %v5297
                %v5299 = vld [vmem:[%s5293 + $0x10] sm:%s5286]
                %5300 = vst [vmem:[%s5294 + $0x10] sm:%s5286] %v5299
                %v5301 = vld [vmem:[%s5293 + $0x18] sm:%s5286]
                %5302 = vst [vmem:[%s5294 + $0x18] sm:%s5286] %v5301
                %v5303 = vld [vmem:[%s5293 + $0x20] sm:%s5286]
                %5304 = vst [vmem:[%s5294 + $0x40] sm:%s5286] %v5303
                %v5305 = vld [vmem:[%s5293 + $0x28] sm:%s5286]
                %5306 = vst [vmem:[%s5294 + $0x48] sm:%s5286] %v5305
                %v5307 = vld [vmem:[%s5293 + $0x30] sm:%s5286]
                %5308 = vst [vmem:[%s5294 + $0x50] sm:%s5286] %v5307
                %v5309 = vld [vmem:[%s5293 + $0x38] sm:%s5286]
                %5310 = vst [vmem:[%s5294 + $0x58] sm:%s5286] %v5309
              $region225: #{transformer_decoder_forward.1} parent=219 // loop_footer
                %s5292 = sadd.s32 1, %s5288
              $region226: #{transformer_decoder_forward.1} parent=219 // loop_footer_branch
                %5287 = sbr.rel target = $region222
              $region227: #{transformer_decoder_forward.1} parent=219 // loop_exit
                _
            $region220: #{transformer_decoder_forward.1} parent=211 // pred_fallthru
              _
          $region212: #{transformer_decoder_forward.1} parent=207 // pred_fallthru
            _
          %5339 = vnop
        $region208: #{transformer_decoder_forward.1} parent=91 // pred_fallthru
          _
      $region92: #{transformer_decoder_forward.1} parent=5 // pred_fallthru
        _
      %p5340 = scmp.le.s32.totalorder 2, %s40
      // Predicated region
      $region243: #{transformer_decoder_forward.1} parent=5 // pred_check
        %p5341 = pneg %p5340
      $region244: #{transformer_decoder_forward.1} parent=5 // pred_check_branch
        %5343 = sbr.rel (%p5341) target = $region246
      $region245: #{transformer_decoder_forward.1} parent=5 // pred_region
        %s5344 = ssub.s32 %s40, 2
        // Predicated region
        $region247: #{transformer_decoder_forward.1} parent=245 // pred_check
          %p5345 = pneg %p457
        $region248: #{transformer_decoder_forward.1} parent=245 // pred_check_branch
          %5347 = sbr.rel (%p5345) target = $region250
        $region249: #{transformer_decoder_forward.1} parent=245 // pred_region
          %s5348 = sand.u32 %s442, 1
          %s5349 = scalar_lea.sflag [#allocation4], %s5348
          %s5350 = sand.u32 %s442, 1
          %s5351 = scalar_lea.vmem [#allocation16], %s5350
          %5352 = dma.done %s5349, 16
        $region250: #{transformer_decoder_forward.1} parent=245 // pred_fallthru
          _
        // Predicated region
        $region251: #{transformer_decoder_forward.1} parent=245 // pred_check
          %p5353 = pneg %p483
        $region252: #{transformer_decoder_forward.1} parent=245 // pred_check_branch
          %5355 = sbr.rel (%p5353) target = $region254
        $region253: #{transformer_decoder_forward.1} parent=245 // pred_region
          %s5356 = sand.u32 %s468, 1
          %s5357 = sand.u32 %s468, 1
          %s5358 = smul.addr %s5357, 16
          %s5359 = scalar_lea.vmem [#allocation17], %s5358
        $region254: #{transformer_decoder_forward.1} parent=245 // pred_fallthru
          _
        // Predicated region
        $region255: #{transformer_decoder_forward.1} parent=245 // pred_check
          %p5360 = pneg %p509
        $region256: #{transformer_decoder_forward.1} parent=245 // pred_check_branch
          %5362 = sbr.rel (%p5360) target = $region258
        $region257: #{transformer_decoder_forward.1} parent=245 // pred_region
          %s5363 = sand.u32 %s494, 1
          %s5364 = sand.u32 %s494, 1
          %s5365 = smul.addr %s5364, 64
          %s5366 = scalar_lea.vmem [#allocation18], %s5365
        $region258: #{transformer_decoder_forward.1} parent=245 // pred_fallthru
          _
        // Predicated region
        $region259: #{transformer_decoder_forward.1} parent=245 // pred_check
          %p5367 = pneg %p535
        $region260: #{transformer_decoder_forward.1} parent=245 // pred_check_branch
          %5369 = sbr.rel (%p5367) target = $region262
        $region261: #{transformer_decoder_forward.1} parent=245 // pred_region
          %s5370 = sand.u32 %s520, 1
          %s5371 = sand.u32 %s520, 1
          %s5372 = smul.addr %s5371, 64
          %s5373 = scalar_lea.vmem [#allocation19], %s5372
        $region262: #{transformer_decoder_forward.1} parent=245 // pred_fallthru
          _
      $region246: #{transformer_decoder_forward.1} parent=5 // pred_fallthru
        _
    $region6: #{transformer_decoder_forward.1} parent=1 // loop_footer
      %s44 = sadd.s32 1, %s40
    $region7: #{transformer_decoder_forward.1} parent=1 // loop_footer_branch
      %39 = sbr.rel target = $region3
    $region8: #{transformer_decoder_forward.1} parent=1 // loop_exit
      _
    %5374 = vsyncpa [#allocation3], 1
    %s5375 = scalar_lea.sflag [#allocation3], 1
    %5376 = vsyncpa %s5375, 1
    %5377 = vsyncpa [#allocation6], 1
    %s5378 = scalar_lea.sflag [#allocation6], 1
    %5379 = vsyncpa %s5378, 1
    %5380 = vsyncpa [#allocation9], 1
    %5381 = vsyncpa [#allocation12], 1
    %5382 = vsyncpa [#allocation15], 1
    %5383 = vsyncpa [#allocation4], 1
    %s5384 = scalar_lea.sflag [#allocation4], 1
    %5385 = vsyncpa %s5384, 1

</llo_original>
